<compile_context>
chip_gen: v6e
topology: v6e:2x2x1
jax: 0.10.0
libtpu: 0.0.40
codegen_flags: <defaults>
</compile_context>

<pallas_src>
import math

import jax
import jax.numpy as jnp
from jax import lax
from jax.experimental import pallas as pl
from jax.experimental.pallas import tpu as pltpu


# --------------------------------------------------------------------------
# Fused kernel factory: 4 stacked BiLSTM layers + attention + FC,
# one batch block (bb rows, t-major / batch-minor) per grid step.
# --------------------------------------------------------------------------
def _make_fused_kernel(T, bb, hidden_sizes):
    n_layers = len(hidden_sizes)
    R = T * bb  # rows per block; row index = t * bb + local_batch

    def kernel(*args):
        idx = 0
        x_ref = args[idx]; idx += 1                      # (R, D0)
        layer_w = []
        for _ in range(n_layers):                        # w_in, b_in, w_rec
            layer_w.append(args[idx:idx + 3]); idx += 3
        (wq_ref, bq_ref, wk_ref, bk_ref,
         wv_ref, bv_ref, wfc_ref, bfc_ref) = args[idx:idx + 8]; idx += 8
        out_ref = args[idx]; idx += 1                    # (1, R)
        gx_refs = args[idx:idx + n_layers]               # VMEM scratch per layer

        f32 = jnp.float32

        def project(pieces, w_ref, b_ref):
            # sum_i pieces[i] @ w_ref[row-range_i, :] + b  (column-split matmul,
            # so fwd / bwd halves never need a lane concatenation).
            off = pieces[0].shape[1]
            acc = jnp.dot(pieces[0], w_ref[0:off, :], preferred_element_type=f32)
            for p in pieces[1:]:
                d = p.shape[1]
                acc = acc + jnp.dot(p, w_ref[off:off + d, :],
                                    preferred_element_type=f32)
                off += d
            return acc + b_ref[...]

        # ---- stacked BiLSTM layers (activations stay in vregs) ----
        pieces = [x_ref[...]]                            # layer-0 input (R, D0)
        for l in range(n_layers):
            H = hidden_sizes[l]
            H4, H8 = 4 * H, 8 * H
            w_in_ref, b_in_ref, w_rec_ref = layer_w[l]
            gx_ref = gx_refs[l]

            # (a) hoisted input projection: all gates / directions / timesteps.
            gx_ref[...] = project(pieces, w_in_ref, b_in_ref)        # (R, 8H)

            # (b) serial recurrence: fwd at t and bwd at T-1-t each step.
            w_rec_f = w_rec_ref[0:H, :]                  # (H, 8H) = [Whh_f | 0]
            w_rec_b = w_rec_ref[H:2 * H, :]              # (H, 8H) = [0 | Whh_b]
            lane = lax.broadcasted_iota(jnp.int32, (bb, H8), 1)
            fwd_lane = lane < H4
            h_f = jnp.zeros((bb, H), f32)
            h_b = jnp.zeros((bb, H), f32)
            c_f = jnp.zeros((bb, H), f32)
            c_b = jnp.zeros((bb, H), f32)
            fwd_h = [None] * T
            bwd_h = [None] * T
            for t in range(T):                           # fully unrolled (T small)
                tb = T - 1 - t
                rec = (jnp.dot(h_f, w_rec_f, preferred_element_type=f32)
                       + jnp.dot(h_b, w_rec_b, preferred_element_type=f32))
                g_f = gx_ref[t * bb:(t + 1) * bb, :]     # aligned (bb, 8H) vld
                g_b = gx_ref[tb * bb:(tb + 1) * bb, :]
                pre = rec + jnp.where(fwd_lane, g_f, g_b)
                sig = jax.nn.sigmoid(pre)                # i / f / o lanes
                th = jnp.tanh(pre)                       # g lanes
                i_f = sig[:, 0:H]
                f_gate_f = sig[:, H:2 * H]
                g_gate_f = th[:, 2 * H:3 * H]
                o_f = sig[:, 3 * H:4 * H]
                i_b = sig[:, H4:H4 + H]
                f_gate_b = sig[:, H4 + H:H4 + 2 * H]
                g_gate_b = th[:, H4 + 2 * H:H4 + 3 * H]
                o_b = sig[:, H4 + 3 * H:H8]
                c_f = f_gate_f * c_f + i_f * g_gate_f
                c_b = f_gate_b * c_b + i_b * g_gate_b
                h_f = o_f * jnp.tanh(c_f)
                h_b = o_b * jnp.tanh(c_b)
                fwd_h[t] = h_f
                bwd_h[tb] = h_b
            # (c) layer output: sublane-aligned stacks, no memory round-trip.
            pieces = [jnp.concatenate(fwd_h, axis=0),    # (R, H) fwd features
                      jnp.concatenate(bwd_h, axis=0)]    # (R, H) bwd features

        # ---- attention (batch rows masked apart) + final FC ----
        q = project(pieces, wq_ref, bq_ref)              # 1/sqrt(A) folded in
        k = project(pieces, wk_ref, bk_ref)
        v = project(pieces, wv_ref, bv_ref)
        scores = lax.dot_general(q, k, (((1,), (1,)), ((), ())),
                                 preferred_element_type=f32)         # (R, R)
        row = lax.broadcasted_iota(jnp.int32, (R, R), 0)
        col = lax.broadcasted_iota(jnp.int32, (R, R), 1)
        scores = jnp.where((row % bb) == (col % bb), scores, -1e30)
        scores = scores - jnp.max(scores, axis=-1, keepdims=True)
        e = jnp.exp(scores)
        attn = e * pl.reciprocal(jnp.sum(e, axis=-1, keepdims=True), approx=True)
        ctx = jnp.dot(attn, v, preferred_element_type=f32)           # (R, A)
        # dropout is identity at inference; fc emitted lane-dense as (1, R).
        out = lax.dot_general(wfc_ref[...], ctx, (((1,), (1,)), ((), ())),
                              preferred_element_type=f32) + bfc_ref[...]
        out_ref[...] = out

    return kernel


def fused_forward(x, lstm_layers, wq, bq, wk, bk, wv, bv, wfc_t, bfc):
    # x: (B, T, D0) float32
    B, T, D0 = x.shape
    bb = 8                                    # batch rows per block (sublanes)
    B_pad = ((B + bb - 1) // bb) * bb
    nb = B_pad // bb
    if B_pad != B:
        x = jnp.concatenate(
            [x, jnp.zeros((B_pad - B, T, D0), x.dtype)], axis=0)
    # (B_pad, T, D0) -> (nb, T*bb, D0) with row index t*bb + local_batch.
    x_k = x.reshape(nb, bb, T, D0).transpose(0, 2, 1, 3).reshape(nb, T * bb, D0)

    hidden_sizes = [p["w_rec"].shape[0] // 2 for p in lstm_layers]
    kernel = _make_fused_kernel(T, bb, hidden_sizes)

    def const_spec(a):
        nd = a.ndim
        return pl.BlockSpec(a.shape, lambda i, _nd=nd: (0,) * _nd)

    flat_weights = []
    in_specs = [pl.BlockSpec((None, T * bb, D0), lambda i: (i, 0, 0))]
    for p in lstm_layers:
        for name in ("w_in", "b_in", "w_rec"):
            flat_weights.append(p[name])
            in_specs.append(const_spec(p[name]))
    for w in (wq, bq, wk, bk, wv, bv, wfc_t, bfc):
        flat_weights.append(w)
        in_specs.append(const_spec(w))

    scratch_shapes = [pltpu.VMEM((T * bb, 8 * H_l), jnp.float32)
                      for H_l in hidden_sizes]

    out = pl.pallas_call(
        kernel,
        out_shape=jax.ShapeDtypeStruct((nb, 1, T * bb), jnp.float32),
        grid=(nb,),
        in_specs=in_specs,
        out_specs=pl.BlockSpec((None, 1, T * bb), lambda i: (i, 0, 0)),
        scratch_shapes=scratch_shapes,
        compiler_params=pltpu.CompilerParams(
            dimension_semantics=("parallel",),
            vmem_limit_bytes=32 * 1024 * 1024),
    )(x_k, *flat_weights)

    # (nb, 1, T*bb) -> (B, T, 1)
    y = out.reshape(nb, T, bb).transpose(0, 2, 1).reshape(B_pad, T)[:B]
    return y[..., None]


# --------------------------------------------------------------------------
# Deterministic parameter construction (packed layout) + full forward pass.
# --------------------------------------------------------------------------
def _init(key, shape, scale=0.1):
    return scale * jax.random.normal(key, shape, dtype=jnp.float32)


def make_lstm_params(key, D, H):
    # Packed layout: lanes = [fwd(i,f,g,o) | bwd(i,f,g,o)], bias = b_ih + b_hh.
    ks = jax.random.split(key, 6)
    wih_f = _init(ks[0], (D, 4 * H))
    whh_f = _init(ks[1], (H, 4 * H))
    b_f = _init(ks[2], (1, 4 * H))
    wih_b = _init(ks[3], (D, 4 * H))
    whh_b = _init(ks[4], (H, 4 * H))
    b_b = _init(ks[5], (1, 4 * H))
    w_rec = jnp.zeros((2 * H, 8 * H), jnp.float32)
    w_rec = w_rec.at[:H, :4 * H].set(whh_f).at[H:, 4 * H:].set(whh_b)
    return {
        "w_in": jnp.concatenate([wih_f, wih_b], axis=1),   # (D, 8H)
        "b_in": jnp.concatenate([b_f, b_b], axis=1),       # (1, 8H)
        "w_rec": w_rec,                                     # (2H, 8H) block-diag
    }


def make_params(key, feature_dim, num_stocks, num_group, num_day, num_month, cfg):
    ks = jax.random.split(key, 16)
    e_s, e_g, e_d, e_m = (cfg["embedding_dim_stock"], cfg["embedding_dim_group"],
                          cfg["embedding_dim_day"], cfg["embedding_dim_month"])
    input_dim = e_s + e_g + e_d + e_m + feature_dim
    A = cfg["attent_hidden_size"]
    F3 = cfg["third_layer_hidden_size"] * 2
    lstm_layers = [
        make_lstm_params(ks[4], input_dim, cfg["hidden_bilstm"]),
        make_lstm_params(ks[5], cfg["hidden_bilstm"] * 2,
                         cfg["first_layer_hidden_size"]),
        make_lstm_params(ks[6], cfg["first_layer_hidden_size"] * 2,
                         cfg["second_layer_hidden_size"]),
        make_lstm_params(ks[7], cfg["second_layer_hidden_size"] * 2,
                         cfg["third_layer_hidden_size"]),
    ]
    return {
        "emb_stock": _init(ks[0], (num_stocks, e_s)),
        "emb_group": _init(ks[1], (num_group, e_g)),
        "emb_day":   _init(ks[2], (num_day, e_d)),
        "emb_month": _init(ks[3], (num_month, e_m)),
        "lstm_layers": lstm_layers,
        "wq": _init(ks[8], (F3, A)),  "bq": _init(ks[9], (1, A)),
        "wk": _init(ks[10], (F3, A)), "bk": _init(ks[11], (1, A)),
        "wv": _init(ks[12], (F3, A)), "bv": _init(ks[13], (1, A)),
        "wfc": _init(ks[14], (A, 1)), "bfc": _init(ks[15], (1, 1)),
    }


def forward(params, stock_name, group_name, day_name, month_name, feature):
    # embedding lookups + concat along feature dim (wrapper glue)
    stock_emb = jnp.take(params["emb_stock"], stock_name, axis=0)
    group_emb = jnp.take(params["emb_group"], group_name, axis=0)
    month_emb = jnp.take(params["emb_month"], month_name, axis=0)
    day_emb = jnp.take(params["emb_day"], day_name, axis=0)
    x = jnp.concatenate([stock_emb, group_emb, day_emb, month_emb, feature],
                        axis=2)                                     # (B, T, D0)

    # Fold the attention 1/sqrt(A) scale into the query projection.
    A = params["wq"].shape[1]
    scale = 1.0 / math.sqrt(A)
    wq = params["wq"] * scale
    bq = params["bq"] * scale
    wfc_t = params["wfc"].T                                         # (1, A)

    fc_out = fused_forward(x, params["lstm_layers"], wq, bq,
                           params["wk"], params["bk"],
                           params["wv"], params["bv"],
                           wfc_t, params["bfc"])                    # (B, T, 1)
    # PyTorch's context_vector.squeeze(1) only squeezes when seq_len == 1.
    if fc_out.shape[1] == 1:
        fc_out = jnp.squeeze(fc_out, axis=1)
    # TODO(synk): nn.Dropout RNG path not implemented (identity, eval semantics).
    return fc_out


# --------------------------------------------------------------------------
# Pure-JAX reference (for a numerics check in __main__).
# --------------------------------------------------------------------------
def _ref_forward(params, stock_name, group_name, day_name, month_name, feature):
    stock_emb = jnp.take(params["emb_stock"], stock_name, axis=0)
    group_emb = jnp.take(params["emb_group"], group_name, axis=0)
    month_emb = jnp.take(params["emb_month"], month_name, axis=0)
    day_emb = jnp.take(params["emb_day"], day_name, axis=0)
    x = jnp.concatenate([stock_emb, group_emb, day_emb, month_emb, feature],
                        axis=2)

    def lstm_dir(xs, wih, whh, b, reverse):
        Bb, T, _ = xs.shape
        H = whh.shape[0]
        h = jnp.zeros((Bb, H), jnp.float32)
        c = jnp.zeros((Bb, H), jnp.float32)
        outs = [None] * T
        order = range(T - 1, -1, -1) if reverse else range(T)
        for t in order:
            pre = xs[:, t, :] @ wih + h @ whh + b
            i = jax.nn.sigmoid(pre[:, :H])
            f = jax.nn.sigmoid(pre[:, H:2 * H])
            g = jnp.tanh(pre[:, 2 * H:3 * H])
            o = jax.nn.sigmoid(pre[:, 3 * H:4 * H])
            c = f * c + i * g
            h = o * jnp.tanh(c)
            outs[t] = h
        return jnp.stack(outs, axis=1)

    for p in params["lstm_layers"]:
        H = p["w_rec"].shape[0] // 2
        w_in, b_in, w_rec = p["w_in"], p["b_in"], p["w_rec"]
        fwd = lstm_dir(x, w_in[:, :4 * H], w_rec[:H, :4 * H],
                       b_in[:, :4 * H], False)
        bwd = lstm_dir(x, w_in[:, 4 * H:], w_rec[H:, 4 * H:],
                       b_in[:, 4 * H:], True)
        x = jnp.concatenate([fwd, bwd], axis=2)

    A = params["wq"].shape[1]
    q = x @ params["wq"] + params["bq"]
    k = x @ params["wk"] + params["bk"]
    v = x @ params["wv"] + params["bv"]
    scores = jnp.einsum("btd,bsd->bts", q, k) / math.sqrt(A)
    attn = jax.nn.softmax(scores, axis=-1)
    ctx = jnp.einsum("bts,bsd->btd", attn, v)
    if ctx.shape[1] == 1:
        ctx = jnp.squeeze(ctx, axis=1)
    return ctx @ params["wfc"] + params["bfc"]


if __name__ == "__main__":
    B, T = 2, 8
    feature_dim = 8
    num_stocks, num_group, num_day, num_month = 10, 5, 31, 12
    cfg = dict(embedding_dim_stock=4, embedding_dim_group=4, embedding_dim_day=4,
               embedding_dim_month=4, hidden_bilstm=16, first_layer_hidden_size=16,
               second_layer_hidden_size=16, third_layer_hidden_size=16,
               attent_hidden_size=32, dropout=0.1)

    root = jax.random.PRNGKey(0)
    k_params, k_s, k_g, k_d, k_m, k_f = jax.random.split(root, 6)
    params = make_params(k_params, feature_dim, num_stocks, num_group,
                         num_day, num_month, cfg)

    stock_name = jax.random.randint(k_s, (B, T), 0, num_stocks, dtype=jnp.int32)
    group_name = jax.random.randint(k_g, (B, T), 0, num_group, dtype=jnp.int32)
    day_name = jax.random.randint(k_d, (B, T), 0, num_day, dtype=jnp.int32)
    month_name = jax.random.randint(k_m, (B, T), 0, num_month, dtype=jnp.int32)
    feature = jax.random.normal(k_f, (B, T, feature_dim), dtype=jnp.float32)

    fwd = jax.jit(forward)
    out = fwd(params, stock_name, group_name, day_name, month_name, feature)
    out = jax.block_until_ready(out)
    assert out.shape == (B, T, 1), out.shape
    assert bool(jnp.all(jnp.isfinite(out)))

    ref = _ref_forward(params, stock_name, group_name, day_name, month_name,
                       feature)
    assert bool(jnp.allclose(out, ref, atol=5e-3, rtol=5e-3)), (
        float(jnp.max(jnp.abs(out - ref))))
    print("KERNEL_OK")
</pallas_src>

<mosaic_0001>
module attributes {stable_mosaic.version = 11 : i64} {
  func.func @kernel(%arg0: i32, %arg1: memref<1x64x24xf32, #tpu.memory_space<vmem>>, %arg2: memref<24x128xf32, #tpu.memory_space<vmem>>, %arg3: memref<1x128xf32, #tpu.memory_space<vmem>>, %arg4: memref<32x128xf32, #tpu.memory_space<vmem>>, %arg5: memref<32x128xf32, #tpu.memory_space<vmem>>, %arg6: memref<1x128xf32, #tpu.memory_space<vmem>>, %arg7: memref<32x128xf32, #tpu.memory_space<vmem>>, %arg8: memref<32x128xf32, #tpu.memory_space<vmem>>, %arg9: memref<1x128xf32, #tpu.memory_space<vmem>>, %arg10: memref<32x128xf32, #tpu.memory_space<vmem>>, %arg11: memref<32x128xf32, #tpu.memory_space<vmem>>, %arg12: memref<1x128xf32, #tpu.memory_space<vmem>>, %arg13: memref<32x128xf32, #tpu.memory_space<vmem>>, %arg14: memref<32x32xf32, #tpu.memory_space<vmem>>, %arg15: memref<1x32xf32, #tpu.memory_space<vmem>>, %arg16: memref<32x32xf32, #tpu.memory_space<vmem>>, %arg17: memref<1x32xf32, #tpu.memory_space<vmem>>, %arg18: memref<32x32xf32, #tpu.memory_space<vmem>>, %arg19: memref<1x32xf32, #tpu.memory_space<vmem>>, %arg20: memref<1x32xf32, #tpu.memory_space<vmem>>, %arg21: memref<1x1xf32, #tpu.memory_space<vmem>>, %arg22: memref<1x1x64xf32, #tpu.memory_space<vmem>>, %arg23: memref<64x128xf32, #tpu.memory_space<vmem>>, %arg24: memref<64x128xf32, #tpu.memory_space<vmem>>, %arg25: memref<64x128xf32, #tpu.memory_space<vmem>>, %arg26: memref<64x128xf32, #tpu.memory_space<vmem>>) attributes {dimension_semantics = [#tpu.dimension_semantics<parallel>], iteration_bounds = array<i64: 1>, scalar_prefetch = 0 : i64, scratch_operands = 4 : i64, tpu.core_type = #tpu.core_type<tc>, window_params = [{transform_indices = @transform_0, window_bounds = array<i64: 1, 64, 24>}, {pipeline_mode = #tpu.pipeline_mode<synchronous>, transform_indices = @transform_1, window_bounds = array<i64: 24, 128>}, {pipeline_mode = #tpu.pipeline_mode<synchronous>, transform_indices = @transform_2, window_bounds = array<i64: 1, 128>}, {pipeline_mode = #tpu.pipeline_mode<synchronous>, transform_indices = @transform_3, window_bounds = array<i64: 32, 128>}, {pipeline_mode = #tpu.pipeline_mode<synchronous>, transform_indices = @transform_4, window_bounds = array<i64: 32, 128>}, {pipeline_mode = #tpu.pipeline_mode<synchronous>, transform_indices = @transform_5, window_bounds = array<i64: 1, 128>}, {pipeline_mode = #tpu.pipeline_mode<synchronous>, transform_indices = @transform_6, window_bounds = array<i64: 32, 128>}, {pipeline_mode = #tpu.pipeline_mode<synchronous>, transform_indices = @transform_7, window_bounds = array<i64: 32, 128>}, {pipeline_mode = #tpu.pipeline_mode<synchronous>, transform_indices = @transform_8, window_bounds = array<i64: 1, 128>}, {pipeline_mode = #tpu.pipeline_mode<synchronous>, transform_indices = @transform_9, window_bounds = array<i64: 32, 128>}, {pipeline_mode = #tpu.pipeline_mode<synchronous>, transform_indices = @transform_10, window_bounds = array<i64: 32, 128>}, {pipeline_mode = #tpu.pipeline_mode<synchronous>, transform_indices = @transform_11, window_bounds = array<i64: 1, 128>}, {pipeline_mode = #tpu.pipeline_mode<synchronous>, transform_indices = @transform_12, window_bounds = array<i64: 32, 128>}, {pipeline_mode = #tpu.pipeline_mode<synchronous>, transform_indices = @transform_13, window_bounds = array<i64: 32, 32>}, {pipeline_mode = #tpu.pipeline_mode<synchronous>, transform_indices = @transform_14, window_bounds = array<i64: 1, 32>}, {pipeline_mode = #tpu.pipeline_mode<synchronous>, transform_indices = @transform_15, window_bounds = array<i64: 32, 32>}, {pipeline_mode = #tpu.pipeline_mode<synchronous>, transform_indices = @transform_16, window_bounds = array<i64: 1, 32>}, {pipeline_mode = #tpu.pipeline_mode<synchronous>, transform_indices = @transform_17, window_bounds = array<i64: 32, 32>}, {pipeline_mode = #tpu.pipeline_mode<synchronous>, transform_indices = @transform_18, window_bounds = array<i64: 1, 32>}, {pipeline_mode = #tpu.pipeline_mode<synchronous>, transform_indices = @transform_19, window_bounds = array<i64: 1, 32>}, {pipeline_mode = #tpu.pipeline_mode<synchronous>, transform_indices = @transform_20, window_bounds = array<i64: 1, 1>}, {transform_indices = @transform_21, window_bounds = array<i64: 1, 1, 64>}]} {
    %c0 = arith.constant 0 : index
    %c0_0 = arith.constant 0 : index
    %c0_1 = arith.constant 0 : index
    %0 = vector.load %arg1[%c0, %c0_0, %c0_1] : memref<1x64x24xf32, #tpu.memory_space<vmem>>, vector<1x64x24xf32>
    %1 = vector.shape_cast %0 : vector<1x64x24xf32> to vector<64x24xf32>
    %c0_2 = arith.constant 0 : index
    %c0_3 = arith.constant 0 : index
    %2 = vector.load %arg2[%c0_2, %c0_3] : memref<24x128xf32, #tpu.memory_space<vmem>>, vector<24x128xf32>
    %cst = arith.constant dense<0.000000e+00> : vector<64x128xf32>
    %3 = tpu.matmul %1, %2, %cst {dimension_numbers = #tpu.dot_dimension_numbers<[1], [0], [0], [1], [0, 0, 1, 1], [], []>} : vector<64x24xf32>, vector<24x128xf32>, vector<64x128xf32> -> vector<64x128xf32>
    %c0_4 = arith.constant 0 : index
    %c0_5 = arith.constant 0 : index
    %4 = vector.load %arg3[%c0_4, %c0_5] : memref<1x128xf32, #tpu.memory_space<vmem>>, vector<1x128xf32>
    %5 = vector.broadcast %4 : vector<1x128xf32> to vector<64x128xf32>
    %6 = arith.addf %3, %5 : vector<64x128xf32>
    %c0_6 = arith.constant 0 : index
    %c0_7 = arith.constant 0 : index
    %7 = vector.load %arg23[%c0_6, %c0_7] : memref<64x128xf32, #tpu.memory_space<vmem>>, vector<64x128xf32>
    tpu.vector_store %arg23[%c0_6, %c0_7], %6 {strides = array<i32>} : memref<64x128xf32, #tpu.memory_space<vmem>>, vector<64x128xf32>,
    %c0_8 = arith.constant 0 : index
    %c0_9 = arith.constant 0 : index
    %8 = vector.load %arg4[%c0_8, %c0_9] : memref<32x128xf32, #tpu.memory_space<vmem>>, vector<16x128xf32>
    %c16 = arith.constant 16 : index
    %c0_10 = arith.constant 0 : index
    %9 = vector.load %arg4[%c16, %c0_10] : memref<32x128xf32, #tpu.memory_space<vmem>>, vector<16x128xf32>
    %10 = tpu.iota {dimensions = array<i32: 1>} : vector<8x128xi32>
    %c64_i32 = arith.constant 64 : i32
    %11 = vector.broadcast %c64_i32 : i32 to vector<8x128xi32>
    %12 = arith.cmpi slt, %10, %11 : vector<8x128xi32>
    %cst_11 = arith.constant 0.000000e+00 : f32
    %13 = vector.broadcast %cst_11 : f32 to vector<8x16xf32>
    %cst_12 = arith.constant 0.000000e+00 : f32
    %14 = vector.broadcast %cst_12 : f32 to vector<8x16xf32>
    %cst_13 = arith.constant 0.000000e+00 : f32
    %15 = vector.broadcast %cst_13 : f32 to vector<8x16xf32>
    %cst_14 = arith.constant 0.000000e+00 : f32
    %16 = vector.broadcast %cst_14 : f32 to vector<8x16xf32>
    %cst_15 = arith.constant dense<0.000000e+00> : vector<8x128xf32>
    %17 = tpu.matmul %13, %8, %cst_15 {dimension_numbers = #tpu.dot_dimension_numbers<[1], [0], [0], [1], [0, 0, 1, 1], [], []>} : vector<8x16xf32>, vector<16x128xf32>, vector<8x128xf32> -> vector<8x128xf32>
    %cst_16 = arith.constant dense<0.000000e+00> : vector<8x128xf32>
    %18 = tpu.matmul %14, %9, %cst_16 {dimension_numbers = #tpu.dot_dimension_numbers<[1], [0], [0], [1], [0, 0, 1, 1], [], []>} : vector<8x16xf32>, vector<16x128xf32>, vector<8x128xf32> -> vector<8x128xf32>
    %19 = arith.addf %17, %18 : vector<8x128xf32>
    %c0_17 = arith.constant 0 : index
    %c0_18 = arith.constant 0 : index
    %20 = vector.load %arg23[%c0_17, %c0_18] : memref<64x128xf32, #tpu.memory_space<vmem>>, vector<8x128xf32>
    %c56 = arith.constant 56 : index
    %c0_19 = arith.constant 0 : index
    %21 = vector.load %arg23[%c56, %c0_19] : memref<64x128xf32, #tpu.memory_space<vmem>>, vector<8x128xf32>
    %22 = arith.select %12, %20, %21 : vector<8x128xi1>, vector<8x128xf32>
    %23 = arith.addf %19, %22 : vector<8x128xf32>
    %24 = arith.negf %23 : vector<8x128xf32>
    %25 = math.exp %24 : vector<8x128xf32>
    %cst_20 = arith.constant 1.000000e+00 : f32
    %26 = vector.broadcast %cst_20 : f32 to vector<8x128xf32>
    %27 = arith.addf %26, %25 : vector<8x128xf32>
    %28 = arith.divf %26, %27 : vector<8x128xf32>
    %29 = math.tanh %23 : vector<8x128xf32>
    %30 = vector.extract_strided_slice %28 {offsets = [0, 0], sizes = [8, 16], strides = [1, 1]} : vector<8x128xf32> to vector<8x16xf32>
    %31 = vector.extract_strided_slice %28 {offsets = [0, 16], sizes = [8, 16], strides = [1, 1]} : vector<8x128xf32> to vector<8x16xf32>
    %32 = vector.extract_strided_slice %29 {offsets = [0, 32], sizes = [8, 16], strides = [1, 1]} : vector<8x128xf32> to vector<8x16xf32>
    %33 = vector.extract_strided_slice %28 {offsets = [0, 48], sizes = [8, 16], strides = [1, 1]} : vector<8x128xf32> to vector<8x16xf32>
    %34 = vector.extract_strided_slice %28 {offsets = [0, 64], sizes = [8, 16], strides = [1, 1]} : vector<8x128xf32> to vector<8x16xf32>
    %35 = vector.extract_strided_slice %28 {offsets = [0, 80], sizes = [8, 16], strides = [1, 1]} : vector<8x128xf32> to vector<8x16xf32>
    %36 = vector.extract_strided_slice %29 {offsets = [0, 96], sizes = [8, 16], strides = [1, 1]} : vector<8x128xf32> to vector<8x16xf32>
    %37 = vector.extract_strided_slice %28 {offsets = [0, 112], sizes = [8, 16], strides = [1, 1]} : vector<8x128xf32> to vector<8x16xf32>
    %38 = arith.mulf %31, %15 : vector<8x16xf32>
    %39 = arith.mulf %30, %32 : vector<8x16xf32>
    %40 = arith.addf %38, %39 : vector<8x16xf32>
    %41 = arith.mulf %35, %16 : vector<8x16xf32>
    %42 = arith.mulf %34, %36 : vector<8x16xf32>
    %43 = arith.addf %41, %42 : vector<8x16xf32>
    %44 = math.tanh %40 : vector<8x16xf32>
    %45 = arith.mulf %33, %44 : vector<8x16xf32>
    %46 = math.tanh %43 : vector<8x16xf32>
    %47 = arith.mulf %37, %46 : vector<8x16xf32>
    %cst_21 = arith.constant dense<0.000000e+00> : vector<8x128xf32>
    %48 = tpu.matmul %45, %8, %cst_21 {dimension_numbers = #tpu.dot_dimension_numbers<[1], [0], [0], [1], [0, 0, 1, 1], [], []>} : vector<8x16xf32>, vector<16x128xf32>, vector<8x128xf32> -> vector<8x128xf32>
    %cst_22 = arith.constant dense<0.000000e+00> : vector<8x128xf32>
    %49 = tpu.matmul %47, %9, %cst_22 {dimension_numbers = #tpu.dot_dimension_numbers<[1], [0], [0], [1], [0, 0, 1, 1], [], []>} : vector<8x16xf32>, vector<16x128xf32>, vector<8x128xf32> -> vector<8x128xf32>
    %50 = arith.addf %48, %49 : vector<8x128xf32>
    %c8 = arith.constant 8 : index
    %c0_23 = arith.constant 0 : index
    %51 = vector.load %arg23[%c8, %c0_23] : memref<64x128xf32, #tpu.memory_space<vmem>>, vector<8x128xf32>
    %c48 = arith.constant 48 : index
    %c0_24 = arith.constant 0 : index
    %52 = vector.load %arg23[%c48, %c0_24] : memref<64x128xf32, #tpu.memory_space<vmem>>, vector<8x128xf32>
    %53 = arith.select %12, %51, %52 : vector<8x128xi1>, vector<8x128xf32>
    %54 = arith.addf %50, %53 : vector<8x128xf32>
    %55 = arith.negf %54 : vector<8x128xf32>
    %56 = math.exp %55 : vector<8x128xf32>
    %cst_25 = arith.constant 1.000000e+00 : f32
    %57 = vector.broadcast %cst_25 : f32 to vector<8x128xf32>
    %58 = arith.addf %57, %56 : vector<8x128xf32>
    %59 = arith.divf %57, %58 : vector<8x128xf32>
    %60 = math.tanh %54 : vector<8x128xf32>
    %61 = vector.extract_strided_slice %59 {offsets = [0, 0], sizes = [8, 16], strides = [1, 1]} : vector<8x128xf32> to vector<8x16xf32>
    %62 = vector.extract_strided_slice %59 {offsets = [0, 16], sizes = [8, 16], strides = [1, 1]} : vector<8x128xf32> to vector<8x16xf32>
    %63 = vector.extract_strided_slice %60 {offsets = [0, 32], sizes = [8, 16], strides = [1, 1]} : vector<8x128xf32> to vector<8x16xf32>
    %64 = vector.extract_strided_slice %59 {offsets = [0, 48], sizes = [8, 16], strides = [1, 1]} : vector<8x128xf32> to vector<8x16xf32>
    %65 = vector.extract_strided_slice %59 {offsets = [0, 64], sizes = [8, 16], strides = [1, 1]} : vector<8x128xf32> to vector<8x16xf32>
    %66 = vector.extract_strided_slice %59 {offsets = [0, 80], sizes = [8, 16], strides = [1, 1]} : vector<8x128xf32> to vector<8x16xf32>
    %67 = vector.extract_strided_slice %60 {offsets = [0, 96], sizes = [8, 16], strides = [1, 1]} : vector<8x128xf32> to vector<8x16xf32>
    %68 = vector.extract_strided_slice %59 {offsets = [0, 112], sizes = [8, 16], strides = [1, 1]} : vector<8x128xf32> to vector<8x16xf32>
    %69 = arith.mulf %62, %40 : vector<8x16xf32>
    %70 = arith.mulf %61, %63 : vector<8x16xf32>
    %71 = arith.addf %69, %70 : vector<8x16xf32>
    %72 = arith.mulf %66, %43 : vector<8x16xf32>
    %73 = arith.mulf %65, %67 : vector<8x16xf32>
    %74 = arith.addf %72, %73 : vector<8x16xf32>
    %75 = math.tanh %71 : vector<8x16xf32>
    %76 = arith.mulf %64, %75 : vector<8x16xf32>
    %77 = math.tanh %74 : vector<8x16xf32>
    %78 = arith.mulf %68, %77 : vector<8x16xf32>
    %cst_26 = arith.constant dense<0.000000e+00> : vector<8x128xf32>
    %79 = tpu.matmul %76, %8, %cst_26 {dimension_numbers = #tpu.dot_dimension_numbers<[1], [0], [0], [1], [0, 0, 1, 1], [], []>} : vector<8x16xf32>, vector<16x128xf32>, vector<8x128xf32> -> vector<8x128xf32>
    %cst_27 = arith.constant dense<0.000000e+00> : vector<8x128xf32>
    %80 = tpu.matmul %78, %9, %cst_27 {dimension_numbers = #tpu.dot_dimension_numbers<[1], [0], [0], [1], [0, 0, 1, 1], [], []>} : vector<8x16xf32>, vector<16x128xf32>, vector<8x128xf32> -> vector<8x128xf32>
    %81 = arith.addf %79, %80 : vector<8x128xf32>
    %c16_28 = arith.constant 16 : index
    %c0_29 = arith.constant 0 : index
    %82 = vector.load %arg23[%c16_28, %c0_29] : memref<64x128xf32, #tpu.memory_space<vmem>>, vector<8x128xf32>
    %c40 = arith.constant 40 : index
    %c0_30 = arith.constant 0 : index
    %83 = vector.load %arg23[%c40, %c0_30] : memref<64x128xf32, #tpu.memory_space<vmem>>, vector<8x128xf32>
    %84 = arith.select %12, %82, %83 : vector<8x128xi1>, vector<8x128xf32>
    %85 = arith.addf %81, %84 : vector<8x128xf32>
    %86 = arith.negf %85 : vector<8x128xf32>
    %87 = math.exp %86 : vector<8x128xf32>
    %cst_31 = arith.constant 1.000000e+00 : f32
    %88 = vector.broadcast %cst_31 : f32 to vector<8x128xf32>
    %89 = arith.addf %88, %87 : vector<8x128xf32>
    %90 = arith.divf %88, %89 : vector<8x128xf32>
    %91 = math.tanh %85 : vector<8x128xf32>
    %92 = vector.extract_strided_slice %90 {offsets = [0, 0], sizes = [8, 16], strides = [1, 1]} : vector<8x128xf32> to vector<8x16xf32>
    %93 = vector.extract_strided_slice %90 {offsets = [0, 16], sizes = [8, 16], strides = [1, 1]} : vector<8x128xf32> to vector<8x16xf32>
    %94 = vector.extract_strided_slice %91 {offsets = [0, 32], sizes = [8, 16], strides = [1, 1]} : vector<8x128xf32> to vector<8x16xf32>
    %95 = vector.extract_strided_slice %90 {offsets = [0, 48], sizes = [8, 16], strides = [1, 1]} : vector<8x128xf32> to vector<8x16xf32>
    %96 = vector.extract_strided_slice %90 {offsets = [0, 64], sizes = [8, 16], strides = [1, 1]} : vector<8x128xf32> to vector<8x16xf32>
    %97 = vector.extract_strided_slice %90 {offsets = [0, 80], sizes = [8, 16], strides = [1, 1]} : vector<8x128xf32> to vector<8x16xf32>
    %98 = vector.extract_strided_slice %91 {offsets = [0, 96], sizes = [8, 16], strides = [1, 1]} : vector<8x128xf32> to vector<8x16xf32>
    %99 = vector.extract_strided_slice %90 {offsets = [0, 112], sizes = [8, 16], strides = [1, 1]} : vector<8x128xf32> to vector<8x16xf32>
    %100 = arith.mulf %93, %71 : vector<8x16xf32>
    %101 = arith.mulf %92, %94 : vector<8x16xf32>
    %102 = arith.addf %100, %101 : vector<8x16xf32>
    %103 = arith.mulf %97, %74 : vector<8x16xf32>
    %104 = arith.mulf %96, %98 : vector<8x16xf32>
    %105 = arith.addf %103, %104 : vector<8x16xf32>
    %106 = math.tanh %102 : vector<8x16xf32>
    %107 = arith.mulf %95, %106 : vector<8x16xf32>
    %108 = math.tanh %105 : vector<8x16xf32>
    %109 = arith.mulf %99, %108 : vector<8x16xf32>
    %cst_32 = arith.constant dense<0.000000e+00> : vector<8x128xf32>
    %110 = tpu.matmul %107, %8, %cst_32 {dimension_numbers = #tpu.dot_dimension_numbers<[1], [0], [0], [1], [0, 0, 1, 1], [], []>} : vector<8x16xf32>, vector<16x128xf32>, vector<8x128xf32> -> vector<8x128xf32>
    %cst_33 = arith.constant dense<0.000000e+00> : vector<8x128xf32>
    %111 = tpu.matmul %109, %9, %cst_33 {dimension_numbers = #tpu.dot_dimension_numbers<[1], [0], [0], [1], [0, 0, 1, 1], [], []>} : vector<8x16xf32>, vector<16x128xf32>, vector<8x128xf32> -> vector<8x128xf32>
    %112 = arith.addf %110, %111 : vector<8x128xf32>
    %c24 = arith.constant 24 : index
    %c0_34 = arith.constant 0 : index
    %113 = vector.load %arg23[%c24, %c0_34] : memref<64x128xf32, #tpu.memory_space<vmem>>, vector<8x128xf32>
    %c32 = arith.constant 32 : index
    %c0_35 = arith.constant 0 : index
    %114 = vector.load %arg23[%c32, %c0_35] : memref<64x128xf32, #tpu.memory_space<vmem>>, vector<8x128xf32>
    %115 = arith.select %12, %113, %114 : vector<8x128xi1>, vector<8x128xf32>
    %116 = arith.addf %112, %115 : vector<8x128xf32>
    %117 = arith.negf %116 : vector<8x128xf32>
    %118 = math.exp %117 : vector<8x128xf32>
    %cst_36 = arith.constant 1.000000e+00 : f32
    %119 = vector.broadcast %cst_36 : f32 to vector<8x128xf32>
    %120 = arith.addf %119, %118 : vector<8x128xf32>
    %121 = arith.divf %119, %120 : vector<8x128xf32>
    %122 = math.tanh %116 : vector<8x128xf32>
    %123 = vector.extract_strided_slice %121 {offsets = [0, 0], sizes = [8, 16], strides = [1, 1]} : vector<8x128xf32> to vector<8x16xf32>
    %124 = vector.extract_strided_slice %121 {offsets = [0, 16], sizes = [8, 16], strides = [1, 1]} : vector<8x128xf32> to vector<8x16xf32>
    %125 = vector.extract_strided_slice %122 {offsets = [0, 32], sizes = [8, 16], strides = [1, 1]} : vector<8x128xf32> to vector<8x16xf32>
    %126 = vector.extract_strided_slice %121 {offsets = [0, 48], sizes = [8, 16], strides = [1, 1]} : vector<8x128xf32> to vector<8x16xf32>
    %127 = vector.extract_strided_slice %121 {offsets = [0, 64], sizes = [8, 16], strides = [1, 1]} : vector<8x128xf32> to vector<8x16xf32>
    %128 = vector.extract_strided_slice %121 {offsets = [0, 80], sizes = [8, 16], strides = [1, 1]} : vector<8x128xf32> to vector<8x16xf32>
    %129 = vector.extract_strided_slice %122 {offsets = [0, 96], sizes = [8, 16], strides = [1, 1]} : vector<8x128xf32> to vector<8x16xf32>
    %130 = vector.extract_strided_slice %121 {offsets = [0, 112], sizes = [8, 16], strides = [1, 1]} : vector<8x128xf32> to vector<8x16xf32>
    %131 = arith.mulf %124, %102 : vector<8x16xf32>
    %132 = arith.mulf %123, %125 : vector<8x16xf32>
    %133 = arith.addf %131, %132 : vector<8x16xf32>
    %134 = arith.mulf %128, %105 : vector<8x16xf32>
    %135 = arith.mulf %127, %129 : vector<8x16xf32>
    %136 = arith.addf %134, %135 : vector<8x16xf32>
    %137 = math.tanh %133 : vector<8x16xf32>
    %138 = arith.mulf %126, %137 : vector<8x16xf32>
    %139 = math.tanh %136 : vector<8x16xf32>
    %140 = arith.mulf %130, %139 : vector<8x16xf32>
    %cst_37 = arith.constant dense<0.000000e+00> : vector<8x128xf32>
    %141 = tpu.matmul %138, %8, %cst_37 {dimension_numbers = #tpu.dot_dimension_numbers<[1], [0], [0], [1], [0, 0, 1, 1], [], []>} : vector<8x16xf32>, vector<16x128xf32>, vector<8x128xf32> -> vector<8x128xf32>
    %cst_38 = arith.constant dense<0.000000e+00> : vector<8x128xf32>
    %142 = tpu.matmul %140, %9, %cst_38 {dimension_numbers = #tpu.dot_dimension_numbers<[1], [0], [0], [1], [0, 0, 1, 1], [], []>} : vector<8x16xf32>, vector<16x128xf32>, vector<8x128xf32> -> vector<8x128xf32>
    %143 = arith.addf %141, %142 : vector<8x128xf32>
    %c32_39 = arith.constant 32 : index
    %c0_40 = arith.constant 0 : index
    %144 = vector.load %arg23[%c32_39, %c0_40] : memref<64x128xf32, #tpu.memory_space<vmem>>, vector<8x128xf32>
    %c24_41 = arith.constant 24 : index
    %c0_42 = arith.constant 0 : index
    %145 = vector.load %arg23[%c24_41, %c0_42] : memref<64x128xf32, #tpu.memory_space<vmem>>, vector<8x128xf32>
    %146 = arith.select %12, %144, %145 : vector<8x128xi1>, vector<8x128xf32>
    %147 = arith.addf %143, %146 : vector<8x128xf32>
    %148 = arith.negf %147 : vector<8x128xf32>
    %149 = math.exp %148 : vector<8x128xf32>
    %cst_43 = arith.constant 1.000000e+00 : f32
    %150 = vector.broadcast %cst_43 : f32 to vector<8x128xf32>
    %151 = arith.addf %150, %149 : vector<8x128xf32>
    %152 = arith.divf %150, %151 : vector<8x128xf32>
    %153 = math.tanh %147 : vector<8x128xf32>
    %154 = vector.extract_strided_slice %152 {offsets = [0, 0], sizes = [8, 16], strides = [1, 1]} : vector<8x128xf32> to vector<8x16xf32>
    %155 = vector.extract_strided_slice %152 {offsets = [0, 16], sizes = [8, 16], strides = [1, 1]} : vector<8x128xf32> to vector<8x16xf32>
    %156 = vector.extract_strided_slice %153 {offsets = [0, 32], sizes = [8, 16], strides = [1, 1]} : vector<8x128xf32> to vector<8x16xf32>
    %157 = vector.extract_strided_slice %152 {offsets = [0, 48], sizes = [8, 16], strides = [1, 1]} : vector<8x128xf32> to vector<8x16xf32>
    %158 = vector.extract_strided_slice %152 {offsets = [0, 64], sizes = [8, 16], strides = [1, 1]} : vector<8x128xf32> to vector<8x16xf32>
    %159 = vector.extract_strided_slice %152 {offsets = [0, 80], sizes = [8, 16], strides = [1, 1]} : vector<8x128xf32> to vector<8x16xf32>
    %160 = vector.extract_strided_slice %153 {offsets = [0, 96], sizes = [8, 16], strides = [1, 1]} : vector<8x128xf32> to vector<8x16xf32>
    %161 = vector.extract_strided_slice %152 {offsets = [0, 112], sizes = [8, 16], strides = [1, 1]} : vector<8x128xf32> to vector<8x16xf32>
    %162 = arith.mulf %155, %133 : vector<8x16xf32>
    %163 = arith.mulf %154, %156 : vector<8x16xf32>
    %164 = arith.addf %162, %163 : vector<8x16xf32>
    %165 = arith.mulf %159, %136 : vector<8x16xf32>
    %166 = arith.mulf %158, %160 : vector<8x16xf32>
    %167 = arith.addf %165, %166 : vector<8x16xf32>
    %168 = math.tanh %164 : vector<8x16xf32>
    %169 = arith.mulf %157, %168 : vector<8x16xf32>
    %170 = math.tanh %167 : vector<8x16xf32>
    %171 = arith.mulf %161, %170 : vector<8x16xf32>
    %cst_44 = arith.constant dense<0.000000e+00> : vector<8x128xf32>
    %172 = tpu.matmul %169, %8, %cst_44 {dimension_numbers = #tpu.dot_dimension_numbers<[1], [0], [0], [1], [0, 0, 1, 1], [], []>} : vector<8x16xf32>, vector<16x128xf32>, vector<8x128xf32> -> vector<8x128xf32>
    %cst_45 = arith.constant dense<0.000000e+00> : vector<8x128xf32>
    %173 = tpu.matmul %171, %9, %cst_45 {dimension_numbers = #tpu.dot_dimension_numbers<[1], [0], [0], [1], [0, 0, 1, 1], [], []>} : vector<8x16xf32>, vector<16x128xf32>, vector<8x128xf32> -> vector<8x128xf32>
    %174 = arith.addf %172, %173 : vector<8x128xf32>
    %c40_46 = arith.constant 40 : index
    %c0_47 = arith.constant 0 : index
    %175 = vector.load %arg23[%c40_46, %c0_47] : memref<64x128xf32, #tpu.memory_space<vmem>>, vector<8x128xf32>
    %c16_48 = arith.constant 16 : index
    %c0_49 = arith.constant 0 : index
    %176 = vector.load %arg23[%c16_48, %c0_49] : memref<64x128xf32, #tpu.memory_space<vmem>>, vector<8x128xf32>
    %177 = arith.select %12, %175, %176 : vector<8x128xi1>, vector<8x128xf32>
    %178 = arith.addf %174, %177 : vector<8x128xf32>
    %179 = arith.negf %178 : vector<8x128xf32>
    %180 = math.exp %179 : vector<8x128xf32>
    %cst_50 = arith.constant 1.000000e+00 : f32
    %181 = vector.broadcast %cst_50 : f32 to vector<8x128xf32>
    %182 = arith.addf %181, %180 : vector<8x128xf32>
    %183 = arith.divf %181, %182 : vector<8x128xf32>
    %184 = math.tanh %178 : vector<8x128xf32>
    %185 = vector.extract_strided_slice %183 {offsets = [0, 0], sizes = [8, 16], strides = [1, 1]} : vector<8x128xf32> to vector<8x16xf32>
    %186 = vector.extract_strided_slice %183 {offsets = [0, 16], sizes = [8, 16], strides = [1, 1]} : vector<8x128xf32> to vector<8x16xf32>
    %187 = vector.extract_strided_slice %184 {offsets = [0, 32], sizes = [8, 16], strides = [1, 1]} : vector<8x128xf32> to vector<8x16xf32>
    %188 = vector.extract_strided_slice %183 {offsets = [0, 48], sizes = [8, 16], strides = [1, 1]} : vector<8x128xf32> to vector<8x16xf32>
    %189 = vector.extract_strided_slice %183 {offsets = [0, 64], sizes = [8, 16], strides = [1, 1]} : vector<8x128xf32> to vector<8x16xf32>
    %190 = vector.extract_strided_slice %183 {offsets = [0, 80], sizes = [8, 16], strides = [1, 1]} : vector<8x128xf32> to vector<8x16xf32>
    %191 = vector.extract_strided_slice %184 {offsets = [0, 96], sizes = [8, 16], strides = [1, 1]} : vector<8x128xf32> to vector<8x16xf32>
    %192 = vector.extract_strided_slice %183 {offsets = [0, 112], sizes = [8, 16], strides = [1, 1]} : vector<8x128xf32> to vector<8x16xf32>
    %193 = arith.mulf %186, %164 : vector<8x16xf32>
    %194 = arith.mulf %185, %187 : vector<8x16xf32>
    %195 = arith.addf %193, %194 : vector<8x16xf32>
    %196 = arith.mulf %190, %167 : vector<8x16xf32>
    %197 = arith.mulf %189, %191 : vector<8x16xf32>
    %198 = arith.addf %196, %197 : vector<8x16xf32>
    %199 = math.tanh %195 : vector<8x16xf32>
    %200 = arith.mulf %188, %199 : vector<8x16xf32>
    %201 = math.tanh %198 : vector<8x16xf32>
    %202 = arith.mulf %192, %201 : vector<8x16xf32>
    %cst_51 = arith.constant dense<0.000000e+00> : vector<8x128xf32>
    %203 = tpu.matmul %200, %8, %cst_51 {dimension_numbers = #tpu.dot_dimension_numbers<[1], [0], [0], [1], [0, 0, 1, 1], [], []>} : vector<8x16xf32>, vector<16x128xf32>, vector<8x128xf32> -> vector<8x128xf32>
    %cst_52 = arith.constant dense<0.000000e+00> : vector<8x128xf32>
    %204 = tpu.matmul %202, %9, %cst_52 {dimension_numbers = #tpu.dot_dimension_numbers<[1], [0], [0], [1], [0, 0, 1, 1], [], []>} : vector<8x16xf32>, vector<16x128xf32>, vector<8x128xf32> -> vector<8x128xf32>
    %205 = arith.addf %203, %204 : vector<8x128xf32>
    %c48_53 = arith.constant 48 : index
    %c0_54 = arith.constant 0 : index
    %206 = vector.load %arg23[%c48_53, %c0_54] : memref<64x128xf32, #tpu.memory_space<vmem>>, vector<8x128xf32>
    %c8_55 = arith.constant 8 : index
    %c0_56 = arith.constant 0 : index
    %207 = vector.load %arg23[%c8_55, %c0_56] : memref<64x128xf32, #tpu.memory_space<vmem>>, vector<8x128xf32>
    %208 = arith.select %12, %206, %207 : vector<8x128xi1>, vector<8x128xf32>
    %209 = arith.addf %205, %208 : vector<8x128xf32>
    %210 = arith.negf %209 : vector<8x128xf32>
    %211 = math.exp %210 : vector<8x128xf32>
    %cst_57 = arith.constant 1.000000e+00 : f32
    %212 = vector.broadcast %cst_57 : f32 to vector<8x128xf32>
    %213 = arith.addf %212, %211 : vector<8x128xf32>
    %214 = arith.divf %212, %213 : vector<8x128xf32>
    %215 = math.tanh %209 : vector<8x128xf32>
    %216 = vector.extract_strided_slice %214 {offsets = [0, 0], sizes = [8, 16], strides = [1, 1]} : vector<8x128xf32> to vector<8x16xf32>
    %217 = vector.extract_strided_slice %214 {offsets = [0, 16], sizes = [8, 16], strides = [1, 1]} : vector<8x128xf32> to vector<8x16xf32>
    %218 = vector.extract_strided_slice %215 {offsets = [0, 32], sizes = [8, 16], strides = [1, 1]} : vector<8x128xf32> to vector<8x16xf32>
    %219 = vector.extract_strided_slice %214 {offsets = [0, 48], sizes = [8, 16], strides = [1, 1]} : vector<8x128xf32> to vector<8x16xf32>
    %220 = vector.extract_strided_slice %214 {offsets = [0, 64], sizes = [8, 16], strides = [1, 1]} : vector<8x128xf32> to vector<8x16xf32>
    %221 = vector.extract_strided_slice %214 {offsets = [0, 80], sizes = [8, 16], strides = [1, 1]} : vector<8x128xf32> to vector<8x16xf32>
    %222 = vector.extract_strided_slice %215 {offsets = [0, 96], sizes = [8, 16], strides = [1, 1]} : vector<8x128xf32> to vector<8x16xf32>
    %223 = vector.extract_strided_slice %214 {offsets = [0, 112], sizes = [8, 16], strides = [1, 1]} : vector<8x128xf32> to vector<8x16xf32>
    %224 = arith.mulf %217, %195 : vector<8x16xf32>
    %225 = arith.mulf %216, %218 : vector<8x16xf32>
    %226 = arith.addf %224, %225 : vector<8x16xf32>
    %227 = arith.mulf %221, %198 : vector<8x16xf32>
    %228 = arith.mulf %220, %222 : vector<8x16xf32>
    %229 = arith.addf %227, %228 : vector<8x16xf32>
    %230 = math.tanh %226 : vector<8x16xf32>
    %231 = arith.mulf %219, %230 : vector<8x16xf32>
    %232 = math.tanh %229 : vector<8x16xf32>
    %233 = arith.mulf %223, %232 : vector<8x16xf32>
    %cst_58 = arith.constant dense<0.000000e+00> : vector<8x128xf32>
    %234 = tpu.matmul %231, %8, %cst_58 {dimension_numbers = #tpu.dot_dimension_numbers<[1], [0], [0], [1], [0, 0, 1, 1], [], []>} : vector<8x16xf32>, vector<16x128xf32>, vector<8x128xf32> -> vector<8x128xf32>
    %cst_59 = arith.constant dense<0.000000e+00> : vector<8x128xf32>
    %235 = tpu.matmul %233, %9, %cst_59 {dimension_numbers = #tpu.dot_dimension_numbers<[1], [0], [0], [1], [0, 0, 1, 1], [], []>} : vector<8x16xf32>, vector<16x128xf32>, vector<8x128xf32> -> vector<8x128xf32>
    %236 = arith.addf %234, %235 : vector<8x128xf32>
    %c56_60 = arith.constant 56 : index
    %c0_61 = arith.constant 0 : index
    %237 = vector.load %arg23[%c56_60, %c0_61] : memref<64x128xf32, #tpu.memory_space<vmem>>, vector<8x128xf32>
    %c0_62 = arith.constant 0 : index
    %c0_63 = arith.constant 0 : index
    %238 = vector.load %arg23[%c0_62, %c0_63] : memref<64x128xf32, #tpu.memory_space<vmem>>, vector<8x128xf32>
    %239 = arith.select %12, %237, %238 : vector<8x128xi1>, vector<8x128xf32>
    %240 = arith.addf %236, %239 : vector<8x128xf32>
    %241 = arith.negf %240 : vector<8x128xf32>
    %242 = math.exp %241 : vector<8x128xf32>
    %cst_64 = arith.constant 1.000000e+00 : f32
    %243 = vector.broadcast %cst_64 : f32 to vector<8x128xf32>
    %244 = arith.addf %243, %242 : vector<8x128xf32>
    %245 = arith.divf %243, %244 : vector<8x128xf32>
    %246 = math.tanh %240 : vector<8x128xf32>
    %247 = vector.extract_strided_slice %245 {offsets = [0, 0], sizes = [8, 16], strides = [1, 1]} : vector<8x128xf32> to vector<8x16xf32>
    %248 = vector.extract_strided_slice %245 {offsets = [0, 16], sizes = [8, 16], strides = [1, 1]} : vector<8x128xf32> to vector<8x16xf32>
    %249 = vector.extract_strided_slice %246 {offsets = [0, 32], sizes = [8, 16], strides = [1, 1]} : vector<8x128xf32> to vector<8x16xf32>
    %250 = vector.extract_strided_slice %245 {offsets = [0, 48], sizes = [8, 16], strides = [1, 1]} : vector<8x128xf32> to vector<8x16xf32>
    %251 = vector.extract_strided_slice %245 {offsets = [0, 64], sizes = [8, 16], strides = [1, 1]} : vector<8x128xf32> to vector<8x16xf32>
    %252 = vector.extract_strided_slice %245 {offsets = [0, 80], sizes = [8, 16], strides = [1, 1]} : vector<8x128xf32> to vector<8x16xf32>
    %253 = vector.extract_strided_slice %246 {offsets = [0, 96], sizes = [8, 16], strides = [1, 1]} : vector<8x128xf32> to vector<8x16xf32>
    %254 = vector.extract_strided_slice %245 {offsets = [0, 112], sizes = [8, 16], strides = [1, 1]} : vector<8x128xf32> to vector<8x16xf32>
    %255 = arith.mulf %248, %226 : vector<8x16xf32>
    %256 = arith.mulf %247, %249 : vector<8x16xf32>
    %257 = arith.addf %255, %256 : vector<8x16xf32>
    %258 = arith.mulf %252, %229 : vector<8x16xf32>
    %259 = arith.mulf %251, %253 : vector<8x16xf32>
    %260 = arith.addf %258, %259 : vector<8x16xf32>
    %261 = math.tanh %257 : vector<8x16xf32>
    %262 = arith.mulf %250, %261 : vector<8x16xf32>
    %263 = math.tanh %260 : vector<8x16xf32>
    %264 = arith.mulf %254, %263 : vector<8x16xf32>
    %265 = tpu.concatenate %45, %76, %107, %138, %169, %200, %231, %262 in 0 : vector<8x16xf32>, vector<8x16xf32>, vector<8x16xf32>, vector<8x16xf32>, vector<8x16xf32>, vector<8x16xf32>, vector<8x16xf32>, vector<8x16xf32> -> vector<64x16xf32>
    %266 = tpu.concatenate %264, %233, %202, %171, %140, %109, %78, %47 in 0 : vector<8x16xf32>, vector<8x16xf32>, vector<8x16xf32>, vector<8x16xf32>, vector<8x16xf32>, vector<8x16xf32>, vector<8x16xf32>, vector<8x16xf32> -> vector<64x16xf32>
    %c0_65 = arith.constant 0 : index
    %c0_66 = arith.constant 0 : index
    %267 = vector.load %arg5[%c0_65, %c0_66] : memref<32x128xf32, #tpu.memory_space<vmem>>, vector<16x128xf32>
    %cst_67 = arith.constant dense<0.000000e+00> : vector<64x128xf32>
    %268 = tpu.matmul %265, %267, %cst_67 {dimension_numbers = #tpu.dot_dimension_numbers<[1], [0], [0], [1], [0, 0, 1, 1], [], []>} : vector<64x16xf32>, vector<16x128xf32>, vector<64x128xf32> -> vector<64x128xf32>
    %c16_68 = arith.constant 16 : index
    %c0_69 = arith.constant 0 : index
    %269 = vector.load %arg5[%c16_68, %c0_69] : memref<32x128xf32, #tpu.memory_space<vmem>>, vector<16x128xf32>
    %cst_70 = arith.constant dense<0.000000e+00> : vector<64x128xf32>
    %270 = tpu.matmul %266, %269, %cst_70 {dimension_numbers = #tpu.dot_dimension_numbers<[1], [0], [0], [1], [0, 0, 1, 1], [], []>} : vector<64x16xf32>, vector<16x128xf32>, vector<64x128xf32> -> vector<64x128xf32>
    %271 = arith.addf %268, %270 : vector<64x128xf32>
    %c0_71 = arith.constant 0 : index
    %c0_72 = arith.constant 0 : index
    %272 = vector.load %arg6[%c0_71, %c0_72] : memref<1x128xf32, #tpu.memory_space<vmem>>, vector<1x128xf32>
    %273 = vector.broadcast %272 : vector<1x128xf32> to vector<64x128xf32>
    %274 = arith.addf %271, %273 : vector<64x128xf32>
    %c0_73 = arith.constant 0 : index
    %c0_74 = arith.constant 0 : index
    %275 = vector.load %arg24[%c0_73, %c0_74] : memref<64x128xf32, #tpu.memory_space<vmem>>, vector<64x128xf32>
    tpu.vector_store %arg24[%c0_73, %c0_74], %274 {strides = array<i32>} : memref<64x128xf32, #tpu.memory_space<vmem>>, vector<64x128xf32>,
    %c0_75 = arith.constant 0 : index
    %c0_76 = arith.constant 0 : index
    %276 = vector.load %arg7[%c0_75, %c0_76] : memref<32x128xf32, #tpu.memory_space<vmem>>, vector<16x128xf32>
    %c16_77 = arith.constant 16 : index
    %c0_78 = arith.constant 0 : index
    %277 = vector.load %arg7[%c16_77, %c0_78] : memref<32x128xf32, #tpu.memory_space<vmem>>, vector<16x128xf32>
    %278 = tpu.iota {dimensions = array<i32: 1>} : vector<8x128xi32>
    %c64_i32_79 = arith.constant 64 : i32
    %279 = vector.broadcast %c64_i32_79 : i32 to vector<8x128xi32>
    %280 = arith.cmpi slt, %278, %279 : vector<8x128xi32>
    %cst_80 = arith.constant 0.000000e+00 : f32
    %281 = vector.broadcast %cst_80 : f32 to vector<8x16xf32>
    %cst_81 = arith.constant 0.000000e+00 : f32
    %282 = vector.broadcast %cst_81 : f32 to vector<8x16xf32>
    %cst_82 = arith.constant 0.000000e+00 : f32
    %283 = vector.broadcast %cst_82 : f32 to vector<8x16xf32>
    %cst_83 = arith.constant 0.000000e+00 : f32
    %284 = vector.broadcast %cst_83 : f32 to vector<8x16xf32>
    %cst_84 = arith.constant dense<0.000000e+00> : vector<8x128xf32>
    %285 = tpu.matmul %281, %276, %cst_84 {dimension_numbers = #tpu.dot_dimension_numbers<[1], [0], [0], [1], [0, 0, 1, 1], [], []>} : vector<8x16xf32>, vector<16x128xf32>, vector<8x128xf32> -> vector<8x128xf32>
    %cst_85 = arith.constant dense<0.000000e+00> : vector<8x128xf32>
    %286 = tpu.matmul %282, %277, %cst_85 {dimension_numbers = #tpu.dot_dimension_numbers<[1], [0], [0], [1], [0, 0, 1, 1], [], []>} : vector<8x16xf32>, vector<16x128xf32>, vector<8x128xf32> -> vector<8x128xf32>
    %287 = arith.addf %285, %286 : vector<8x128xf32>
    %c0_86 = arith.constant 0 : index
    %c0_87 = arith.constant 0 : index
    %288 = vector.load %arg24[%c0_86, %c0_87] : memref<64x128xf32, #tpu.memory_space<vmem>>, vector<8x128xf32>
    %c56_88 = arith.constant 56 : index
    %c0_89 = arith.constant 0 : index
    %289 = vector.load %arg24[%c56_88, %c0_89] : memref<64x128xf32, #tpu.memory_space<vmem>>, vector<8x128xf32>
    %290 = arith.select %280, %288, %289 : vector<8x128xi1>, vector<8x128xf32>
    %291 = arith.addf %287, %290 : vector<8x128xf32>
    %292 = arith.negf %291 : vector<8x128xf32>
    %293 = math.exp %292 : vector<8x128xf32>
    %cst_90 = arith.constant 1.000000e+00 : f32
    %294 = vector.broadcast %cst_90 : f32 to vector<8x128xf32>
    %295 = arith.addf %294, %293 : vector<8x128xf32>
    %296 = arith.divf %294, %295 : vector<8x128xf32>
    %297 = math.tanh %291 : vector<8x128xf32>
    %298 = vector.extract_strided_slice %296 {offsets = [0, 0], sizes = [8, 16], strides = [1, 1]} : vector<8x128xf32> to vector<8x16xf32>
    %299 = vector.extract_strided_slice %296 {offsets = [0, 16], sizes = [8, 16], strides = [1, 1]} : vector<8x128xf32> to vector<8x16xf32>
    %300 = vector.extract_strided_slice %297 {offsets = [0, 32], sizes = [8, 16], strides = [1, 1]} : vector<8x128xf32> to vector<8x16xf32>
    %301 = vector.extract_strided_slice %296 {offsets = [0, 48], sizes = [8, 16], strides = [1, 1]} : vector<8x128xf32> to vector<8x16xf32>
    %302 = vector.extract_strided_slice %296 {offsets = [0, 64], sizes = [8, 16], strides = [1, 1]} : vector<8x128xf32> to vector<8x16xf32>
    %303 = vector.extract_strided_slice %296 {offsets = [0, 80], sizes = [8, 16], strides = [1, 1]} : vector<8x128xf32> to vector<8x16xf32>
    %304 = vector.extract_strided_slice %297 {offsets = [0, 96], sizes = [8, 16], strides = [1, 1]} : vector<8x128xf32> to vector<8x16xf32>
    %305 = vector.extract_strided_slice %296 {offsets = [0, 112], sizes = [8, 16], strides = [1, 1]} : vector<8x128xf32> to vector<8x16xf32>
    %306 = arith.mulf %299, %283 : vector<8x16xf32>
    %307 = arith.mulf %298, %300 : vector<8x16xf32>
    %308 = arith.addf %306, %307 : vector<8x16xf32>
    %309 = arith.mulf %303, %284 : vector<8x16xf32>
    %310 = arith.mulf %302, %304 : vector<8x16xf32>
    %311 = arith.addf %309, %310 : vector<8x16xf32>
    %312 = math.tanh %308 : vector<8x16xf32>
    %313 = arith.mulf %301, %312 : vector<8x16xf32>
    %314 = math.tanh %311 : vector<8x16xf32>
    %315 = arith.mulf %305, %314 : vector<8x16xf32>
    %cst_91 = arith.constant dense<0.000000e+00> : vector<8x128xf32>
    %316 = tpu.matmul %313, %276, %cst_91 {dimension_numbers = #tpu.dot_dimension_numbers<[1], [0], [0], [1], [0, 0, 1, 1], [], []>} : vector<8x16xf32>, vector<16x128xf32>, vector<8x128xf32> -> vector<8x128xf32>
    %cst_92 = arith.constant dense<0.000000e+00> : vector<8x128xf32>
    %317 = tpu.matmul %315, %277, %cst_92 {dimension_numbers = #tpu.dot_dimension_numbers<[1], [0], [0], [1], [0, 0, 1, 1], [], []>} : vector<8x16xf32>, vector<16x128xf32>, vector<8x128xf32> -> vector<8x128xf32>
    %318 = arith.addf %316, %317 : vector<8x128xf32>
    %c8_93 = arith.constant 8 : index
    %c0_94 = arith.constant 0 : index
    %319 = vector.load %arg24[%c8_93, %c0_94] : memref<64x128xf32, #tpu.memory_space<vmem>>, vector<8x128xf32>
    %c48_95 = arith.constant 48 : index
    %c0_96 = arith.constant 0 : index
    %320 = vector.load %arg24[%c48_95, %c0_96] : memref<64x128xf32, #tpu.memory_space<vmem>>, vector<8x128xf32>
    %321 = arith.select %280, %319, %320 : vector<8x128xi1>, vector<8x128xf32>
    %322 = arith.addf %318, %321 : vector<8x128xf32>
    %323 = arith.negf %322 : vector<8x128xf32>
    %324 = math.exp %323 : vector<8x128xf32>
    %cst_97 = arith.constant 1.000000e+00 : f32
    %325 = vector.broadcast %cst_97 : f32 to vector<8x128xf32>
    %326 = arith.addf %325, %324 : vector<8x128xf32>
    %327 = arith.divf %325, %326 : vector<8x128xf32>
    %328 = math.tanh %322 : vector<8x128xf32>
    %329 = vector.extract_strided_slice %327 {offsets = [0, 0], sizes = [8, 16], strides = [1, 1]} : vector<8x128xf32> to vector<8x16xf32>
    %330 = vector.extract_strided_slice %327 {offsets = [0, 16], sizes = [8, 16], strides = [1, 1]} : vector<8x128xf32> to vector<8x16xf32>
    %331 = vector.extract_strided_slice %328 {offsets = [0, 32], sizes = [8, 16], strides = [1, 1]} : vector<8x128xf32> to vector<8x16xf32>
    %332 = vector.extract_strided_slice %327 {offsets = [0, 48], sizes = [8, 16], strides = [1, 1]} : vector<8x128xf32> to vector<8x16xf32>
    %333 = vector.extract_strided_slice %327 {offsets = [0, 64], sizes = [8, 16], strides = [1, 1]} : vector<8x128xf32> to vector<8x16xf32>
    %334 = vector.extract_strided_slice %327 {offsets = [0, 80], sizes = [8, 16], strides = [1, 1]} : vector<8x128xf32> to vector<8x16xf32>
    %335 = vector.extract_strided_slice %328 {offsets = [0, 96], sizes = [8, 16], strides = [1, 1]} : vector<8x128xf32> to vector<8x16xf32>
    %336 = vector.extract_strided_slice %327 {offsets = [0, 112], sizes = [8, 16], strides = [1, 1]} : vector<8x128xf32> to vector<8x16xf32>
    %337 = arith.mulf %330, %308 : vector<8x16xf32>
    %338 = arith.mulf %329, %331 : vector<8x16xf32>
    %339 = arith.addf %337, %338 : vector<8x16xf32>
    %340 = arith.mulf %334, %311 : vector<8x16xf32>
    %341 = arith.mulf %333, %335 : vector<8x16xf32>
    %342 = arith.addf %340, %341 : vector<8x16xf32>
    %343 = math.tanh %339 : vector<8x16xf32>
    %344 = arith.mulf %332, %343 : vector<8x16xf32>
    %345 = math.tanh %342 : vector<8x16xf32>
    %346 = arith.mulf %336, %345 : vector<8x16xf32>
    %cst_98 = arith.constant dense<0.000000e+00> : vector<8x128xf32>
    %347 = tpu.matmul %344, %276, %cst_98 {dimension_numbers = #tpu.dot_dimension_numbers<[1], [0], [0], [1], [0, 0, 1, 1], [], []>} : vector<8x16xf32>, vector<16x128xf32>, vector<8x128xf32> -> vector<8x128xf32>
    %cst_99 = arith.constant dense<0.000000e+00> : vector<8x128xf32>
    %348 = tpu.matmul %346, %277, %cst_99 {dimension_numbers = #tpu.dot_dimension_numbers<[1], [0], [0], [1], [0, 0, 1, 1], [], []>} : vector<8x16xf32>, vector<16x128xf32>, vector<8x128xf32> -> vector<8x128xf32>
    %349 = arith.addf %347, %348 : vector<8x128xf32>
    %c16_100 = arith.constant 16 : index
    %c0_101 = arith.constant 0 : index
    %350 = vector.load %arg24[%c16_100, %c0_101] : memref<64x128xf32, #tpu.memory_space<vmem>>, vector<8x128xf32>
    %c40_102 = arith.constant 40 : index
    %c0_103 = arith.constant 0 : index
    %351 = vector.load %arg24[%c40_102, %c0_103] : memref<64x128xf32, #tpu.memory_space<vmem>>, vector<8x128xf32>
    %352 = arith.select %280, %350, %351 : vector<8x128xi1>, vector<8x128xf32>
    %353 = arith.addf %349, %352 : vector<8x128xf32>
    %354 = arith.negf %353 : vector<8x128xf32>
    %355 = math.exp %354 : vector<8x128xf32>
    %cst_104 = arith.constant 1.000000e+00 : f32
    %356 = vector.broadcast %cst_104 : f32 to vector<8x128xf32>
    %357 = arith.addf %356, %355 : vector<8x128xf32>
    %358 = arith.divf %356, %357 : vector<8x128xf32>
    %359 = math.tanh %353 : vector<8x128xf32>
    %360 = vector.extract_strided_slice %358 {offsets = [0, 0], sizes = [8, 16], strides = [1, 1]} : vector<8x128xf32> to vector<8x16xf32>
    %361 = vector.extract_strided_slice %358 {offsets = [0, 16], sizes = [8, 16], strides = [1, 1]} : vector<8x128xf32> to vector<8x16xf32>
    %362 = vector.extract_strided_slice %359 {offsets = [0, 32], sizes = [8, 16], strides = [1, 1]} : vector<8x128xf32> to vector<8x16xf32>
    %363 = vector.extract_strided_slice %358 {offsets = [0, 48], sizes = [8, 16], strides = [1, 1]} : vector<8x128xf32> to vector<8x16xf32>
    %364 = vector.extract_strided_slice %358 {offsets = [0, 64], sizes = [8, 16], strides = [1, 1]} : vector<8x128xf32> to vector<8x16xf32>
    %365 = vector.extract_strided_slice %358 {offsets = [0, 80], sizes = [8, 16], strides = [1, 1]} : vector<8x128xf32> to vector<8x16xf32>
    %366 = vector.extract_strided_slice %359 {offsets = [0, 96], sizes = [8, 16], strides = [1, 1]} : vector<8x128xf32> to vector<8x16xf32>
    %367 = vector.extract_strided_slice %358 {offsets = [0, 112], sizes = [8, 16], strides = [1, 1]} : vector<8x128xf32> to vector<8x16xf32>
    %368 = arith.mulf %361, %339 : vector<8x16xf32>
    %369 = arith.mulf %360, %362 : vector<8x16xf32>
    %370 = arith.addf %368, %369 : vector<8x16xf32>
    %371 = arith.mulf %365, %342 : vector<8x16xf32>
    %372 = arith.mulf %364, %366 : vector<8x16xf32>
    %373 = arith.addf %371, %372 : vector<8x16xf32>
    %374 = math.tanh %370 : vector<8x16xf32>
    %375 = arith.mulf %363, %374 : vector<8x16xf32>
    %376 = math.tanh %373 : vector<8x16xf32>
    %377 = arith.mulf %367, %376 : vector<8x16xf32>
    %cst_105 = arith.constant dense<0.000000e+00> : vector<8x128xf32>
    %378 = tpu.matmul %375, %276, %cst_105 {dimension_numbers = #tpu.dot_dimension_numbers<[1], [0], [0], [1], [0, 0, 1, 1], [], []>} : vector<8x16xf32>, vector<16x128xf32>, vector<8x128xf32> -> vector<8x128xf32>
    %cst_106 = arith.constant dense<0.000000e+00> : vector<8x128xf32>
    %379 = tpu.matmul %377, %277, %cst_106 {dimension_numbers = #tpu.dot_dimension_numbers<[1], [0], [0], [1], [0, 0, 1, 1], [], []>} : vector<8x16xf32>, vector<16x128xf32>, vector<8x128xf32> -> vector<8x128xf32>
    %380 = arith.addf %378, %379 : vector<8x128xf32>
    %c24_107 = arith.constant 24 : index
    %c0_108 = arith.constant 0 : index
    %381 = vector.load %arg24[%c24_107, %c0_108] : memref<64x128xf32, #tpu.memory_space<vmem>>, vector<8x128xf32>
    %c32_109 = arith.constant 32 : index
    %c0_110 = arith.constant 0 : index
    %382 = vector.load %arg24[%c32_109, %c0_110] : memref<64x128xf32, #tpu.memory_space<vmem>>, vector<8x128xf32>
    %383 = arith.select %280, %381, %382 : vector<8x128xi1>, vector<8x128xf32>
    %384 = arith.addf %380, %383 : vector<8x128xf32>
    %385 = arith.negf %384 : vector<8x128xf32>
    %386 = math.exp %385 : vector<8x128xf32>
    %cst_111 = arith.constant 1.000000e+00 : f32
    %387 = vector.broadcast %cst_111 : f32 to vector<8x128xf32>
    %388 = arith.addf %387, %386 : vector<8x128xf32>
    %389 = arith.divf %387, %388 : vector<8x128xf32>
    %390 = math.tanh %384 : vector<8x128xf32>
    %391 = vector.extract_strided_slice %389 {offsets = [0, 0], sizes = [8, 16], strides = [1, 1]} : vector<8x128xf32> to vector<8x16xf32>
    %392 = vector.extract_strided_slice %389 {offsets = [0, 16], sizes = [8, 16], strides = [1, 1]} : vector<8x128xf32> to vector<8x16xf32>
    %393 = vector.extract_strided_slice %390 {offsets = [0, 32], sizes = [8, 16], strides = [1, 1]} : vector<8x128xf32> to vector<8x16xf32>
    %394 = vector.extract_strided_slice %389 {offsets = [0, 48], sizes = [8, 16], strides = [1, 1]} : vector<8x128xf32> to vector<8x16xf32>
    %395 = vector.extract_strided_slice %389 {offsets = [0, 64], sizes = [8, 16], strides = [1, 1]} : vector<8x128xf32> to vector<8x16xf32>
    %396 = vector.extract_strided_slice %389 {offsets = [0, 80], sizes = [8, 16], strides = [1, 1]} : vector<8x128xf32> to vector<8x16xf32>
    %397 = vector.extract_strided_slice %390 {offsets = [0, 96], sizes = [8, 16], strides = [1, 1]} : vector<8x128xf32> to vector<8x16xf32>
    %398 = vector.extract_strided_slice %389 {offsets = [0, 112], sizes = [8, 16], strides = [1, 1]} : vector<8x128xf32> to vector<8x16xf32>
    %399 = arith.mulf %392, %370 : vector<8x16xf32>
    %400 = arith.mulf %391, %393 : vector<8x16xf32>
    %401 = arith.addf %399, %400 : vector<8x16xf32>
    %402 = arith.mulf %396, %373 : vector<8x16xf32>
    %403 = arith.mulf %395, %397 : vector<8x16xf32>
    %404 = arith.addf %402, %403 : vector<8x16xf32>
    %405 = math.tanh %401 : vector<8x16xf32>
    %406 = arith.mulf %394, %405 : vector<8x16xf32>
    %407 = math.tanh %404 : vector<8x16xf32>
    %408 = arith.mulf %398, %407 : vector<8x16xf32>
    %cst_112 = arith.constant dense<0.000000e+00> : vector<8x128xf32>
    %409 = tpu.matmul %406, %276, %cst_112 {dimension_numbers = #tpu.dot_dimension_numbers<[1], [0], [0], [1], [0, 0, 1, 1], [], []>} : vector<8x16xf32>, vector<16x128xf32>, vector<8x128xf32> -> vector<8x128xf32>
    %cst_113 = arith.constant dense<0.000000e+00> : vector<8x128xf32>
    %410 = tpu.matmul %408, %277, %cst_113 {dimension_numbers = #tpu.dot_dimension_numbers<[1], [0], [0], [1], [0, 0, 1, 1], [], []>} : vector<8x16xf32>, vector<16x128xf32>, vector<8x128xf32> -> vector<8x128xf32>
    %411 = arith.addf %409, %410 : vector<8x128xf32>
    %c32_114 = arith.constant 32 : index
    %c0_115 = arith.constant 0 : index
    %412 = vector.load %arg24[%c32_114, %c0_115] : memref<64x128xf32, #tpu.memory_space<vmem>>, vector<8x128xf32>
    %c24_116 = arith.constant 24 : index
    %c0_117 = arith.constant 0 : index
    %413 = vector.load %arg24[%c24_116, %c0_117] : memref<64x128xf32, #tpu.memory_space<vmem>>, vector<8x128xf32>
    %414 = arith.select %280, %412, %413 : vector<8x128xi1>, vector<8x128xf32>
    %415 = arith.addf %411, %414 : vector<8x128xf32>
    %416 = arith.negf %415 : vector<8x128xf32>
    %417 = math.exp %416 : vector<8x128xf32>
    %cst_118 = arith.constant 1.000000e+00 : f32
    %418 = vector.broadcast %cst_118 : f32 to vector<8x128xf32>
    %419 = arith.addf %418, %417 : vector<8x128xf32>
    %420 = arith.divf %418, %419 : vector<8x128xf32>
    %421 = math.tanh %415 : vector<8x128xf32>
    %422 = vector.extract_strided_slice %420 {offsets = [0, 0], sizes = [8, 16], strides = [1, 1]} : vector<8x128xf32> to vector<8x16xf32>
    %423 = vector.extract_strided_slice %420 {offsets = [0, 16], sizes = [8, 16], strides = [1, 1]} : vector<8x128xf32> to vector<8x16xf32>
    %424 = vector.extract_strided_slice %421 {offsets = [0, 32], sizes = [8, 16], strides = [1, 1]} : vector<8x128xf32> to vector<8x16xf32>
    %425 = vector.extract_strided_slice %420 {offsets = [0, 48], sizes = [8, 16], strides = [1, 1]} : vector<8x128xf32> to vector<8x16xf32>
    %426 = vector.extract_strided_slice %420 {offsets = [0, 64], sizes = [8, 16], strides = [1, 1]} : vector<8x128xf32> to vector<8x16xf32>
    %427 = vector.extract_strided_slice %420 {offsets = [0, 80], sizes = [8, 16], strides = [1, 1]} : vector<8x128xf32> to vector<8x16xf32>
    %428 = vector.extract_strided_slice %421 {offsets = [0, 96], sizes = [8, 16], strides = [1, 1]} : vector<8x128xf32> to vector<8x16xf32>
    %429 = vector.extract_strided_slice %420 {offsets = [0, 112], sizes = [8, 16], strides = [1, 1]} : vector<8x128xf32> to vector<8x16xf32>
    %430 = arith.mulf %423, %401 : vector<8x16xf32>
    %431 = arith.mulf %422, %424 : vector<8x16xf32>
    %432 = arith.addf %430, %431 : vector<8x16xf32>
    %433 = arith.mulf %427, %404 : vector<8x16xf32>
    %434 = arith.mulf %426, %428 : vector<8x16xf32>
    %435 = arith.addf %433, %434 : vector<8x16xf32>
    %436 = math.tanh %432 : vector<8x16xf32>
    %437 = arith.mulf %425, %436 : vector<8x16xf32>
    %438 = math.tanh %435 : vector<8x16xf32>
    %439 = arith.mulf %429, %438 : vector<8x16xf32>
    %cst_119 = arith.constant dense<0.000000e+00> : vector<8x128xf32>
    %440 = tpu.matmul %437, %276, %cst_119 {dimension_numbers = #tpu.dot_dimension_numbers<[1], [0], [0], [1], [0, 0, 1, 1], [], []>} : vector<8x16xf32>, vector<16x128xf32>, vector<8x128xf32> -> vector<8x128xf32>
    %cst_120 = arith.constant dense<0.000000e+00> : vector<8x128xf32>
    %441 = tpu.matmul %439, %277, %cst_120 {dimension_numbers = #tpu.dot_dimension_numbers<[1], [0], [0], [1], [0, 0, 1, 1], [], []>} : vector<8x16xf32>, vector<16x128xf32>, vector<8x128xf32> -> vector<8x128xf32>
    %442 = arith.addf %440, %441 : vector<8x128xf32>
    %c40_121 = arith.constant 40 : index
    %c0_122 = arith.constant 0 : index
    %443 = vector.load %arg24[%c40_121, %c0_122] : memref<64x128xf32, #tpu.memory_space<vmem>>, vector<8x128xf32>
    %c16_123 = arith.constant 16 : index
    %c0_124 = arith.constant 0 : index
    %444 = vector.load %arg24[%c16_123, %c0_124] : memref<64x128xf32, #tpu.memory_space<vmem>>, vector<8x128xf32>
    %445 = arith.select %280, %443, %444 : vector<8x128xi1>, vector<8x128xf32>
    %446 = arith.addf %442, %445 : vector<8x128xf32>
    %447 = arith.negf %446 : vector<8x128xf32>
    %448 = math.exp %447 : vector<8x128xf32>
    %cst_125 = arith.constant 1.000000e+00 : f32
    %449 = vector.broadcast %cst_125 : f32 to vector<8x128xf32>
    %450 = arith.addf %449, %448 : vector<8x128xf32>
    %451 = arith.divf %449, %450 : vector<8x128xf32>
    %452 = math.tanh %446 : vector<8x128xf32>
    %453 = vector.extract_strided_slice %451 {offsets = [0, 0], sizes = [8, 16], strides = [1, 1]} : vector<8x128xf32> to vector<8x16xf32>
    %454 = vector.extract_strided_slice %451 {offsets = [0, 16], sizes = [8, 16], strides = [1, 1]} : vector<8x128xf32> to vector<8x16xf32>
    %455 = vector.extract_strided_slice %452 {offsets = [0, 32], sizes = [8, 16], strides = [1, 1]} : vector<8x128xf32> to vector<8x16xf32>
    %456 = vector.extract_strided_slice %451 {offsets = [0, 48], sizes = [8, 16], strides = [1, 1]} : vector<8x128xf32> to vector<8x16xf32>
    %457 = vector.extract_strided_slice %451 {offsets = [0, 64], sizes = [8, 16], strides = [1, 1]} : vector<8x128xf32> to vector<8x16xf32>
    %458 = vector.extract_strided_slice %451 {offsets = [0, 80], sizes = [8, 16], strides = [1, 1]} : vector<8x128xf32> to vector<8x16xf32>
    %459 = vector.extract_strided_slice %452 {offsets = [0, 96], sizes = [8, 16], strides = [1, 1]} : vector<8x128xf32> to vector<8x16xf32>
    %460 = vector.extract_strided_slice %451 {offsets = [0, 112], sizes = [8, 16], strides = [1, 1]} : vector<8x128xf32> to vector<8x16xf32>
    %461 = arith.mulf %454, %432 : vector<8x16xf32>
    %462 = arith.mulf %453, %455 : vector<8x16xf32>
    %463 = arith.addf %461, %462 : vector<8x16xf32>
    %464 = arith.mulf %458, %435 : vector<8x16xf32>
    %465 = arith.mulf %457, %459 : vector<8x16xf32>
    %466 = arith.addf %464, %465 : vector<8x16xf32>
    %467 = math.tanh %463 : vector<8x16xf32>
    %468 = arith.mulf %456, %467 : vector<8x16xf32>
    %469 = math.tanh %466 : vector<8x16xf32>
    %470 = arith.mulf %460, %469 : vector<8x16xf32>
    %cst_126 = arith.constant dense<0.000000e+00> : vector<8x128xf32>
    %471 = tpu.matmul %468, %276, %cst_126 {dimension_numbers = #tpu.dot_dimension_numbers<[1], [0], [0], [1], [0, 0, 1, 1], [], []>} : vector<8x16xf32>, vector<16x128xf32>, vector<8x128xf32> -> vector<8x128xf32>
    %cst_127 = arith.constant dense<0.000000e+00> : vector<8x128xf32>
    %472 = tpu.matmul %470, %277, %cst_127 {dimension_numbers = #tpu.dot_dimension_numbers<[1], [0], [0], [1], [0, 0, 1, 1], [], []>} : vector<8x16xf32>, vector<16x128xf32>, vector<8x128xf32> -> vector<8x128xf32>
    %473 = arith.addf %471, %472 : vector<8x128xf32>
    %c48_128 = arith.constant 48 : index
    %c0_129 = arith.constant 0 : index
    %474 = vector.load %arg24[%c48_128, %c0_129] : memref<64x128xf32, #tpu.memory_space<vmem>>, vector<8x128xf32>
    %c8_130 = arith.constant 8 : index
    %c0_131 = arith.constant 0 : index
    %475 = vector.load %arg24[%c8_130, %c0_131] : memref<64x128xf32, #tpu.memory_space<vmem>>, vector<8x128xf32>
    %476 = arith.select %280, %474, %475 : vector<8x128xi1>, vector<8x128xf32>
    %477 = arith.addf %473, %476 : vector<8x128xf32>
    %478 = arith.negf %477 : vector<8x128xf32>
    %479 = math.exp %478 : vector<8x128xf32>
    %cst_132 = arith.constant 1.000000e+00 : f32
    %480 = vector.broadcast %cst_132 : f32 to vector<8x128xf32>
    %481 = arith.addf %480, %479 : vector<8x128xf32>
    %482 = arith.divf %480, %481 : vector<8x128xf32>
    %483 = math.tanh %477 : vector<8x128xf32>
    %484 = vector.extract_strided_slice %482 {offsets = [0, 0], sizes = [8, 16], strides = [1, 1]} : vector<8x128xf32> to vector<8x16xf32>
    %485 = vector.extract_strided_slice %482 {offsets = [0, 16], sizes = [8, 16], strides = [1, 1]} : vector<8x128xf32> to vector<8x16xf32>
    %486 = vector.extract_strided_slice %483 {offsets = [0, 32], sizes = [8, 16], strides = [1, 1]} : vector<8x128xf32> to vector<8x16xf32>
    %487 = vector.extract_strided_slice %482 {offsets = [0, 48], sizes = [8, 16], strides = [1, 1]} : vector<8x128xf32> to vector<8x16xf32>
    %488 = vector.extract_strided_slice %482 {offsets = [0, 64], sizes = [8, 16], strides = [1, 1]} : vector<8x128xf32> to vector<8x16xf32>
    %489 = vector.extract_strided_slice %482 {offsets = [0, 80], sizes = [8, 16], strides = [1, 1]} : vector<8x128xf32> to vector<8x16xf32>
    %490 = vector.extract_strided_slice %483 {offsets = [0, 96], sizes = [8, 16], strides = [1, 1]} : vector<8x128xf32> to vector<8x16xf32>
    %491 = vector.extract_strided_slice %482 {offsets = [0, 112], sizes = [8, 16], strides = [1, 1]} : vector<8x128xf32> to vector<8x16xf32>
    %492 = arith.mulf %485, %463 : vector<8x16xf32>
    %493 = arith.mulf %484, %486 : vector<8x16xf32>
    %494 = arith.addf %492, %493 : vector<8x16xf32>
    %495 = arith.mulf %489, %466 : vector<8x16xf32>
    %496 = arith.mulf %488, %490 : vector<8x16xf32>
    %497 = arith.addf %495, %496 : vector<8x16xf32>
    %498 = math.tanh %494 : vector<8x16xf32>
    %499 = arith.mulf %487, %498 : vector<8x16xf32>
    %500 = math.tanh %497 : vector<8x16xf32>
    %501 = arith.mulf %491, %500 : vector<8x16xf32>
    %cst_133 = arith.constant dense<0.000000e+00> : vector<8x128xf32>
    %502 = tpu.matmul %499, %276, %cst_133 {dimension_numbers = #tpu.dot_dimension_numbers<[1], [0], [0], [1], [0, 0, 1, 1], [], []>} : vector<8x16xf32>, vector<16x128xf32>, vector<8x128xf32> -> vector<8x128xf32>
    %cst_134 = arith.constant dense<0.000000e+00> : vector<8x128xf32>
    %503 = tpu.matmul %501, %277, %cst_134 {dimension_numbers = #tpu.dot_dimension_numbers<[1], [0], [0], [1], [0, 0, 1, 1], [], []>} : vector<8x16xf32>, vector<16x128xf32>, vector<8x128xf32> -> vector<8x128xf32>
    %504 = arith.addf %502, %503 : vector<8x128xf32>
    %c56_135 = arith.constant 56 : index
    %c0_136 = arith.constant 0 : index
    %505 = vector.load %arg24[%c56_135, %c0_136] : memref<64x128xf32, #tpu.memory_space<vmem>>, vector<8x128xf32>
    %c0_137 = arith.constant 0 : index
    %c0_138 = arith.constant 0 : index
    %506 = vector.load %arg24[%c0_137, %c0_138] : memref<64x128xf32, #tpu.memory_space<vmem>>, vector<8x128xf32>
    %507 = arith.select %280, %505, %506 : vector<8x128xi1>, vector<8x128xf32>
    %508 = arith.addf %504, %507 : vector<8x128xf32>
    %509 = arith.negf %508 : vector<8x128xf32>
    %510 = math.exp %509 : vector<8x128xf32>
    %cst_139 = arith.constant 1.000000e+00 : f32
    %511 = vector.broadcast %cst_139 : f32 to vector<8x128xf32>
    %512 = arith.addf %511, %510 : vector<8x128xf32>
    %513 = arith.divf %511, %512 : vector<8x128xf32>
    %514 = math.tanh %508 : vector<8x128xf32>
    %515 = vector.extract_strided_slice %513 {offsets = [0, 0], sizes = [8, 16], strides = [1, 1]} : vector<8x128xf32> to vector<8x16xf32>
    %516 = vector.extract_strided_slice %513 {offsets = [0, 16], sizes = [8, 16], strides = [1, 1]} : vector<8x128xf32> to vector<8x16xf32>
    %517 = vector.extract_strided_slice %514 {offsets = [0, 32], sizes = [8, 16], strides = [1, 1]} : vector<8x128xf32> to vector<8x16xf32>
    %518 = vector.extract_strided_slice %513 {offsets = [0, 48], sizes = [8, 16], strides = [1, 1]} : vector<8x128xf32> to vector<8x16xf32>
    %519 = vector.extract_strided_slice %513 {offsets = [0, 64], sizes = [8, 16], strides = [1, 1]} : vector<8x128xf32> to vector<8x16xf32>
    %520 = vector.extract_strided_slice %513 {offsets = [0, 80], sizes = [8, 16], strides = [1, 1]} : vector<8x128xf32> to vector<8x16xf32>
    %521 = vector.extract_strided_slice %514 {offsets = [0, 96], sizes = [8, 16], strides = [1, 1]} : vector<8x128xf32> to vector<8x16xf32>
    %522 = vector.extract_strided_slice %513 {offsets = [0, 112], sizes = [8, 16], strides = [1, 1]} : vector<8x128xf32> to vector<8x16xf32>
    %523 = arith.mulf %516, %494 : vector<8x16xf32>
    %524 = arith.mulf %515, %517 : vector<8x16xf32>
    %525 = arith.addf %523, %524 : vector<8x16xf32>
    %526 = arith.mulf %520, %497 : vector<8x16xf32>
    %527 = arith.mulf %519, %521 : vector<8x16xf32>
    %528 = arith.addf %526, %527 : vector<8x16xf32>
    %529 = math.tanh %525 : vector<8x16xf32>
    %530 = arith.mulf %518, %529 : vector<8x16xf32>
    %531 = math.tanh %528 : vector<8x16xf32>
    %532 = arith.mulf %522, %531 : vector<8x16xf32>
    %533 = tpu.concatenate %313, %344, %375, %406, %437, %468, %499, %530 in 0 : vector<8x16xf32>, vector<8x16xf32>, vector<8x16xf32>, vector<8x16xf32>, vector<8x16xf32>, vector<8x16xf32>, vector<8x16xf32>, vector<8x16xf32> -> vector<64x16xf32>
    %534 = tpu.concatenate %532, %501, %470, %439, %408, %377, %346, %315 in 0 : vector<8x16xf32>, vector<8x16xf32>, vector<8x16xf32>, vector<8x16xf32>, vector<8x16xf32>, vector<8x16xf32>, vector<8x16xf32>, vector<8x16xf32> -> vector<64x16xf32>
    %c0_140 = arith.constant 0 : index
    %c0_141 = arith.constant 0 : index
    %535 = vector.load %arg8[%c0_140, %c0_141] : memref<32x128xf32, #tpu.memory_space<vmem>>, vector<16x128xf32>
    %cst_142 = arith.constant dense<0.000000e+00> : vector<64x128xf32>
    %536 = tpu.matmul %533, %535, %cst_142 {dimension_numbers = #tpu.dot_dimension_numbers<[1], [0], [0], [1], [0, 0, 1, 1], [], []>} : vector<64x16xf32>, vector<16x128xf32>, vector<64x128xf32> -> vector<64x128xf32>
    %c16_143 = arith.constant 16 : index
    %c0_144 = arith.constant 0 : index
    %537 = vector.load %arg8[%c16_143, %c0_144] : memref<32x128xf32, #tpu.memory_space<vmem>>, vector<16x128xf32>
    %cst_145 = arith.constant dense<0.000000e+00> : vector<64x128xf32>
    %538 = tpu.matmul %534, %537, %cst_145 {dimension_numbers = #tpu.dot_dimension_numbers<[1], [0], [0], [1], [0, 0, 1, 1], [], []>} : vector<64x16xf32>, vector<16x128xf32>, vector<64x128xf32> -> vector<64x128xf32>
    %539 = arith.addf %536, %538 : vector<64x128xf32>
    %c0_146 = arith.constant 0 : index
    %c0_147 = arith.constant 0 : index
    %540 = vector.load %arg9[%c0_146, %c0_147] : memref<1x128xf32, #tpu.memory_space<vmem>>, vector<1x128xf32>
    %541 = vector.broadcast %540 : vector<1x128xf32> to vector<64x128xf32>
    %542 = arith.addf %539, %541 : vector<64x128xf32>
    %c0_148 = arith.constant 0 : index
    %c0_149 = arith.constant 0 : index
    %543 = vector.load %arg25[%c0_148, %c0_149] : memref<64x128xf32, #tpu.memory_space<vmem>>, vector<64x128xf32>
    tpu.vector_store %arg25[%c0_148, %c0_149], %542 {strides = array<i32>} : memref<64x128xf32, #tpu.memory_space<vmem>>, vector<64x128xf32>,
    %c0_150 = arith.constant 0 : index
    %c0_151 = arith.constant 0 : index
    %544 = vector.load %arg10[%c0_150, %c0_151] : memref<32x128xf32, #tpu.memory_space<vmem>>, vector<16x128xf32>
    %c16_152 = arith.constant 16 : index
    %c0_153 = arith.constant 0 : index
    %545 = vector.load %arg10[%c16_152, %c0_153] : memref<32x128xf32, #tpu.memory_space<vmem>>, vector<16x128xf32>
    %546 = tpu.iota {dimensions = array<i32: 1>} : vector<8x128xi32>
    %c64_i32_154 = arith.constant 64 : i32
    %547 = vector.broadcast %c64_i32_154 : i32 to vector<8x128xi32>
    %548 = arith.cmpi slt, %546, %547 : vector<8x128xi32>
    %cst_155 = arith.constant 0.000000e+00 : f32
    %549 = vector.broadcast %cst_155 : f32 to vector<8x16xf32>
    %cst_156 = arith.constant 0.000000e+00 : f32
    %550 = vector.broadcast %cst_156 : f32 to vector<8x16xf32>
    %cst_157 = arith.constant 0.000000e+00 : f32
    %551 = vector.broadcast %cst_157 : f32 to vector<8x16xf32>
    %cst_158 = arith.constant 0.000000e+00 : f32
    %552 = vector.broadcast %cst_158 : f32 to vector<8x16xf32>
    %cst_159 = arith.constant dense<0.000000e+00> : vector<8x128xf32>
    %553 = tpu.matmul %549, %544, %cst_159 {dimension_numbers = #tpu.dot_dimension_numbers<[1], [0], [0], [1], [0, 0, 1, 1], [], []>} : vector<8x16xf32>, vector<16x128xf32>, vector<8x128xf32> -> vector<8x128xf32>
    %cst_160 = arith.constant dense<0.000000e+00> : vector<8x128xf32>
    %554 = tpu.matmul %550, %545, %cst_160 {dimension_numbers = #tpu.dot_dimension_numbers<[1], [0], [0], [1], [0, 0, 1, 1], [], []>} : vector<8x16xf32>, vector<16x128xf32>, vector<8x128xf32> -> vector<8x128xf32>
    %555 = arith.addf %553, %554 : vector<8x128xf32>
    %c0_161 = arith.constant 0 : index
    %c0_162 = arith.constant 0 : index
    %556 = vector.load %arg25[%c0_161, %c0_162] : memref<64x128xf32, #tpu.memory_space<vmem>>, vector<8x128xf32>
    %c56_163 = arith.constant 56 : index
    %c0_164 = arith.constant 0 : index
    %557 = vector.load %arg25[%c56_163, %c0_164] : memref<64x128xf32, #tpu.memory_space<vmem>>, vector<8x128xf32>
    %558 = arith.select %548, %556, %557 : vector<8x128xi1>, vector<8x128xf32>
    %559 = arith.addf %555, %558 : vector<8x128xf32>
    %560 = arith.negf %559 : vector<8x128xf32>
    %561 = math.exp %560 : vector<8x128xf32>
    %cst_165 = arith.constant 1.000000e+00 : f32
    %562 = vector.broadcast %cst_165 : f32 to vector<8x128xf32>
    %563 = arith.addf %562, %561 : vector<8x128xf32>
    %564 = arith.divf %562, %563 : vector<8x128xf32>
    %565 = math.tanh %559 : vector<8x128xf32>
    %566 = vector.extract_strided_slice %564 {offsets = [0, 0], sizes = [8, 16], strides = [1, 1]} : vector<8x128xf32> to vector<8x16xf32>
    %567 = vector.extract_strided_slice %564 {offsets = [0, 16], sizes = [8, 16], strides = [1, 1]} : vector<8x128xf32> to vector<8x16xf32>
    %568 = vector.extract_strided_slice %565 {offsets = [0, 32], sizes = [8, 16], strides = [1, 1]} : vector<8x128xf32> to vector<8x16xf32>
    %569 = vector.extract_strided_slice %564 {offsets = [0, 48], sizes = [8, 16], strides = [1, 1]} : vector<8x128xf32> to vector<8x16xf32>
    %570 = vector.extract_strided_slice %564 {offsets = [0, 64], sizes = [8, 16], strides = [1, 1]} : vector<8x128xf32> to vector<8x16xf32>
    %571 = vector.extract_strided_slice %564 {offsets = [0, 80], sizes = [8, 16], strides = [1, 1]} : vector<8x128xf32> to vector<8x16xf32>
    %572 = vector.extract_strided_slice %565 {offsets = [0, 96], sizes = [8, 16], strides = [1, 1]} : vector<8x128xf32> to vector<8x16xf32>
    %573 = vector.extract_strided_slice %564 {offsets = [0, 112], sizes = [8, 16], strides = [1, 1]} : vector<8x128xf32> to vector<8x16xf32>
    %574 = arith.mulf %567, %551 : vector<8x16xf32>
    %575 = arith.mulf %566, %568 : vector<8x16xf32>
    %576 = arith.addf %574, %575 : vector<8x16xf32>
    %577 = arith.mulf %571, %552 : vector<8x16xf32>
    %578 = arith.mulf %570, %572 : vector<8x16xf32>
    %579 = arith.addf %577, %578 : vector<8x16xf32>
    %580 = math.tanh %576 : vector<8x16xf32>
    %581 = arith.mulf %569, %580 : vector<8x16xf32>
    %582 = math.tanh %579 : vector<8x16xf32>
    %583 = arith.mulf %573, %582 : vector<8x16xf32>
    %cst_166 = arith.constant dense<0.000000e+00> : vector<8x128xf32>
    %584 = tpu.matmul %581, %544, %cst_166 {dimension_numbers = #tpu.dot_dimension_numbers<[1], [0], [0], [1], [0, 0, 1, 1], [], []>} : vector<8x16xf32>, vector<16x128xf32>, vector<8x128xf32> -> vector<8x128xf32>
    %cst_167 = arith.constant dense<0.000000e+00> : vector<8x128xf32>
    %585 = tpu.matmul %583, %545, %cst_167 {dimension_numbers = #tpu.dot_dimension_numbers<[1], [0], [0], [1], [0, 0, 1, 1], [], []>} : vector<8x16xf32>, vector<16x128xf32>, vector<8x128xf32> -> vector<8x128xf32>
    %586 = arith.addf %584, %585 : vector<8x128xf32>
    %c8_168 = arith.constant 8 : index
    %c0_169 = arith.constant 0 : index
    %587 = vector.load %arg25[%c8_168, %c0_169] : memref<64x128xf32, #tpu.memory_space<vmem>>, vector<8x128xf32>
    %c48_170 = arith.constant 48 : index
    %c0_171 = arith.constant 0 : index
    %588 = vector.load %arg25[%c48_170, %c0_171] : memref<64x128xf32, #tpu.memory_space<vmem>>, vector<8x128xf32>
    %589 = arith.select %548, %587, %588 : vector<8x128xi1>, vector<8x128xf32>
    %590 = arith.addf %586, %589 : vector<8x128xf32>
    %591 = arith.negf %590 : vector<8x128xf32>
    %592 = math.exp %591 : vector<8x128xf32>
    %cst_172 = arith.constant 1.000000e+00 : f32
    %593 = vector.broadcast %cst_172 : f32 to vector<8x128xf32>
    %594 = arith.addf %593, %592 : vector<8x128xf32>
    %595 = arith.divf %593, %594 : vector<8x128xf32>
    %596 = math.tanh %590 : vector<8x128xf32>
    %597 = vector.extract_strided_slice %595 {offsets = [0, 0], sizes = [8, 16], strides = [1, 1]} : vector<8x128xf32> to vector<8x16xf32>
    %598 = vector.extract_strided_slice %595 {offsets = [0, 16], sizes = [8, 16], strides = [1, 1]} : vector<8x128xf32> to vector<8x16xf32>
    %599 = vector.extract_strided_slice %596 {offsets = [0, 32], sizes = [8, 16], strides = [1, 1]} : vector<8x128xf32> to vector<8x16xf32>
    %600 = vector.extract_strided_slice %595 {offsets = [0, 48], sizes = [8, 16], strides = [1, 1]} : vector<8x128xf32> to vector<8x16xf32>
    %601 = vector.extract_strided_slice %595 {offsets = [0, 64], sizes = [8, 16], strides = [1, 1]} : vector<8x128xf32> to vector<8x16xf32>
    %602 = vector.extract_strided_slice %595 {offsets = [0, 80], sizes = [8, 16], strides = [1, 1]} : vector<8x128xf32> to vector<8x16xf32>
    %603 = vector.extract_strided_slice %596 {offsets = [0, 96], sizes = [8, 16], strides = [1, 1]} : vector<8x128xf32> to vector<8x16xf32>
    %604 = vector.extract_strided_slice %595 {offsets = [0, 112], sizes = [8, 16], strides = [1, 1]} : vector<8x128xf32> to vector<8x16xf32>
    %605 = arith.mulf %598, %576 : vector<8x16xf32>
    %606 = arith.mulf %597, %599 : vector<8x16xf32>
    %607 = arith.addf %605, %606 : vector<8x16xf32>
    %608 = arith.mulf %602, %579 : vector<8x16xf32>
    %609 = arith.mulf %601, %603 : vector<8x16xf32>
    %610 = arith.addf %608, %609 : vector<8x16xf32>
    %611 = math.tanh %607 : vector<8x16xf32>
    %612 = arith.mulf %600, %611 : vector<8x16xf32>
    %613 = math.tanh %610 : vector<8x16xf32>
    %614 = arith.mulf %604, %613 : vector<8x16xf32>
    %cst_173 = arith.constant dense<0.000000e+00> : vector<8x128xf32>
    %615 = tpu.matmul %612, %544, %cst_173 {dimension_numbers = #tpu.dot_dimension_numbers<[1], [0], [0], [1], [0, 0, 1, 1], [], []>} : vector<8x16xf32>, vector<16x128xf32>, vector<8x128xf32> -> vector<8x128xf32>
    %cst_174 = arith.constant dense<0.000000e+00> : vector<8x128xf32>
    %616 = tpu.matmul %614, %545, %cst_174 {dimension_numbers = #tpu.dot_dimension_numbers<[1], [0], [0], [1], [0, 0, 1, 1], [], []>} : vector<8x16xf32>, vector<16x128xf32>, vector<8x128xf32> -> vector<8x128xf32>
    %617 = arith.addf %615, %616 : vector<8x128xf32>
    %c16_175 = arith.constant 16 : index
    %c0_176 = arith.constant 0 : index
    %618 = vector.load %arg25[%c16_175, %c0_176] : memref<64x128xf32, #tpu.memory_space<vmem>>, vector<8x128xf32>
    %c40_177 = arith.constant 40 : index
    %c0_178 = arith.constant 0 : index
    %619 = vector.load %arg25[%c40_177, %c0_178] : memref<64x128xf32, #tpu.memory_space<vmem>>, vector<8x128xf32>
    %620 = arith.select %548, %618, %619 : vector<8x128xi1>, vector<8x128xf32>
    %621 = arith.addf %617, %620 : vector<8x128xf32>
    %622 = arith.negf %621 : vector<8x128xf32>
    %623 = math.exp %622 : vector<8x128xf32>
    %cst_179 = arith.constant 1.000000e+00 : f32
    %624 = vector.broadcast %cst_179 : f32 to vector<8x128xf32>
    %625 = arith.addf %624, %623 : vector<8x128xf32>
    %626 = arith.divf %624, %625 : vector<8x128xf32>
    %627 = math.tanh %621 : vector<8x128xf32>
    %628 = vector.extract_strided_slice %626 {offsets = [0, 0], sizes = [8, 16], strides = [1, 1]} : vector<8x128xf32> to vector<8x16xf32>
    %629 = vector.extract_strided_slice %626 {offsets = [0, 16], sizes = [8, 16], strides = [1, 1]} : vector<8x128xf32> to vector<8x16xf32>
    %630 = vector.extract_strided_slice %627 {offsets = [0, 32], sizes = [8, 16], strides = [1, 1]} : vector<8x128xf32> to vector<8x16xf32>
    %631 = vector.extract_strided_slice %626 {offsets = [0, 48], sizes = [8, 16], strides = [1, 1]} : vector<8x128xf32> to vector<8x16xf32>
    %632 = vector.extract_strided_slice %626 {offsets = [0, 64], sizes = [8, 16], strides = [1, 1]} : vector<8x128xf32> to vector<8x16xf32>
    %633 = vector.extract_strided_slice %626 {offsets = [0, 80], sizes = [8, 16], strides = [1, 1]} : vector<8x128xf32> to vector<8x16xf32>
    %634 = vector.extract_strided_slice %627 {offsets = [0, 96], sizes = [8, 16], strides = [1, 1]} : vector<8x128xf32> to vector<8x16xf32>
    %635 = vector.extract_strided_slice %626 {offsets = [0, 112], sizes = [8, 16], strides = [1, 1]} : vector<8x128xf32> to vector<8x16xf32>
    %636 = arith.mulf %629, %607 : vector<8x16xf32>
    %637 = arith.mulf %628, %630 : vector<8x16xf32>
    %638 = arith.addf %636, %637 : vector<8x16xf32>
    %639 = arith.mulf %633, %610 : vector<8x16xf32>
    %640 = arith.mulf %632, %634 : vector<8x16xf32>
    %641 = arith.addf %639, %640 : vector<8x16xf32>
    %642 = math.tanh %638 : vector<8x16xf32>
    %643 = arith.mulf %631, %642 : vector<8x16xf32>
    %644 = math.tanh %641 : vector<8x16xf32>
    %645 = arith.mulf %635, %644 : vector<8x16xf32>
    %cst_180 = arith.constant dense<0.000000e+00> : vector<8x128xf32>
    %646 = tpu.matmul %643, %544, %cst_180 {dimension_numbers = #tpu.dot_dimension_numbers<[1], [0], [0], [1], [0, 0, 1, 1], [], []>} : vector<8x16xf32>, vector<16x128xf32>, vector<8x128xf32> -> vector<8x128xf32>
    %cst_181 = arith.constant dense<0.000000e+00> : vector<8x128xf32>
    %647 = tpu.matmul %645, %545, %cst_181 {dimension_numbers = #tpu.dot_dimension_numbers<[1], [0], [0], [1], [0, 0, 1, 1], [], []>} : vector<8x16xf32>, vector<16x128xf32>, vector<8x128xf32> -> vector<8x128xf32>
    %648 = arith.addf %646, %647 : vector<8x128xf32>
    %c24_182 = arith.constant 24 : index
    %c0_183 = arith.constant 0 : index
    %649 = vector.load %arg25[%c24_182, %c0_183] : memref<64x128xf32, #tpu.memory_space<vmem>>, vector<8x128xf32>
    %c32_184 = arith.constant 32 : index
    %c0_185 = arith.constant 0 : index
    %650 = vector.load %arg25[%c32_184, %c0_185] : memref<64x128xf32, #tpu.memory_space<vmem>>, vector<8x128xf32>
    %651 = arith.select %548, %649, %650 : vector<8x128xi1>, vector<8x128xf32>
    %652 = arith.addf %648, %651 : vector<8x128xf32>
    %653 = arith.negf %652 : vector<8x128xf32>
    %654 = math.exp %653 : vector<8x128xf32>
    %cst_186 = arith.constant 1.000000e+00 : f32
    %655 = vector.broadcast %cst_186 : f32 to vector<8x128xf32>
    %656 = arith.addf %655, %654 : vector<8x128xf32>
    %657 = arith.divf %655, %656 : vector<8x128xf32>
    %658 = math.tanh %652 : vector<8x128xf32>
    %659 = vector.extract_strided_slice %657 {offsets = [0, 0], sizes = [8, 16], strides = [1, 1]} : vector<8x128xf32> to vector<8x16xf32>
    %660 = vector.extract_strided_slice %657 {offsets = [0, 16], sizes = [8, 16], strides = [1, 1]} : vector<8x128xf32> to vector<8x16xf32>
    %661 = vector.extract_strided_slice %658 {offsets = [0, 32], sizes = [8, 16], strides = [1, 1]} : vector<8x128xf32> to vector<8x16xf32>
    %662 = vector.extract_strided_slice %657 {offsets = [0, 48], sizes = [8, 16], strides = [1, 1]} : vector<8x128xf32> to vector<8x16xf32>
    %663 = vector.extract_strided_slice %657 {offsets = [0, 64], sizes = [8, 16], strides = [1, 1]} : vector<8x128xf32> to vector<8x16xf32>
    %664 = vector.extract_strided_slice %657 {offsets = [0, 80], sizes = [8, 16], strides = [1, 1]} : vector<8x128xf32> to vector<8x16xf32>
    %665 = vector.extract_strided_slice %658 {offsets = [0, 96], sizes = [8, 16], strides = [1, 1]} : vector<8x128xf32> to vector<8x16xf32>
    %666 = vector.extract_strided_slice %657 {offsets = [0, 112], sizes = [8, 16], strides = [1, 1]} : vector<8x128xf32> to vector<8x16xf32>
    %667 = arith.mulf %660, %638 : vector<8x16xf32>
    %668 = arith.mulf %659, %661 : vector<8x16xf32>
    %669 = arith.addf %667, %668 : vector<8x16xf32>
    %670 = arith.mulf %664, %641 : vector<8x16xf32>
    %671 = arith.mulf %663, %665 : vector<8x16xf32>
    %672 = arith.addf %670, %671 : vector<8x16xf32>
    %673 = math.tanh %669 : vector<8x16xf32>
    %674 = arith.mulf %662, %673 : vector<8x16xf32>
    %675 = math.tanh %672 : vector<8x16xf32>
    %676 = arith.mulf %666, %675 : vector<8x16xf32>
    %cst_187 = arith.constant dense<0.000000e+00> : vector<8x128xf32>
    %677 = tpu.matmul %674, %544, %cst_187 {dimension_numbers = #tpu.dot_dimension_numbers<[1], [0], [0], [1], [0, 0, 1, 1], [], []>} : vector<8x16xf32>, vector<16x128xf32>, vector<8x128xf32> -> vector<8x128xf32>
    %cst_188 = arith.constant dense<0.000000e+00> : vector<8x128xf32>
    %678 = tpu.matmul %676, %545, %cst_188 {dimension_numbers = #tpu.dot_dimension_numbers<[1], [0], [0], [1], [0, 0, 1, 1], [], []>} : vector<8x16xf32>, vector<16x128xf32>, vector<8x128xf32> -> vector<8x128xf32>
    %679 = arith.addf %677, %678 : vector<8x128xf32>
    %c32_189 = arith.constant 32 : index
    %c0_190 = arith.constant 0 : index
    %680 = vector.load %arg25[%c32_189, %c0_190] : memref<64x128xf32, #tpu.memory_space<vmem>>, vector<8x128xf32>
    %c24_191 = arith.constant 24 : index
    %c0_192 = arith.constant 0 : index
    %681 = vector.load %arg25[%c24_191, %c0_192] : memref<64x128xf32, #tpu.memory_space<vmem>>, vector<8x128xf32>
    %682 = arith.select %548, %680, %681 : vector<8x128xi1>, vector<8x128xf32>
    %683 = arith.addf %679, %682 : vector<8x128xf32>
    %684 = arith.negf %683 : vector<8x128xf32>
    %685 = math.exp %684 : vector<8x128xf32>
    %cst_193 = arith.constant 1.000000e+00 : f32
    %686 = vector.broadcast %cst_193 : f32 to vector<8x128xf32>
    %687 = arith.addf %686, %685 : vector<8x128xf32>
    %688 = arith.divf %686, %687 : vector<8x128xf32>
    %689 = math.tanh %683 : vector<8x128xf32>
    %690 = vector.extract_strided_slice %688 {offsets = [0, 0], sizes = [8, 16], strides = [1, 1]} : vector<8x128xf32> to vector<8x16xf32>
    %691 = vector.extract_strided_slice %688 {offsets = [0, 16], sizes = [8, 16], strides = [1, 1]} : vector<8x128xf32> to vector<8x16xf32>
    %692 = vector.extract_strided_slice %689 {offsets = [0, 32], sizes = [8, 16], strides = [1, 1]} : vector<8x128xf32> to vector<8x16xf32>
    %693 = vector.extract_strided_slice %688 {offsets = [0, 48], sizes = [8, 16], strides = [1, 1]} : vector<8x128xf32> to vector<8x16xf32>
    %694 = vector.extract_strided_slice %688 {offsets = [0, 64], sizes = [8, 16], strides = [1, 1]} : vector<8x128xf32> to vector<8x16xf32>
    %695 = vector.extract_strided_slice %688 {offsets = [0, 80], sizes = [8, 16], strides = [1, 1]} : vector<8x128xf32> to vector<8x16xf32>
    %696 = vector.extract_strided_slice %689 {offsets = [0, 96], sizes = [8, 16], strides = [1, 1]} : vector<8x128xf32> to vector<8x16xf32>
    %697 = vector.extract_strided_slice %688 {offsets = [0, 112], sizes = [8, 16], strides = [1, 1]} : vector<8x128xf32> to vector<8x16xf32>
    %698 = arith.mulf %691, %669 : vector<8x16xf32>
    %699 = arith.mulf %690, %692 : vector<8x16xf32>
    %700 = arith.addf %698, %699 : vector<8x16xf32>
    %701 = arith.mulf %695, %672 : vector<8x16xf32>
    %702 = arith.mulf %694, %696 : vector<8x16xf32>
    %703 = arith.addf %701, %702 : vector<8x16xf32>
    %704 = math.tanh %700 : vector<8x16xf32>
    %705 = arith.mulf %693, %704 : vector<8x16xf32>
    %706 = math.tanh %703 : vector<8x16xf32>
    %707 = arith.mulf %697, %706 : vector<8x16xf32>
    %cst_194 = arith.constant dense<0.000000e+00> : vector<8x128xf32>
    %708 = tpu.matmul %705, %544, %cst_194 {dimension_numbers = #tpu.dot_dimension_numbers<[1], [0], [0], [1], [0, 0, 1, 1], [], []>} : vector<8x16xf32>, vector<16x128xf32>, vector<8x128xf32> -> vector<8x128xf32>
    %cst_195 = arith.constant dense<0.000000e+00> : vector<8x128xf32>
    %709 = tpu.matmul %707, %545, %cst_195 {dimension_numbers = #tpu.dot_dimension_numbers<[1], [0], [0], [1], [0, 0, 1, 1], [], []>} : vector<8x16xf32>, vector<16x128xf32>, vector<8x128xf32> -> vector<8x128xf32>
    %710 = arith.addf %708, %709 : vector<8x128xf32>
    %c40_196 = arith.constant 40 : index
    %c0_197 = arith.constant 0 : index
    %711 = vector.load %arg25[%c40_196, %c0_197] : memref<64x128xf32, #tpu.memory_space<vmem>>, vector<8x128xf32>
    %c16_198 = arith.constant 16 : index
    %c0_199 = arith.constant 0 : index
    %712 = vector.load %arg25[%c16_198, %c0_199] : memref<64x128xf32, #tpu.memory_space<vmem>>, vector<8x128xf32>
    %713 = arith.select %548, %711, %712 : vector<8x128xi1>, vector<8x128xf32>
    %714 = arith.addf %710, %713 : vector<8x128xf32>
    %715 = arith.negf %714 : vector<8x128xf32>
    %716 = math.exp %715 : vector<8x128xf32>
    %cst_200 = arith.constant 1.000000e+00 : f32
    %717 = vector.broadcast %cst_200 : f32 to vector<8x128xf32>
    %718 = arith.addf %717, %716 : vector<8x128xf32>
    %719 = arith.divf %717, %718 : vector<8x128xf32>
    %720 = math.tanh %714 : vector<8x128xf32>
    %721 = vector.extract_strided_slice %719 {offsets = [0, 0], sizes = [8, 16], strides = [1, 1]} : vector<8x128xf32> to vector<8x16xf32>
    %722 = vector.extract_strided_slice %719 {offsets = [0, 16], sizes = [8, 16], strides = [1, 1]} : vector<8x128xf32> to vector<8x16xf32>
    %723 = vector.extract_strided_slice %720 {offsets = [0, 32], sizes = [8, 16], strides = [1, 1]} : vector<8x128xf32> to vector<8x16xf32>
    %724 = vector.extract_strided_slice %719 {offsets = [0, 48], sizes = [8, 16], strides = [1, 1]} : vector<8x128xf32> to vector<8x16xf32>
    %725 = vector.extract_strided_slice %719 {offsets = [0, 64], sizes = [8, 16], strides = [1, 1]} : vector<8x128xf32> to vector<8x16xf32>
    %726 = vector.extract_strided_slice %719 {offsets = [0, 80], sizes = [8, 16], strides = [1, 1]} : vector<8x128xf32> to vector<8x16xf32>
    %727 = vector.extract_strided_slice %720 {offsets = [0, 96], sizes = [8, 16], strides = [1, 1]} : vector<8x128xf32> to vector<8x16xf32>
    %728 = vector.extract_strided_slice %719 {offsets = [0, 112], sizes = [8, 16], strides = [1, 1]} : vector<8x128xf32> to vector<8x16xf32>
    %729 = arith.mulf %722, %700 : vector<8x16xf32>
    %730 = arith.mulf %721, %723 : vector<8x16xf32>
    %731 = arith.addf %729, %730 : vector<8x16xf32>
    %732 = arith.mulf %726, %703 : vector<8x16xf32>
    %733 = arith.mulf %725, %727 : vector<8x16xf32>
    %734 = arith.addf %732, %733 : vector<8x16xf32>
    %735 = math.tanh %731 : vector<8x16xf32>
    %736 = arith.mulf %724, %735 : vector<8x16xf32>
    %737 = math.tanh %734 : vector<8x16xf32>
    %738 = arith.mulf %728, %737 : vector<8x16xf32>
    %cst_201 = arith.constant dense<0.000000e+00> : vector<8x128xf32>
    %739 = tpu.matmul %736, %544, %cst_201 {dimension_numbers = #tpu.dot_dimension_numbers<[1], [0], [0], [1], [0, 0, 1, 1], [], []>} : vector<8x16xf32>, vector<16x128xf32>, vector<8x128xf32> -> vector<8x128xf32>
    %cst_202 = arith.constant dense<0.000000e+00> : vector<8x128xf32>
    %740 = tpu.matmul %738, %545, %cst_202 {dimension_numbers = #tpu.dot_dimension_numbers<[1], [0], [0], [1], [0, 0, 1, 1], [], []>} : vector<8x16xf32>, vector<16x128xf32>, vector<8x128xf32> -> vector<8x128xf32>
    %741 = arith.addf %739, %740 : vector<8x128xf32>
    %c48_203 = arith.constant 48 : index
    %c0_204 = arith.constant 0 : index
    %742 = vector.load %arg25[%c48_203, %c0_204] : memref<64x128xf32, #tpu.memory_space<vmem>>, vector<8x128xf32>
    %c8_205 = arith.constant 8 : index
    %c0_206 = arith.constant 0 : index
    %743 = vector.load %arg25[%c8_205, %c0_206] : memref<64x128xf32, #tpu.memory_space<vmem>>, vector<8x128xf32>
    %744 = arith.select %548, %742, %743 : vector<8x128xi1>, vector<8x128xf32>
    %745 = arith.addf %741, %744 : vector<8x128xf32>
    %746 = arith.negf %745 : vector<8x128xf32>
    %747 = math.exp %746 : vector<8x128xf32>
    %cst_207 = arith.constant 1.000000e+00 : f32
    %748 = vector.broadcast %cst_207 : f32 to vector<8x128xf32>
    %749 = arith.addf %748, %747 : vector<8x128xf32>
    %750 = arith.divf %748, %749 : vector<8x128xf32>
    %751 = math.tanh %745 : vector<8x128xf32>
    %752 = vector.extract_strided_slice %750 {offsets = [0, 0], sizes = [8, 16], strides = [1, 1]} : vector<8x128xf32> to vector<8x16xf32>
    %753 = vector.extract_strided_slice %750 {offsets = [0, 16], sizes = [8, 16], strides = [1, 1]} : vector<8x128xf32> to vector<8x16xf32>
    %754 = vector.extract_strided_slice %751 {offsets = [0, 32], sizes = [8, 16], strides = [1, 1]} : vector<8x128xf32> to vector<8x16xf32>
    %755 = vector.extract_strided_slice %750 {offsets = [0, 48], sizes = [8, 16], strides = [1, 1]} : vector<8x128xf32> to vector<8x16xf32>
    %756 = vector.extract_strided_slice %750 {offsets = [0, 64], sizes = [8, 16], strides = [1, 1]} : vector<8x128xf32> to vector<8x16xf32>
    %757 = vector.extract_strided_slice %750 {offsets = [0, 80], sizes = [8, 16], strides = [1, 1]} : vector<8x128xf32> to vector<8x16xf32>
    %758 = vector.extract_strided_slice %751 {offsets = [0, 96], sizes = [8, 16], strides = [1, 1]} : vector<8x128xf32> to vector<8x16xf32>
    %759 = vector.extract_strided_slice %750 {offsets = [0, 112], sizes = [8, 16], strides = [1, 1]} : vector<8x128xf32> to vector<8x16xf32>
    %760 = arith.mulf %753, %731 : vector<8x16xf32>
    %761 = arith.mulf %752, %754 : vector<8x16xf32>
    %762 = arith.addf %760, %761 : vector<8x16xf32>
    %763 = arith.mulf %757, %734 : vector<8x16xf32>
    %764 = arith.mulf %756, %758 : vector<8x16xf32>
    %765 = arith.addf %763, %764 : vector<8x16xf32>
    %766 = math.tanh %762 : vector<8x16xf32>
    %767 = arith.mulf %755, %766 : vector<8x16xf32>
    %768 = math.tanh %765 : vector<8x16xf32>
    %769 = arith.mulf %759, %768 : vector<8x16xf32>
    %cst_208 = arith.constant dense<0.000000e+00> : vector<8x128xf32>
    %770 = tpu.matmul %767, %544, %cst_208 {dimension_numbers = #tpu.dot_dimension_numbers<[1], [0], [0], [1], [0, 0, 1, 1], [], []>} : vector<8x16xf32>, vector<16x128xf32>, vector<8x128xf32> -> vector<8x128xf32>
    %cst_209 = arith.constant dense<0.000000e+00> : vector<8x128xf32>
    %771 = tpu.matmul %769, %545, %cst_209 {dimension_numbers = #tpu.dot_dimension_numbers<[1], [0], [0], [1], [0, 0, 1, 1], [], []>} : vector<8x16xf32>, vector<16x128xf32>, vector<8x128xf32> -> vector<8x128xf32>
    %772 = arith.addf %770, %771 : vector<8x128xf32>
    %c56_210 = arith.constant 56 : index
    %c0_211 = arith.constant 0 : index
    %773 = vector.load %arg25[%c56_210, %c0_211] : memref<64x128xf32, #tpu.memory_space<vmem>>, vector<8x128xf32>
    %c0_212 = arith.constant 0 : index
    %c0_213 = arith.constant 0 : index
    %774 = vector.load %arg25[%c0_212, %c0_213] : memref<64x128xf32, #tpu.memory_space<vmem>>, vector<8x128xf32>
    %775 = arith.select %548, %773, %774 : vector<8x128xi1>, vector<8x128xf32>
    %776 = arith.addf %772, %775 : vector<8x128xf32>
    %777 = arith.negf %776 : vector<8x128xf32>
    %778 = math.exp %777 : vector<8x128xf32>
    %cst_214 = arith.constant 1.000000e+00 : f32
    %779 = vector.broadcast %cst_214 : f32 to vector<8x128xf32>
    %780 = arith.addf %779, %778 : vector<8x128xf32>
    %781 = arith.divf %779, %780 : vector<8x128xf32>
    %782 = math.tanh %776 : vector<8x128xf32>
    %783 = vector.extract_strided_slice %781 {offsets = [0, 0], sizes = [8, 16], strides = [1, 1]} : vector<8x128xf32> to vector<8x16xf32>
    %784 = vector.extract_strided_slice %781 {offsets = [0, 16], sizes = [8, 16], strides = [1, 1]} : vector<8x128xf32> to vector<8x16xf32>
    %785 = vector.extract_strided_slice %782 {offsets = [0, 32], sizes = [8, 16], strides = [1, 1]} : vector<8x128xf32> to vector<8x16xf32>
    %786 = vector.extract_strided_slice %781 {offsets = [0, 48], sizes = [8, 16], strides = [1, 1]} : vector<8x128xf32> to vector<8x16xf32>
    %787 = vector.extract_strided_slice %781 {offsets = [0, 64], sizes = [8, 16], strides = [1, 1]} : vector<8x128xf32> to vector<8x16xf32>
    %788 = vector.extract_strided_slice %781 {offsets = [0, 80], sizes = [8, 16], strides = [1, 1]} : vector<8x128xf32> to vector<8x16xf32>
    %789 = vector.extract_strided_slice %782 {offsets = [0, 96], sizes = [8, 16], strides = [1, 1]} : vector<8x128xf32> to vector<8x16xf32>
    %790 = vector.extract_strided_slice %781 {offsets = [0, 112], sizes = [8, 16], strides = [1, 1]} : vector<8x128xf32> to vector<8x16xf32>
    %791 = arith.mulf %784, %762 : vector<8x16xf32>
    %792 = arith.mulf %783, %785 : vector<8x16xf32>
    %793 = arith.addf %791, %792 : vector<8x16xf32>
    %794 = arith.mulf %788, %765 : vector<8x16xf32>
    %795 = arith.mulf %787, %789 : vector<8x16xf32>
    %796 = arith.addf %794, %795 : vector<8x16xf32>
    %797 = math.tanh %793 : vector<8x16xf32>
    %798 = arith.mulf %786, %797 : vector<8x16xf32>
    %799 = math.tanh %796 : vector<8x16xf32>
    %800 = arith.mulf %790, %799 : vector<8x16xf32>
    %801 = tpu.concatenate %581, %612, %643, %674, %705, %736, %767, %798 in 0 : vector<8x16xf32>, vector<8x16xf32>, vector<8x16xf32>, vector<8x16xf32>, vector<8x16xf32>, vector<8x16xf32>, vector<8x16xf32>, vector<8x16xf32> -> vector<64x16xf32>
    %802 = tpu.concatenate %800, %769, %738, %707, %676, %645, %614, %583 in 0 : vector<8x16xf32>, vector<8x16xf32>, vector<8x16xf32>, vector<8x16xf32>, vector<8x16xf32>, vector<8x16xf32>, vector<8x16xf32>, vector<8x16xf32> -> vector<64x16xf32>
    %c0_215 = arith.constant 0 : index
    %c0_216 = arith.constant 0 : index
    %803 = vector.load %arg11[%c0_215, %c0_216] : memref<32x128xf32, #tpu.memory_space<vmem>>, vector<16x128xf32>
    %cst_217 = arith.constant dense<0.000000e+00> : vector<64x128xf32>
    %804 = tpu.matmul %801, %803, %cst_217 {dimension_numbers = #tpu.dot_dimension_numbers<[1], [0], [0], [1], [0, 0, 1, 1], [], []>} : vector<64x16xf32>, vector<16x128xf32>, vector<64x128xf32> -> vector<64x128xf32>
    %c16_218 = arith.constant 16 : index
    %c0_219 = arith.constant 0 : index
    %805 = vector.load %arg11[%c16_218, %c0_219] : memref<32x128xf32, #tpu.memory_space<vmem>>, vector<16x128xf32>
    %cst_220 = arith.constant dense<0.000000e+00> : vector<64x128xf32>
    %806 = tpu.matmul %802, %805, %cst_220 {dimension_numbers = #tpu.dot_dimension_numbers<[1], [0], [0], [1], [0, 0, 1, 1], [], []>} : vector<64x16xf32>, vector<16x128xf32>, vector<64x128xf32> -> vector<64x128xf32>
    %807 = arith.addf %804, %806 : vector<64x128xf32>
    %c0_221 = arith.constant 0 : index
    %c0_222 = arith.constant 0 : index
    %808 = vector.load %arg12[%c0_221, %c0_222] : memref<1x128xf32, #tpu.memory_space<vmem>>, vector<1x128xf32>
    %809 = vector.broadcast %808 : vector<1x128xf32> to vector<64x128xf32>
    %810 = arith.addf %807, %809 : vector<64x128xf32>
    %c0_223 = arith.constant 0 : index
    %c0_224 = arith.constant 0 : index
    %811 = vector.load %arg26[%c0_223, %c0_224] : memref<64x128xf32, #tpu.memory_space<vmem>>, vector<64x128xf32>
    tpu.vector_store %arg26[%c0_223, %c0_224], %810 {strides = array<i32>} : memref<64x128xf32, #tpu.memory_space<vmem>>, vector<64x128xf32>,
    %c0_225 = arith.constant 0 : index
    %c0_226 = arith.constant 0 : index
    %812 = vector.load %arg13[%c0_225, %c0_226] : memref<32x128xf32, #tpu.memory_space<vmem>>, vector<16x128xf32>
    %c16_227 = arith.constant 16 : index
    %c0_228 = arith.constant 0 : index
    %813 = vector.load %arg13[%c16_227, %c0_228] : memref<32x128xf32, #tpu.memory_space<vmem>>, vector<16x128xf32>
    %814 = tpu.iota {dimensions = array<i32: 1>} : vector<8x128xi32>
    %c64_i32_229 = arith.constant 64 : i32
    %815 = vector.broadcast %c64_i32_229 : i32 to vector<8x128xi32>
    %816 = arith.cmpi slt, %814, %815 : vector<8x128xi32>
    %cst_230 = arith.constant 0.000000e+00 : f32
    %817 = vector.broadcast %cst_230 : f32 to vector<8x16xf32>
    %cst_231 = arith.constant 0.000000e+00 : f32
    %818 = vector.broadcast %cst_231 : f32 to vector<8x16xf32>
    %cst_232 = arith.constant 0.000000e+00 : f32
    %819 = vector.broadcast %cst_232 : f32 to vector<8x16xf32>
    %cst_233 = arith.constant 0.000000e+00 : f32
    %820 = vector.broadcast %cst_233 : f32 to vector<8x16xf32>
    %cst_234 = arith.constant dense<0.000000e+00> : vector<8x128xf32>
    %821 = tpu.matmul %817, %812, %cst_234 {dimension_numbers = #tpu.dot_dimension_numbers<[1], [0], [0], [1], [0, 0, 1, 1], [], []>} : vector<8x16xf32>, vector<16x128xf32>, vector<8x128xf32> -> vector<8x128xf32>
    %cst_235 = arith.constant dense<0.000000e+00> : vector<8x128xf32>
    %822 = tpu.matmul %818, %813, %cst_235 {dimension_numbers = #tpu.dot_dimension_numbers<[1], [0], [0], [1], [0, 0, 1, 1], [], []>} : vector<8x16xf32>, vector<16x128xf32>, vector<8x128xf32> -> vector<8x128xf32>
    %823 = arith.addf %821, %822 : vector<8x128xf32>
    %c0_236 = arith.constant 0 : index
    %c0_237 = arith.constant 0 : index
    %824 = vector.load %arg26[%c0_236, %c0_237] : memref<64x128xf32, #tpu.memory_space<vmem>>, vector<8x128xf32>
    %c56_238 = arith.constant 56 : index
    %c0_239 = arith.constant 0 : index
    %825 = vector.load %arg26[%c56_238, %c0_239] : memref<64x128xf32, #tpu.memory_space<vmem>>, vector<8x128xf32>
    %826 = arith.select %816, %824, %825 : vector<8x128xi1>, vector<8x128xf32>
    %827 = arith.addf %823, %826 : vector<8x128xf32>
    %828 = arith.negf %827 : vector<8x128xf32>
    %829 = math.exp %828 : vector<8x128xf32>
    %cst_240 = arith.constant 1.000000e+00 : f32
    %830 = vector.broadcast %cst_240 : f32 to vector<8x128xf32>
    %831 = arith.addf %830, %829 : vector<8x128xf32>
    %832 = arith.divf %830, %831 : vector<8x128xf32>
    %833 = math.tanh %827 : vector<8x128xf32>
    %834 = vector.extract_strided_slice %832 {offsets = [0, 0], sizes = [8, 16], strides = [1, 1]} : vector<8x128xf32> to vector<8x16xf32>
    %835 = vector.extract_strided_slice %832 {offsets = [0, 16], sizes = [8, 16], strides = [1, 1]} : vector<8x128xf32> to vector<8x16xf32>
    %836 = vector.extract_strided_slice %833 {offsets = [0, 32], sizes = [8, 16], strides = [1, 1]} : vector<8x128xf32> to vector<8x16xf32>
    %837 = vector.extract_strided_slice %832 {offsets = [0, 48], sizes = [8, 16], strides = [1, 1]} : vector<8x128xf32> to vector<8x16xf32>
    %838 = vector.extract_strided_slice %832 {offsets = [0, 64], sizes = [8, 16], strides = [1, 1]} : vector<8x128xf32> to vector<8x16xf32>
    %839 = vector.extract_strided_slice %832 {offsets = [0, 80], sizes = [8, 16], strides = [1, 1]} : vector<8x128xf32> to vector<8x16xf32>
    %840 = vector.extract_strided_slice %833 {offsets = [0, 96], sizes = [8, 16], strides = [1, 1]} : vector<8x128xf32> to vector<8x16xf32>
    %841 = vector.extract_strided_slice %832 {offsets = [0, 112], sizes = [8, 16], strides = [1, 1]} : vector<8x128xf32> to vector<8x16xf32>
    %842 = arith.mulf %835, %819 : vector<8x16xf32>
    %843 = arith.mulf %834, %836 : vector<8x16xf32>
    %844 = arith.addf %842, %843 : vector<8x16xf32>
    %845 = arith.mulf %839, %820 : vector<8x16xf32>
    %846 = arith.mulf %838, %840 : vector<8x16xf32>
    %847 = arith.addf %845, %846 : vector<8x16xf32>
    %848 = math.tanh %844 : vector<8x16xf32>
    %849 = arith.mulf %837, %848 : vector<8x16xf32>
    %850 = math.tanh %847 : vector<8x16xf32>
    %851 = arith.mulf %841, %850 : vector<8x16xf32>
    %cst_241 = arith.constant dense<0.000000e+00> : vector<8x128xf32>
    %852 = tpu.matmul %849, %812, %cst_241 {dimension_numbers = #tpu.dot_dimension_numbers<[1], [0], [0], [1], [0, 0, 1, 1], [], []>} : vector<8x16xf32>, vector<16x128xf32>, vector<8x128xf32> -> vector<8x128xf32>
    %cst_242 = arith.constant dense<0.000000e+00> : vector<8x128xf32>
    %853 = tpu.matmul %851, %813, %cst_242 {dimension_numbers = #tpu.dot_dimension_numbers<[1], [0], [0], [1], [0, 0, 1, 1], [], []>} : vector<8x16xf32>, vector<16x128xf32>, vector<8x128xf32> -> vector<8x128xf32>
    %854 = arith.addf %852, %853 : vector<8x128xf32>
    %c8_243 = arith.constant 8 : index
    %c0_244 = arith.constant 0 : index
    %855 = vector.load %arg26[%c8_243, %c0_244] : memref<64x128xf32, #tpu.memory_space<vmem>>, vector<8x128xf32>
    %c48_245 = arith.constant 48 : index
    %c0_246 = arith.constant 0 : index
    %856 = vector.load %arg26[%c48_245, %c0_246] : memref<64x128xf32, #tpu.memory_space<vmem>>, vector<8x128xf32>
    %857 = arith.select %816, %855, %856 : vector<8x128xi1>, vector<8x128xf32>
    %858 = arith.addf %854, %857 : vector<8x128xf32>
    %859 = arith.negf %858 : vector<8x128xf32>
    %860 = math.exp %859 : vector<8x128xf32>
    %cst_247 = arith.constant 1.000000e+00 : f32
    %861 = vector.broadcast %cst_247 : f32 to vector<8x128xf32>
    %862 = arith.addf %861, %860 : vector<8x128xf32>
    %863 = arith.divf %861, %862 : vector<8x128xf32>
    %864 = math.tanh %858 : vector<8x128xf32>
    %865 = vector.extract_strided_slice %863 {offsets = [0, 0], sizes = [8, 16], strides = [1, 1]} : vector<8x128xf32> to vector<8x16xf32>
    %866 = vector.extract_strided_slice %863 {offsets = [0, 16], sizes = [8, 16], strides = [1, 1]} : vector<8x128xf32> to vector<8x16xf32>
    %867 = vector.extract_strided_slice %864 {offsets = [0, 32], sizes = [8, 16], strides = [1, 1]} : vector<8x128xf32> to vector<8x16xf32>
    %868 = vector.extract_strided_slice %863 {offsets = [0, 48], sizes = [8, 16], strides = [1, 1]} : vector<8x128xf32> to vector<8x16xf32>
    %869 = vector.extract_strided_slice %863 {offsets = [0, 64], sizes = [8, 16], strides = [1, 1]} : vector<8x128xf32> to vector<8x16xf32>
    %870 = vector.extract_strided_slice %863 {offsets = [0, 80], sizes = [8, 16], strides = [1, 1]} : vector<8x128xf32> to vector<8x16xf32>
    %871 = vector.extract_strided_slice %864 {offsets = [0, 96], sizes = [8, 16], strides = [1, 1]} : vector<8x128xf32> to vector<8x16xf32>
    %872 = vector.extract_strided_slice %863 {offsets = [0, 112], sizes = [8, 16], strides = [1, 1]} : vector<8x128xf32> to vector<8x16xf32>
    %873 = arith.mulf %866, %844 : vector<8x16xf32>
    %874 = arith.mulf %865, %867 : vector<8x16xf32>
    %875 = arith.addf %873, %874 : vector<8x16xf32>
    %876 = arith.mulf %870, %847 : vector<8x16xf32>
    %877 = arith.mulf %869, %871 : vector<8x16xf32>
    %878 = arith.addf %876, %877 : vector<8x16xf32>
    %879 = math.tanh %875 : vector<8x16xf32>
    %880 = arith.mulf %868, %879 : vector<8x16xf32>
    %881 = math.tanh %878 : vector<8x16xf32>
    %882 = arith.mulf %872, %881 : vector<8x16xf32>
    %cst_248 = arith.constant dense<0.000000e+00> : vector<8x128xf32>
    %883 = tpu.matmul %880, %812, %cst_248 {dimension_numbers = #tpu.dot_dimension_numbers<[1], [0], [0], [1], [0, 0, 1, 1], [], []>} : vector<8x16xf32>, vector<16x128xf32>, vector<8x128xf32> -> vector<8x128xf32>
    %cst_249 = arith.constant dense<0.000000e+00> : vector<8x128xf32>
    %884 = tpu.matmul %882, %813, %cst_249 {dimension_numbers = #tpu.dot_dimension_numbers<[1], [0], [0], [1], [0, 0, 1, 1], [], []>} : vector<8x16xf32>, vector<16x128xf32>, vector<8x128xf32> -> vector<8x128xf32>
    %885 = arith.addf %883, %884 : vector<8x128xf32>
    %c16_250 = arith.constant 16 : index
    %c0_251 = arith.constant 0 : index
    %886 = vector.load %arg26[%c16_250, %c0_251] : memref<64x128xf32, #tpu.memory_space<vmem>>, vector<8x128xf32>
    %c40_252 = arith.constant 40 : index
    %c0_253 = arith.constant 0 : index
    %887 = vector.load %arg26[%c40_252, %c0_253] : memref<64x128xf32, #tpu.memory_space<vmem>>, vector<8x128xf32>
    %888 = arith.select %816, %886, %887 : vector<8x128xi1>, vector<8x128xf32>
    %889 = arith.addf %885, %888 : vector<8x128xf32>
    %890 = arith.negf %889 : vector<8x128xf32>
    %891 = math.exp %890 : vector<8x128xf32>
    %cst_254 = arith.constant 1.000000e+00 : f32
    %892 = vector.broadcast %cst_254 : f32 to vector<8x128xf32>
    %893 = arith.addf %892, %891 : vector<8x128xf32>
    %894 = arith.divf %892, %893 : vector<8x128xf32>
    %895 = math.tanh %889 : vector<8x128xf32>
    %896 = vector.extract_strided_slice %894 {offsets = [0, 0], sizes = [8, 16], strides = [1, 1]} : vector<8x128xf32> to vector<8x16xf32>
    %897 = vector.extract_strided_slice %894 {offsets = [0, 16], sizes = [8, 16], strides = [1, 1]} : vector<8x128xf32> to vector<8x16xf32>
    %898 = vector.extract_strided_slice %895 {offsets = [0, 32], sizes = [8, 16], strides = [1, 1]} : vector<8x128xf32> to vector<8x16xf32>
    %899 = vector.extract_strided_slice %894 {offsets = [0, 48], sizes = [8, 16], strides = [1, 1]} : vector<8x128xf32> to vector<8x16xf32>
    %900 = vector.extract_strided_slice %894 {offsets = [0, 64], sizes = [8, 16], strides = [1, 1]} : vector<8x128xf32> to vector<8x16xf32>
    %901 = vector.extract_strided_slice %894 {offsets = [0, 80], sizes = [8, 16], strides = [1, 1]} : vector<8x128xf32> to vector<8x16xf32>
    %902 = vector.extract_strided_slice %895 {offsets = [0, 96], sizes = [8, 16], strides = [1, 1]} : vector<8x128xf32> to vector<8x16xf32>
    %903 = vector.extract_strided_slice %894 {offsets = [0, 112], sizes = [8, 16], strides = [1, 1]} : vector<8x128xf32> to vector<8x16xf32>
    %904 = arith.mulf %897, %875 : vector<8x16xf32>
    %905 = arith.mulf %896, %898 : vector<8x16xf32>
    %906 = arith.addf %904, %905 : vector<8x16xf32>
    %907 = arith.mulf %901, %878 : vector<8x16xf32>
    %908 = arith.mulf %900, %902 : vector<8x16xf32>
    %909 = arith.addf %907, %908 : vector<8x16xf32>
    %910 = math.tanh %906 : vector<8x16xf32>
    %911 = arith.mulf %899, %910 : vector<8x16xf32>
    %912 = math.tanh %909 : vector<8x16xf32>
    %913 = arith.mulf %903, %912 : vector<8x16xf32>
    %cst_255 = arith.constant dense<0.000000e+00> : vector<8x128xf32>
    %914 = tpu.matmul %911, %812, %cst_255 {dimension_numbers = #tpu.dot_dimension_numbers<[1], [0], [0], [1], [0, 0, 1, 1], [], []>} : vector<8x16xf32>, vector<16x128xf32>, vector<8x128xf32> -> vector<8x128xf32>
    %cst_256 = arith.constant dense<0.000000e+00> : vector<8x128xf32>
    %915 = tpu.matmul %913, %813, %cst_256 {dimension_numbers = #tpu.dot_dimension_numbers<[1], [0], [0], [1], [0, 0, 1, 1], [], []>} : vector<8x16xf32>, vector<16x128xf32>, vector<8x128xf32> -> vector<8x128xf32>
    %916 = arith.addf %914, %915 : vector<8x128xf32>
    %c24_257 = arith.constant 24 : index
    %c0_258 = arith.constant 0 : index
    %917 = vector.load %arg26[%c24_257, %c0_258] : memref<64x128xf32, #tpu.memory_space<vmem>>, vector<8x128xf32>
    %c32_259 = arith.constant 32 : index
    %c0_260 = arith.constant 0 : index
    %918 = vector.load %arg26[%c32_259, %c0_260] : memref<64x128xf32, #tpu.memory_space<vmem>>, vector<8x128xf32>
    %919 = arith.select %816, %917, %918 : vector<8x128xi1>, vector<8x128xf32>
    %920 = arith.addf %916, %919 : vector<8x128xf32>
    %921 = arith.negf %920 : vector<8x128xf32>
    %922 = math.exp %921 : vector<8x128xf32>
    %cst_261 = arith.constant 1.000000e+00 : f32
    %923 = vector.broadcast %cst_261 : f32 to vector<8x128xf32>
    %924 = arith.addf %923, %922 : vector<8x128xf32>
    %925 = arith.divf %923, %924 : vector<8x128xf32>
    %926 = math.tanh %920 : vector<8x128xf32>
    %927 = vector.extract_strided_slice %925 {offsets = [0, 0], sizes = [8, 16], strides = [1, 1]} : vector<8x128xf32> to vector<8x16xf32>
    %928 = vector.extract_strided_slice %925 {offsets = [0, 16], sizes = [8, 16], strides = [1, 1]} : vector<8x128xf32> to vector<8x16xf32>
    %929 = vector.extract_strided_slice %926 {offsets = [0, 32], sizes = [8, 16], strides = [1, 1]} : vector<8x128xf32> to vector<8x16xf32>
    %930 = vector.extract_strided_slice %925 {offsets = [0, 48], sizes = [8, 16], strides = [1, 1]} : vector<8x128xf32> to vector<8x16xf32>
    %931 = vector.extract_strided_slice %925 {offsets = [0, 64], sizes = [8, 16], strides = [1, 1]} : vector<8x128xf32> to vector<8x16xf32>
    %932 = vector.extract_strided_slice %925 {offsets = [0, 80], sizes = [8, 16], strides = [1, 1]} : vector<8x128xf32> to vector<8x16xf32>
    %933 = vector.extract_strided_slice %926 {offsets = [0, 96], sizes = [8, 16], strides = [1, 1]} : vector<8x128xf32> to vector<8x16xf32>
    %934 = vector.extract_strided_slice %925 {offsets = [0, 112], sizes = [8, 16], strides = [1, 1]} : vector<8x128xf32> to vector<8x16xf32>
    %935 = arith.mulf %928, %906 : vector<8x16xf32>
    %936 = arith.mulf %927, %929 : vector<8x16xf32>
    %937 = arith.addf %935, %936 : vector<8x16xf32>
    %938 = arith.mulf %932, %909 : vector<8x16xf32>
    %939 = arith.mulf %931, %933 : vector<8x16xf32>
    %940 = arith.addf %938, %939 : vector<8x16xf32>
    %941 = math.tanh %937 : vector<8x16xf32>
    %942 = arith.mulf %930, %941 : vector<8x16xf32>
    %943 = math.tanh %940 : vector<8x16xf32>
    %944 = arith.mulf %934, %943 : vector<8x16xf32>
    %cst_262 = arith.constant dense<0.000000e+00> : vector<8x128xf32>
    %945 = tpu.matmul %942, %812, %cst_262 {dimension_numbers = #tpu.dot_dimension_numbers<[1], [0], [0], [1], [0, 0, 1, 1], [], []>} : vector<8x16xf32>, vector<16x128xf32>, vector<8x128xf32> -> vector<8x128xf32>
    %cst_263 = arith.constant dense<0.000000e+00> : vector<8x128xf32>
    %946 = tpu.matmul %944, %813, %cst_263 {dimension_numbers = #tpu.dot_dimension_numbers<[1], [0], [0], [1], [0, 0, 1, 1], [], []>} : vector<8x16xf32>, vector<16x128xf32>, vector<8x128xf32> -> vector<8x128xf32>
    %947 = arith.addf %945, %946 : vector<8x128xf32>
    %c32_264 = arith.constant 32 : index
    %c0_265 = arith.constant 0 : index
    %948 = vector.load %arg26[%c32_264, %c0_265] : memref<64x128xf32, #tpu.memory_space<vmem>>, vector<8x128xf32>
    %c24_266 = arith.constant 24 : index
    %c0_267 = arith.constant 0 : index
    %949 = vector.load %arg26[%c24_266, %c0_267] : memref<64x128xf32, #tpu.memory_space<vmem>>, vector<8x128xf32>
    %950 = arith.select %816, %948, %949 : vector<8x128xi1>, vector<8x128xf32>
    %951 = arith.addf %947, %950 : vector<8x128xf32>
    %952 = arith.negf %951 : vector<8x128xf32>
    %953 = math.exp %952 : vector<8x128xf32>
    %cst_268 = arith.constant 1.000000e+00 : f32
    %954 = vector.broadcast %cst_268 : f32 to vector<8x128xf32>
    %955 = arith.addf %954, %953 : vector<8x128xf32>
    %956 = arith.divf %954, %955 : vector<8x128xf32>
    %957 = math.tanh %951 : vector<8x128xf32>
    %958 = vector.extract_strided_slice %956 {offsets = [0, 0], sizes = [8, 16], strides = [1, 1]} : vector<8x128xf32> to vector<8x16xf32>
    %959 = vector.extract_strided_slice %956 {offsets = [0, 16], sizes = [8, 16], strides = [1, 1]} : vector<8x128xf32> to vector<8x16xf32>
    %960 = vector.extract_strided_slice %957 {offsets = [0, 32], sizes = [8, 16], strides = [1, 1]} : vector<8x128xf32> to vector<8x16xf32>
    %961 = vector.extract_strided_slice %956 {offsets = [0, 48], sizes = [8, 16], strides = [1, 1]} : vector<8x128xf32> to vector<8x16xf32>
    %962 = vector.extract_strided_slice %956 {offsets = [0, 64], sizes = [8, 16], strides = [1, 1]} : vector<8x128xf32> to vector<8x16xf32>
    %963 = vector.extract_strided_slice %956 {offsets = [0, 80], sizes = [8, 16], strides = [1, 1]} : vector<8x128xf32> to vector<8x16xf32>
    %964 = vector.extract_strided_slice %957 {offsets = [0, 96], sizes = [8, 16], strides = [1, 1]} : vector<8x128xf32> to vector<8x16xf32>
    %965 = vector.extract_strided_slice %956 {offsets = [0, 112], sizes = [8, 16], strides = [1, 1]} : vector<8x128xf32> to vector<8x16xf32>
    %966 = arith.mulf %959, %937 : vector<8x16xf32>
    %967 = arith.mulf %958, %960 : vector<8x16xf32>
    %968 = arith.addf %966, %967 : vector<8x16xf32>
    %969 = arith.mulf %963, %940 : vector<8x16xf32>
    %970 = arith.mulf %962, %964 : vector<8x16xf32>
    %971 = arith.addf %969, %970 : vector<8x16xf32>
    %972 = math.tanh %968 : vector<8x16xf32>
    %973 = arith.mulf %961, %972 : vector<8x16xf32>
    %974 = math.tanh %971 : vector<8x16xf32>
    %975 = arith.mulf %965, %974 : vector<8x16xf32>
    %cst_269 = arith.constant dense<0.000000e+00> : vector<8x128xf32>
    %976 = tpu.matmul %973, %812, %cst_269 {dimension_numbers = #tpu.dot_dimension_numbers<[1], [0], [0], [1], [0, 0, 1, 1], [], []>} : vector<8x16xf32>, vector<16x128xf32>, vector<8x128xf32> -> vector<8x128xf32>
    %cst_270 = arith.constant dense<0.000000e+00> : vector<8x128xf32>
    %977 = tpu.matmul %975, %813, %cst_270 {dimension_numbers = #tpu.dot_dimension_numbers<[1], [0], [0], [1], [0, 0, 1, 1], [], []>} : vector<8x16xf32>, vector<16x128xf32>, vector<8x128xf32> -> vector<8x128xf32>
    %978 = arith.addf %976, %977 : vector<8x128xf32>
    %c40_271 = arith.constant 40 : index
    %c0_272 = arith.constant 0 : index
    %979 = vector.load %arg26[%c40_271, %c0_272] : memref<64x128xf32, #tpu.memory_space<vmem>>, vector<8x128xf32>
    %c16_273 = arith.constant 16 : index
    %c0_274 = arith.constant 0 : index
    %980 = vector.load %arg26[%c16_273, %c0_274] : memref<64x128xf32, #tpu.memory_space<vmem>>, vector<8x128xf32>
    %981 = arith.select %816, %979, %980 : vector<8x128xi1>, vector<8x128xf32>
    %982 = arith.addf %978, %981 : vector<8x128xf32>
    %983 = arith.negf %982 : vector<8x128xf32>
    %984 = math.exp %983 : vector<8x128xf32>
    %cst_275 = arith.constant 1.000000e+00 : f32
    %985 = vector.broadcast %cst_275 : f32 to vector<8x128xf32>
    %986 = arith.addf %985, %984 : vector<8x128xf32>
    %987 = arith.divf %985, %986 : vector<8x128xf32>
    %988 = math.tanh %982 : vector<8x128xf32>
    %989 = vector.extract_strided_slice %987 {offsets = [0, 0], sizes = [8, 16], strides = [1, 1]} : vector<8x128xf32> to vector<8x16xf32>
    %990 = vector.extract_strided_slice %987 {offsets = [0, 16], sizes = [8, 16], strides = [1, 1]} : vector<8x128xf32> to vector<8x16xf32>
    %991 = vector.extract_strided_slice %988 {offsets = [0, 32], sizes = [8, 16], strides = [1, 1]} : vector<8x128xf32> to vector<8x16xf32>
    %992 = vector.extract_strided_slice %987 {offsets = [0, 48], sizes = [8, 16], strides = [1, 1]} : vector<8x128xf32> to vector<8x16xf32>
    %993 = vector.extract_strided_slice %987 {offsets = [0, 64], sizes = [8, 16], strides = [1, 1]} : vector<8x128xf32> to vector<8x16xf32>
    %994 = vector.extract_strided_slice %987 {offsets = [0, 80], sizes = [8, 16], strides = [1, 1]} : vector<8x128xf32> to vector<8x16xf32>
    %995 = vector.extract_strided_slice %988 {offsets = [0, 96], sizes = [8, 16], strides = [1, 1]} : vector<8x128xf32> to vector<8x16xf32>
    %996 = vector.extract_strided_slice %987 {offsets = [0, 112], sizes = [8, 16], strides = [1, 1]} : vector<8x128xf32> to vector<8x16xf32>
    %997 = arith.mulf %990, %968 : vector<8x16xf32>
    %998 = arith.mulf %989, %991 : vector<8x16xf32>
    %999 = arith.addf %997, %998 : vector<8x16xf32>
    %1000 = arith.mulf %994, %971 : vector<8x16xf32>
    %1001 = arith.mulf %993, %995 : vector<8x16xf32>
    %1002 = arith.addf %1000, %1001 : vector<8x16xf32>
    %1003 = math.tanh %999 : vector<8x16xf32>
    %1004 = arith.mulf %992, %1003 : vector<8x16xf32>
    %1005 = math.tanh %1002 : vector<8x16xf32>
    %1006 = arith.mulf %996, %1005 : vector<8x16xf32>
    %cst_276 = arith.constant dense<0.000000e+00> : vector<8x128xf32>
    %1007 = tpu.matmul %1004, %812, %cst_276 {dimension_numbers = #tpu.dot_dimension_numbers<[1], [0], [0], [1], [0, 0, 1, 1], [], []>} : vector<8x16xf32>, vector<16x128xf32>, vector<8x128xf32> -> vector<8x128xf32>
    %cst_277 = arith.constant dense<0.000000e+00> : vector<8x128xf32>
    %1008 = tpu.matmul %1006, %813, %cst_277 {dimension_numbers = #tpu.dot_dimension_numbers<[1], [0], [0], [1], [0, 0, 1, 1], [], []>} : vector<8x16xf32>, vector<16x128xf32>, vector<8x128xf32> -> vector<8x128xf32>
    %1009 = arith.addf %1007, %1008 : vector<8x128xf32>
    %c48_278 = arith.constant 48 : index
    %c0_279 = arith.constant 0 : index
    %1010 = vector.load %arg26[%c48_278, %c0_279] : memref<64x128xf32, #tpu.memory_space<vmem>>, vector<8x128xf32>
    %c8_280 = arith.constant 8 : index
    %c0_281 = arith.constant 0 : index
    %1011 = vector.load %arg26[%c8_280, %c0_281] : memref<64x128xf32, #tpu.memory_space<vmem>>, vector<8x128xf32>
    %1012 = arith.select %816, %1010, %1011 : vector<8x128xi1>, vector<8x128xf32>
    %1013 = arith.addf %1009, %1012 : vector<8x128xf32>
    %1014 = arith.negf %1013 : vector<8x128xf32>
    %1015 = math.exp %1014 : vector<8x128xf32>
    %cst_282 = arith.constant 1.000000e+00 : f32
    %1016 = vector.broadcast %cst_282 : f32 to vector<8x128xf32>
    %1017 = arith.addf %1016, %1015 : vector<8x128xf32>
    %1018 = arith.divf %1016, %1017 : vector<8x128xf32>
    %1019 = math.tanh %1013 : vector<8x128xf32>
    %1020 = vector.extract_strided_slice %1018 {offsets = [0, 0], sizes = [8, 16], strides = [1, 1]} : vector<8x128xf32> to vector<8x16xf32>
    %1021 = vector.extract_strided_slice %1018 {offsets = [0, 16], sizes = [8, 16], strides = [1, 1]} : vector<8x128xf32> to vector<8x16xf32>
    %1022 = vector.extract_strided_slice %1019 {offsets = [0, 32], sizes = [8, 16], strides = [1, 1]} : vector<8x128xf32> to vector<8x16xf32>
    %1023 = vector.extract_strided_slice %1018 {offsets = [0, 48], sizes = [8, 16], strides = [1, 1]} : vector<8x128xf32> to vector<8x16xf32>
    %1024 = vector.extract_strided_slice %1018 {offsets = [0, 64], sizes = [8, 16], strides = [1, 1]} : vector<8x128xf32> to vector<8x16xf32>
    %1025 = vector.extract_strided_slice %1018 {offsets = [0, 80], sizes = [8, 16], strides = [1, 1]} : vector<8x128xf32> to vector<8x16xf32>
    %1026 = vector.extract_strided_slice %1019 {offsets = [0, 96], sizes = [8, 16], strides = [1, 1]} : vector<8x128xf32> to vector<8x16xf32>
    %1027 = vector.extract_strided_slice %1018 {offsets = [0, 112], sizes = [8, 16], strides = [1, 1]} : vector<8x128xf32> to vector<8x16xf32>
    %1028 = arith.mulf %1021, %999 : vector<8x16xf32>
    %1029 = arith.mulf %1020, %1022 : vector<8x16xf32>
    %1030 = arith.addf %1028, %1029 : vector<8x16xf32>
    %1031 = arith.mulf %1025, %1002 : vector<8x16xf32>
    %1032 = arith.mulf %1024, %1026 : vector<8x16xf32>
    %1033 = arith.addf %1031, %1032 : vector<8x16xf32>
    %1034 = math.tanh %1030 : vector<8x16xf32>
    %1035 = arith.mulf %1023, %1034 : vector<8x16xf32>
    %1036 = math.tanh %1033 : vector<8x16xf32>
    %1037 = arith.mulf %1027, %1036 : vector<8x16xf32>
    %cst_283 = arith.constant dense<0.000000e+00> : vector<8x128xf32>
    %1038 = tpu.matmul %1035, %812, %cst_283 {dimension_numbers = #tpu.dot_dimension_numbers<[1], [0], [0], [1], [0, 0, 1, 1], [], []>} : vector<8x16xf32>, vector<16x128xf32>, vector<8x128xf32> -> vector<8x128xf32>
    %cst_284 = arith.constant dense<0.000000e+00> : vector<8x128xf32>
    %1039 = tpu.matmul %1037, %813, %cst_284 {dimension_numbers = #tpu.dot_dimension_numbers<[1], [0], [0], [1], [0, 0, 1, 1], [], []>} : vector<8x16xf32>, vector<16x128xf32>, vector<8x128xf32> -> vector<8x128xf32>
    %1040 = arith.addf %1038, %1039 : vector<8x128xf32>
    %c56_285 = arith.constant 56 : index
    %c0_286 = arith.constant 0 : index
    %1041 = vector.load %arg26[%c56_285, %c0_286] : memref<64x128xf32, #tpu.memory_space<vmem>>, vector<8x128xf32>
    %c0_287 = arith.constant 0 : index
    %c0_288 = arith.constant 0 : index
    %1042 = vector.load %arg26[%c0_287, %c0_288] : memref<64x128xf32, #tpu.memory_space<vmem>>, vector<8x128xf32>
    %1043 = arith.select %816, %1041, %1042 : vector<8x128xi1>, vector<8x128xf32>
    %1044 = arith.addf %1040, %1043 : vector<8x128xf32>
    %1045 = arith.negf %1044 : vector<8x128xf32>
    %1046 = math.exp %1045 : vector<8x128xf32>
    %cst_289 = arith.constant 1.000000e+00 : f32
    %1047 = vector.broadcast %cst_289 : f32 to vector<8x128xf32>
    %1048 = arith.addf %1047, %1046 : vector<8x128xf32>
    %1049 = arith.divf %1047, %1048 : vector<8x128xf32>
    %1050 = math.tanh %1044 : vector<8x128xf32>
    %1051 = vector.extract_strided_slice %1049 {offsets = [0, 0], sizes = [8, 16], strides = [1, 1]} : vector<8x128xf32> to vector<8x16xf32>
    %1052 = vector.extract_strided_slice %1049 {offsets = [0, 16], sizes = [8, 16], strides = [1, 1]} : vector<8x128xf32> to vector<8x16xf32>
    %1053 = vector.extract_strided_slice %1050 {offsets = [0, 32], sizes = [8, 16], strides = [1, 1]} : vector<8x128xf32> to vector<8x16xf32>
    %1054 = vector.extract_strided_slice %1049 {offsets = [0, 48], sizes = [8, 16], strides = [1, 1]} : vector<8x128xf32> to vector<8x16xf32>
    %1055 = vector.extract_strided_slice %1049 {offsets = [0, 64], sizes = [8, 16], strides = [1, 1]} : vector<8x128xf32> to vector<8x16xf32>
    %1056 = vector.extract_strided_slice %1049 {offsets = [0, 80], sizes = [8, 16], strides = [1, 1]} : vector<8x128xf32> to vector<8x16xf32>
    %1057 = vector.extract_strided_slice %1050 {offsets = [0, 96], sizes = [8, 16], strides = [1, 1]} : vector<8x128xf32> to vector<8x16xf32>
    %1058 = vector.extract_strided_slice %1049 {offsets = [0, 112], sizes = [8, 16], strides = [1, 1]} : vector<8x128xf32> to vector<8x16xf32>
    %1059 = arith.mulf %1052, %1030 : vector<8x16xf32>
    %1060 = arith.mulf %1051, %1053 : vector<8x16xf32>
    %1061 = arith.addf %1059, %1060 : vector<8x16xf32>
    %1062 = arith.mulf %1056, %1033 : vector<8x16xf32>
    %1063 = arith.mulf %1055, %1057 : vector<8x16xf32>
    %1064 = arith.addf %1062, %1063 : vector<8x16xf32>
    %1065 = math.tanh %1061 : vector<8x16xf32>
    %1066 = arith.mulf %1054, %1065 : vector<8x16xf32>
    %1067 = math.tanh %1064 : vector<8x16xf32>
    %1068 = arith.mulf %1058, %1067 : vector<8x16xf32>
    %1069 = tpu.concatenate %849, %880, %911, %942, %973, %1004, %1035, %1066 in 0 : vector<8x16xf32>, vector<8x16xf32>, vector<8x16xf32>, vector<8x16xf32>, vector<8x16xf32>, vector<8x16xf32>, vector<8x16xf32>, vector<8x16xf32> -> vector<64x16xf32>
    %1070 = tpu.concatenate %1068, %1037, %1006, %975, %944, %913, %882, %851 in 0 : vector<8x16xf32>, vector<8x16xf32>, vector<8x16xf32>, vector<8x16xf32>, vector<8x16xf32>, vector<8x16xf32>, vector<8x16xf32>, vector<8x16xf32> -> vector<64x16xf32>
    %c0_290 = arith.constant 0 : index
    %c0_291 = arith.constant 0 : index
    %1071 = vector.load %arg14[%c0_290, %c0_291] : memref<32x32xf32, #tpu.memory_space<vmem>>, vector<16x32xf32>
    %cst_292 = arith.constant dense<0.000000e+00> : vector<64x32xf32>
    %1072 = tpu.matmul %1069, %1071, %cst_292 {dimension_numbers = #tpu.dot_dimension_numbers<[1], [0], [0], [1], [0, 0, 1, 1], [], []>} : vector<64x16xf32>, vector<16x32xf32>, vector<64x32xf32> -> vector<64x32xf32>
    %c16_293 = arith.constant 16 : index
    %c0_294 = arith.constant 0 : index
    %1073 = vector.load %arg14[%c16_293, %c0_294] : memref<32x32xf32, #tpu.memory_space<vmem>>, vector<16x32xf32>
    %cst_295 = arith.constant dense<0.000000e+00> : vector<64x32xf32>
    %1074 = tpu.matmul %1070, %1073, %cst_295 {dimension_numbers = #tpu.dot_dimension_numbers<[1], [0], [0], [1], [0, 0, 1, 1], [], []>} : vector<64x16xf32>, vector<16x32xf32>, vector<64x32xf32> -> vector<64x32xf32>
    %1075 = arith.addf %1072, %1074 : vector<64x32xf32>
    %c0_296 = arith.constant 0 : index
    %c0_297 = arith.constant 0 : index
    %1076 = vector.load %arg15[%c0_296, %c0_297] : memref<1x32xf32, #tpu.memory_space<vmem>>, vector<1x32xf32>
    %1077 = vector.broadcast %1076 : vector<1x32xf32> to vector<64x32xf32>
    %1078 = arith.addf %1075, %1077 : vector<64x32xf32>
    %c0_298 = arith.constant 0 : index
    %c0_299 = arith.constant 0 : index
    %1079 = vector.load %arg16[%c0_298, %c0_299] : memref<32x32xf32, #tpu.memory_space<vmem>>, vector<16x32xf32>
    %cst_300 = arith.constant dense<0.000000e+00> : vector<64x32xf32>
    %1080 = tpu.matmul %1069, %1079, %cst_300 {dimension_numbers = #tpu.dot_dimension_numbers<[1], [0], [0], [1], [0, 0, 1, 1], [], []>} : vector<64x16xf32>, vector<16x32xf32>, vector<64x32xf32> -> vector<64x32xf32>
    %c16_301 = arith.constant 16 : index
    %c0_302 = arith.constant 0 : index
    %1081 = vector.load %arg16[%c16_301, %c0_302] : memref<32x32xf32, #tpu.memory_space<vmem>>, vector<16x32xf32>
    %cst_303 = arith.constant dense<0.000000e+00> : vector<64x32xf32>
    %1082 = tpu.matmul %1070, %1081, %cst_303 {dimension_numbers = #tpu.dot_dimension_numbers<[1], [0], [0], [1], [0, 0, 1, 1], [], []>} : vector<64x16xf32>, vector<16x32xf32>, vector<64x32xf32> -> vector<64x32xf32>
    %1083 = arith.addf %1080, %1082 : vector<64x32xf32>
    %c0_304 = arith.constant 0 : index
    %c0_305 = arith.constant 0 : index
    %1084 = vector.load %arg17[%c0_304, %c0_305] : memref<1x32xf32, #tpu.memory_space<vmem>>, vector<1x32xf32>
    %1085 = vector.broadcast %1084 : vector<1x32xf32> to vector<64x32xf32>
    %1086 = arith.addf %1083, %1085 : vector<64x32xf32>
    %c0_306 = arith.constant 0 : index
    %c0_307 = arith.constant 0 : index
    %1087 = vector.load %arg18[%c0_306, %c0_307] : memref<32x32xf32, #tpu.memory_space<vmem>>, vector<16x32xf32>
    %cst_308 = arith.constant dense<0.000000e+00> : vector<64x32xf32>
    %1088 = tpu.matmul %1069, %1087, %cst_308 {dimension_numbers = #tpu.dot_dimension_numbers<[1], [0], [0], [1], [0, 0, 1, 1], [], []>} : vector<64x16xf32>, vector<16x32xf32>, vector<64x32xf32> -> vector<64x32xf32>
    %c16_309 = arith.constant 16 : index
    %c0_310 = arith.constant 0 : index
    %1089 = vector.load %arg18[%c16_309, %c0_310] : memref<32x32xf32, #tpu.memory_space<vmem>>, vector<16x32xf32>
    %cst_311 = arith.constant dense<0.000000e+00> : vector<64x32xf32>
    %1090 = tpu.matmul %1070, %1089, %cst_311 {dimension_numbers = #tpu.dot_dimension_numbers<[1], [0], [0], [1], [0, 0, 1, 1], [], []>} : vector<64x16xf32>, vector<16x32xf32>, vector<64x32xf32> -> vector<64x32xf32>
    %1091 = arith.addf %1088, %1090 : vector<64x32xf32>
    %c0_312 = arith.constant 0 : index
    %c0_313 = arith.constant 0 : index
    %1092 = vector.load %arg19[%c0_312, %c0_313] : memref<1x32xf32, #tpu.memory_space<vmem>>, vector<1x32xf32>
    %1093 = vector.broadcast %1092 : vector<1x32xf32> to vector<64x32xf32>
    %1094 = arith.addf %1091, %1093 : vector<64x32xf32>
    %cst_314 = arith.constant dense<0.000000e+00> : vector<64x64xf32>
    %1095 = tpu.matmul %1078, %1086, %cst_314 {dimension_numbers = #tpu.dot_dimension_numbers<[1], [1], [0], [0], [0, 0, 1, 0], [], []>} : vector<64x32xf32>, vector<64x32xf32>, vector<64x64xf32> -> vector<64x64xf32>
    %1096 = tpu.iota {dimensions = array<i32: 0>} : vector<64x64xi32>
    %1097 = tpu.iota {dimensions = array<i32: 1>} : vector<64x64xi32>
    %c8_i32 = arith.constant 8 : i32
    %c0_i32 = arith.constant 0 : i32
    %1098 = arith.cmpi eq, %c8_i32, %c0_i32 : i32
    %c1_i32 = arith.constant 1 : i32
    %1099 = arith.select %1098, %c1_i32, %c8_i32 : i32
    %1100 = vector.broadcast %1099 : i32 to vector<64x64xi32>
    %1101 = arith.remsi %1096, %1100 : vector<64x64xi32>
    %c0_i32_315 = arith.constant 0 : i32
    %1102 = vector.broadcast %c0_i32_315 : i32 to vector<64x64xi32>
    %1103 = arith.cmpi ne, %1101, %1102 : vector<64x64xi32>
    %c0_i32_316 = arith.constant 0 : i32
    %1104 = vector.broadcast %c0_i32_316 : i32 to vector<64x64xi32>
    %1105 = arith.cmpi slt, %1101, %1104 : vector<64x64xi32>
    %c0_i32_317 = arith.constant 0 : i32
    %1106 = arith.cmpi slt, %1099, %c0_i32_317 : i32
    %1107 = vector.broadcast %1106 : i1 to vector<64x64xi1>
    %1108 = vector.broadcast %1107 : vector<64x64xi1> to vector<64x64xi1>
    %1109 = arith.xori %1105, %1108 : vector<64x64xi1>
    %1110 = arith.andi %1109, %1103 : vector<64x64xi1>
    %1111 = vector.broadcast %1099 : i32 to vector<64x64xi32>
    %1112 = arith.addi %1101, %1111 : vector<64x64xi32>
    %1113 = arith.select %1110, %1112, %1101 : vector<64x64xi1>, vector<64x64xi32>
    %c8_i32_318 = arith.constant 8 : i32
    %c0_i32_319 = arith.constant 0 : i32
    %1114 = arith.cmpi eq, %c8_i32_318, %c0_i32_319 : i32
    %c1_i32_320 = arith.constant 1 : i32
    %1115 = arith.select %1114, %c1_i32_320, %c8_i32_318 : i32
    %1116 = vector.broadcast %1115 : i32 to vector<64x64xi32>
    %1117 = arith.remsi %1097, %1116 : vector<64x64xi32>
    %c0_i32_321 = arith.constant 0 : i32
    %1118 = vector.broadcast %c0_i32_321 : i32 to vector<64x64xi32>
    %1119 = arith.cmpi ne, %1117, %1118 : vector<64x64xi32>
    %c0_i32_322 = arith.constant 0 : i32
    %1120 = vector.broadcast %c0_i32_322 : i32 to vector<64x64xi32>
    %1121 = arith.cmpi slt, %1117, %1120 : vector<64x64xi32>
    %c0_i32_323 = arith.constant 0 : i32
    %1122 = arith.cmpi slt, %1115, %c0_i32_323 : i32
    %1123 = vector.broadcast %1122 : i1 to vector<64x64xi1>
    %1124 = vector.broadcast %1123 : vector<64x64xi1> to vector<64x64xi1>
    %1125 = arith.xori %1121, %1124 : vector<64x64xi1>
    %1126 = arith.andi %1125, %1119 : vector<64x64xi1>
    %1127 = vector.broadcast %1115 : i32 to vector<64x64xi32>
    %1128 = arith.addi %1117, %1127 : vector<64x64xi32>
    %1129 = arith.select %1126, %1128, %1117 : vector<64x64xi1>, vector<64x64xi32>
    %1130 = arith.cmpi eq, %1113, %1129 : vector<64x64xi32>
    %cst_324 = arith.constant -1.000000e+30 : f32
    %1131 = vector.broadcast %cst_324 : f32 to vector<64x64xf32>
    %1132 = arith.select %1130, %1095, %1131 : vector<64x64xi1>, vector<64x64xf32>
    %cst_325 = arith.constant dense<0xFF800000> : vector<64xf32>
    %1133 = vector.multi_reduction <maximumf>, %1132, %cst_325 [1] : vector<64x64xf32> to vector<64xf32>
    %1134 = vector.shape_cast %1133 : vector<64xf32> to vector<64x1xf32>
    %1135 = vector.broadcast %1134 : vector<64x1xf32> to vector<64x64xf32>
    %1136 = arith.subf %1132, %1135 : vector<64x64xf32>
    %1137 = math.exp %1136 : vector<64x64xf32>
    %cst_326 = arith.constant dense<0.000000e+00> : vector<64xf32>
    %1138 = vector.multi_reduction <add>, %1137, %cst_326 [1] : vector<64x64xf32> to vector<64xf32>
    %1139 = vector.shape_cast %1138 : vector<64xf32> to vector<64x1xf32>
    %1140 = tpu.reciprocal %1139 {approx = true} : vector<64x1xf32> -> vector<64x1xf32>
    %1141 = vector.broadcast %1140 : vector<64x1xf32> to vector<64x64xf32>
    %1142 = arith.mulf %1137, %1141 : vector<64x64xf32>
    %cst_327 = arith.constant dense<0.000000e+00> : vector<64x32xf32>
    %1143 = tpu.matmul %1142, %1094, %cst_327 {dimension_numbers = #tpu.dot_dimension_numbers<[1], [0], [0], [1], [0, 0, 1, 1], [], []>} : vector<64x64xf32>, vector<64x32xf32>, vector<64x32xf32> -> vector<64x32xf32>
    %c0_328 = arith.constant 0 : index
    %c0_329 = arith.constant 0 : index
    %1144 = vector.load %arg20[%c0_328, %c0_329] : memref<1x32xf32, #tpu.memory_space<vmem>>, vector<1x32xf32>
    %cst_330 = arith.constant dense<0.000000e+00> : vector<1x64xf32>
    %1145 = tpu.matmul %1144, %1143, %cst_330 {dimension_numbers = #tpu.dot_dimension_numbers<[1], [1], [0], [0], [0, 0, 1, 0], [], []>} : vector<1x32xf32>, vector<64x32xf32>, vector<1x64xf32> -> vector<1x64xf32>
    %c0_331 = arith.constant 0 : index
    %c0_332 = arith.constant 0 : index
    %1146 = vector.load %arg21[%c0_331, %c0_332] : memref<1x1xf32, #tpu.memory_space<vmem>>, vector<1x1xf32>
    %1147 = vector.broadcast %1146 : vector<1x1xf32> to vector<1x64xf32>
    %1148 = arith.addf %1145, %1147 : vector<1x64xf32>
    %c0_333 = arith.constant 0 : index
    %c0_334 = arith.constant 0 : index
    %c0_335 = arith.constant 0 : index
    %1149 = vector.load %arg22[%c0_333, %c0_334, %c0_335] : memref<1x1x64xf32, #tpu.memory_space<vmem>>, vector<1x1x64xf32>
    %1150 = vector.shape_cast %1149 : vector<1x1x64xf32> to vector<1x64xf32>
    %1151 = vector.shape_cast %1148 : vector<1x64xf32> to vector<1x1x64xf32>
    tpu.vector_store %arg22[%c0_333, %c0_334, %c0_335], %1151 {strides = array<i32>} : memref<1x1x64xf32, #tpu.memory_space<vmem>>, vector<1x1x64xf32>,
    return
  }
  func.func @transform_0(%arg0: i32) -> (i32, i32, i32) {
    %c0_i32 = arith.constant 0 : i32
    %c0_i32_0 = arith.constant 0 : i32
    %c0_i32_1 = arith.constant 0 : i32
    return %arg0, %c0_i32, %c0_i32_0 : i32, i32, i32
  }
  func.func @transform_1(%arg0: i32) -> (i32, i32) {
    %c0_i32 = arith.constant 0 : i32
    %c0_i32_0 = arith.constant 0 : i32
    %c0_i32_1 = arith.constant 0 : i32
    return %c0_i32, %c0_i32_0 : i32, i32
  }
  func.func @transform_2(%arg0: i32) -> (i32, i32) {
    %c0_i32 = arith.constant 0 : i32
    %c0_i32_0 = arith.constant 0 : i32
    %c0_i32_1 = arith.constant 0 : i32
    return %c0_i32, %c0_i32_0 : i32, i32
  }
  func.func @transform_3(%arg0: i32) -> (i32, i32) {
    %c0_i32 = arith.constant 0 : i32
    %c0_i32_0 = arith.constant 0 : i32
    %c0_i32_1 = arith.constant 0 : i32
    return %c0_i32, %c0_i32_0 : i32, i32
  }
  func.func @transform_4(%arg0: i32) -> (i32, i32) {
    %c0_i32 = arith.constant 0 : i32
    %c0_i32_0 = arith.constant 0 : i32
    %c0_i32_1 = arith.constant 0 : i32
    return %c0_i32, %c0_i32_0 : i32, i32
  }
  func.func @transform_5(%arg0: i32) -> (i32, i32) {
    %c0_i32 = arith.constant 0 : i32
    %c0_i32_0 = arith.constant 0 : i32
    %c0_i32_1 = arith.constant 0 : i32
    return %c0_i32, %c0_i32_0 : i32, i32
  }
  func.func @transform_6(%arg0: i32) -> (i32, i32) {
    %c0_i32 = arith.constant 0 : i32
    %c0_i32_0 = arith.constant 0 : i32
    %c0_i32_1 = arith.constant 0 : i32
    return %c0_i32, %c0_i32_0 : i32, i32
  }
  func.func @transform_7(%arg0: i32) -> (i32, i32) {
    %c0_i32 = arith.constant 0 : i32
    %c0_i32_0 = arith.constant 0 : i32
    %c0_i32_1 = arith.constant 0 : i32
    return %c0_i32, %c0_i32_0 : i32, i32
  }
  func.func @transform_8(%arg0: i32) -> (i32, i32) {
    %c0_i32 = arith.constant 0 : i32
    %c0_i32_0 = arith.constant 0 : i32
    %c0_i32_1 = arith.constant 0 : i32
    return %c0_i32, %c0_i32_0 : i32, i32
  }
  func.func @transform_9(%arg0: i32) -> (i32, i32) {
    %c0_i32 = arith.constant 0 : i32
    %c0_i32_0 = arith.constant 0 : i32
    %c0_i32_1 = arith.constant 0 : i32
    return %c0_i32, %c0_i32_0 : i32, i32
  }
  func.func @transform_10(%arg0: i32) -> (i32, i32) {
    %c0_i32 = arith.constant 0 : i32
    %c0_i32_0 = arith.constant 0 : i32
    %c0_i32_1 = arith.constant 0 : i32
    return %c0_i32, %c0_i32_0 : i32, i32
  }
  func.func @transform_11(%arg0: i32) -> (i32, i32) {
    %c0_i32 = arith.constant 0 : i32
    %c0_i32_0 = arith.constant 0 : i32
    %c0_i32_1 = arith.constant 0 : i32
    return %c0_i32, %c0_i32_0 : i32, i32
  }
  func.func @transform_12(%arg0: i32) -> (i32, i32) {
    %c0_i32 = arith.constant 0 : i32
    %c0_i32_0 = arith.constant 0 : i32
    %c0_i32_1 = arith.constant 0 : i32
    return %c0_i32, %c0_i32_0 : i32, i32
  }
  func.func @transform_13(%arg0: i32) -> (i32, i32) {
    %c0_i32 = arith.constant 0 : i32
    %c0_i32_0 = arith.constant 0 : i32
    %c0_i32_1 = arith.constant 0 : i32
    return %c0_i32, %c0_i32_0 : i32, i32
  }
  func.func @transform_14(%arg0: i32) -> (i32, i32) {
    %c0_i32 = arith.constant 0 : i32
    %c0_i32_0 = arith.constant 0 : i32
    %c0_i32_1 = arith.constant 0 : i32
    return %c0_i32, %c0_i32_0 : i32, i32
  }
  func.func @transform_15(%arg0: i32) -> (i32, i32) {
    %c0_i32 = arith.constant 0 : i32
    %c0_i32_0 = arith.constant 0 : i32
    %c0_i32_1 = arith.constant 0 : i32
    return %c0_i32, %c0_i32_0 : i32, i32
  }
  func.func @transform_16(%arg0: i32) -> (i32, i32) {
    %c0_i32 = arith.constant 0 : i32
    %c0_i32_0 = arith.constant 0 : i32
    %c0_i32_1 = arith.constant 0 : i32
    return %c0_i32, %c0_i32_0 : i32, i32
  }
  func.func @transform_17(%arg0: i32) -> (i32, i32) {
    %c0_i32 = arith.constant 0 : i32
    %c0_i32_0 = arith.constant 0 : i32
    %c0_i32_1 = arith.constant 0 : i32
    return %c0_i32, %c0_i32_0 : i32, i32
  }
  func.func @transform_18(%arg0: i32) -> (i32, i32) {
    %c0_i32 = arith.constant 0 : i32
    %c0_i32_0 = arith.constant 0 : i32
    %c0_i32_1 = arith.constant 0 : i32
    return %c0_i32, %c0_i32_0 : i32, i32
  }
  func.func @transform_19(%arg0: i32) -> (i32, i32) {
    %c0_i32 = arith.constant 0 : i32
    %c0_i32_0 = arith.constant 0 : i32
    %c0_i32_1 = arith.constant 0 : i32
    return %c0_i32, %c0_i32_0 : i32, i32
  }
  func.func @transform_20(%arg0: i32) -> (i32, i32) {
    %c0_i32 = arith.constant 0 : i32
    %c0_i32_0 = arith.constant 0 : i32
    %c0_i32_1 = arith.constant 0 : i32
    return %c0_i32, %c0_i32_0 : i32, i32
  }
  func.func @transform_21(%arg0: i32) -> (i32, i32, i32) {
    %c0_i32 = arith.constant 0 : i32
    %c0_i32_0 = arith.constant 0 : i32
    %c0_i32_1 = arith.constant 0 : i32
    return %arg0, %c0_i32, %c0_i32_0 : i32, i32, i32
  }
}

</mosaic_0001>

<llo_original>
// kernel: forward.1
$region0: #{forward.1}
  #allocation0 [shape = 'u32[]', space=smem, size = 0x4, offset = 0x4, fixed_abs, tag = 'smem constant byte address 0x4 - core index']
  #allocation1 [shape = 'u32[144,128]{1,0:T(1,128)}', space=vmem, size = 0x12000, scoped, tag = 'internal scratch']
  #allocation2 [shape = 'f32[64,128]{1,0:T(8,128)}', space=vmem, size = 0x8000, scoped, tag = 'scratch operand']
  #allocation3 [shape = 'f32[64,128]{1,0:T(8,128)}', space=vmem, size = 0x8000, scoped, tag = 'scratch operand']
  #allocation4 [shape = 'f32[64,128]{1,0:T(8,128)}', space=vmem, size = 0x8000, scoped, tag = 'scratch operand']
  #allocation5 [shape = 'f32[64,128]{1,0:T(8,128)}', space=vmem, size = 0x8000, scoped, tag = 'scratch operand']
  #allocation6 [shape = 'f32[1,1]{1,0:T(1,128)S(1)}', space=vmem, size = 0x200, scoped, tag = 'scoped memory for forward.1']
  %s0 = inlined_call_operand.vmem [shape: f32[1,64,24], index: 0, kind: input, shape index: {}]
  %s1 = inlined_call_operand.vmem [shape: f32[24,128], index: 1, kind: input, shape index: {}]
  %s2 = inlined_call_operand.vmem [shape: f32[1,128], index: 2, kind: input, shape index: {}]
  %s3 = inlined_call_operand.vmem [shape: f32[32,128], index: 3, kind: input, shape index: {}]
  %s4 = inlined_call_operand.vmem [shape: f32[32,128], index: 4, kind: input, shape index: {}]
  %s5 = inlined_call_operand.vmem [shape: f32[1,128], index: 5, kind: input, shape index: {}]
  %s6 = inlined_call_operand.vmem [shape: f32[32,128], index: 6, kind: input, shape index: {}]
  %s7 = inlined_call_operand.vmem [shape: f32[32,128], index: 7, kind: input, shape index: {}]
  %s8 = inlined_call_operand.vmem [shape: f32[1,128], index: 8, kind: input, shape index: {}]
  %s9 = inlined_call_operand.vmem [shape: f32[32,128], index: 9, kind: input, shape index: {}]
  %s10 = inlined_call_operand.vmem [shape: f32[32,128], index: 10, kind: input, shape index: {}]
  %s11 = inlined_call_operand.vmem [shape: f32[1,128], index: 11, kind: input, shape index: {}]
  %s12 = inlined_call_operand.vmem [shape: f32[32,128], index: 12, kind: input, shape index: {}]
  %s13 = inlined_call_operand.vmem [shape: f32[32,32], index: 13, kind: input, shape index: {}]
  %s14 = inlined_call_operand.vmem [shape: f32[1,32], index: 14, kind: input, shape index: {}]
  %s15 = inlined_call_operand.vmem [shape: f32[32,32], index: 15, kind: input, shape index: {}]
  %s16 = inlined_call_operand.vmem [shape: f32[1,32], index: 16, kind: input, shape index: {}]
  %s17 = inlined_call_operand.vmem [shape: f32[32,32], index: 17, kind: input, shape index: {}]
  %s18 = inlined_call_operand.vmem [shape: f32[1,32], index: 18, kind: input, shape index: {}]
  %s19 = inlined_call_operand.vmem [shape: f32[1,32], index: 19, kind: input, shape index: {}]
  %s20 = inlined_call_operand.<no memory space> [shape: f32[1,1], index: 20, kind: input, shape index: {}]
  %s21 = inlined_call_operand.vmem [shape: f32[1,1,64], index: 21, kind: output, shape index: {}]
  %s22 = sld [smem:[#allocation0]]
  $region94: #{forward.1} parent=0
    _
  %s24 = ssub.s32 1, %s22
  %s25 = scalar_select 0, %s24, %s22
  %v26 = vstv %s20
  %27 = vst [vmem:[#allocation6] sm:$0x1] %v26
  // Predicated region
  $region2: #{forward.1} parent=0 // pred_check
    _
  $region3: #{forward.1} parent=0 // pred_check_branch
    %29 = sbr.rel (0) target = $region5
  $region4: #{forward.1} parent=0 // pred_region
    _
  $region5: #{forward.1} parent=0 // pred_fallthru
    _
  // Predicated region
  $region6: #{forward.1} parent=0 // pred_check
    _
  $region7: #{forward.1} parent=0 // pred_check_branch
    %31 = sbr.rel (0) target = $region9
  $region8: #{forward.1} parent=0 // pred_region
    _
  $region9: #{forward.1} parent=0 // pred_fallthru
    _
  // Predicated region
  $region10: #{forward.1} parent=0 // pred_check
    _
  $region11: #{forward.1} parent=0 // pred_check_branch
    %33 = sbr.rel (0) target = $region13
  $region12: #{forward.1} parent=0 // pred_region
    _
  $region13: #{forward.1} parent=0 // pred_fallthru
    _
  // Predicated region
  $region14: #{forward.1} parent=0 // pred_check
    _
  $region15: #{forward.1} parent=0 // pred_check_branch
    %35 = sbr.rel (0) target = $region17
  $region16: #{forward.1} parent=0 // pred_region
    _
  $region17: #{forward.1} parent=0 // pred_fallthru
    _
  // Predicated region
  $region18: #{forward.1} parent=0 // pred_check
    _
  $region19: #{forward.1} parent=0 // pred_check_branch
    %37 = sbr.rel (0) target = $region21
  $region20: #{forward.1} parent=0 // pred_region
    _
  $region21: #{forward.1} parent=0 // pred_fallthru
    _
  // Predicated region
  $region22: #{forward.1} parent=0 // pred_check
    _
  $region23: #{forward.1} parent=0 // pred_check_branch
    %39 = sbr.rel (0) target = $region25
  $region24: #{forward.1} parent=0 // pred_region
    _
  $region25: #{forward.1} parent=0 // pred_fallthru
    _
  // Predicated region
  $region26: #{forward.1} parent=0 // pred_check
    _
  $region27: #{forward.1} parent=0 // pred_check_branch
    %41 = sbr.rel (0) target = $region29
  $region28: #{forward.1} parent=0 // pred_region
    _
  $region29: #{forward.1} parent=0 // pred_fallthru
    _
  // Predicated region
  $region30: #{forward.1} parent=0 // pred_check
    _
  $region31: #{forward.1} parent=0 // pred_check_branch
    %43 = sbr.rel (0) target = $region33
  $region32: #{forward.1} parent=0 // pred_region
    _
  $region33: #{forward.1} parent=0 // pred_fallthru
    _
  // Predicated region
  $region34: #{forward.1} parent=0 // pred_check
    _
  $region35: #{forward.1} parent=0 // pred_check_branch
    %45 = sbr.rel (0) target = $region37
  $region36: #{forward.1} parent=0 // pred_region
    _
  $region37: #{forward.1} parent=0 // pred_fallthru
    _
  // Predicated region
  $region38: #{forward.1} parent=0 // pred_check
    _
  $region39: #{forward.1} parent=0 // pred_check_branch
    %47 = sbr.rel (0) target = $region41
  $region40: #{forward.1} parent=0 // pred_region
    _
  $region41: #{forward.1} parent=0 // pred_fallthru
    _
  // Predicated region
  $region42: #{forward.1} parent=0 // pred_check
    _
  $region43: #{forward.1} parent=0 // pred_check_branch
    %49 = sbr.rel (0) target = $region45
  $region44: #{forward.1} parent=0 // pred_region
    _
  $region45: #{forward.1} parent=0 // pred_fallthru
    _
  // Predicated region
  $region46: #{forward.1} parent=0 // pred_check
    _
  $region47: #{forward.1} parent=0 // pred_check_branch
    %51 = sbr.rel (0) target = $region49
  $region48: #{forward.1} parent=0 // pred_region
    _
  $region49: #{forward.1} parent=0 // pred_fallthru
    _
  // Predicated region
  $region50: #{forward.1} parent=0 // pred_check
    _
  $region51: #{forward.1} parent=0 // pred_check_branch
    %53 = sbr.rel (0) target = $region53
  $region52: #{forward.1} parent=0 // pred_region
    _
  $region53: #{forward.1} parent=0 // pred_fallthru
    _
  // Predicated region
  $region54: #{forward.1} parent=0 // pred_check
    _
  $region55: #{forward.1} parent=0 // pred_check_branch
    %55 = sbr.rel (0) target = $region57
  $region56: #{forward.1} parent=0 // pred_region
    _
  $region57: #{forward.1} parent=0 // pred_fallthru
    _
  // Predicated region
  $region58: #{forward.1} parent=0 // pred_check
    _
  $region59: #{forward.1} parent=0 // pred_check_branch
    %57 = sbr.rel (0) target = $region61
  $region60: #{forward.1} parent=0 // pred_region
    _
  $region61: #{forward.1} parent=0 // pred_fallthru
    _
  // Predicated region
  $region62: #{forward.1} parent=0 // pred_check
    _
  $region63: #{forward.1} parent=0 // pred_check_branch
    %59 = sbr.rel (0) target = $region65
  $region64: #{forward.1} parent=0 // pred_region
    _
  $region65: #{forward.1} parent=0 // pred_fallthru
    _
  // Predicated region
  $region66: #{forward.1} parent=0 // pred_check
    _
  $region67: #{forward.1} parent=0 // pred_check_branch
    %61 = sbr.rel (0) target = $region69
  $region68: #{forward.1} parent=0 // pred_region
    _
  $region69: #{forward.1} parent=0 // pred_fallthru
    _
  // Predicated region
  $region70: #{forward.1} parent=0 // pred_check
    _
  $region71: #{forward.1} parent=0 // pred_check_branch
    %63 = sbr.rel (0) target = $region73
  $region72: #{forward.1} parent=0 // pred_region
    _
  $region73: #{forward.1} parent=0 // pred_fallthru
    _
  // Predicated region
  $region74: #{forward.1} parent=0 // pred_check
    _
  $region75: #{forward.1} parent=0 // pred_check_branch
    %65 = sbr.rel (0) target = $region77
  $region76: #{forward.1} parent=0 // pred_region
    _
  $region77: #{forward.1} parent=0 // pred_fallthru
    _
  // Predicated region
  $region78: #{forward.1} parent=0 // pred_check
    _
  $region79: #{forward.1} parent=0 // pred_check_branch
    %67 = sbr.rel (0) target = $region81
  $region80: #{forward.1} parent=0 // pred_region
    _
  $region81: #{forward.1} parent=0 // pred_fallthru
    _
  // Predicated region
  $region82: #{forward.1} parent=0 // pred_check
    _
  $region83: #{forward.1} parent=0 // pred_check_branch
    %69 = sbr.rel (0) target = $region85
  $region84: #{forward.1} parent=0 // pred_region
    _
  $region85: #{forward.1} parent=0 // pred_fallthru
    _
  %v70 = vld [vmem:[%s0] sm:$0xff]
  %v71 = vld [vmem:[%s0 + $0x8] sm:$0xff]
  %v72 = vld [vmem:[%s0 + $0x10] sm:$0xff]
  %v73 = vld [vmem:[%s0 + $0x18] sm:$0xff]
  %v74 = vld [vmem:[%s0 + $0x20] sm:$0xff]
  %v75 = vld [vmem:[%s0 + $0x28] sm:$0xff]
  %v76 = vld [vmem:[%s0 + $0x30] sm:$0xff]
  %v77 = vld [vmem:[%s0 + $0x38] sm:$0xff]
  %v78 = vld [vmem:[%s1] sm:$0xff]
  %v79 = vld [vmem:[%s1 + $0x8] sm:$0xff]
  %v80 = vld [vmem:[%s1 + $0x10] sm:$0xff]
  %v81 = vld [vmem:[%s2] sm:$0x1]
  %v83 = vlaneseq
  %v84 = vshrl.u32 %v83, 7
  %v85 = vsub.s32 0, %v84
  %v86 = vrot.slane %v81, %v85
  %vm88 = vcmask 195584
  %v90 = vsel %vm88, %v70, 0
  %v93 = vsel %vm88, %v71, 0
  %v96 = vsel %vm88, %v72, 0
  %v99 = vsel %vm88, %v73, 0
  %v102 = vsel %vm88, %v74, 0
  %v105 = vsel %vm88, %v75, 0
  %v108 = vsel %vm88, %v76, 0
  %v111 = vsel %vm88, %v77, 0
  %113 = vmatprep.subr.mxu0 0.0
  %114 = vmatpush1.msra.mxu0 0.0
  %115 = vmatprep.subr.mxu0 0.0
  %116 = vmatpush1.msra.mxu0 0.0
  %117 = vmatprep.subr.mxu0 0.0
  %118 = vmatpush1.msra.mxu0 0.0
  %119 = vmatprep.subr.mxu0 0.0
  %120 = vmatpush1.msra.mxu0 0.0
  %121 = vmatprep.subr.mxu0 0.0
  %122 = vmatpush1.msra.mxu0 0.0
  %123 = vmatprep.subr.mxu0 0.0
  %124 = vmatpush1.msra.mxu0 0.0
  %125 = vmatprep.subr.mxu0 0.0
  %126 = vmatpush1.msra.mxu0 0.0
  %127 = vmatprep.subr.mxu0 0.0
  %128 = vmatpush1.msra.mxu0 0.0
  %129 = vmatprep.subr.mxu0 0.0
  %130 = vmatpush1.msra.mxu0 0.0
  %131 = vmatprep.subr.mxu0 0.0
  %132 = vmatpush1.msra.mxu0 0.0
  %133 = vmatprep.subr.mxu0 0.0
  %134 = vmatpush1.msra.mxu0 0.0
  %135 = vmatprep.subr.mxu0 0.0
  %136 = vmatpush1.msra.mxu0 0.0
  %137 = vmatprep.subr.mxu0 0.0
  %138 = vmatpush1.msra.mxu0 0.0
  %139 = vmatprep.subr.mxu0 0.0
  %140 = vmatpush1.msra.mxu0 %v80
  %141 = vmatprep.subr.mxu0 0.0
  %142 = vmatpush1.msra.mxu0 %v79
  %143 = vmatprep.subr.mxu0 0.0
  %144 = vmatpush1.msra.mxu0 %v78
  %145 = vmatprep.subr.mxu0 0.0
  %146 = vmatpush2.msra.mxu0 0.0
  %147 = vmatprep.subr.mxu0 0.0
  %148 = vmatpush2.msra.mxu0 0.0
  %149 = vmatprep.subr.mxu0 0.0
  %150 = vmatpush2.msra.mxu0 0.0
  %151 = vmatprep.subr.mxu0 0.0
  %152 = vmatpush2.msra.mxu0 0.0
  %153 = vmatprep.subr.mxu0 0.0
  %154 = vmatpush2.msra.mxu0 0.0
  %155 = vmatprep.subr.mxu0 0.0
  %156 = vmatpush2.msra.mxu0 0.0
  %157 = vmatprep.subr.mxu0 0.0
  %158 = vmatpush2.msra.mxu0 0.0
  %159 = vmatprep.subr.mxu0 0.0
  %160 = vmatpush2.msra.mxu0 0.0
  %161 = vmatprep.subr.mxu0 0.0
  %162 = vmatpush2.msra.mxu0 0.0
  %163 = vmatprep.subr.mxu0 0.0
  %164 = vmatpush2.msra.mxu0 0.0
  %165 = vmatprep.subr.mxu0 0.0
  %166 = vmatpush2.msra.mxu0 0.0
  %167 = vmatprep.subr.mxu0 0.0
  %168 = vmatpush2.msra.mxu0 0.0
  %169 = vmatprep.subr.mxu0 0.0
  %170 = vmatpush2.msra.mxu0 0.0
  %171 = vmatprep.subr.mxu0 0.0
  %172 = vmatpush2.msra.mxu0 0.0
  %173 = vmatprep.subr.mxu0 0.0
  %174 = vmatpush2.msra.mxu0 0.0
  %175 = vmatprep.subr.mxu0 0.0
  %176 = vmatpush2.msra.mxu0 0.0
  %177 = vmatprep.mubr.f32.mxu0 0.0
  %178 = vmatmul.mubr.f32.gmra.mxu0 %v90
  %v179 = vpop.f32.mrf.mxu0
  %v180 = vadd.f32 %v86, %v179
  %v181 = vpop.f32.mrf.mxu0
  %182 = vmatprep.mubr.f32.mxu0 0.0
  %183 = vmatmul.mubr.f32.gmra.mxu0 %v93
  %v184 = vpop.f32.mrf.mxu0
  %v185 = vadd.f32 %v86, %v184
  %v186 = vpop.f32.mrf.mxu0
  %187 = vmatprep.mubr.f32.mxu0 0.0
  %188 = vmatmul.mubr.f32.gmra.mxu0 %v96
  %v189 = vpop.f32.mrf.mxu0
  %v190 = vadd.f32 %v86, %v189
  %v191 = vpop.f32.mrf.mxu0
  %192 = vmatprep.mubr.f32.mxu0 0.0
  %193 = vmatmul.mubr.f32.gmra.mxu0 %v99
  %v194 = vpop.f32.mrf.mxu0
  %v195 = vadd.f32 %v86, %v194
  %v196 = vpop.f32.mrf.mxu0
  %197 = vmatprep.mubr.f32.mxu0 0.0
  %198 = vmatmul.mubr.f32.gmra.mxu0 %v102
  %v199 = vpop.f32.mrf.mxu0
  %v200 = vadd.f32 %v86, %v199
  %v201 = vpop.f32.mrf.mxu0
  %202 = vmatprep.mubr.f32.mxu0 0.0
  %203 = vmatmul.mubr.f32.gmra.mxu0 %v105
  %v204 = vpop.f32.mrf.mxu0
  %v205 = vadd.f32 %v86, %v204
  %v206 = vpop.f32.mrf.mxu0
  %207 = vmatprep.mubr.f32.mxu0 0.0
  %208 = vmatmul.mubr.f32.gmra.mxu0 %v108
  %v209 = vpop.f32.mrf.mxu0
  %v210 = vadd.f32 %v86, %v209
  %v211 = vpop.f32.mrf.mxu0
  %212 = vmatprep.mubr.f32.mxu0 0.0
  %213 = vmatmul.mubr.f32.gmra.mxu0 %v111
  %v214 = vpop.f32.mrf.mxu0
  %v215 = vadd.f32 %v86, %v214
  %v216 = vpop.f32.mrf.mxu0
  %217 = vdwg.mxu0
  %218 = vst [vmem:[#allocation2] sm:$0xff] %v180
  %219 = vst [vmem:[#allocation2 + $0x8] sm:$0xff] %v185
  %220 = vst [vmem:[#allocation2 + $0x10] sm:$0xff] %v190
  %221 = vst [vmem:[#allocation2 + $0x18] sm:$0xff] %v195
  %222 = vst [vmem:[#allocation2 + $0x20] sm:$0xff] %v200
  %223 = vst [vmem:[#allocation2 + $0x28] sm:$0xff] %v205
  %224 = vst [vmem:[#allocation2 + $0x30] sm:$0xff] %v210
  %225 = vst [vmem:[#allocation2 + $0x38] sm:$0xff] %v215
  %v226 = vld [vmem:[%s3] sm:$0xff]
  %v227 = vld [vmem:[%s3 + $0x8] sm:$0xff]
  %v228 = vld [vmem:[%s3 + $0x10] sm:$0xff]
  %v229 = vld [vmem:[%s3 + $0x18] sm:$0xff]
  %v230 = vlaneseq
  %v231 = vand.u32 %v230, 127
  %vm232 = vcmp.lt.s32.totalorder %v231, 64
  %vm233 = vcmask 130048
  %v235 = vsel %vm233, 0.0, 0
  %237 = vmatprep.subr.mxu0 0.0
  %238 = vmatpush1.msra.mxu0 0.0
  %239 = vmatprep.subr.mxu0 0.0
  %240 = vmatpush1.msra.mxu0 0.0
  %241 = vmatprep.subr.mxu0 0.0
  %242 = vmatpush1.msra.mxu0 0.0
  %243 = vmatprep.subr.mxu0 0.0
  %244 = vmatpush1.msra.mxu0 0.0
  %245 = vmatprep.subr.mxu0 0.0
  %246 = vmatpush1.msra.mxu0 0.0
  %247 = vmatprep.subr.mxu0 0.0
  %248 = vmatpush1.msra.mxu0 0.0
  %249 = vmatprep.subr.mxu0 0.0
  %250 = vmatpush1.msra.mxu0 0.0
  %251 = vmatprep.subr.mxu0 0.0
  %252 = vmatpush1.msra.mxu0 0.0
  %253 = vmatprep.subr.mxu0 0.0
  %254 = vmatpush1.msra.mxu0 0.0
  %255 = vmatprep.subr.mxu0 0.0
  %256 = vmatpush1.msra.mxu0 0.0
  %257 = vmatprep.subr.mxu0 0.0
  %258 = vmatpush1.msra.mxu0 0.0
  %259 = vmatprep.subr.mxu0 0.0
  %260 = vmatpush1.msra.mxu0 0.0
  %261 = vmatprep.subr.mxu0 0.0
  %262 = vmatpush1.msra.mxu0 0.0
  %263 = vmatprep.subr.mxu0 0.0
  %264 = vmatpush1.msra.mxu0 0.0
  %265 = vmatprep.subr.mxu0 0.0
  %266 = vmatpush1.msra.mxu0 %v229
  %267 = vmatprep.subr.mxu0 0.0
  %268 = vmatpush1.msra.mxu0 %v228
  %269 = vmatprep.subr.mxu0 0.0
  %270 = vmatpush2.msra.mxu0 0.0
  %271 = vmatprep.subr.mxu0 0.0
  %272 = vmatpush2.msra.mxu0 0.0
  %273 = vmatprep.subr.mxu0 0.0
  %274 = vmatpush2.msra.mxu0 0.0
  %275 = vmatprep.subr.mxu0 0.0
  %276 = vmatpush2.msra.mxu0 0.0
  %277 = vmatprep.subr.mxu0 0.0
  %278 = vmatpush2.msra.mxu0 0.0
  %279 = vmatprep.subr.mxu0 0.0
  %280 = vmatpush2.msra.mxu0 0.0
  %281 = vmatprep.subr.mxu0 0.0
  %282 = vmatpush2.msra.mxu0 0.0
  %283 = vmatprep.subr.mxu0 0.0
  %284 = vmatpush2.msra.mxu0 0.0
  %285 = vmatprep.subr.mxu0 0.0
  %286 = vmatpush2.msra.mxu0 0.0
  %287 = vmatprep.subr.mxu0 0.0
  %288 = vmatpush2.msra.mxu0 0.0
  %289 = vmatprep.subr.mxu0 0.0
  %290 = vmatpush2.msra.mxu0 0.0
  %291 = vmatprep.subr.mxu0 0.0
  %292 = vmatpush2.msra.mxu0 0.0
  %293 = vmatprep.subr.mxu0 0.0
  %294 = vmatpush2.msra.mxu0 0.0
  %295 = vmatprep.subr.mxu0 0.0
  %296 = vmatpush2.msra.mxu0 0.0
  %297 = vmatprep.subr.mxu0 0.0
  %298 = vmatpush2.msra.mxu0 0.0
  %299 = vmatprep.subr.mxu0 0.0
  %300 = vmatpush2.msra.mxu0 0.0
  %301 = vmatprep.mubr.f32.mxu0 0.0
  %302 = vmatmul.mubr.f32.gmra.mxu0 %v235
  %v303 = vpop.f32.mrf.mxu0
  %v304 = vadd.f32 0.0, %v303
  %v305 = vpop.f32.mrf.mxu0
  %306 = vdwg.mxu0
  %307 = vmatprep.subr.mxu0 0.0
  %308 = vmatpush1.msra.mxu0 0.0
  %309 = vmatprep.subr.mxu0 0.0
  %310 = vmatpush1.msra.mxu0 0.0
  %311 = vmatprep.subr.mxu0 0.0
  %312 = vmatpush1.msra.mxu0 0.0
  %313 = vmatprep.subr.mxu0 0.0
  %314 = vmatpush1.msra.mxu0 0.0
  %315 = vmatprep.subr.mxu0 0.0
  %316 = vmatpush1.msra.mxu0 0.0
  %317 = vmatprep.subr.mxu0 0.0
  %318 = vmatpush1.msra.mxu0 0.0
  %319 = vmatprep.subr.mxu0 0.0
  %320 = vmatpush1.msra.mxu0 0.0
  %321 = vmatprep.subr.mxu0 0.0
  %322 = vmatpush1.msra.mxu0 0.0
  %323 = vmatprep.subr.mxu0 0.0
  %324 = vmatpush1.msra.mxu0 0.0
  %325 = vmatprep.subr.mxu0 0.0
  %326 = vmatpush1.msra.mxu0 0.0
  %327 = vmatprep.subr.mxu0 0.0
  %328 = vmatpush1.msra.mxu0 0.0
  %329 = vmatprep.subr.mxu0 0.0
  %330 = vmatpush1.msra.mxu0 0.0
  %331 = vmatprep.subr.mxu0 0.0
  %332 = vmatpush1.msra.mxu0 0.0
  %333 = vmatprep.subr.mxu0 0.0
  %334 = vmatpush1.msra.mxu0 0.0
  %335 = vmatprep.subr.mxu0 0.0
  %336 = vmatpush1.msra.mxu0 %v227
  %337 = vmatprep.subr.mxu0 0.0
  %338 = vmatpush1.msra.mxu0 %v226
  %339 = vmatprep.subr.mxu0 0.0
  %340 = vmatpush2.msra.mxu0 0.0
  %341 = vmatprep.subr.mxu0 0.0
  %342 = vmatpush2.msra.mxu0 0.0
  %343 = vmatprep.subr.mxu0 0.0
  %344 = vmatpush2.msra.mxu0 0.0
  %345 = vmatprep.subr.mxu0 0.0
  %346 = vmatpush2.msra.mxu0 0.0
  %347 = vmatprep.subr.mxu0 0.0
  %348 = vmatpush2.msra.mxu0 0.0
  %349 = vmatprep.subr.mxu0 0.0
  %350 = vmatpush2.msra.mxu0 0.0
  %351 = vmatprep.subr.mxu0 0.0
  %352 = vmatpush2.msra.mxu0 0.0
  %353 = vmatprep.subr.mxu0 0.0
  %354 = vmatpush2.msra.mxu0 0.0
  %355 = vmatprep.subr.mxu0 0.0
  %356 = vmatpush2.msra.mxu0 0.0
  %357 = vmatprep.subr.mxu0 0.0
  %358 = vmatpush2.msra.mxu0 0.0
  %359 = vmatprep.subr.mxu0 0.0
  %360 = vmatpush2.msra.mxu0 0.0
  %361 = vmatprep.subr.mxu0 0.0
  %362 = vmatpush2.msra.mxu0 0.0
  %363 = vmatprep.subr.mxu0 0.0
  %364 = vmatpush2.msra.mxu0 0.0
  %365 = vmatprep.subr.mxu0 0.0
  %366 = vmatpush2.msra.mxu0 0.0
  %367 = vmatprep.subr.mxu0 0.0
  %368 = vmatpush2.msra.mxu0 0.0
  %369 = vmatprep.subr.mxu0 0.0
  %370 = vmatpush2.msra.mxu0 0.0
  %371 = vmatprep.mubr.f32.mxu0 0.0
  %372 = vmatmul.mubr.f32.gmra.mxu0 %v235
  %v373 = vpop.f32.mrf.mxu0
  %v374 = vadd.f32 %v304, %v373
  %v375 = vpop.f32.mrf.mxu0
  %376 = vdwg.mxu0
  %v377 = vld [vmem:[#allocation2] sm:$0xff]
  %v378 = vld [vmem:[#allocation2 + $0x38] sm:$0xff]
  %v379 = vsel %vm232, %v377, %v378
  %v380 = vadd.f32 %v374, %v379
  %v381 = vxor.u32 %v380, 2147483648
  %v382 = vmul.f32 %v381, 1.442695
  %v383 = vpow.pop %v382
  %v384 = vadd.f32 %v383, 1.0
  %v385 = vrcp.pop %v384
  %v386 = vmul.f32 1.0, %v385
  %v387 = vtanh.pop %v380
  %v388 = vmul.f32 %v386, 0.0
  %390 = vrot.lane.b32.xlu0 %v387, 96
  %v391 = vpop.permute.xlu0 %390
  %v393 = vmul.f32 %v386, %v391
  %395 = vrot.lane.b32.xlu0 %v393, 16
  %v396 = vpop.permute.xlu0 %395
  %v398 = vadd.f32 %v388, %v396
  %v399 = vtanh.pop %v398
  %401 = vrot.lane.b32.xlu0 %v399, 32
  %v402 = vpop.permute.xlu0 %401
  %v404 = vmul.f32 %v386, %v402
  %406 = vrot.lane.b32.xlu0 %v404, 16
  %v407 = vpop.permute.xlu0 %406
  %v408 = vsel %vm233, %v407, 0
  %410 = vmatprep.subr.mxu0 0.0
  %411 = vmatpush1.msra.mxu0 0.0
  %412 = vmatprep.subr.mxu0 0.0
  %413 = vmatpush1.msra.mxu0 0.0
  %414 = vmatprep.subr.mxu0 0.0
  %415 = vmatpush1.msra.mxu0 0.0
  %416 = vmatprep.subr.mxu0 0.0
  %417 = vmatpush1.msra.mxu0 0.0
  %418 = vmatprep.subr.mxu0 0.0
  %419 = vmatpush1.msra.mxu0 0.0
  %420 = vmatprep.subr.mxu0 0.0
  %421 = vmatpush1.msra.mxu0 0.0
  %422 = vmatprep.subr.mxu0 0.0
  %423 = vmatpush1.msra.mxu0 0.0
  %424 = vmatprep.subr.mxu0 0.0
  %425 = vmatpush1.msra.mxu0 0.0
  %426 = vmatprep.subr.mxu0 0.0
  %427 = vmatpush1.msra.mxu0 0.0
  %428 = vmatprep.subr.mxu0 0.0
  %429 = vmatpush1.msra.mxu0 0.0
  %430 = vmatprep.subr.mxu0 0.0
  %431 = vmatpush1.msra.mxu0 0.0
  %432 = vmatprep.subr.mxu0 0.0
  %433 = vmatpush1.msra.mxu0 0.0
  %434 = vmatprep.subr.mxu0 0.0
  %435 = vmatpush1.msra.mxu0 0.0
  %436 = vmatprep.subr.mxu0 0.0
  %437 = vmatpush1.msra.mxu0 0.0
  %438 = vmatprep.subr.mxu0 0.0
  %439 = vmatpush1.msra.mxu0 %v229
  %440 = vmatprep.subr.mxu0 0.0
  %441 = vmatpush1.msra.mxu0 %v228
  %442 = vmatprep.subr.mxu0 0.0
  %443 = vmatpush2.msra.mxu0 0.0
  %444 = vmatprep.subr.mxu0 0.0
  %445 = vmatpush2.msra.mxu0 0.0
  %446 = vmatprep.subr.mxu0 0.0
  %447 = vmatpush2.msra.mxu0 0.0
  %448 = vmatprep.subr.mxu0 0.0
  %449 = vmatpush2.msra.mxu0 0.0
  %450 = vmatprep.subr.mxu0 0.0
  %451 = vmatpush2.msra.mxu0 0.0
  %452 = vmatprep.subr.mxu0 0.0
  %453 = vmatpush2.msra.mxu0 0.0
  %454 = vmatprep.subr.mxu0 0.0
  %455 = vmatpush2.msra.mxu0 0.0
  %456 = vmatprep.subr.mxu0 0.0
  %457 = vmatpush2.msra.mxu0 0.0
  %458 = vmatprep.subr.mxu0 0.0
  %459 = vmatpush2.msra.mxu0 0.0
  %460 = vmatprep.subr.mxu0 0.0
  %461 = vmatpush2.msra.mxu0 0.0
  %462 = vmatprep.subr.mxu0 0.0
  %463 = vmatpush2.msra.mxu0 0.0
  %464 = vmatprep.subr.mxu0 0.0
  %465 = vmatpush2.msra.mxu0 0.0
  %466 = vmatprep.subr.mxu0 0.0
  %467 = vmatpush2.msra.mxu0 0.0
  %468 = vmatprep.subr.mxu0 0.0
  %469 = vmatpush2.msra.mxu0 0.0
  %470 = vmatprep.subr.mxu0 0.0
  %471 = vmatpush2.msra.mxu0 0.0
  %472 = vmatprep.subr.mxu0 0.0
  %473 = vmatpush2.msra.mxu0 0.0
  %474 = vmatprep.mubr.f32.mxu0 0.0
  %475 = vmatmul.mubr.f32.gmra.mxu0 %v408
  %v476 = vpop.f32.mrf.mxu0
  %v477 = vadd.f32 0.0, %v476
  %v478 = vpop.f32.mrf.mxu0
  %479 = vdwg.mxu0
  %480 = vrot.lane.b32.xlu0 %v404, 80
  %v481 = vpop.permute.xlu0 %480
  %v482 = vsel %vm233, %v481, 0
  %484 = vmatprep.subr.mxu0 0.0
  %485 = vmatpush1.msra.mxu0 0.0
  %486 = vmatprep.subr.mxu0 0.0
  %487 = vmatpush1.msra.mxu0 0.0
  %488 = vmatprep.subr.mxu0 0.0
  %489 = vmatpush1.msra.mxu0 0.0
  %490 = vmatprep.subr.mxu0 0.0
  %491 = vmatpush1.msra.mxu0 0.0
  %492 = vmatprep.subr.mxu0 0.0
  %493 = vmatpush1.msra.mxu0 0.0
  %494 = vmatprep.subr.mxu0 0.0
  %495 = vmatpush1.msra.mxu0 0.0
  %496 = vmatprep.subr.mxu0 0.0
  %497 = vmatpush1.msra.mxu0 0.0
  %498 = vmatprep.subr.mxu0 0.0
  %499 = vmatpush1.msra.mxu0 0.0
  %500 = vmatprep.subr.mxu0 0.0
  %501 = vmatpush1.msra.mxu0 0.0
  %502 = vmatprep.subr.mxu0 0.0
  %503 = vmatpush1.msra.mxu0 0.0
  %504 = vmatprep.subr.mxu0 0.0
  %505 = vmatpush1.msra.mxu0 0.0
  %506 = vmatprep.subr.mxu0 0.0
  %507 = vmatpush1.msra.mxu0 0.0
  %508 = vmatprep.subr.mxu0 0.0
  %509 = vmatpush1.msra.mxu0 0.0
  %510 = vmatprep.subr.mxu0 0.0
  %511 = vmatpush1.msra.mxu0 0.0
  %512 = vmatprep.subr.mxu0 0.0
  %513 = vmatpush1.msra.mxu0 %v227
  %514 = vmatprep.subr.mxu0 0.0
  %515 = vmatpush1.msra.mxu0 %v226
  %516 = vmatprep.subr.mxu0 0.0
  %517 = vmatpush2.msra.mxu0 0.0
  %518 = vmatprep.subr.mxu0 0.0
  %519 = vmatpush2.msra.mxu0 0.0
  %520 = vmatprep.subr.mxu0 0.0
  %521 = vmatpush2.msra.mxu0 0.0
  %522 = vmatprep.subr.mxu0 0.0
  %523 = vmatpush2.msra.mxu0 0.0
  %524 = vmatprep.subr.mxu0 0.0
  %525 = vmatpush2.msra.mxu0 0.0
  %526 = vmatprep.subr.mxu0 0.0
  %527 = vmatpush2.msra.mxu0 0.0
  %528 = vmatprep.subr.mxu0 0.0
  %529 = vmatpush2.msra.mxu0 0.0
  %530 = vmatprep.subr.mxu0 0.0
  %531 = vmatpush2.msra.mxu0 0.0
  %532 = vmatprep.subr.mxu0 0.0
  %533 = vmatpush2.msra.mxu0 0.0
  %534 = vmatprep.subr.mxu0 0.0
  %535 = vmatpush2.msra.mxu0 0.0
  %536 = vmatprep.subr.mxu0 0.0
  %537 = vmatpush2.msra.mxu0 0.0
  %538 = vmatprep.subr.mxu0 0.0
  %539 = vmatpush2.msra.mxu0 0.0
  %540 = vmatprep.subr.mxu0 0.0
  %541 = vmatpush2.msra.mxu0 0.0
  %542 = vmatprep.subr.mxu0 0.0
  %543 = vmatpush2.msra.mxu0 0.0
  %544 = vmatprep.subr.mxu0 0.0
  %545 = vmatpush2.msra.mxu0 0.0
  %546 = vmatprep.subr.mxu0 0.0
  %547 = vmatpush2.msra.mxu0 0.0
  %548 = vmatprep.mubr.f32.mxu0 0.0
  %549 = vmatmul.mubr.f32.gmra.mxu0 %v482
  %v550 = vpop.f32.mrf.mxu0
  %v551 = vadd.f32 %v477, %v550
  %v552 = vpop.f32.mrf.mxu0
  %553 = vdwg.mxu0
  %v554 = vld [vmem:[#allocation2 + $0x8] sm:$0xff]
  %v555 = vld [vmem:[#allocation2 + $0x30] sm:$0xff]
  %v556 = vsel %vm232, %v554, %v555
  %v557 = vadd.f32 %v551, %v556
  %v558 = vxor.u32 %v557, 2147483648
  %v559 = vmul.f32 %v558, 1.442695
  %v560 = vpow.pop %v559
  %v561 = vadd.f32 %v560, 1.0
  %v562 = vrcp.pop %v561
  %v563 = vmul.f32 1.0, %v562
  %v564 = vtanh.pop %v557
  %v565 = vmul.f32 %v563, %v398
  %567 = vrot.lane.b32.xlu0 %v564, 96
  %v568 = vpop.permute.xlu0 %567
  %v570 = vmul.f32 %v563, %v568
  %572 = vrot.lane.b32.xlu0 %v570, 16
  %v573 = vpop.permute.xlu0 %572
  %v575 = vadd.f32 %v565, %v573
  %v576 = vtanh.pop %v575
  %578 = vrot.lane.b32.xlu0 %v576, 32
  %v579 = vpop.permute.xlu0 %578
  %v581 = vmul.f32 %v563, %v579
  %583 = vrot.lane.b32.xlu0 %v581, 16
  %v584 = vpop.permute.xlu0 %583
  %v585 = vsel %vm233, %v584, 0
  %587 = vmatprep.subr.mxu0 0.0
  %588 = vmatpush1.msra.mxu0 0.0
  %589 = vmatprep.subr.mxu0 0.0
  %590 = vmatpush1.msra.mxu0 0.0
  %591 = vmatprep.subr.mxu0 0.0
  %592 = vmatpush1.msra.mxu0 0.0
  %593 = vmatprep.subr.mxu0 0.0
  %594 = vmatpush1.msra.mxu0 0.0
  %595 = vmatprep.subr.mxu0 0.0
  %596 = vmatpush1.msra.mxu0 0.0
  %597 = vmatprep.subr.mxu0 0.0
  %598 = vmatpush1.msra.mxu0 0.0
  %599 = vmatprep.subr.mxu0 0.0
  %600 = vmatpush1.msra.mxu0 0.0
  %601 = vmatprep.subr.mxu0 0.0
  %602 = vmatpush1.msra.mxu0 0.0
  %603 = vmatprep.subr.mxu0 0.0
  %604 = vmatpush1.msra.mxu0 0.0
  %605 = vmatprep.subr.mxu0 0.0
  %606 = vmatpush1.msra.mxu0 0.0
  %607 = vmatprep.subr.mxu0 0.0
  %608 = vmatpush1.msra.mxu0 0.0
  %609 = vmatprep.subr.mxu0 0.0
  %610 = vmatpush1.msra.mxu0 0.0
  %611 = vmatprep.subr.mxu0 0.0
  %612 = vmatpush1.msra.mxu0 0.0
  %613 = vmatprep.subr.mxu0 0.0
  %614 = vmatpush1.msra.mxu0 0.0
  %615 = vmatprep.subr.mxu0 0.0
  %616 = vmatpush1.msra.mxu0 %v229
  %617 = vmatprep.subr.mxu0 0.0
  %618 = vmatpush1.msra.mxu0 %v228
  %619 = vmatprep.subr.mxu0 0.0
  %620 = vmatpush2.msra.mxu0 0.0
  %621 = vmatprep.subr.mxu0 0.0
  %622 = vmatpush2.msra.mxu0 0.0
  %623 = vmatprep.subr.mxu0 0.0
  %624 = vmatpush2.msra.mxu0 0.0
  %625 = vmatprep.subr.mxu0 0.0
  %626 = vmatpush2.msra.mxu0 0.0
  %627 = vmatprep.subr.mxu0 0.0
  %628 = vmatpush2.msra.mxu0 0.0
  %629 = vmatprep.subr.mxu0 0.0
  %630 = vmatpush2.msra.mxu0 0.0
  %631 = vmatprep.subr.mxu0 0.0
  %632 = vmatpush2.msra.mxu0 0.0
  %633 = vmatprep.subr.mxu0 0.0
  %634 = vmatpush2.msra.mxu0 0.0
  %635 = vmatprep.subr.mxu0 0.0
  %636 = vmatpush2.msra.mxu0 0.0
  %637 = vmatprep.subr.mxu0 0.0
  %638 = vmatpush2.msra.mxu0 0.0
  %639 = vmatprep.subr.mxu0 0.0
  %640 = vmatpush2.msra.mxu0 0.0
  %641 = vmatprep.subr.mxu0 0.0
  %642 = vmatpush2.msra.mxu0 0.0
  %643 = vmatprep.subr.mxu0 0.0
  %644 = vmatpush2.msra.mxu0 0.0
  %645 = vmatprep.subr.mxu0 0.0
  %646 = vmatpush2.msra.mxu0 0.0
  %647 = vmatprep.subr.mxu0 0.0
  %648 = vmatpush2.msra.mxu0 0.0
  %649 = vmatprep.subr.mxu0 0.0
  %650 = vmatpush2.msra.mxu0 0.0
  %651 = vmatprep.mubr.f32.mxu0 0.0
  %652 = vmatmul.mubr.f32.gmra.mxu0 %v585
  %v653 = vpop.f32.mrf.mxu0
  %v654 = vadd.f32 0.0, %v653
  %v655 = vpop.f32.mrf.mxu0
  %656 = vdwg.mxu0
  %657 = vrot.lane.b32.xlu0 %v581, 80
  %v658 = vpop.permute.xlu0 %657
  %v659 = vsel %vm233, %v658, 0
  %661 = vmatprep.subr.mxu0 0.0
  %662 = vmatpush1.msra.mxu0 0.0
  %663 = vmatprep.subr.mxu0 0.0
  %664 = vmatpush1.msra.mxu0 0.0
  %665 = vmatprep.subr.mxu0 0.0
  %666 = vmatpush1.msra.mxu0 0.0
  %667 = vmatprep.subr.mxu0 0.0
  %668 = vmatpush1.msra.mxu0 0.0
  %669 = vmatprep.subr.mxu0 0.0
  %670 = vmatpush1.msra.mxu0 0.0
  %671 = vmatprep.subr.mxu0 0.0
  %672 = vmatpush1.msra.mxu0 0.0
  %673 = vmatprep.subr.mxu0 0.0
  %674 = vmatpush1.msra.mxu0 0.0
  %675 = vmatprep.subr.mxu0 0.0
  %676 = vmatpush1.msra.mxu0 0.0
  %677 = vmatprep.subr.mxu0 0.0
  %678 = vmatpush1.msra.mxu0 0.0
  %679 = vmatprep.subr.mxu0 0.0
  %680 = vmatpush1.msra.mxu0 0.0
  %681 = vmatprep.subr.mxu0 0.0
  %682 = vmatpush1.msra.mxu0 0.0
  %683 = vmatprep.subr.mxu0 0.0
  %684 = vmatpush1.msra.mxu0 0.0
  %685 = vmatprep.subr.mxu0 0.0
  %686 = vmatpush1.msra.mxu0 0.0
  %687 = vmatprep.subr.mxu0 0.0
  %688 = vmatpush1.msra.mxu0 0.0
  %689 = vmatprep.subr.mxu0 0.0
  %690 = vmatpush1.msra.mxu0 %v227
  %691 = vmatprep.subr.mxu0 0.0
  %692 = vmatpush1.msra.mxu0 %v226
  %693 = vmatprep.subr.mxu0 0.0
  %694 = vmatpush2.msra.mxu0 0.0
  %695 = vmatprep.subr.mxu0 0.0
  %696 = vmatpush2.msra.mxu0 0.0
  %697 = vmatprep.subr.mxu0 0.0
  %698 = vmatpush2.msra.mxu0 0.0
  %699 = vmatprep.subr.mxu0 0.0
  %700 = vmatpush2.msra.mxu0 0.0
  %701 = vmatprep.subr.mxu0 0.0
  %702 = vmatpush2.msra.mxu0 0.0
  %703 = vmatprep.subr.mxu0 0.0
  %704 = vmatpush2.msra.mxu0 0.0
  %705 = vmatprep.subr.mxu0 0.0
  %706 = vmatpush2.msra.mxu0 0.0
  %707 = vmatprep.subr.mxu0 0.0
  %708 = vmatpush2.msra.mxu0 0.0
  %709 = vmatprep.subr.mxu0 0.0
  %710 = vmatpush2.msra.mxu0 0.0
  %711 = vmatprep.subr.mxu0 0.0
  %712 = vmatpush2.msra.mxu0 0.0
  %713 = vmatprep.subr.mxu0 0.0
  %714 = vmatpush2.msra.mxu0 0.0
  %715 = vmatprep.subr.mxu0 0.0
  %716 = vmatpush2.msra.mxu0 0.0
  %717 = vmatprep.subr.mxu0 0.0
  %718 = vmatpush2.msra.mxu0 0.0
  %719 = vmatprep.subr.mxu0 0.0
  %720 = vmatpush2.msra.mxu0 0.0
  %721 = vmatprep.subr.mxu0 0.0
  %722 = vmatpush2.msra.mxu0 0.0
  %723 = vmatprep.subr.mxu0 0.0
  %724 = vmatpush2.msra.mxu0 0.0
  %725 = vmatprep.mubr.f32.mxu0 0.0
  %726 = vmatmul.mubr.f32.gmra.mxu0 %v659
  %v727 = vpop.f32.mrf.mxu0
  %v728 = vadd.f32 %v654, %v727
  %v729 = vpop.f32.mrf.mxu0
  %730 = vdwg.mxu0
  %v731 = vld [vmem:[#allocation2 + $0x10] sm:$0xff]
  %v732 = vld [vmem:[#allocation2 + $0x28] sm:$0xff]
  %v733 = vsel %vm232, %v731, %v732
  %v734 = vadd.f32 %v728, %v733
  %v735 = vxor.u32 %v734, 2147483648
  %v736 = vmul.f32 %v735, 1.442695
  %v737 = vpow.pop %v736
  %v738 = vadd.f32 %v737, 1.0
  %v739 = vrcp.pop %v738
  %v740 = vmul.f32 1.0, %v739
  %v741 = vtanh.pop %v734
  %v742 = vmul.f32 %v740, %v575
  %744 = vrot.lane.b32.xlu0 %v741, 96
  %v745 = vpop.permute.xlu0 %744
  %v747 = vmul.f32 %v740, %v745
  %749 = vrot.lane.b32.xlu0 %v747, 16
  %v750 = vpop.permute.xlu0 %749
  %v752 = vadd.f32 %v742, %v750
  %v753 = vtanh.pop %v752
  %755 = vrot.lane.b32.xlu0 %v753, 32
  %v756 = vpop.permute.xlu0 %755
  %v758 = vmul.f32 %v740, %v756
  %760 = vrot.lane.b32.xlu0 %v758, 16
  %v761 = vpop.permute.xlu0 %760
  %v762 = vsel %vm233, %v761, 0
  %764 = vmatprep.subr.mxu0 0.0
  %765 = vmatpush1.msra.mxu0 0.0
  %766 = vmatprep.subr.mxu0 0.0
  %767 = vmatpush1.msra.mxu0 0.0
  %768 = vmatprep.subr.mxu0 0.0
  %769 = vmatpush1.msra.mxu0 0.0
  %770 = vmatprep.subr.mxu0 0.0
  %771 = vmatpush1.msra.mxu0 0.0
  %772 = vmatprep.subr.mxu0 0.0
  %773 = vmatpush1.msra.mxu0 0.0
  %774 = vmatprep.subr.mxu0 0.0
  %775 = vmatpush1.msra.mxu0 0.0
  %776 = vmatprep.subr.mxu0 0.0
  %777 = vmatpush1.msra.mxu0 0.0
  %778 = vmatprep.subr.mxu0 0.0
  %779 = vmatpush1.msra.mxu0 0.0
  %780 = vmatprep.subr.mxu0 0.0
  %781 = vmatpush1.msra.mxu0 0.0
  %782 = vmatprep.subr.mxu0 0.0
  %783 = vmatpush1.msra.mxu0 0.0
  %784 = vmatprep.subr.mxu0 0.0
  %785 = vmatpush1.msra.mxu0 0.0
  %786 = vmatprep.subr.mxu0 0.0
  %787 = vmatpush1.msra.mxu0 0.0
  %788 = vmatprep.subr.mxu0 0.0
  %789 = vmatpush1.msra.mxu0 0.0
  %790 = vmatprep.subr.mxu0 0.0
  %791 = vmatpush1.msra.mxu0 0.0
  %792 = vmatprep.subr.mxu0 0.0
  %793 = vmatpush1.msra.mxu0 %v229
  %794 = vmatprep.subr.mxu0 0.0
  %795 = vmatpush1.msra.mxu0 %v228
  %796 = vmatprep.subr.mxu0 0.0
  %797 = vmatpush2.msra.mxu0 0.0
  %798 = vmatprep.subr.mxu0 0.0
  %799 = vmatpush2.msra.mxu0 0.0
  %800 = vmatprep.subr.mxu0 0.0
  %801 = vmatpush2.msra.mxu0 0.0
  %802 = vmatprep.subr.mxu0 0.0
  %803 = vmatpush2.msra.mxu0 0.0
  %804 = vmatprep.subr.mxu0 0.0
  %805 = vmatpush2.msra.mxu0 0.0
  %806 = vmatprep.subr.mxu0 0.0
  %807 = vmatpush2.msra.mxu0 0.0
  %808 = vmatprep.subr.mxu0 0.0
  %809 = vmatpush2.msra.mxu0 0.0
  %810 = vmatprep.subr.mxu0 0.0
  %811 = vmatpush2.msra.mxu0 0.0
  %812 = vmatprep.subr.mxu0 0.0
  %813 = vmatpush2.msra.mxu0 0.0
  %814 = vmatprep.subr.mxu0 0.0
  %815 = vmatpush2.msra.mxu0 0.0
  %816 = vmatprep.subr.mxu0 0.0
  %817 = vmatpush2.msra.mxu0 0.0
  %818 = vmatprep.subr.mxu0 0.0
  %819 = vmatpush2.msra.mxu0 0.0
  %820 = vmatprep.subr.mxu0 0.0
  %821 = vmatpush2.msra.mxu0 0.0
  %822 = vmatprep.subr.mxu0 0.0
  %823 = vmatpush2.msra.mxu0 0.0
  %824 = vmatprep.subr.mxu0 0.0
  %825 = vmatpush2.msra.mxu0 0.0
  %826 = vmatprep.subr.mxu0 0.0
  %827 = vmatpush2.msra.mxu0 0.0
  %828 = vmatprep.mubr.f32.mxu0 0.0
  %829 = vmatmul.mubr.f32.gmra.mxu0 %v762
  %v830 = vpop.f32.mrf.mxu0
  %v831 = vadd.f32 0.0, %v830
  %v832 = vpop.f32.mrf.mxu0
  %833 = vdwg.mxu0
  %834 = vrot.lane.b32.xlu0 %v758, 80
  %v835 = vpop.permute.xlu0 %834
  %v836 = vsel %vm233, %v835, 0
  %838 = vmatprep.subr.mxu0 0.0
  %839 = vmatpush1.msra.mxu0 0.0
  %840 = vmatprep.subr.mxu0 0.0
  %841 = vmatpush1.msra.mxu0 0.0
  %842 = vmatprep.subr.mxu0 0.0
  %843 = vmatpush1.msra.mxu0 0.0
  %844 = vmatprep.subr.mxu0 0.0
  %845 = vmatpush1.msra.mxu0 0.0
  %846 = vmatprep.subr.mxu0 0.0
  %847 = vmatpush1.msra.mxu0 0.0
  %848 = vmatprep.subr.mxu0 0.0
  %849 = vmatpush1.msra.mxu0 0.0
  %850 = vmatprep.subr.mxu0 0.0
  %851 = vmatpush1.msra.mxu0 0.0
  %852 = vmatprep.subr.mxu0 0.0
  %853 = vmatpush1.msra.mxu0 0.0
  %854 = vmatprep.subr.mxu0 0.0
  %855 = vmatpush1.msra.mxu0 0.0
  %856 = vmatprep.subr.mxu0 0.0
  %857 = vmatpush1.msra.mxu0 0.0
  %858 = vmatprep.subr.mxu0 0.0
  %859 = vmatpush1.msra.mxu0 0.0
  %860 = vmatprep.subr.mxu0 0.0
  %861 = vmatpush1.msra.mxu0 0.0
  %862 = vmatprep.subr.mxu0 0.0
  %863 = vmatpush1.msra.mxu0 0.0
  %864 = vmatprep.subr.mxu0 0.0
  %865 = vmatpush1.msra.mxu0 0.0
  %866 = vmatprep.subr.mxu0 0.0
  %867 = vmatpush1.msra.mxu0 %v227
  %868 = vmatprep.subr.mxu0 0.0
  %869 = vmatpush1.msra.mxu0 %v226
  %870 = vmatprep.subr.mxu0 0.0
  %871 = vmatpush2.msra.mxu0 0.0
  %872 = vmatprep.subr.mxu0 0.0
  %873 = vmatpush2.msra.mxu0 0.0
  %874 = vmatprep.subr.mxu0 0.0
  %875 = vmatpush2.msra.mxu0 0.0
  %876 = vmatprep.subr.mxu0 0.0
  %877 = vmatpush2.msra.mxu0 0.0
  %878 = vmatprep.subr.mxu0 0.0
  %879 = vmatpush2.msra.mxu0 0.0
  %880 = vmatprep.subr.mxu0 0.0
  %881 = vmatpush2.msra.mxu0 0.0
  %882 = vmatprep.subr.mxu0 0.0
  %883 = vmatpush2.msra.mxu0 0.0
  %884 = vmatprep.subr.mxu0 0.0
  %885 = vmatpush2.msra.mxu0 0.0
  %886 = vmatprep.subr.mxu0 0.0
  %887 = vmatpush2.msra.mxu0 0.0
  %888 = vmatprep.subr.mxu0 0.0
  %889 = vmatpush2.msra.mxu0 0.0
  %890 = vmatprep.subr.mxu0 0.0
  %891 = vmatpush2.msra.mxu0 0.0
  %892 = vmatprep.subr.mxu0 0.0
  %893 = vmatpush2.msra.mxu0 0.0
  %894 = vmatprep.subr.mxu0 0.0
  %895 = vmatpush2.msra.mxu0 0.0
  %896 = vmatprep.subr.mxu0 0.0
  %897 = vmatpush2.msra.mxu0 0.0
  %898 = vmatprep.subr.mxu0 0.0
  %899 = vmatpush2.msra.mxu0 0.0
  %900 = vmatprep.subr.mxu0 0.0
  %901 = vmatpush2.msra.mxu0 0.0
  %902 = vmatprep.mubr.f32.mxu0 0.0
  %903 = vmatmul.mubr.f32.gmra.mxu0 %v836
  %v904 = vpop.f32.mrf.mxu0
  %v905 = vadd.f32 %v831, %v904
  %v906 = vpop.f32.mrf.mxu0
  %907 = vdwg.mxu0
  %v908 = vld [vmem:[#allocation2 + $0x18] sm:$0xff]
  %v909 = vld [vmem:[#allocation2 + $0x20] sm:$0xff]
  %v910 = vsel %vm232, %v908, %v909
  %v911 = vadd.f32 %v905, %v910
  %v912 = vxor.u32 %v911, 2147483648
  %v913 = vmul.f32 %v912, 1.442695
  %v914 = vpow.pop %v913
  %v915 = vadd.f32 %v914, 1.0
  %v916 = vrcp.pop %v915
  %v917 = vmul.f32 1.0, %v916
  %v918 = vtanh.pop %v911
  %v919 = vmul.f32 %v917, %v752
  %921 = vrot.lane.b32.xlu0 %v918, 96
  %v922 = vpop.permute.xlu0 %921
  %v924 = vmul.f32 %v917, %v922
  %926 = vrot.lane.b32.xlu0 %v924, 16
  %v927 = vpop.permute.xlu0 %926
  %v929 = vadd.f32 %v919, %v927
  %v930 = vtanh.pop %v929
  %932 = vrot.lane.b32.xlu0 %v930, 32
  %v933 = vpop.permute.xlu0 %932
  %v935 = vmul.f32 %v917, %v933
  %937 = vrot.lane.b32.xlu0 %v935, 16
  %v938 = vpop.permute.xlu0 %937
  %v939 = vsel %vm233, %v938, 0
  %941 = vmatprep.subr.mxu0 0.0
  %942 = vmatpush1.msra.mxu0 0.0
  %943 = vmatprep.subr.mxu0 0.0
  %944 = vmatpush1.msra.mxu0 0.0
  %945 = vmatprep.subr.mxu0 0.0
  %946 = vmatpush1.msra.mxu0 0.0
  %947 = vmatprep.subr.mxu0 0.0
  %948 = vmatpush1.msra.mxu0 0.0
  %949 = vmatprep.subr.mxu0 0.0
  %950 = vmatpush1.msra.mxu0 0.0
  %951 = vmatprep.subr.mxu0 0.0
  %952 = vmatpush1.msra.mxu0 0.0
  %953 = vmatprep.subr.mxu0 0.0
  %954 = vmatpush1.msra.mxu0 0.0
  %955 = vmatprep.subr.mxu0 0.0
  %956 = vmatpush1.msra.mxu0 0.0
  %957 = vmatprep.subr.mxu0 0.0
  %958 = vmatpush1.msra.mxu0 0.0
  %959 = vmatprep.subr.mxu0 0.0
  %960 = vmatpush1.msra.mxu0 0.0
  %961 = vmatprep.subr.mxu0 0.0
  %962 = vmatpush1.msra.mxu0 0.0
  %963 = vmatprep.subr.mxu0 0.0
  %964 = vmatpush1.msra.mxu0 0.0
  %965 = vmatprep.subr.mxu0 0.0
  %966 = vmatpush1.msra.mxu0 0.0
  %967 = vmatprep.subr.mxu0 0.0
  %968 = vmatpush1.msra.mxu0 0.0
  %969 = vmatprep.subr.mxu0 0.0
  %970 = vmatpush1.msra.mxu0 %v229
  %971 = vmatprep.subr.mxu0 0.0
  %972 = vmatpush1.msra.mxu0 %v228
  %973 = vmatprep.subr.mxu0 0.0
  %974 = vmatpush2.msra.mxu0 0.0
  %975 = vmatprep.subr.mxu0 0.0
  %976 = vmatpush2.msra.mxu0 0.0
  %977 = vmatprep.subr.mxu0 0.0
  %978 = vmatpush2.msra.mxu0 0.0
  %979 = vmatprep.subr.mxu0 0.0
  %980 = vmatpush2.msra.mxu0 0.0
  %981 = vmatprep.subr.mxu0 0.0
  %982 = vmatpush2.msra.mxu0 0.0
  %983 = vmatprep.subr.mxu0 0.0
  %984 = vmatpush2.msra.mxu0 0.0
  %985 = vmatprep.subr.mxu0 0.0
  %986 = vmatpush2.msra.mxu0 0.0
  %987 = vmatprep.subr.mxu0 0.0
  %988 = vmatpush2.msra.mxu0 0.0
  %989 = vmatprep.subr.mxu0 0.0
  %990 = vmatpush2.msra.mxu0 0.0
  %991 = vmatprep.subr.mxu0 0.0
  %992 = vmatpush2.msra.mxu0 0.0
  %993 = vmatprep.subr.mxu0 0.0
  %994 = vmatpush2.msra.mxu0 0.0
  %995 = vmatprep.subr.mxu0 0.0
  %996 = vmatpush2.msra.mxu0 0.0
  %997 = vmatprep.subr.mxu0 0.0
  %998 = vmatpush2.msra.mxu0 0.0
  %999 = vmatprep.subr.mxu0 0.0
  %1000 = vmatpush2.msra.mxu0 0.0
  %1001 = vmatprep.subr.mxu0 0.0
  %1002 = vmatpush2.msra.mxu0 0.0
  %1003 = vmatprep.subr.mxu0 0.0
  %1004 = vmatpush2.msra.mxu0 0.0
  %1005 = vmatprep.mubr.f32.mxu0 0.0
  %1006 = vmatmul.mubr.f32.gmra.mxu0 %v939
  %v1007 = vpop.f32.mrf.mxu0
  %v1008 = vadd.f32 0.0, %v1007
  %v1009 = vpop.f32.mrf.mxu0
  %1010 = vdwg.mxu0
  %1011 = vrot.lane.b32.xlu0 %v935, 80
  %v1012 = vpop.permute.xlu0 %1011
  %v1013 = vsel %vm233, %v1012, 0
  %1015 = vmatprep.subr.mxu0 0.0
  %1016 = vmatpush1.msra.mxu0 0.0
  %1017 = vmatprep.subr.mxu0 0.0
  %1018 = vmatpush1.msra.mxu0 0.0
  %1019 = vmatprep.subr.mxu0 0.0
  %1020 = vmatpush1.msra.mxu0 0.0
  %1021 = vmatprep.subr.mxu0 0.0
  %1022 = vmatpush1.msra.mxu0 0.0
  %1023 = vmatprep.subr.mxu0 0.0
  %1024 = vmatpush1.msra.mxu0 0.0
  %1025 = vmatprep.subr.mxu0 0.0
  %1026 = vmatpush1.msra.mxu0 0.0
  %1027 = vmatprep.subr.mxu0 0.0
  %1028 = vmatpush1.msra.mxu0 0.0
  %1029 = vmatprep.subr.mxu0 0.0
  %1030 = vmatpush1.msra.mxu0 0.0
  %1031 = vmatprep.subr.mxu0 0.0
  %1032 = vmatpush1.msra.mxu0 0.0
  %1033 = vmatprep.subr.mxu0 0.0
  %1034 = vmatpush1.msra.mxu0 0.0
  %1035 = vmatprep.subr.mxu0 0.0
  %1036 = vmatpush1.msra.mxu0 0.0
  %1037 = vmatprep.subr.mxu0 0.0
  %1038 = vmatpush1.msra.mxu0 0.0
  %1039 = vmatprep.subr.mxu0 0.0
  %1040 = vmatpush1.msra.mxu0 0.0
  %1041 = vmatprep.subr.mxu0 0.0
  %1042 = vmatpush1.msra.mxu0 0.0
  %1043 = vmatprep.subr.mxu0 0.0
  %1044 = vmatpush1.msra.mxu0 %v227
  %1045 = vmatprep.subr.mxu0 0.0
  %1046 = vmatpush1.msra.mxu0 %v226
  %1047 = vmatprep.subr.mxu0 0.0
  %1048 = vmatpush2.msra.mxu0 0.0
  %1049 = vmatprep.subr.mxu0 0.0
  %1050 = vmatpush2.msra.mxu0 0.0
  %1051 = vmatprep.subr.mxu0 0.0
  %1052 = vmatpush2.msra.mxu0 0.0
  %1053 = vmatprep.subr.mxu0 0.0
  %1054 = vmatpush2.msra.mxu0 0.0
  %1055 = vmatprep.subr.mxu0 0.0
  %1056 = vmatpush2.msra.mxu0 0.0
  %1057 = vmatprep.subr.mxu0 0.0
  %1058 = vmatpush2.msra.mxu0 0.0
  %1059 = vmatprep.subr.mxu0 0.0
  %1060 = vmatpush2.msra.mxu0 0.0
  %1061 = vmatprep.subr.mxu0 0.0
  %1062 = vmatpush2.msra.mxu0 0.0
  %1063 = vmatprep.subr.mxu0 0.0
  %1064 = vmatpush2.msra.mxu0 0.0
  %1065 = vmatprep.subr.mxu0 0.0
  %1066 = vmatpush2.msra.mxu0 0.0
  %1067 = vmatprep.subr.mxu0 0.0
  %1068 = vmatpush2.msra.mxu0 0.0
  %1069 = vmatprep.subr.mxu0 0.0
  %1070 = vmatpush2.msra.mxu0 0.0
  %1071 = vmatprep.subr.mxu0 0.0
  %1072 = vmatpush2.msra.mxu0 0.0
  %1073 = vmatprep.subr.mxu0 0.0
  %1074 = vmatpush2.msra.mxu0 0.0
  %1075 = vmatprep.subr.mxu0 0.0
  %1076 = vmatpush2.msra.mxu0 0.0
  %1077 = vmatprep.subr.mxu0 0.0
  %1078 = vmatpush2.msra.mxu0 0.0
  %1079 = vmatprep.mubr.f32.mxu0 0.0
  %1080 = vmatmul.mubr.f32.gmra.mxu0 %v1013
  %v1081 = vpop.f32.mrf.mxu0
  %v1082 = vadd.f32 %v1008, %v1081
  %v1083 = vpop.f32.mrf.mxu0
  %1084 = vdwg.mxu0
  %v1085 = vsel %vm232, %v909, %v908
  %v1086 = vadd.f32 %v1082, %v1085
  %v1087 = vxor.u32 %v1086, 2147483648
  %v1088 = vmul.f32 %v1087, 1.442695
  %v1089 = vpow.pop %v1088
  %v1090 = vadd.f32 %v1089, 1.0
  %v1091 = vrcp.pop %v1090
  %v1092 = vmul.f32 1.0, %v1091
  %v1093 = vtanh.pop %v1086
  %v1094 = vmul.f32 %v1092, %v929
  %1096 = vrot.lane.b32.xlu0 %v1093, 96
  %v1097 = vpop.permute.xlu0 %1096
  %v1099 = vmul.f32 %v1092, %v1097
  %1101 = vrot.lane.b32.xlu0 %v1099, 16
  %v1102 = vpop.permute.xlu0 %1101
  %v1104 = vadd.f32 %v1094, %v1102
  %v1105 = vtanh.pop %v1104
  %1107 = vrot.lane.b32.xlu0 %v1105, 32
  %v1108 = vpop.permute.xlu0 %1107
  %v1110 = vmul.f32 %v1092, %v1108
  %1112 = vrot.lane.b32.xlu0 %v1110, 16
  %v1113 = vpop.permute.xlu0 %1112
  %v1114 = vsel %vm233, %v1113, 0
  %1116 = vmatprep.subr.mxu0 0.0
  %1117 = vmatpush1.msra.mxu0 0.0
  %1118 = vmatprep.subr.mxu0 0.0
  %1119 = vmatpush1.msra.mxu0 0.0
  %1120 = vmatprep.subr.mxu0 0.0
  %1121 = vmatpush1.msra.mxu0 0.0
  %1122 = vmatprep.subr.mxu0 0.0
  %1123 = vmatpush1.msra.mxu0 0.0
  %1124 = vmatprep.subr.mxu0 0.0
  %1125 = vmatpush1.msra.mxu0 0.0
  %1126 = vmatprep.subr.mxu0 0.0
  %1127 = vmatpush1.msra.mxu0 0.0
  %1128 = vmatprep.subr.mxu0 0.0
  %1129 = vmatpush1.msra.mxu0 0.0
  %1130 = vmatprep.subr.mxu0 0.0
  %1131 = vmatpush1.msra.mxu0 0.0
  %1132 = vmatprep.subr.mxu0 0.0
  %1133 = vmatpush1.msra.mxu0 0.0
  %1134 = vmatprep.subr.mxu0 0.0
  %1135 = vmatpush1.msra.mxu0 0.0
  %1136 = vmatprep.subr.mxu0 0.0
  %1137 = vmatpush1.msra.mxu0 0.0
  %1138 = vmatprep.subr.mxu0 0.0
  %1139 = vmatpush1.msra.mxu0 0.0
  %1140 = vmatprep.subr.mxu0 0.0
  %1141 = vmatpush1.msra.mxu0 0.0
  %1142 = vmatprep.subr.mxu0 0.0
  %1143 = vmatpush1.msra.mxu0 0.0
  %1144 = vmatprep.subr.mxu0 0.0
  %1145 = vmatpush1.msra.mxu0 %v229
  %1146 = vmatprep.subr.mxu0 0.0
  %1147 = vmatpush1.msra.mxu0 %v228
  %1148 = vmatprep.subr.mxu0 0.0
  %1149 = vmatpush2.msra.mxu0 0.0
  %1150 = vmatprep.subr.mxu0 0.0
  %1151 = vmatpush2.msra.mxu0 0.0
  %1152 = vmatprep.subr.mxu0 0.0
  %1153 = vmatpush2.msra.mxu0 0.0
  %1154 = vmatprep.subr.mxu0 0.0
  %1155 = vmatpush2.msra.mxu0 0.0
  %1156 = vmatprep.subr.mxu0 0.0
  %1157 = vmatpush2.msra.mxu0 0.0
  %1158 = vmatprep.subr.mxu0 0.0
  %1159 = vmatpush2.msra.mxu0 0.0
  %1160 = vmatprep.subr.mxu0 0.0
  %1161 = vmatpush2.msra.mxu0 0.0
  %1162 = vmatprep.subr.mxu0 0.0
  %1163 = vmatpush2.msra.mxu0 0.0
  %1164 = vmatprep.subr.mxu0 0.0
  %1165 = vmatpush2.msra.mxu0 0.0
  %1166 = vmatprep.subr.mxu0 0.0
  %1167 = vmatpush2.msra.mxu0 0.0
  %1168 = vmatprep.subr.mxu0 0.0
  %1169 = vmatpush2.msra.mxu0 0.0
  %1170 = vmatprep.subr.mxu0 0.0
  %1171 = vmatpush2.msra.mxu0 0.0
  %1172 = vmatprep.subr.mxu0 0.0
  %1173 = vmatpush2.msra.mxu0 0.0
  %1174 = vmatprep.subr.mxu0 0.0
  %1175 = vmatpush2.msra.mxu0 0.0
  %1176 = vmatprep.subr.mxu0 0.0
  %1177 = vmatpush2.msra.mxu0 0.0
  %1178 = vmatprep.subr.mxu0 0.0
  %1179 = vmatpush2.msra.mxu0 0.0
  %1180 = vmatprep.mubr.f32.mxu0 0.0
  %1181 = vmatmul.mubr.f32.gmra.mxu0 %v1114
  %v1182 = vpop.f32.mrf.mxu0
  %v1183 = vadd.f32 0.0, %v1182
  %v1184 = vpop.f32.mrf.mxu0
  %1185 = vdwg.mxu0
  %1186 = vrot.lane.b32.xlu0 %v1110, 80
  %v1187 = vpop.permute.xlu0 %1186
  %v1188 = vsel %vm233, %v1187, 0
  %1190 = vmatprep.subr.mxu0 0.0
  %1191 = vmatpush1.msra.mxu0 0.0
  %1192 = vmatprep.subr.mxu0 0.0
  %1193 = vmatpush1.msra.mxu0 0.0
  %1194 = vmatprep.subr.mxu0 0.0
  %1195 = vmatpush1.msra.mxu0 0.0
  %1196 = vmatprep.subr.mxu0 0.0
  %1197 = vmatpush1.msra.mxu0 0.0
  %1198 = vmatprep.subr.mxu0 0.0
  %1199 = vmatpush1.msra.mxu0 0.0
  %1200 = vmatprep.subr.mxu0 0.0
  %1201 = vmatpush1.msra.mxu0 0.0
  %1202 = vmatprep.subr.mxu0 0.0
  %1203 = vmatpush1.msra.mxu0 0.0
  %1204 = vmatprep.subr.mxu0 0.0
  %1205 = vmatpush1.msra.mxu0 0.0
  %1206 = vmatprep.subr.mxu0 0.0
  %1207 = vmatpush1.msra.mxu0 0.0
  %1208 = vmatprep.subr.mxu0 0.0
  %1209 = vmatpush1.msra.mxu0 0.0
  %1210 = vmatprep.subr.mxu0 0.0
  %1211 = vmatpush1.msra.mxu0 0.0
  %1212 = vmatprep.subr.mxu0 0.0
  %1213 = vmatpush1.msra.mxu0 0.0
  %1214 = vmatprep.subr.mxu0 0.0
  %1215 = vmatpush1.msra.mxu0 0.0
  %1216 = vmatprep.subr.mxu0 0.0
  %1217 = vmatpush1.msra.mxu0 0.0
  %1218 = vmatprep.subr.mxu0 0.0
  %1219 = vmatpush1.msra.mxu0 %v227
  %1220 = vmatprep.subr.mxu0 0.0
  %1221 = vmatpush1.msra.mxu0 %v226
  %1222 = vmatprep.subr.mxu0 0.0
  %1223 = vmatpush2.msra.mxu0 0.0
  %1224 = vmatprep.subr.mxu0 0.0
  %1225 = vmatpush2.msra.mxu0 0.0
  %1226 = vmatprep.subr.mxu0 0.0
  %1227 = vmatpush2.msra.mxu0 0.0
  %1228 = vmatprep.subr.mxu0 0.0
  %1229 = vmatpush2.msra.mxu0 0.0
  %1230 = vmatprep.subr.mxu0 0.0
  %1231 = vmatpush2.msra.mxu0 0.0
  %1232 = vmatprep.subr.mxu0 0.0
  %1233 = vmatpush2.msra.mxu0 0.0
  %1234 = vmatprep.subr.mxu0 0.0
  %1235 = vmatpush2.msra.mxu0 0.0
  %1236 = vmatprep.subr.mxu0 0.0
  %1237 = vmatpush2.msra.mxu0 0.0
  %1238 = vmatprep.subr.mxu0 0.0
  %1239 = vmatpush2.msra.mxu0 0.0
  %1240 = vmatprep.subr.mxu0 0.0
  %1241 = vmatpush2.msra.mxu0 0.0
  %1242 = vmatprep.subr.mxu0 0.0
  %1243 = vmatpush2.msra.mxu0 0.0
  %1244 = vmatprep.subr.mxu0 0.0
  %1245 = vmatpush2.msra.mxu0 0.0
  %1246 = vmatprep.subr.mxu0 0.0
  %1247 = vmatpush2.msra.mxu0 0.0
  %1248 = vmatprep.subr.mxu0 0.0
  %1249 = vmatpush2.msra.mxu0 0.0
  %1250 = vmatprep.subr.mxu0 0.0
  %1251 = vmatpush2.msra.mxu0 0.0
  %1252 = vmatprep.subr.mxu0 0.0
  %1253 = vmatpush2.msra.mxu0 0.0
  %1254 = vmatprep.mubr.f32.mxu0 0.0
  %1255 = vmatmul.mubr.f32.gmra.mxu0 %v1188
  %v1256 = vpop.f32.mrf.mxu0
  %v1257 = vadd.f32 %v1183, %v1256
  %v1258 = vpop.f32.mrf.mxu0
  %1259 = vdwg.mxu0
  %v1260 = vsel %vm232, %v732, %v731
  %v1261 = vadd.f32 %v1257, %v1260
  %v1262 = vxor.u32 %v1261, 2147483648
  %v1263 = vmul.f32 %v1262, 1.442695
  %v1264 = vpow.pop %v1263
  %v1265 = vadd.f32 %v1264, 1.0
  %v1266 = vrcp.pop %v1265
  %v1267 = vmul.f32 1.0, %v1266
  %v1268 = vtanh.pop %v1261
  %v1269 = vmul.f32 %v1267, %v1104
  %1271 = vrot.lane.b32.xlu0 %v1268, 96
  %v1272 = vpop.permute.xlu0 %1271
  %v1274 = vmul.f32 %v1267, %v1272
  %1276 = vrot.lane.b32.xlu0 %v1274, 16
  %v1277 = vpop.permute.xlu0 %1276
  %v1279 = vadd.f32 %v1269, %v1277
  %v1280 = vtanh.pop %v1279
  %1282 = vrot.lane.b32.xlu0 %v1280, 32
  %v1283 = vpop.permute.xlu0 %1282
  %v1285 = vmul.f32 %v1267, %v1283
  %1287 = vrot.lane.b32.xlu0 %v1285, 16
  %v1288 = vpop.permute.xlu0 %1287
  %v1289 = vsel %vm233, %v1288, 0
  %1291 = vmatprep.subr.mxu0 0.0
  %1292 = vmatpush1.msra.mxu0 0.0
  %1293 = vmatprep.subr.mxu0 0.0
  %1294 = vmatpush1.msra.mxu0 0.0
  %1295 = vmatprep.subr.mxu0 0.0
  %1296 = vmatpush1.msra.mxu0 0.0
  %1297 = vmatprep.subr.mxu0 0.0
  %1298 = vmatpush1.msra.mxu0 0.0
  %1299 = vmatprep.subr.mxu0 0.0
  %1300 = vmatpush1.msra.mxu0 0.0
  %1301 = vmatprep.subr.mxu0 0.0
  %1302 = vmatpush1.msra.mxu0 0.0
  %1303 = vmatprep.subr.mxu0 0.0
  %1304 = vmatpush1.msra.mxu0 0.0
  %1305 = vmatprep.subr.mxu0 0.0
  %1306 = vmatpush1.msra.mxu0 0.0
  %1307 = vmatprep.subr.mxu0 0.0
  %1308 = vmatpush1.msra.mxu0 0.0
  %1309 = vmatprep.subr.mxu0 0.0
  %1310 = vmatpush1.msra.mxu0 0.0
  %1311 = vmatprep.subr.mxu0 0.0
  %1312 = vmatpush1.msra.mxu0 0.0
  %1313 = vmatprep.subr.mxu0 0.0
  %1314 = vmatpush1.msra.mxu0 0.0
  %1315 = vmatprep.subr.mxu0 0.0
  %1316 = vmatpush1.msra.mxu0 0.0
  %1317 = vmatprep.subr.mxu0 0.0
  %1318 = vmatpush1.msra.mxu0 0.0
  %1319 = vmatprep.subr.mxu0 0.0
  %1320 = vmatpush1.msra.mxu0 %v229
  %1321 = vmatprep.subr.mxu0 0.0
  %1322 = vmatpush1.msra.mxu0 %v228
  %1323 = vmatprep.subr.mxu0 0.0
  %1324 = vmatpush2.msra.mxu0 0.0
  %1325 = vmatprep.subr.mxu0 0.0
  %1326 = vmatpush2.msra.mxu0 0.0
  %1327 = vmatprep.subr.mxu0 0.0
  %1328 = vmatpush2.msra.mxu0 0.0
  %1329 = vmatprep.subr.mxu0 0.0
  %1330 = vmatpush2.msra.mxu0 0.0
  %1331 = vmatprep.subr.mxu0 0.0
  %1332 = vmatpush2.msra.mxu0 0.0
  %1333 = vmatprep.subr.mxu0 0.0
  %1334 = vmatpush2.msra.mxu0 0.0
  %1335 = vmatprep.subr.mxu0 0.0
  %1336 = vmatpush2.msra.mxu0 0.0
  %1337 = vmatprep.subr.mxu0 0.0
  %1338 = vmatpush2.msra.mxu0 0.0
  %1339 = vmatprep.subr.mxu0 0.0
  %1340 = vmatpush2.msra.mxu0 0.0
  %1341 = vmatprep.subr.mxu0 0.0
  %1342 = vmatpush2.msra.mxu0 0.0
  %1343 = vmatprep.subr.mxu0 0.0
  %1344 = vmatpush2.msra.mxu0 0.0
  %1345 = vmatprep.subr.mxu0 0.0
  %1346 = vmatpush2.msra.mxu0 0.0
  %1347 = vmatprep.subr.mxu0 0.0
  %1348 = vmatpush2.msra.mxu0 0.0
  %1349 = vmatprep.subr.mxu0 0.0
  %1350 = vmatpush2.msra.mxu0 0.0
  %1351 = vmatprep.subr.mxu0 0.0
  %1352 = vmatpush2.msra.mxu0 0.0
  %1353 = vmatprep.subr.mxu0 0.0
  %1354 = vmatpush2.msra.mxu0 0.0
  %1355 = vmatprep.mubr.f32.mxu0 0.0
  %1356 = vmatmul.mubr.f32.gmra.mxu0 %v1289
  %v1357 = vpop.f32.mrf.mxu0
  %v1358 = vadd.f32 0.0, %v1357
  %v1359 = vpop.f32.mrf.mxu0
  %1360 = vdwg.mxu0
  %1361 = vrot.lane.b32.xlu0 %v1285, 80
  %v1362 = vpop.permute.xlu0 %1361
  %v1363 = vsel %vm233, %v1362, 0
  %1365 = vmatprep.subr.mxu0 0.0
  %1366 = vmatpush1.msra.mxu0 0.0
  %1367 = vmatprep.subr.mxu0 0.0
  %1368 = vmatpush1.msra.mxu0 0.0
  %1369 = vmatprep.subr.mxu0 0.0
  %1370 = vmatpush1.msra.mxu0 0.0
  %1371 = vmatprep.subr.mxu0 0.0
  %1372 = vmatpush1.msra.mxu0 0.0
  %1373 = vmatprep.subr.mxu0 0.0
  %1374 = vmatpush1.msra.mxu0 0.0
  %1375 = vmatprep.subr.mxu0 0.0
  %1376 = vmatpush1.msra.mxu0 0.0
  %1377 = vmatprep.subr.mxu0 0.0
  %1378 = vmatpush1.msra.mxu0 0.0
  %1379 = vmatprep.subr.mxu0 0.0
  %1380 = vmatpush1.msra.mxu0 0.0
  %1381 = vmatprep.subr.mxu0 0.0
  %1382 = vmatpush1.msra.mxu0 0.0
  %1383 = vmatprep.subr.mxu0 0.0
  %1384 = vmatpush1.msra.mxu0 0.0
  %1385 = vmatprep.subr.mxu0 0.0
  %1386 = vmatpush1.msra.mxu0 0.0
  %1387 = vmatprep.subr.mxu0 0.0
  %1388 = vmatpush1.msra.mxu0 0.0
  %1389 = vmatprep.subr.mxu0 0.0
  %1390 = vmatpush1.msra.mxu0 0.0
  %1391 = vmatprep.subr.mxu0 0.0
  %1392 = vmatpush1.msra.mxu0 0.0
  %1393 = vmatprep.subr.mxu0 0.0
  %1394 = vmatpush1.msra.mxu0 %v227
  %1395 = vmatprep.subr.mxu0 0.0
  %1396 = vmatpush1.msra.mxu0 %v226
  %1397 = vmatprep.subr.mxu0 0.0
  %1398 = vmatpush2.msra.mxu0 0.0
  %1399 = vmatprep.subr.mxu0 0.0
  %1400 = vmatpush2.msra.mxu0 0.0
  %1401 = vmatprep.subr.mxu0 0.0
  %1402 = vmatpush2.msra.mxu0 0.0
  %1403 = vmatprep.subr.mxu0 0.0
  %1404 = vmatpush2.msra.mxu0 0.0
  %1405 = vmatprep.subr.mxu0 0.0
  %1406 = vmatpush2.msra.mxu0 0.0
  %1407 = vmatprep.subr.mxu0 0.0
  %1408 = vmatpush2.msra.mxu0 0.0
  %1409 = vmatprep.subr.mxu0 0.0
  %1410 = vmatpush2.msra.mxu0 0.0
  %1411 = vmatprep.subr.mxu0 0.0
  %1412 = vmatpush2.msra.mxu0 0.0
  %1413 = vmatprep.subr.mxu0 0.0
  %1414 = vmatpush2.msra.mxu0 0.0
  %1415 = vmatprep.subr.mxu0 0.0
  %1416 = vmatpush2.msra.mxu0 0.0
  %1417 = vmatprep.subr.mxu0 0.0
  %1418 = vmatpush2.msra.mxu0 0.0
  %1419 = vmatprep.subr.mxu0 0.0
  %1420 = vmatpush2.msra.mxu0 0.0
  %1421 = vmatprep.subr.mxu0 0.0
  %1422 = vmatpush2.msra.mxu0 0.0
  %1423 = vmatprep.subr.mxu0 0.0
  %1424 = vmatpush2.msra.mxu0 0.0
  %1425 = vmatprep.subr.mxu0 0.0
  %1426 = vmatpush2.msra.mxu0 0.0
  %1427 = vmatprep.subr.mxu0 0.0
  %1428 = vmatpush2.msra.mxu0 0.0
  %1429 = vmatprep.mubr.f32.mxu0 0.0
  %1430 = vmatmul.mubr.f32.gmra.mxu0 %v1363
  %v1431 = vpop.f32.mrf.mxu0
  %v1432 = vadd.f32 %v1358, %v1431
  %v1433 = vpop.f32.mrf.mxu0
  %1434 = vdwg.mxu0
  %v1435 = vsel %vm232, %v555, %v554
  %v1436 = vadd.f32 %v1432, %v1435
  %v1437 = vxor.u32 %v1436, 2147483648
  %v1438 = vmul.f32 %v1437, 1.442695
  %v1439 = vpow.pop %v1438
  %v1440 = vadd.f32 %v1439, 1.0
  %v1441 = vrcp.pop %v1440
  %v1442 = vmul.f32 1.0, %v1441
  %v1443 = vtanh.pop %v1436
  %v1444 = vmul.f32 %v1442, %v1279
  %1446 = vrot.lane.b32.xlu0 %v1443, 96
  %v1447 = vpop.permute.xlu0 %1446
  %v1449 = vmul.f32 %v1442, %v1447
  %1451 = vrot.lane.b32.xlu0 %v1449, 16
  %v1452 = vpop.permute.xlu0 %1451
  %v1454 = vadd.f32 %v1444, %v1452
  %v1455 = vtanh.pop %v1454
  %1457 = vrot.lane.b32.xlu0 %v1455, 32
  %v1458 = vpop.permute.xlu0 %1457
  %v1460 = vmul.f32 %v1442, %v1458
  %1462 = vrot.lane.b32.xlu0 %v1460, 16
  %v1463 = vpop.permute.xlu0 %1462
  %v1464 = vsel %vm233, %v1463, 0
  %1466 = vmatprep.subr.mxu0 0.0
  %1467 = vmatpush1.msra.mxu0 0.0
  %1468 = vmatprep.subr.mxu0 0.0
  %1469 = vmatpush1.msra.mxu0 0.0
  %1470 = vmatprep.subr.mxu0 0.0
  %1471 = vmatpush1.msra.mxu0 0.0
  %1472 = vmatprep.subr.mxu0 0.0
  %1473 = vmatpush1.msra.mxu0 0.0
  %1474 = vmatprep.subr.mxu0 0.0
  %1475 = vmatpush1.msra.mxu0 0.0
  %1476 = vmatprep.subr.mxu0 0.0
  %1477 = vmatpush1.msra.mxu0 0.0
  %1478 = vmatprep.subr.mxu0 0.0
  %1479 = vmatpush1.msra.mxu0 0.0
  %1480 = vmatprep.subr.mxu0 0.0
  %1481 = vmatpush1.msra.mxu0 0.0
  %1482 = vmatprep.subr.mxu0 0.0
  %1483 = vmatpush1.msra.mxu0 0.0
  %1484 = vmatprep.subr.mxu0 0.0
  %1485 = vmatpush1.msra.mxu0 0.0
  %1486 = vmatprep.subr.mxu0 0.0
  %1487 = vmatpush1.msra.mxu0 0.0
  %1488 = vmatprep.subr.mxu0 0.0
  %1489 = vmatpush1.msra.mxu0 0.0
  %1490 = vmatprep.subr.mxu0 0.0
  %1491 = vmatpush1.msra.mxu0 0.0
  %1492 = vmatprep.subr.mxu0 0.0
  %1493 = vmatpush1.msra.mxu0 0.0
  %1494 = vmatprep.subr.mxu0 0.0
  %1495 = vmatpush1.msra.mxu0 %v229
  %1496 = vmatprep.subr.mxu0 0.0
  %1497 = vmatpush1.msra.mxu0 %v228
  %1498 = vmatprep.subr.mxu0 0.0
  %1499 = vmatpush2.msra.mxu0 0.0
  %1500 = vmatprep.subr.mxu0 0.0
  %1501 = vmatpush2.msra.mxu0 0.0
  %1502 = vmatprep.subr.mxu0 0.0
  %1503 = vmatpush2.msra.mxu0 0.0
  %1504 = vmatprep.subr.mxu0 0.0
  %1505 = vmatpush2.msra.mxu0 0.0
  %1506 = vmatprep.subr.mxu0 0.0
  %1507 = vmatpush2.msra.mxu0 0.0
  %1508 = vmatprep.subr.mxu0 0.0
  %1509 = vmatpush2.msra.mxu0 0.0
  %1510 = vmatprep.subr.mxu0 0.0
  %1511 = vmatpush2.msra.mxu0 0.0
  %1512 = vmatprep.subr.mxu0 0.0
  %1513 = vmatpush2.msra.mxu0 0.0
  %1514 = vmatprep.subr.mxu0 0.0
  %1515 = vmatpush2.msra.mxu0 0.0
  %1516 = vmatprep.subr.mxu0 0.0
  %1517 = vmatpush2.msra.mxu0 0.0
  %1518 = vmatprep.subr.mxu0 0.0
  %1519 = vmatpush2.msra.mxu0 0.0
  %1520 = vmatprep.subr.mxu0 0.0
  %1521 = vmatpush2.msra.mxu0 0.0
  %1522 = vmatprep.subr.mxu0 0.0
  %1523 = vmatpush2.msra.mxu0 0.0
  %1524 = vmatprep.subr.mxu0 0.0
  %1525 = vmatpush2.msra.mxu0 0.0
  %1526 = vmatprep.subr.mxu0 0.0
  %1527 = vmatpush2.msra.mxu0 0.0
  %1528 = vmatprep.subr.mxu0 0.0
  %1529 = vmatpush2.msra.mxu0 0.0
  %1530 = vmatprep.mubr.f32.mxu0 0.0
  %1531 = vmatmul.mubr.f32.gmra.mxu0 %v1464
  %v1532 = vpop.f32.mrf.mxu0
  %v1533 = vadd.f32 0.0, %v1532
  %v1534 = vpop.f32.mrf.mxu0
  %1535 = vdwg.mxu0
  %1536 = vrot.lane.b32.xlu0 %v1460, 80
  %v1537 = vpop.permute.xlu0 %1536
  %v1538 = vsel %vm233, %v1537, 0
  %1540 = vmatprep.subr.mxu0 0.0
  %1541 = vmatpush1.msra.mxu0 0.0
  %1542 = vmatprep.subr.mxu0 0.0
  %1543 = vmatpush1.msra.mxu0 0.0
  %1544 = vmatprep.subr.mxu0 0.0
  %1545 = vmatpush1.msra.mxu0 0.0
  %1546 = vmatprep.subr.mxu0 0.0
  %1547 = vmatpush1.msra.mxu0 0.0
  %1548 = vmatprep.subr.mxu0 0.0
  %1549 = vmatpush1.msra.mxu0 0.0
  %1550 = vmatprep.subr.mxu0 0.0
  %1551 = vmatpush1.msra.mxu0 0.0
  %1552 = vmatprep.subr.mxu0 0.0
  %1553 = vmatpush1.msra.mxu0 0.0
  %1554 = vmatprep.subr.mxu0 0.0
  %1555 = vmatpush1.msra.mxu0 0.0
  %1556 = vmatprep.subr.mxu0 0.0
  %1557 = vmatpush1.msra.mxu0 0.0
  %1558 = vmatprep.subr.mxu0 0.0
  %1559 = vmatpush1.msra.mxu0 0.0
  %1560 = vmatprep.subr.mxu0 0.0
  %1561 = vmatpush1.msra.mxu0 0.0
  %1562 = vmatprep.subr.mxu0 0.0
  %1563 = vmatpush1.msra.mxu0 0.0
  %1564 = vmatprep.subr.mxu0 0.0
  %1565 = vmatpush1.msra.mxu0 0.0
  %1566 = vmatprep.subr.mxu0 0.0
  %1567 = vmatpush1.msra.mxu0 0.0
  %1568 = vmatprep.subr.mxu0 0.0
  %1569 = vmatpush1.msra.mxu0 %v227
  %1570 = vmatprep.subr.mxu0 0.0
  %1571 = vmatpush1.msra.mxu0 %v226
  %1572 = vmatprep.subr.mxu0 0.0
  %1573 = vmatpush2.msra.mxu0 0.0
  %1574 = vmatprep.subr.mxu0 0.0
  %1575 = vmatpush2.msra.mxu0 0.0
  %1576 = vmatprep.subr.mxu0 0.0
  %1577 = vmatpush2.msra.mxu0 0.0
  %1578 = vmatprep.subr.mxu0 0.0
  %1579 = vmatpush2.msra.mxu0 0.0
  %1580 = vmatprep.subr.mxu0 0.0
  %1581 = vmatpush2.msra.mxu0 0.0
  %1582 = vmatprep.subr.mxu0 0.0
  %1583 = vmatpush2.msra.mxu0 0.0
  %1584 = vmatprep.subr.mxu0 0.0
  %1585 = vmatpush2.msra.mxu0 0.0
  %1586 = vmatprep.subr.mxu0 0.0
  %1587 = vmatpush2.msra.mxu0 0.0
  %1588 = vmatprep.subr.mxu0 0.0
  %1589 = vmatpush2.msra.mxu0 0.0
  %1590 = vmatprep.subr.mxu0 0.0
  %1591 = vmatpush2.msra.mxu0 0.0
  %1592 = vmatprep.subr.mxu0 0.0
  %1593 = vmatpush2.msra.mxu0 0.0
  %1594 = vmatprep.subr.mxu0 0.0
  %1595 = vmatpush2.msra.mxu0 0.0
  %1596 = vmatprep.subr.mxu0 0.0
  %1597 = vmatpush2.msra.mxu0 0.0
  %1598 = vmatprep.subr.mxu0 0.0
  %1599 = vmatpush2.msra.mxu0 0.0
  %1600 = vmatprep.subr.mxu0 0.0
  %1601 = vmatpush2.msra.mxu0 0.0
  %1602 = vmatprep.subr.mxu0 0.0
  %1603 = vmatpush2.msra.mxu0 0.0
  %1604 = vmatprep.mubr.f32.mxu0 0.0
  %1605 = vmatmul.mubr.f32.gmra.mxu0 %v1538
  %v1606 = vpop.f32.mrf.mxu0
  %v1607 = vadd.f32 %v1533, %v1606
  %v1608 = vpop.f32.mrf.mxu0
  %1609 = vdwg.mxu0
  %v1610 = vsel %vm232, %v378, %v377
  %v1611 = vadd.f32 %v1607, %v1610
  %v1612 = vxor.u32 %v1611, 2147483648
  %v1613 = vmul.f32 %v1612, 1.442695
  %v1614 = vpow.pop %v1613
  %v1615 = vadd.f32 %v1614, 1.0
  %v1616 = vrcp.pop %v1615
  %v1617 = vmul.f32 1.0, %v1616
  %v1618 = vtanh.pop %v1611
  %v1619 = vmul.f32 %v1617, %v1454
  %1621 = vrot.lane.b32.xlu0 %v1618, 96
  %v1622 = vpop.permute.xlu0 %1621
  %v1624 = vmul.f32 %v1617, %v1622
  %1626 = vrot.lane.b32.xlu0 %v1624, 16
  %v1627 = vpop.permute.xlu0 %1626
  %v1629 = vadd.f32 %v1619, %v1627
  %v1630 = vtanh.pop %v1629
  %1632 = vrot.lane.b32.xlu0 %v1630, 32
  %v1633 = vpop.permute.xlu0 %1632
  %v1635 = vmul.f32 %v1617, %v1633
  %v1636 = vld [vmem:[%s4] sm:$0xff]
  %v1637 = vld [vmem:[%s4 + $0x8] sm:$0xff]
  %v1638 = vld [vmem:[%s4 + $0x10] sm:$0xff]
  %v1639 = vld [vmem:[%s4 + $0x18] sm:$0xff]
  %1641 = vrot.lane.b32.xlu0 %v1635, 16
  %v1642 = vpop.permute.xlu0 %1641
  %v1643 = vsel %vm233, %v1642, 0
  %1645 = vmatprep.subr.mxu0 0.0
  %1646 = vmatpush1.msra.mxu0 0.0
  %1647 = vmatprep.subr.mxu0 0.0
  %1648 = vmatpush1.msra.mxu0 0.0
  %1649 = vmatprep.subr.mxu0 0.0
  %1650 = vmatpush1.msra.mxu0 0.0
  %1651 = vmatprep.subr.mxu0 0.0
  %1652 = vmatpush1.msra.mxu0 0.0
  %1653 = vmatprep.subr.mxu0 0.0
  %1654 = vmatpush1.msra.mxu0 0.0
  %1655 = vmatprep.subr.mxu0 0.0
  %1656 = vmatpush1.msra.mxu0 0.0
  %1657 = vmatprep.subr.mxu0 0.0
  %1658 = vmatpush1.msra.mxu0 0.0
  %1659 = vmatprep.subr.mxu0 0.0
  %1660 = vmatpush1.msra.mxu0 0.0
  %1661 = vmatprep.subr.mxu0 0.0
  %1662 = vmatpush1.msra.mxu0 0.0
  %1663 = vmatprep.subr.mxu0 0.0
  %1664 = vmatpush1.msra.mxu0 0.0
  %1665 = vmatprep.subr.mxu0 0.0
  %1666 = vmatpush1.msra.mxu0 0.0
  %1667 = vmatprep.subr.mxu0 0.0
  %1668 = vmatpush1.msra.mxu0 0.0
  %1669 = vmatprep.subr.mxu0 0.0
  %1670 = vmatpush1.msra.mxu0 0.0
  %1671 = vmatprep.subr.mxu0 0.0
  %1672 = vmatpush1.msra.mxu0 0.0
  %1673 = vmatprep.subr.mxu0 0.0
  %1674 = vmatpush1.msra.mxu0 %v1639
  %1675 = vmatprep.subr.mxu0 0.0
  %1676 = vmatpush1.msra.mxu0 %v1638
  %1677 = vmatprep.subr.mxu0 0.0
  %1678 = vmatpush2.msra.mxu0 0.0
  %1679 = vmatprep.subr.mxu0 0.0
  %1680 = vmatpush2.msra.mxu0 0.0
  %1681 = vmatprep.subr.mxu0 0.0
  %1682 = vmatpush2.msra.mxu0 0.0
  %1683 = vmatprep.subr.mxu0 0.0
  %1684 = vmatpush2.msra.mxu0 0.0
  %1685 = vmatprep.subr.mxu0 0.0
  %1686 = vmatpush2.msra.mxu0 0.0
  %1687 = vmatprep.subr.mxu0 0.0
  %1688 = vmatpush2.msra.mxu0 0.0
  %1689 = vmatprep.subr.mxu0 0.0
  %1690 = vmatpush2.msra.mxu0 0.0
  %1691 = vmatprep.subr.mxu0 0.0
  %1692 = vmatpush2.msra.mxu0 0.0
  %1693 = vmatprep.subr.mxu0 0.0
  %1694 = vmatpush2.msra.mxu0 0.0
  %1695 = vmatprep.subr.mxu0 0.0
  %1696 = vmatpush2.msra.mxu0 0.0
  %1697 = vmatprep.subr.mxu0 0.0
  %1698 = vmatpush2.msra.mxu0 0.0
  %1699 = vmatprep.subr.mxu0 0.0
  %1700 = vmatpush2.msra.mxu0 0.0
  %1701 = vmatprep.subr.mxu0 0.0
  %1702 = vmatpush2.msra.mxu0 0.0
  %1703 = vmatprep.subr.mxu0 0.0
  %1704 = vmatpush2.msra.mxu0 0.0
  %1705 = vmatprep.subr.mxu0 0.0
  %1706 = vmatpush2.msra.mxu0 0.0
  %1707 = vmatprep.subr.mxu0 0.0
  %1708 = vmatpush2.msra.mxu0 0.0
  %1709 = vmatprep.mubr.f32.mxu0 0.0
  %1710 = vmatmul.mubr.f32.gmra.mxu0 %v1643
  %v1711 = vpop.f32.mrf.mxu0
  %v1712 = vadd.f32 0.0, %v1711
  %v1713 = vpop.f32.mrf.mxu0
  %1714 = vmatprep.mubr.f32.mxu0 0.0
  %1715 = vmatmul.mubr.f32.gmra.mxu0 %v1464
  %v1716 = vpop.f32.mrf.mxu0
  %v1717 = vadd.f32 0.0, %v1716
  %v1718 = vpop.f32.mrf.mxu0
  %1719 = vmatprep.mubr.f32.mxu0 0.0
  %1720 = vmatmul.mubr.f32.gmra.mxu0 %v1289
  %v1721 = vpop.f32.mrf.mxu0
  %v1722 = vadd.f32 0.0, %v1721
  %v1723 = vpop.f32.mrf.mxu0
  %1724 = vmatprep.mubr.f32.mxu0 0.0
  %1725 = vmatmul.mubr.f32.gmra.mxu0 %v1114
  %v1726 = vpop.f32.mrf.mxu0
  %v1727 = vadd.f32 0.0, %v1726
  %v1728 = vpop.f32.mrf.mxu0
  %1729 = vmatprep.mubr.f32.mxu0 0.0
  %1730 = vmatmul.mubr.f32.gmra.mxu0 %v939
  %v1731 = vpop.f32.mrf.mxu0
  %v1732 = vadd.f32 0.0, %v1731
  %v1733 = vpop.f32.mrf.mxu0
  %1734 = vmatprep.mubr.f32.mxu0 0.0
  %1735 = vmatmul.mubr.f32.gmra.mxu0 %v762
  %v1736 = vpop.f32.mrf.mxu0
  %v1737 = vadd.f32 0.0, %v1736
  %v1738 = vpop.f32.mrf.mxu0
  %1739 = vmatprep.mubr.f32.mxu0 0.0
  %1740 = vmatmul.mubr.f32.gmra.mxu0 %v585
  %v1741 = vpop.f32.mrf.mxu0
  %v1742 = vadd.f32 0.0, %v1741
  %v1743 = vpop.f32.mrf.mxu0
  %1744 = vmatprep.mubr.f32.mxu0 0.0
  %1745 = vmatmul.mubr.f32.gmra.mxu0 %v408
  %v1746 = vpop.f32.mrf.mxu0
  %v1747 = vadd.f32 0.0, %v1746
  %v1748 = vpop.f32.mrf.mxu0
  %1749 = vdwg.mxu0
  %1750 = vrot.lane.b32.xlu0 %v1635, 80
  %v1751 = vpop.permute.xlu0 %1750
  %v1752 = vsel %vm233, %v1751, 0
  %1754 = vmatprep.subr.mxu0 0.0
  %1755 = vmatpush1.msra.mxu0 0.0
  %1756 = vmatprep.subr.mxu0 0.0
  %1757 = vmatpush1.msra.mxu0 0.0
  %1758 = vmatprep.subr.mxu0 0.0
  %1759 = vmatpush1.msra.mxu0 0.0
  %1760 = vmatprep.subr.mxu0 0.0
  %1761 = vmatpush1.msra.mxu0 0.0
  %1762 = vmatprep.subr.mxu0 0.0
  %1763 = vmatpush1.msra.mxu0 0.0
  %1764 = vmatprep.subr.mxu0 0.0
  %1765 = vmatpush1.msra.mxu0 0.0
  %1766 = vmatprep.subr.mxu0 0.0
  %1767 = vmatpush1.msra.mxu0 0.0
  %1768 = vmatprep.subr.mxu0 0.0
  %1769 = vmatpush1.msra.mxu0 0.0
  %1770 = vmatprep.subr.mxu0 0.0
  %1771 = vmatpush1.msra.mxu0 0.0
  %1772 = vmatprep.subr.mxu0 0.0
  %1773 = vmatpush1.msra.mxu0 0.0
  %1774 = vmatprep.subr.mxu0 0.0
  %1775 = vmatpush1.msra.mxu0 0.0
  %1776 = vmatprep.subr.mxu0 0.0
  %1777 = vmatpush1.msra.mxu0 0.0
  %1778 = vmatprep.subr.mxu0 0.0
  %1779 = vmatpush1.msra.mxu0 0.0
  %1780 = vmatprep.subr.mxu0 0.0
  %1781 = vmatpush1.msra.mxu0 0.0
  %1782 = vmatprep.subr.mxu0 0.0
  %1783 = vmatpush1.msra.mxu0 %v1637
  %1784 = vmatprep.subr.mxu0 0.0
  %1785 = vmatpush1.msra.mxu0 %v1636
  %1786 = vmatprep.subr.mxu0 0.0
  %1787 = vmatpush2.msra.mxu0 0.0
  %1788 = vmatprep.subr.mxu0 0.0
  %1789 = vmatpush2.msra.mxu0 0.0
  %1790 = vmatprep.subr.mxu0 0.0
  %1791 = vmatpush2.msra.mxu0 0.0
  %1792 = vmatprep.subr.mxu0 0.0
  %1793 = vmatpush2.msra.mxu0 0.0
  %1794 = vmatprep.subr.mxu0 0.0
  %1795 = vmatpush2.msra.mxu0 0.0
  %1796 = vmatprep.subr.mxu0 0.0
  %1797 = vmatpush2.msra.mxu0 0.0
  %1798 = vmatprep.subr.mxu0 0.0
  %1799 = vmatpush2.msra.mxu0 0.0
  %1800 = vmatprep.subr.mxu0 0.0
  %1801 = vmatpush2.msra.mxu0 0.0
  %1802 = vmatprep.subr.mxu0 0.0
  %1803 = vmatpush2.msra.mxu0 0.0
  %1804 = vmatprep.subr.mxu0 0.0
  %1805 = vmatpush2.msra.mxu0 0.0
  %1806 = vmatprep.subr.mxu0 0.0
  %1807 = vmatpush2.msra.mxu0 0.0
  %1808 = vmatprep.subr.mxu0 0.0
  %1809 = vmatpush2.msra.mxu0 0.0
  %1810 = vmatprep.subr.mxu0 0.0
  %1811 = vmatpush2.msra.mxu0 0.0
  %1812 = vmatprep.subr.mxu0 0.0
  %1813 = vmatpush2.msra.mxu0 0.0
  %1814 = vmatprep.subr.mxu0 0.0
  %1815 = vmatpush2.msra.mxu0 0.0
  %1816 = vmatprep.subr.mxu0 0.0
  %1817 = vmatpush2.msra.mxu0 0.0
  %1818 = vmatprep.mubr.f32.mxu0 0.0
  %1819 = vmatmul.mubr.f32.gmra.mxu0 %v482
  %v1820 = vpop.f32.mrf.mxu0
  %v1821 = vadd.f32 %v1712, %v1820
  %v1822 = vpop.f32.mrf.mxu0
  %1823 = vmatprep.mubr.f32.mxu0 0.0
  %1824 = vmatmul.mubr.f32.gmra.mxu0 %v659
  %v1825 = vpop.f32.mrf.mxu0
  %v1826 = vadd.f32 %v1717, %v1825
  %v1827 = vpop.f32.mrf.mxu0
  %1828 = vmatprep.mubr.f32.mxu0 0.0
  %1829 = vmatmul.mubr.f32.gmra.mxu0 %v836
  %v1830 = vpop.f32.mrf.mxu0
  %v1831 = vadd.f32 %v1722, %v1830
  %v1832 = vpop.f32.mrf.mxu0
  %1833 = vmatprep.mubr.f32.mxu0 0.0
  %1834 = vmatmul.mubr.f32.gmra.mxu0 %v1013
  %v1835 = vpop.f32.mrf.mxu0
  %v1836 = vadd.f32 %v1727, %v1835
  %v1837 = vpop.f32.mrf.mxu0
  %1838 = vmatprep.mubr.f32.mxu0 0.0
  %1839 = vmatmul.mubr.f32.gmra.mxu0 %v1188
  %v1840 = vpop.f32.mrf.mxu0
  %v1841 = vadd.f32 %v1732, %v1840
  %v1842 = vpop.f32.mrf.mxu0
  %1843 = vmatprep.mubr.f32.mxu0 0.0
  %1844 = vmatmul.mubr.f32.gmra.mxu0 %v1363
  %v1845 = vpop.f32.mrf.mxu0
  %v1846 = vadd.f32 %v1737, %v1845
  %v1847 = vpop.f32.mrf.mxu0
  %1848 = vmatprep.mubr.f32.mxu0 0.0
  %1849 = vmatmul.mubr.f32.gmra.mxu0 %v1538
  %v1850 = vpop.f32.mrf.mxu0
  %v1851 = vadd.f32 %v1742, %v1850
  %v1852 = vpop.f32.mrf.mxu0
  %1853 = vmatprep.mubr.f32.mxu0 0.0
  %1854 = vmatmul.mubr.f32.gmra.mxu0 %v1752
  %v1855 = vpop.f32.mrf.mxu0
  %v1856 = vadd.f32 %v1747, %v1855
  %v1857 = vpop.f32.mrf.mxu0
  %1858 = vdwg.mxu0
  %v1859 = vld [vmem:[%s5] sm:$0x1]
  %v1861 = vlaneseq
  %v1862 = vshrl.u32 %v1861, 7
  %v1863 = vsub.s32 0, %v1862
  %v1864 = vrot.slane %v1859, %v1863
  %v1866 = vadd.f32 %v1821, %v1864
  %v1867 = vadd.f32 %v1826, %v1864
  %v1868 = vadd.f32 %v1831, %v1864
  %v1869 = vadd.f32 %v1836, %v1864
  %v1870 = vadd.f32 %v1841, %v1864
  %v1871 = vadd.f32 %v1846, %v1864
  %v1872 = vadd.f32 %v1851, %v1864
  %v1873 = vadd.f32 %v1856, %v1864
  %1874 = vst [vmem:[#allocation3] sm:$0xff] %v1866
  %1875 = vst [vmem:[#allocation3 + $0x8] sm:$0xff] %v1867
  %1876 = vst [vmem:[#allocation3 + $0x10] sm:$0xff] %v1868
  %1877 = vst [vmem:[#allocation3 + $0x18] sm:$0xff] %v1869
  %1878 = vst [vmem:[#allocation3 + $0x20] sm:$0xff] %v1870
  %1879 = vst [vmem:[#allocation3 + $0x28] sm:$0xff] %v1871
  %1880 = vst [vmem:[#allocation3 + $0x30] sm:$0xff] %v1872
  %1881 = vst [vmem:[#allocation3 + $0x38] sm:$0xff] %v1873
  %v1882 = vld [vmem:[%s6] sm:$0xff]
  %v1883 = vld [vmem:[%s6 + $0x8] sm:$0xff]
  %v1884 = vld [vmem:[%s6 + $0x10] sm:$0xff]
  %v1885 = vld [vmem:[%s6 + $0x18] sm:$0xff]
  %1886 = vmatprep.subr.mxu0 0.0
  %1887 = vmatpush1.msra.mxu0 0.0
  %1888 = vmatprep.subr.mxu0 0.0
  %1889 = vmatpush1.msra.mxu0 0.0
  %1890 = vmatprep.subr.mxu0 0.0
  %1891 = vmatpush1.msra.mxu0 0.0
  %1892 = vmatprep.subr.mxu0 0.0
  %1893 = vmatpush1.msra.mxu0 0.0
  %1894 = vmatprep.subr.mxu0 0.0
  %1895 = vmatpush1.msra.mxu0 0.0
  %1896 = vmatprep.subr.mxu0 0.0
  %1897 = vmatpush1.msra.mxu0 0.0
  %1898 = vmatprep.subr.mxu0 0.0
  %1899 = vmatpush1.msra.mxu0 0.0
  %1900 = vmatprep.subr.mxu0 0.0
  %1901 = vmatpush1.msra.mxu0 0.0
  %1902 = vmatprep.subr.mxu0 0.0
  %1903 = vmatpush1.msra.mxu0 0.0
  %1904 = vmatprep.subr.mxu0 0.0
  %1905 = vmatpush1.msra.mxu0 0.0
  %1906 = vmatprep.subr.mxu0 0.0
  %1907 = vmatpush1.msra.mxu0 0.0
  %1908 = vmatprep.subr.mxu0 0.0
  %1909 = vmatpush1.msra.mxu0 0.0
  %1910 = vmatprep.subr.mxu0 0.0
  %1911 = vmatpush1.msra.mxu0 0.0
  %1912 = vmatprep.subr.mxu0 0.0
  %1913 = vmatpush1.msra.mxu0 0.0
  %1914 = vmatprep.subr.mxu0 0.0
  %1915 = vmatpush1.msra.mxu0 %v1885
  %1916 = vmatprep.subr.mxu0 0.0
  %1917 = vmatpush1.msra.mxu0 %v1884
  %1918 = vmatprep.subr.mxu0 0.0
  %1919 = vmatpush2.msra.mxu0 0.0
  %1920 = vmatprep.subr.mxu0 0.0
  %1921 = vmatpush2.msra.mxu0 0.0
  %1922 = vmatprep.subr.mxu0 0.0
  %1923 = vmatpush2.msra.mxu0 0.0
  %1924 = vmatprep.subr.mxu0 0.0
  %1925 = vmatpush2.msra.mxu0 0.0
  %1926 = vmatprep.subr.mxu0 0.0
  %1927 = vmatpush2.msra.mxu0 0.0
  %1928 = vmatprep.subr.mxu0 0.0
  %1929 = vmatpush2.msra.mxu0 0.0
  %1930 = vmatprep.subr.mxu0 0.0
  %1931 = vmatpush2.msra.mxu0 0.0
  %1932 = vmatprep.subr.mxu0 0.0
  %1933 = vmatpush2.msra.mxu0 0.0
  %1934 = vmatprep.subr.mxu0 0.0
  %1935 = vmatpush2.msra.mxu0 0.0
  %1936 = vmatprep.subr.mxu0 0.0
  %1937 = vmatpush2.msra.mxu0 0.0
  %1938 = vmatprep.subr.mxu0 0.0
  %1939 = vmatpush2.msra.mxu0 0.0
  %1940 = vmatprep.subr.mxu0 0.0
  %1941 = vmatpush2.msra.mxu0 0.0
  %1942 = vmatprep.subr.mxu0 0.0
  %1943 = vmatpush2.msra.mxu0 0.0
  %1944 = vmatprep.subr.mxu0 0.0
  %1945 = vmatpush2.msra.mxu0 0.0
  %1946 = vmatprep.subr.mxu0 0.0
  %1947 = vmatpush2.msra.mxu0 0.0
  %1948 = vmatprep.subr.mxu0 0.0
  %1949 = vmatpush2.msra.mxu0 0.0
  %1950 = vmatprep.mubr.f32.mxu0 0.0
  %1951 = vmatmul.mubr.f32.gmra.mxu0 %v235
  %v1952 = vpop.f32.mrf.mxu0
  %v1953 = vadd.f32 0.0, %v1952
  %v1954 = vpop.f32.mrf.mxu0
  %1955 = vdwg.mxu0
  %1956 = vmatprep.subr.mxu0 0.0
  %1957 = vmatpush1.msra.mxu0 0.0
  %1958 = vmatprep.subr.mxu0 0.0
  %1959 = vmatpush1.msra.mxu0 0.0
  %1960 = vmatprep.subr.mxu0 0.0
  %1961 = vmatpush1.msra.mxu0 0.0
  %1962 = vmatprep.subr.mxu0 0.0
  %1963 = vmatpush1.msra.mxu0 0.0
  %1964 = vmatprep.subr.mxu0 0.0
  %1965 = vmatpush1.msra.mxu0 0.0
  %1966 = vmatprep.subr.mxu0 0.0
  %1967 = vmatpush1.msra.mxu0 0.0
  %1968 = vmatprep.subr.mxu0 0.0
  %1969 = vmatpush1.msra.mxu0 0.0
  %1970 = vmatprep.subr.mxu0 0.0
  %1971 = vmatpush1.msra.mxu0 0.0
  %1972 = vmatprep.subr.mxu0 0.0
  %1973 = vmatpush1.msra.mxu0 0.0
  %1974 = vmatprep.subr.mxu0 0.0
  %1975 = vmatpush1.msra.mxu0 0.0
  %1976 = vmatprep.subr.mxu0 0.0
  %1977 = vmatpush1.msra.mxu0 0.0
  %1978 = vmatprep.subr.mxu0 0.0
  %1979 = vmatpush1.msra.mxu0 0.0
  %1980 = vmatprep.subr.mxu0 0.0
  %1981 = vmatpush1.msra.mxu0 0.0
  %1982 = vmatprep.subr.mxu0 0.0
  %1983 = vmatpush1.msra.mxu0 0.0
  %1984 = vmatprep.subr.mxu0 0.0
  %1985 = vmatpush1.msra.mxu0 %v1883
  %1986 = vmatprep.subr.mxu0 0.0
  %1987 = vmatpush1.msra.mxu0 %v1882
  %1988 = vmatprep.subr.mxu0 0.0
  %1989 = vmatpush2.msra.mxu0 0.0
  %1990 = vmatprep.subr.mxu0 0.0
  %1991 = vmatpush2.msra.mxu0 0.0
  %1992 = vmatprep.subr.mxu0 0.0
  %1993 = vmatpush2.msra.mxu0 0.0
  %1994 = vmatprep.subr.mxu0 0.0
  %1995 = vmatpush2.msra.mxu0 0.0
  %1996 = vmatprep.subr.mxu0 0.0
  %1997 = vmatpush2.msra.mxu0 0.0
  %1998 = vmatprep.subr.mxu0 0.0
  %1999 = vmatpush2.msra.mxu0 0.0
  %2000 = vmatprep.subr.mxu0 0.0
  %2001 = vmatpush2.msra.mxu0 0.0
  %2002 = vmatprep.subr.mxu0 0.0
  %2003 = vmatpush2.msra.mxu0 0.0
  %2004 = vmatprep.subr.mxu0 0.0
  %2005 = vmatpush2.msra.mxu0 0.0
  %2006 = vmatprep.subr.mxu0 0.0
  %2007 = vmatpush2.msra.mxu0 0.0
  %2008 = vmatprep.subr.mxu0 0.0
  %2009 = vmatpush2.msra.mxu0 0.0
  %2010 = vmatprep.subr.mxu0 0.0
  %2011 = vmatpush2.msra.mxu0 0.0
  %2012 = vmatprep.subr.mxu0 0.0
  %2013 = vmatpush2.msra.mxu0 0.0
  %2014 = vmatprep.subr.mxu0 0.0
  %2015 = vmatpush2.msra.mxu0 0.0
  %2016 = vmatprep.subr.mxu0 0.0
  %2017 = vmatpush2.msra.mxu0 0.0
  %2018 = vmatprep.subr.mxu0 0.0
  %2019 = vmatpush2.msra.mxu0 0.0
  %2020 = vmatprep.mubr.f32.mxu0 0.0
  %2021 = vmatmul.mubr.f32.gmra.mxu0 %v235
  %v2022 = vpop.f32.mrf.mxu0
  %v2023 = vadd.f32 %v1953, %v2022
  %v2024 = vpop.f32.mrf.mxu0
  %2025 = vdwg.mxu0
  %v2026 = vld [vmem:[#allocation3] sm:$0xff]
  %v2027 = vld [vmem:[#allocation3 + $0x38] sm:$0xff]
  %v2028 = vsel %vm232, %v2026, %v2027
  %v2029 = vadd.f32 %v2023, %v2028
  %v2030 = vxor.u32 %v2029, 2147483648
  %v2031 = vmul.f32 %v2030, 1.442695
  %v2032 = vpow.pop %v2031
  %v2033 = vadd.f32 %v2032, 1.0
  %v2034 = vrcp.pop %v2033
  %v2035 = vmul.f32 1.0, %v2034
  %v2036 = vtanh.pop %v2029
  %v2037 = vmul.f32 %v2035, 0.0
  %2039 = vrot.lane.b32.xlu0 %v2036, 96
  %v2040 = vpop.permute.xlu0 %2039
  %v2042 = vmul.f32 %v2035, %v2040
  %2044 = vrot.lane.b32.xlu0 %v2042, 16
  %v2045 = vpop.permute.xlu0 %2044
  %v2047 = vadd.f32 %v2037, %v2045
  %v2048 = vtanh.pop %v2047
  %2050 = vrot.lane.b32.xlu0 %v2048, 32
  %v2051 = vpop.permute.xlu0 %2050
  %v2053 = vmul.f32 %v2035, %v2051
  %2055 = vrot.lane.b32.xlu0 %v2053, 16
  %v2056 = vpop.permute.xlu0 %2055
  %v2057 = vsel %vm233, %v2056, 0
  %2059 = vmatprep.subr.mxu0 0.0
  %2060 = vmatpush1.msra.mxu0 0.0
  %2061 = vmatprep.subr.mxu0 0.0
  %2062 = vmatpush1.msra.mxu0 0.0
  %2063 = vmatprep.subr.mxu0 0.0
  %2064 = vmatpush1.msra.mxu0 0.0
  %2065 = vmatprep.subr.mxu0 0.0
  %2066 = vmatpush1.msra.mxu0 0.0
  %2067 = vmatprep.subr.mxu0 0.0
  %2068 = vmatpush1.msra.mxu0 0.0
  %2069 = vmatprep.subr.mxu0 0.0
  %2070 = vmatpush1.msra.mxu0 0.0
  %2071 = vmatprep.subr.mxu0 0.0
  %2072 = vmatpush1.msra.mxu0 0.0
  %2073 = vmatprep.subr.mxu0 0.0
  %2074 = vmatpush1.msra.mxu0 0.0
  %2075 = vmatprep.subr.mxu0 0.0
  %2076 = vmatpush1.msra.mxu0 0.0
  %2077 = vmatprep.subr.mxu0 0.0
  %2078 = vmatpush1.msra.mxu0 0.0
  %2079 = vmatprep.subr.mxu0 0.0
  %2080 = vmatpush1.msra.mxu0 0.0
  %2081 = vmatprep.subr.mxu0 0.0
  %2082 = vmatpush1.msra.mxu0 0.0
  %2083 = vmatprep.subr.mxu0 0.0
  %2084 = vmatpush1.msra.mxu0 0.0
  %2085 = vmatprep.subr.mxu0 0.0
  %2086 = vmatpush1.msra.mxu0 0.0
  %2087 = vmatprep.subr.mxu0 0.0
  %2088 = vmatpush1.msra.mxu0 %v1885
  %2089 = vmatprep.subr.mxu0 0.0
  %2090 = vmatpush1.msra.mxu0 %v1884
  %2091 = vmatprep.subr.mxu0 0.0
  %2092 = vmatpush2.msra.mxu0 0.0
  %2093 = vmatprep.subr.mxu0 0.0
  %2094 = vmatpush2.msra.mxu0 0.0
  %2095 = vmatprep.subr.mxu0 0.0
  %2096 = vmatpush2.msra.mxu0 0.0
  %2097 = vmatprep.subr.mxu0 0.0
  %2098 = vmatpush2.msra.mxu0 0.0
  %2099 = vmatprep.subr.mxu0 0.0
  %2100 = vmatpush2.msra.mxu0 0.0
  %2101 = vmatprep.subr.mxu0 0.0
  %2102 = vmatpush2.msra.mxu0 0.0
  %2103 = vmatprep.subr.mxu0 0.0
  %2104 = vmatpush2.msra.mxu0 0.0
  %2105 = vmatprep.subr.mxu0 0.0
  %2106 = vmatpush2.msra.mxu0 0.0
  %2107 = vmatprep.subr.mxu0 0.0
  %2108 = vmatpush2.msra.mxu0 0.0
  %2109 = vmatprep.subr.mxu0 0.0
  %2110 = vmatpush2.msra.mxu0 0.0
  %2111 = vmatprep.subr.mxu0 0.0
  %2112 = vmatpush2.msra.mxu0 0.0
  %2113 = vmatprep.subr.mxu0 0.0
  %2114 = vmatpush2.msra.mxu0 0.0
  %2115 = vmatprep.subr.mxu0 0.0
  %2116 = vmatpush2.msra.mxu0 0.0
  %2117 = vmatprep.subr.mxu0 0.0
  %2118 = vmatpush2.msra.mxu0 0.0
  %2119 = vmatprep.subr.mxu0 0.0
  %2120 = vmatpush2.msra.mxu0 0.0
  %2121 = vmatprep.subr.mxu0 0.0
  %2122 = vmatpush2.msra.mxu0 0.0
  %2123 = vmatprep.mubr.f32.mxu0 0.0
  %2124 = vmatmul.mubr.f32.gmra.mxu0 %v2057
  %v2125 = vpop.f32.mrf.mxu0
  %v2126 = vadd.f32 0.0, %v2125
  %v2127 = vpop.f32.mrf.mxu0
  %2128 = vdwg.mxu0
  %2129 = vrot.lane.b32.xlu0 %v2053, 80
  %v2130 = vpop.permute.xlu0 %2129
  %v2131 = vsel %vm233, %v2130, 0
  %2133 = vmatprep.subr.mxu0 0.0
  %2134 = vmatpush1.msra.mxu0 0.0
  %2135 = vmatprep.subr.mxu0 0.0
  %2136 = vmatpush1.msra.mxu0 0.0
  %2137 = vmatprep.subr.mxu0 0.0
  %2138 = vmatpush1.msra.mxu0 0.0
  %2139 = vmatprep.subr.mxu0 0.0
  %2140 = vmatpush1.msra.mxu0 0.0
  %2141 = vmatprep.subr.mxu0 0.0
  %2142 = vmatpush1.msra.mxu0 0.0
  %2143 = vmatprep.subr.mxu0 0.0
  %2144 = vmatpush1.msra.mxu0 0.0
  %2145 = vmatprep.subr.mxu0 0.0
  %2146 = vmatpush1.msra.mxu0 0.0
  %2147 = vmatprep.subr.mxu0 0.0
  %2148 = vmatpush1.msra.mxu0 0.0
  %2149 = vmatprep.subr.mxu0 0.0
  %2150 = vmatpush1.msra.mxu0 0.0
  %2151 = vmatprep.subr.mxu0 0.0
  %2152 = vmatpush1.msra.mxu0 0.0
  %2153 = vmatprep.subr.mxu0 0.0
  %2154 = vmatpush1.msra.mxu0 0.0
  %2155 = vmatprep.subr.mxu0 0.0
  %2156 = vmatpush1.msra.mxu0 0.0
  %2157 = vmatprep.subr.mxu0 0.0
  %2158 = vmatpush1.msra.mxu0 0.0
  %2159 = vmatprep.subr.mxu0 0.0
  %2160 = vmatpush1.msra.mxu0 0.0
  %2161 = vmatprep.subr.mxu0 0.0
  %2162 = vmatpush1.msra.mxu0 %v1883
  %2163 = vmatprep.subr.mxu0 0.0
  %2164 = vmatpush1.msra.mxu0 %v1882
  %2165 = vmatprep.subr.mxu0 0.0
  %2166 = vmatpush2.msra.mxu0 0.0
  %2167 = vmatprep.subr.mxu0 0.0
  %2168 = vmatpush2.msra.mxu0 0.0
  %2169 = vmatprep.subr.mxu0 0.0
  %2170 = vmatpush2.msra.mxu0 0.0
  %2171 = vmatprep.subr.mxu0 0.0
  %2172 = vmatpush2.msra.mxu0 0.0
  %2173 = vmatprep.subr.mxu0 0.0
  %2174 = vmatpush2.msra.mxu0 0.0
  %2175 = vmatprep.subr.mxu0 0.0
  %2176 = vmatpush2.msra.mxu0 0.0
  %2177 = vmatprep.subr.mxu0 0.0
  %2178 = vmatpush2.msra.mxu0 0.0
  %2179 = vmatprep.subr.mxu0 0.0
  %2180 = vmatpush2.msra.mxu0 0.0
  %2181 = vmatprep.subr.mxu0 0.0
  %2182 = vmatpush2.msra.mxu0 0.0
  %2183 = vmatprep.subr.mxu0 0.0
  %2184 = vmatpush2.msra.mxu0 0.0
  %2185 = vmatprep.subr.mxu0 0.0
  %2186 = vmatpush2.msra.mxu0 0.0
  %2187 = vmatprep.subr.mxu0 0.0
  %2188 = vmatpush2.msra.mxu0 0.0
  %2189 = vmatprep.subr.mxu0 0.0
  %2190 = vmatpush2.msra.mxu0 0.0
  %2191 = vmatprep.subr.mxu0 0.0
  %2192 = vmatpush2.msra.mxu0 0.0
  %2193 = vmatprep.subr.mxu0 0.0
  %2194 = vmatpush2.msra.mxu0 0.0
  %2195 = vmatprep.subr.mxu0 0.0
  %2196 = vmatpush2.msra.mxu0 0.0
  %2197 = vmatprep.mubr.f32.mxu0 0.0
  %2198 = vmatmul.mubr.f32.gmra.mxu0 %v2131
  %v2199 = vpop.f32.mrf.mxu0
  %v2200 = vadd.f32 %v2126, %v2199
  %v2201 = vpop.f32.mrf.mxu0
  %2202 = vdwg.mxu0
  %v2203 = vld [vmem:[#allocation3 + $0x8] sm:$0xff]
  %v2204 = vld [vmem:[#allocation3 + $0x30] sm:$0xff]
  %v2205 = vsel %vm232, %v2203, %v2204
  %v2206 = vadd.f32 %v2200, %v2205
  %v2207 = vxor.u32 %v2206, 2147483648
  %v2208 = vmul.f32 %v2207, 1.442695
  %v2209 = vpow.pop %v2208
  %v2210 = vadd.f32 %v2209, 1.0
  %v2211 = vrcp.pop %v2210
  %v2212 = vmul.f32 1.0, %v2211
  %v2213 = vtanh.pop %v2206
  %v2214 = vmul.f32 %v2212, %v2047
  %2216 = vrot.lane.b32.xlu0 %v2213, 96
  %v2217 = vpop.permute.xlu0 %2216
  %v2219 = vmul.f32 %v2212, %v2217
  %2221 = vrot.lane.b32.xlu0 %v2219, 16
  %v2222 = vpop.permute.xlu0 %2221
  %v2224 = vadd.f32 %v2214, %v2222
  %v2225 = vtanh.pop %v2224
  %2227 = vrot.lane.b32.xlu0 %v2225, 32
  %v2228 = vpop.permute.xlu0 %2227
  %v2230 = vmul.f32 %v2212, %v2228
  %2232 = vrot.lane.b32.xlu0 %v2230, 16
  %v2233 = vpop.permute.xlu0 %2232
  %v2234 = vsel %vm233, %v2233, 0
  %2236 = vmatprep.subr.mxu0 0.0
  %2237 = vmatpush1.msra.mxu0 0.0
  %2238 = vmatprep.subr.mxu0 0.0
  %2239 = vmatpush1.msra.mxu0 0.0
  %2240 = vmatprep.subr.mxu0 0.0
  %2241 = vmatpush1.msra.mxu0 0.0
  %2242 = vmatprep.subr.mxu0 0.0
  %2243 = vmatpush1.msra.mxu0 0.0
  %2244 = vmatprep.subr.mxu0 0.0
  %2245 = vmatpush1.msra.mxu0 0.0
  %2246 = vmatprep.subr.mxu0 0.0
  %2247 = vmatpush1.msra.mxu0 0.0
  %2248 = vmatprep.subr.mxu0 0.0
  %2249 = vmatpush1.msra.mxu0 0.0
  %2250 = vmatprep.subr.mxu0 0.0
  %2251 = vmatpush1.msra.mxu0 0.0
  %2252 = vmatprep.subr.mxu0 0.0
  %2253 = vmatpush1.msra.mxu0 0.0
  %2254 = vmatprep.subr.mxu0 0.0
  %2255 = vmatpush1.msra.mxu0 0.0
  %2256 = vmatprep.subr.mxu0 0.0
  %2257 = vmatpush1.msra.mxu0 0.0
  %2258 = vmatprep.subr.mxu0 0.0
  %2259 = vmatpush1.msra.mxu0 0.0
  %2260 = vmatprep.subr.mxu0 0.0
  %2261 = vmatpush1.msra.mxu0 0.0
  %2262 = vmatprep.subr.mxu0 0.0
  %2263 = vmatpush1.msra.mxu0 0.0
  %2264 = vmatprep.subr.mxu0 0.0
  %2265 = vmatpush1.msra.mxu0 %v1885
  %2266 = vmatprep.subr.mxu0 0.0
  %2267 = vmatpush1.msra.mxu0 %v1884
  %2268 = vmatprep.subr.mxu0 0.0
  %2269 = vmatpush2.msra.mxu0 0.0
  %2270 = vmatprep.subr.mxu0 0.0
  %2271 = vmatpush2.msra.mxu0 0.0
  %2272 = vmatprep.subr.mxu0 0.0
  %2273 = vmatpush2.msra.mxu0 0.0
  %2274 = vmatprep.subr.mxu0 0.0
  %2275 = vmatpush2.msra.mxu0 0.0
  %2276 = vmatprep.subr.mxu0 0.0
  %2277 = vmatpush2.msra.mxu0 0.0
  %2278 = vmatprep.subr.mxu0 0.0
  %2279 = vmatpush2.msra.mxu0 0.0
  %2280 = vmatprep.subr.mxu0 0.0
  %2281 = vmatpush2.msra.mxu0 0.0
  %2282 = vmatprep.subr.mxu0 0.0
  %2283 = vmatpush2.msra.mxu0 0.0
  %2284 = vmatprep.subr.mxu0 0.0
  %2285 = vmatpush2.msra.mxu0 0.0
  %2286 = vmatprep.subr.mxu0 0.0
  %2287 = vmatpush2.msra.mxu0 0.0
  %2288 = vmatprep.subr.mxu0 0.0
  %2289 = vmatpush2.msra.mxu0 0.0
  %2290 = vmatprep.subr.mxu0 0.0
  %2291 = vmatpush2.msra.mxu0 0.0
  %2292 = vmatprep.subr.mxu0 0.0
  %2293 = vmatpush2.msra.mxu0 0.0
  %2294 = vmatprep.subr.mxu0 0.0
  %2295 = vmatpush2.msra.mxu0 0.0
  %2296 = vmatprep.subr.mxu0 0.0
  %2297 = vmatpush2.msra.mxu0 0.0
  %2298 = vmatprep.subr.mxu0 0.0
  %2299 = vmatpush2.msra.mxu0 0.0
  %2300 = vmatprep.mubr.f32.mxu0 0.0
  %2301 = vmatmul.mubr.f32.gmra.mxu0 %v2234
  %v2302 = vpop.f32.mrf.mxu0
  %v2303 = vadd.f32 0.0, %v2302
  %v2304 = vpop.f32.mrf.mxu0
  %2305 = vdwg.mxu0
  %2306 = vrot.lane.b32.xlu0 %v2230, 80
  %v2307 = vpop.permute.xlu0 %2306
  %v2308 = vsel %vm233, %v2307, 0
  %2310 = vmatprep.subr.mxu0 0.0
  %2311 = vmatpush1.msra.mxu0 0.0
  %2312 = vmatprep.subr.mxu0 0.0
  %2313 = vmatpush1.msra.mxu0 0.0
  %2314 = vmatprep.subr.mxu0 0.0
  %2315 = vmatpush1.msra.mxu0 0.0
  %2316 = vmatprep.subr.mxu0 0.0
  %2317 = vmatpush1.msra.mxu0 0.0
  %2318 = vmatprep.subr.mxu0 0.0
  %2319 = vmatpush1.msra.mxu0 0.0
  %2320 = vmatprep.subr.mxu0 0.0
  %2321 = vmatpush1.msra.mxu0 0.0
  %2322 = vmatprep.subr.mxu0 0.0
  %2323 = vmatpush1.msra.mxu0 0.0
  %2324 = vmatprep.subr.mxu0 0.0
  %2325 = vmatpush1.msra.mxu0 0.0
  %2326 = vmatprep.subr.mxu0 0.0
  %2327 = vmatpush1.msra.mxu0 0.0
  %2328 = vmatprep.subr.mxu0 0.0
  %2329 = vmatpush1.msra.mxu0 0.0
  %2330 = vmatprep.subr.mxu0 0.0
  %2331 = vmatpush1.msra.mxu0 0.0
  %2332 = vmatprep.subr.mxu0 0.0
  %2333 = vmatpush1.msra.mxu0 0.0
  %2334 = vmatprep.subr.mxu0 0.0
  %2335 = vmatpush1.msra.mxu0 0.0
  %2336 = vmatprep.subr.mxu0 0.0
  %2337 = vmatpush1.msra.mxu0 0.0
  %2338 = vmatprep.subr.mxu0 0.0
  %2339 = vmatpush1.msra.mxu0 %v1883
  %2340 = vmatprep.subr.mxu0 0.0
  %2341 = vmatpush1.msra.mxu0 %v1882
  %2342 = vmatprep.subr.mxu0 0.0
  %2343 = vmatpush2.msra.mxu0 0.0
  %2344 = vmatprep.subr.mxu0 0.0
  %2345 = vmatpush2.msra.mxu0 0.0
  %2346 = vmatprep.subr.mxu0 0.0
  %2347 = vmatpush2.msra.mxu0 0.0
  %2348 = vmatprep.subr.mxu0 0.0
  %2349 = vmatpush2.msra.mxu0 0.0
  %2350 = vmatprep.subr.mxu0 0.0
  %2351 = vmatpush2.msra.mxu0 0.0
  %2352 = vmatprep.subr.mxu0 0.0
  %2353 = vmatpush2.msra.mxu0 0.0
  %2354 = vmatprep.subr.mxu0 0.0
  %2355 = vmatpush2.msra.mxu0 0.0
  %2356 = vmatprep.subr.mxu0 0.0
  %2357 = vmatpush2.msra.mxu0 0.0
  %2358 = vmatprep.subr.mxu0 0.0
  %2359 = vmatpush2.msra.mxu0 0.0
  %2360 = vmatprep.subr.mxu0 0.0
  %2361 = vmatpush2.msra.mxu0 0.0
  %2362 = vmatprep.subr.mxu0 0.0
  %2363 = vmatpush2.msra.mxu0 0.0
  %2364 = vmatprep.subr.mxu0 0.0
  %2365 = vmatpush2.msra.mxu0 0.0
  %2366 = vmatprep.subr.mxu0 0.0
  %2367 = vmatpush2.msra.mxu0 0.0
  %2368 = vmatprep.subr.mxu0 0.0
  %2369 = vmatpush2.msra.mxu0 0.0
  %2370 = vmatprep.subr.mxu0 0.0
  %2371 = vmatpush2.msra.mxu0 0.0
  %2372 = vmatprep.subr.mxu0 0.0
  %2373 = vmatpush2.msra.mxu0 0.0
  %2374 = vmatprep.mubr.f32.mxu0 0.0
  %2375 = vmatmul.mubr.f32.gmra.mxu0 %v2308
  %v2376 = vpop.f32.mrf.mxu0
  %v2377 = vadd.f32 %v2303, %v2376
  %v2378 = vpop.f32.mrf.mxu0
  %2379 = vdwg.mxu0
  %v2380 = vld [vmem:[#allocation3 + $0x10] sm:$0xff]
  %v2381 = vld [vmem:[#allocation3 + $0x28] sm:$0xff]
  %v2382 = vsel %vm232, %v2380, %v2381
  %v2383 = vadd.f32 %v2377, %v2382
  %v2384 = vxor.u32 %v2383, 2147483648
  %v2385 = vmul.f32 %v2384, 1.442695
  %v2386 = vpow.pop %v2385
  %v2387 = vadd.f32 %v2386, 1.0
  %v2388 = vrcp.pop %v2387
  %v2389 = vmul.f32 1.0, %v2388
  %v2390 = vtanh.pop %v2383
  %v2391 = vmul.f32 %v2389, %v2224
  %2393 = vrot.lane.b32.xlu0 %v2390, 96
  %v2394 = vpop.permute.xlu0 %2393
  %v2396 = vmul.f32 %v2389, %v2394
  %2398 = vrot.lane.b32.xlu0 %v2396, 16
  %v2399 = vpop.permute.xlu0 %2398
  %v2401 = vadd.f32 %v2391, %v2399
  %v2402 = vtanh.pop %v2401
  %2404 = vrot.lane.b32.xlu0 %v2402, 32
  %v2405 = vpop.permute.xlu0 %2404
  %v2407 = vmul.f32 %v2389, %v2405
  %2409 = vrot.lane.b32.xlu0 %v2407, 16
  %v2410 = vpop.permute.xlu0 %2409
  %v2411 = vsel %vm233, %v2410, 0
  %2413 = vmatprep.subr.mxu0 0.0
  %2414 = vmatpush1.msra.mxu0 0.0
  %2415 = vmatprep.subr.mxu0 0.0
  %2416 = vmatpush1.msra.mxu0 0.0
  %2417 = vmatprep.subr.mxu0 0.0
  %2418 = vmatpush1.msra.mxu0 0.0
  %2419 = vmatprep.subr.mxu0 0.0
  %2420 = vmatpush1.msra.mxu0 0.0
  %2421 = vmatprep.subr.mxu0 0.0
  %2422 = vmatpush1.msra.mxu0 0.0
  %2423 = vmatprep.subr.mxu0 0.0
  %2424 = vmatpush1.msra.mxu0 0.0
  %2425 = vmatprep.subr.mxu0 0.0
  %2426 = vmatpush1.msra.mxu0 0.0
  %2427 = vmatprep.subr.mxu0 0.0
  %2428 = vmatpush1.msra.mxu0 0.0
  %2429 = vmatprep.subr.mxu0 0.0
  %2430 = vmatpush1.msra.mxu0 0.0
  %2431 = vmatprep.subr.mxu0 0.0
  %2432 = vmatpush1.msra.mxu0 0.0
  %2433 = vmatprep.subr.mxu0 0.0
  %2434 = vmatpush1.msra.mxu0 0.0
  %2435 = vmatprep.subr.mxu0 0.0
  %2436 = vmatpush1.msra.mxu0 0.0
  %2437 = vmatprep.subr.mxu0 0.0
  %2438 = vmatpush1.msra.mxu0 0.0
  %2439 = vmatprep.subr.mxu0 0.0
  %2440 = vmatpush1.msra.mxu0 0.0
  %2441 = vmatprep.subr.mxu0 0.0
  %2442 = vmatpush1.msra.mxu0 %v1885
  %2443 = vmatprep.subr.mxu0 0.0
  %2444 = vmatpush1.msra.mxu0 %v1884
  %2445 = vmatprep.subr.mxu0 0.0
  %2446 = vmatpush2.msra.mxu0 0.0
  %2447 = vmatprep.subr.mxu0 0.0
  %2448 = vmatpush2.msra.mxu0 0.0
  %2449 = vmatprep.subr.mxu0 0.0
  %2450 = vmatpush2.msra.mxu0 0.0
  %2451 = vmatprep.subr.mxu0 0.0
  %2452 = vmatpush2.msra.mxu0 0.0
  %2453 = vmatprep.subr.mxu0 0.0
  %2454 = vmatpush2.msra.mxu0 0.0
  %2455 = vmatprep.subr.mxu0 0.0
  %2456 = vmatpush2.msra.mxu0 0.0
  %2457 = vmatprep.subr.mxu0 0.0
  %2458 = vmatpush2.msra.mxu0 0.0
  %2459 = vmatprep.subr.mxu0 0.0
  %2460 = vmatpush2.msra.mxu0 0.0
  %2461 = vmatprep.subr.mxu0 0.0
  %2462 = vmatpush2.msra.mxu0 0.0
  %2463 = vmatprep.subr.mxu0 0.0
  %2464 = vmatpush2.msra.mxu0 0.0
  %2465 = vmatprep.subr.mxu0 0.0
  %2466 = vmatpush2.msra.mxu0 0.0
  %2467 = vmatprep.subr.mxu0 0.0
  %2468 = vmatpush2.msra.mxu0 0.0
  %2469 = vmatprep.subr.mxu0 0.0
  %2470 = vmatpush2.msra.mxu0 0.0
  %2471 = vmatprep.subr.mxu0 0.0
  %2472 = vmatpush2.msra.mxu0 0.0
  %2473 = vmatprep.subr.mxu0 0.0
  %2474 = vmatpush2.msra.mxu0 0.0
  %2475 = vmatprep.subr.mxu0 0.0
  %2476 = vmatpush2.msra.mxu0 0.0
  %2477 = vmatprep.mubr.f32.mxu0 0.0
  %2478 = vmatmul.mubr.f32.gmra.mxu0 %v2411
  %v2479 = vpop.f32.mrf.mxu0
  %v2480 = vadd.f32 0.0, %v2479
  %v2481 = vpop.f32.mrf.mxu0
  %2482 = vdwg.mxu0
  %2483 = vrot.lane.b32.xlu0 %v2407, 80
  %v2484 = vpop.permute.xlu0 %2483
  %v2485 = vsel %vm233, %v2484, 0
  %2487 = vmatprep.subr.mxu0 0.0
  %2488 = vmatpush1.msra.mxu0 0.0
  %2489 = vmatprep.subr.mxu0 0.0
  %2490 = vmatpush1.msra.mxu0 0.0
  %2491 = vmatprep.subr.mxu0 0.0
  %2492 = vmatpush1.msra.mxu0 0.0
  %2493 = vmatprep.subr.mxu0 0.0
  %2494 = vmatpush1.msra.mxu0 0.0
  %2495 = vmatprep.subr.mxu0 0.0
  %2496 = vmatpush1.msra.mxu0 0.0
  %2497 = vmatprep.subr.mxu0 0.0
  %2498 = vmatpush1.msra.mxu0 0.0
  %2499 = vmatprep.subr.mxu0 0.0
  %2500 = vmatpush1.msra.mxu0 0.0
  %2501 = vmatprep.subr.mxu0 0.0
  %2502 = vmatpush1.msra.mxu0 0.0
  %2503 = vmatprep.subr.mxu0 0.0
  %2504 = vmatpush1.msra.mxu0 0.0
  %2505 = vmatprep.subr.mxu0 0.0
  %2506 = vmatpush1.msra.mxu0 0.0
  %2507 = vmatprep.subr.mxu0 0.0
  %2508 = vmatpush1.msra.mxu0 0.0
  %2509 = vmatprep.subr.mxu0 0.0
  %2510 = vmatpush1.msra.mxu0 0.0
  %2511 = vmatprep.subr.mxu0 0.0
  %2512 = vmatpush1.msra.mxu0 0.0
  %2513 = vmatprep.subr.mxu0 0.0
  %2514 = vmatpush1.msra.mxu0 0.0
  %2515 = vmatprep.subr.mxu0 0.0
  %2516 = vmatpush1.msra.mxu0 %v1883
  %2517 = vmatprep.subr.mxu0 0.0
  %2518 = vmatpush1.msra.mxu0 %v1882
  %2519 = vmatprep.subr.mxu0 0.0
  %2520 = vmatpush2.msra.mxu0 0.0
  %2521 = vmatprep.subr.mxu0 0.0
  %2522 = vmatpush2.msra.mxu0 0.0
  %2523 = vmatprep.subr.mxu0 0.0
  %2524 = vmatpush2.msra.mxu0 0.0
  %2525 = vmatprep.subr.mxu0 0.0
  %2526 = vmatpush2.msra.mxu0 0.0
  %2527 = vmatprep.subr.mxu0 0.0
  %2528 = vmatpush2.msra.mxu0 0.0
  %2529 = vmatprep.subr.mxu0 0.0
  %2530 = vmatpush2.msra.mxu0 0.0
  %2531 = vmatprep.subr.mxu0 0.0
  %2532 = vmatpush2.msra.mxu0 0.0
  %2533 = vmatprep.subr.mxu0 0.0
  %2534 = vmatpush2.msra.mxu0 0.0
  %2535 = vmatprep.subr.mxu0 0.0
  %2536 = vmatpush2.msra.mxu0 0.0
  %2537 = vmatprep.subr.mxu0 0.0
  %2538 = vmatpush2.msra.mxu0 0.0
  %2539 = vmatprep.subr.mxu0 0.0
  %2540 = vmatpush2.msra.mxu0 0.0
  %2541 = vmatprep.subr.mxu0 0.0
  %2542 = vmatpush2.msra.mxu0 0.0
  %2543 = vmatprep.subr.mxu0 0.0
  %2544 = vmatpush2.msra.mxu0 0.0
  %2545 = vmatprep.subr.mxu0 0.0
  %2546 = vmatpush2.msra.mxu0 0.0
  %2547 = vmatprep.subr.mxu0 0.0
  %2548 = vmatpush2.msra.mxu0 0.0
  %2549 = vmatprep.subr.mxu0 0.0
  %2550 = vmatpush2.msra.mxu0 0.0
  %2551 = vmatprep.mubr.f32.mxu0 0.0
  %2552 = vmatmul.mubr.f32.gmra.mxu0 %v2485
  %v2553 = vpop.f32.mrf.mxu0
  %v2554 = vadd.f32 %v2480, %v2553
  %v2555 = vpop.f32.mrf.mxu0
  %2556 = vdwg.mxu0
  %v2557 = vld [vmem:[#allocation3 + $0x18] sm:$0xff]
  %v2558 = vld [vmem:[#allocation3 + $0x20] sm:$0xff]
  %v2559 = vsel %vm232, %v2557, %v2558
  %v2560 = vadd.f32 %v2554, %v2559
  %v2561 = vxor.u32 %v2560, 2147483648
  %v2562 = vmul.f32 %v2561, 1.442695
  %v2563 = vpow.pop %v2562
  %v2564 = vadd.f32 %v2563, 1.0
  %v2565 = vrcp.pop %v2564
  %v2566 = vmul.f32 1.0, %v2565
  %v2567 = vtanh.pop %v2560
  %v2568 = vmul.f32 %v2566, %v2401
  %2570 = vrot.lane.b32.xlu0 %v2567, 96
  %v2571 = vpop.permute.xlu0 %2570
  %v2573 = vmul.f32 %v2566, %v2571
  %2575 = vrot.lane.b32.xlu0 %v2573, 16
  %v2576 = vpop.permute.xlu0 %2575
  %v2578 = vadd.f32 %v2568, %v2576
  %v2579 = vtanh.pop %v2578
  %2581 = vrot.lane.b32.xlu0 %v2579, 32
  %v2582 = vpop.permute.xlu0 %2581
  %v2584 = vmul.f32 %v2566, %v2582
  %2586 = vrot.lane.b32.xlu0 %v2584, 16
  %v2587 = vpop.permute.xlu0 %2586
  %v2588 = vsel %vm233, %v2587, 0
  %2590 = vmatprep.subr.mxu0 0.0
  %2591 = vmatpush1.msra.mxu0 0.0
  %2592 = vmatprep.subr.mxu0 0.0
  %2593 = vmatpush1.msra.mxu0 0.0
  %2594 = vmatprep.subr.mxu0 0.0
  %2595 = vmatpush1.msra.mxu0 0.0
  %2596 = vmatprep.subr.mxu0 0.0
  %2597 = vmatpush1.msra.mxu0 0.0
  %2598 = vmatprep.subr.mxu0 0.0
  %2599 = vmatpush1.msra.mxu0 0.0
  %2600 = vmatprep.subr.mxu0 0.0
  %2601 = vmatpush1.msra.mxu0 0.0
  %2602 = vmatprep.subr.mxu0 0.0
  %2603 = vmatpush1.msra.mxu0 0.0
  %2604 = vmatprep.subr.mxu0 0.0
  %2605 = vmatpush1.msra.mxu0 0.0
  %2606 = vmatprep.subr.mxu0 0.0
  %2607 = vmatpush1.msra.mxu0 0.0
  %2608 = vmatprep.subr.mxu0 0.0
  %2609 = vmatpush1.msra.mxu0 0.0
  %2610 = vmatprep.subr.mxu0 0.0
  %2611 = vmatpush1.msra.mxu0 0.0
  %2612 = vmatprep.subr.mxu0 0.0
  %2613 = vmatpush1.msra.mxu0 0.0
  %2614 = vmatprep.subr.mxu0 0.0
  %2615 = vmatpush1.msra.mxu0 0.0
  %2616 = vmatprep.subr.mxu0 0.0
  %2617 = vmatpush1.msra.mxu0 0.0
  %2618 = vmatprep.subr.mxu0 0.0
  %2619 = vmatpush1.msra.mxu0 %v1885
  %2620 = vmatprep.subr.mxu0 0.0
  %2621 = vmatpush1.msra.mxu0 %v1884
  %2622 = vmatprep.subr.mxu0 0.0
  %2623 = vmatpush2.msra.mxu0 0.0
  %2624 = vmatprep.subr.mxu0 0.0
  %2625 = vmatpush2.msra.mxu0 0.0
  %2626 = vmatprep.subr.mxu0 0.0
  %2627 = vmatpush2.msra.mxu0 0.0
  %2628 = vmatprep.subr.mxu0 0.0
  %2629 = vmatpush2.msra.mxu0 0.0
  %2630 = vmatprep.subr.mxu0 0.0
  %2631 = vmatpush2.msra.mxu0 0.0
  %2632 = vmatprep.subr.mxu0 0.0
  %2633 = vmatpush2.msra.mxu0 0.0
  %2634 = vmatprep.subr.mxu0 0.0
  %2635 = vmatpush2.msra.mxu0 0.0
  %2636 = vmatprep.subr.mxu0 0.0
  %2637 = vmatpush2.msra.mxu0 0.0
  %2638 = vmatprep.subr.mxu0 0.0
  %2639 = vmatpush2.msra.mxu0 0.0
  %2640 = vmatprep.subr.mxu0 0.0
  %2641 = vmatpush2.msra.mxu0 0.0
  %2642 = vmatprep.subr.mxu0 0.0
  %2643 = vmatpush2.msra.mxu0 0.0
  %2644 = vmatprep.subr.mxu0 0.0
  %2645 = vmatpush2.msra.mxu0 0.0
  %2646 = vmatprep.subr.mxu0 0.0
  %2647 = vmatpush2.msra.mxu0 0.0
  %2648 = vmatprep.subr.mxu0 0.0
  %2649 = vmatpush2.msra.mxu0 0.0
  %2650 = vmatprep.subr.mxu0 0.0
  %2651 = vmatpush2.msra.mxu0 0.0
  %2652 = vmatprep.subr.mxu0 0.0
  %2653 = vmatpush2.msra.mxu0 0.0
  %2654 = vmatprep.mubr.f32.mxu0 0.0
  %2655 = vmatmul.mubr.f32.gmra.mxu0 %v2588
  %v2656 = vpop.f32.mrf.mxu0
  %v2657 = vadd.f32 0.0, %v2656
  %v2658 = vpop.f32.mrf.mxu0
  %2659 = vdwg.mxu0
  %2660 = vrot.lane.b32.xlu0 %v2584, 80
  %v2661 = vpop.permute.xlu0 %2660
  %v2662 = vsel %vm233, %v2661, 0
  %2664 = vmatprep.subr.mxu0 0.0
  %2665 = vmatpush1.msra.mxu0 0.0
  %2666 = vmatprep.subr.mxu0 0.0
  %2667 = vmatpush1.msra.mxu0 0.0
  %2668 = vmatprep.subr.mxu0 0.0
  %2669 = vmatpush1.msra.mxu0 0.0
  %2670 = vmatprep.subr.mxu0 0.0
  %2671 = vmatpush1.msra.mxu0 0.0
  %2672 = vmatprep.subr.mxu0 0.0
  %2673 = vmatpush1.msra.mxu0 0.0
  %2674 = vmatprep.subr.mxu0 0.0
  %2675 = vmatpush1.msra.mxu0 0.0
  %2676 = vmatprep.subr.mxu0 0.0
  %2677 = vmatpush1.msra.mxu0 0.0
  %2678 = vmatprep.subr.mxu0 0.0
  %2679 = vmatpush1.msra.mxu0 0.0
  %2680 = vmatprep.subr.mxu0 0.0
  %2681 = vmatpush1.msra.mxu0 0.0
  %2682 = vmatprep.subr.mxu0 0.0
  %2683 = vmatpush1.msra.mxu0 0.0
  %2684 = vmatprep.subr.mxu0 0.0
  %2685 = vmatpush1.msra.mxu0 0.0
  %2686 = vmatprep.subr.mxu0 0.0
  %2687 = vmatpush1.msra.mxu0 0.0
  %2688 = vmatprep.subr.mxu0 0.0
  %2689 = vmatpush1.msra.mxu0 0.0
  %2690 = vmatprep.subr.mxu0 0.0
  %2691 = vmatpush1.msra.mxu0 0.0
  %2692 = vmatprep.subr.mxu0 0.0
  %2693 = vmatpush1.msra.mxu0 %v1883
  %2694 = vmatprep.subr.mxu0 0.0
  %2695 = vmatpush1.msra.mxu0 %v1882
  %2696 = vmatprep.subr.mxu0 0.0
  %2697 = vmatpush2.msra.mxu0 0.0
  %2698 = vmatprep.subr.mxu0 0.0
  %2699 = vmatpush2.msra.mxu0 0.0
  %2700 = vmatprep.subr.mxu0 0.0
  %2701 = vmatpush2.msra.mxu0 0.0
  %2702 = vmatprep.subr.mxu0 0.0
  %2703 = vmatpush2.msra.mxu0 0.0
  %2704 = vmatprep.subr.mxu0 0.0
  %2705 = vmatpush2.msra.mxu0 0.0
  %2706 = vmatprep.subr.mxu0 0.0
  %2707 = vmatpush2.msra.mxu0 0.0
  %2708 = vmatprep.subr.mxu0 0.0
  %2709 = vmatpush2.msra.mxu0 0.0
  %2710 = vmatprep.subr.mxu0 0.0
  %2711 = vmatpush2.msra.mxu0 0.0
  %2712 = vmatprep.subr.mxu0 0.0
  %2713 = vmatpush2.msra.mxu0 0.0
  %2714 = vmatprep.subr.mxu0 0.0
  %2715 = vmatpush2.msra.mxu0 0.0
  %2716 = vmatprep.subr.mxu0 0.0
  %2717 = vmatpush2.msra.mxu0 0.0
  %2718 = vmatprep.subr.mxu0 0.0
  %2719 = vmatpush2.msra.mxu0 0.0
  %2720 = vmatprep.subr.mxu0 0.0
  %2721 = vmatpush2.msra.mxu0 0.0
  %2722 = vmatprep.subr.mxu0 0.0
  %2723 = vmatpush2.msra.mxu0 0.0
  %2724 = vmatprep.subr.mxu0 0.0
  %2725 = vmatpush2.msra.mxu0 0.0
  %2726 = vmatprep.subr.mxu0 0.0
  %2727 = vmatpush2.msra.mxu0 0.0
  %2728 = vmatprep.mubr.f32.mxu0 0.0
  %2729 = vmatmul.mubr.f32.gmra.mxu0 %v2662
  %v2730 = vpop.f32.mrf.mxu0
  %v2731 = vadd.f32 %v2657, %v2730
  %v2732 = vpop.f32.mrf.mxu0
  %2733 = vdwg.mxu0
  %v2734 = vsel %vm232, %v2558, %v2557
  %v2735 = vadd.f32 %v2731, %v2734
  %v2736 = vxor.u32 %v2735, 2147483648
  %v2737 = vmul.f32 %v2736, 1.442695
  %v2738 = vpow.pop %v2737
  %v2739 = vadd.f32 %v2738, 1.0
  %v2740 = vrcp.pop %v2739
  %v2741 = vmul.f32 1.0, %v2740
  %v2742 = vtanh.pop %v2735
  %v2743 = vmul.f32 %v2741, %v2578
  %2745 = vrot.lane.b32.xlu0 %v2742, 96
  %v2746 = vpop.permute.xlu0 %2745
  %v2748 = vmul.f32 %v2741, %v2746
  %2750 = vrot.lane.b32.xlu0 %v2748, 16
  %v2751 = vpop.permute.xlu0 %2750
  %v2753 = vadd.f32 %v2743, %v2751
  %v2754 = vtanh.pop %v2753
  %2756 = vrot.lane.b32.xlu0 %v2754, 32
  %v2757 = vpop.permute.xlu0 %2756
  %v2759 = vmul.f32 %v2741, %v2757
  %2761 = vrot.lane.b32.xlu0 %v2759, 16
  %v2762 = vpop.permute.xlu0 %2761
  %v2763 = vsel %vm233, %v2762, 0
  %2765 = vmatprep.subr.mxu0 0.0
  %2766 = vmatpush1.msra.mxu0 0.0
  %2767 = vmatprep.subr.mxu0 0.0
  %2768 = vmatpush1.msra.mxu0 0.0
  %2769 = vmatprep.subr.mxu0 0.0
  %2770 = vmatpush1.msra.mxu0 0.0
  %2771 = vmatprep.subr.mxu0 0.0
  %2772 = vmatpush1.msra.mxu0 0.0
  %2773 = vmatprep.subr.mxu0 0.0
  %2774 = vmatpush1.msra.mxu0 0.0
  %2775 = vmatprep.subr.mxu0 0.0
  %2776 = vmatpush1.msra.mxu0 0.0
  %2777 = vmatprep.subr.mxu0 0.0
  %2778 = vmatpush1.msra.mxu0 0.0
  %2779 = vmatprep.subr.mxu0 0.0
  %2780 = vmatpush1.msra.mxu0 0.0
  %2781 = vmatprep.subr.mxu0 0.0
  %2782 = vmatpush1.msra.mxu0 0.0
  %2783 = vmatprep.subr.mxu0 0.0
  %2784 = vmatpush1.msra.mxu0 0.0
  %2785 = vmatprep.subr.mxu0 0.0
  %2786 = vmatpush1.msra.mxu0 0.0
  %2787 = vmatprep.subr.mxu0 0.0
  %2788 = vmatpush1.msra.mxu0 0.0
  %2789 = vmatprep.subr.mxu0 0.0
  %2790 = vmatpush1.msra.mxu0 0.0
  %2791 = vmatprep.subr.mxu0 0.0
  %2792 = vmatpush1.msra.mxu0 0.0
  %2793 = vmatprep.subr.mxu0 0.0
  %2794 = vmatpush1.msra.mxu0 %v1885
  %2795 = vmatprep.subr.mxu0 0.0
  %2796 = vmatpush1.msra.mxu0 %v1884
  %2797 = vmatprep.subr.mxu0 0.0
  %2798 = vmatpush2.msra.mxu0 0.0
  %2799 = vmatprep.subr.mxu0 0.0
  %2800 = vmatpush2.msra.mxu0 0.0
  %2801 = vmatprep.subr.mxu0 0.0
  %2802 = vmatpush2.msra.mxu0 0.0
  %2803 = vmatprep.subr.mxu0 0.0
  %2804 = vmatpush2.msra.mxu0 0.0
  %2805 = vmatprep.subr.mxu0 0.0
  %2806 = vmatpush2.msra.mxu0 0.0
  %2807 = vmatprep.subr.mxu0 0.0
  %2808 = vmatpush2.msra.mxu0 0.0
  %2809 = vmatprep.subr.mxu0 0.0
  %2810 = vmatpush2.msra.mxu0 0.0
  %2811 = vmatprep.subr.mxu0 0.0
  %2812 = vmatpush2.msra.mxu0 0.0
  %2813 = vmatprep.subr.mxu0 0.0
  %2814 = vmatpush2.msra.mxu0 0.0
  %2815 = vmatprep.subr.mxu0 0.0
  %2816 = vmatpush2.msra.mxu0 0.0
  %2817 = vmatprep.subr.mxu0 0.0
  %2818 = vmatpush2.msra.mxu0 0.0
  %2819 = vmatprep.subr.mxu0 0.0
  %2820 = vmatpush2.msra.mxu0 0.0
  %2821 = vmatprep.subr.mxu0 0.0
  %2822 = vmatpush2.msra.mxu0 0.0
  %2823 = vmatprep.subr.mxu0 0.0
  %2824 = vmatpush2.msra.mxu0 0.0
  %2825 = vmatprep.subr.mxu0 0.0
  %2826 = vmatpush2.msra.mxu0 0.0
  %2827 = vmatprep.subr.mxu0 0.0
  %2828 = vmatpush2.msra.mxu0 0.0
  %2829 = vmatprep.mubr.f32.mxu0 0.0
  %2830 = vmatmul.mubr.f32.gmra.mxu0 %v2763
  %v2831 = vpop.f32.mrf.mxu0
  %v2832 = vadd.f32 0.0, %v2831
  %v2833 = vpop.f32.mrf.mxu0
  %2834 = vdwg.mxu0
  %2835 = vrot.lane.b32.xlu0 %v2759, 80
  %v2836 = vpop.permute.xlu0 %2835
  %v2837 = vsel %vm233, %v2836, 0
  %2839 = vmatprep.subr.mxu0 0.0
  %2840 = vmatpush1.msra.mxu0 0.0
  %2841 = vmatprep.subr.mxu0 0.0
  %2842 = vmatpush1.msra.mxu0 0.0
  %2843 = vmatprep.subr.mxu0 0.0
  %2844 = vmatpush1.msra.mxu0 0.0
  %2845 = vmatprep.subr.mxu0 0.0
  %2846 = vmatpush1.msra.mxu0 0.0
  %2847 = vmatprep.subr.mxu0 0.0
  %2848 = vmatpush1.msra.mxu0 0.0
  %2849 = vmatprep.subr.mxu0 0.0
  %2850 = vmatpush1.msra.mxu0 0.0
  %2851 = vmatprep.subr.mxu0 0.0
  %2852 = vmatpush1.msra.mxu0 0.0
  %2853 = vmatprep.subr.mxu0 0.0
  %2854 = vmatpush1.msra.mxu0 0.0
  %2855 = vmatprep.subr.mxu0 0.0
  %2856 = vmatpush1.msra.mxu0 0.0
  %2857 = vmatprep.subr.mxu0 0.0
  %2858 = vmatpush1.msra.mxu0 0.0
  %2859 = vmatprep.subr.mxu0 0.0
  %2860 = vmatpush1.msra.mxu0 0.0
  %2861 = vmatprep.subr.mxu0 0.0
  %2862 = vmatpush1.msra.mxu0 0.0
  %2863 = vmatprep.subr.mxu0 0.0
  %2864 = vmatpush1.msra.mxu0 0.0
  %2865 = vmatprep.subr.mxu0 0.0
  %2866 = vmatpush1.msra.mxu0 0.0
  %2867 = vmatprep.subr.mxu0 0.0
  %2868 = vmatpush1.msra.mxu0 %v1883
  %2869 = vmatprep.subr.mxu0 0.0
  %2870 = vmatpush1.msra.mxu0 %v1882
  %2871 = vmatprep.subr.mxu0 0.0
  %2872 = vmatpush2.msra.mxu0 0.0
  %2873 = vmatprep.subr.mxu0 0.0
  %2874 = vmatpush2.msra.mxu0 0.0
  %2875 = vmatprep.subr.mxu0 0.0
  %2876 = vmatpush2.msra.mxu0 0.0
  %2877 = vmatprep.subr.mxu0 0.0
  %2878 = vmatpush2.msra.mxu0 0.0
  %2879 = vmatprep.subr.mxu0 0.0
  %2880 = vmatpush2.msra.mxu0 0.0
  %2881 = vmatprep.subr.mxu0 0.0
  %2882 = vmatpush2.msra.mxu0 0.0
  %2883 = vmatprep.subr.mxu0 0.0
  %2884 = vmatpush2.msra.mxu0 0.0
  %2885 = vmatprep.subr.mxu0 0.0
  %2886 = vmatpush2.msra.mxu0 0.0
  %2887 = vmatprep.subr.mxu0 0.0
  %2888 = vmatpush2.msra.mxu0 0.0
  %2889 = vmatprep.subr.mxu0 0.0
  %2890 = vmatpush2.msra.mxu0 0.0
  %2891 = vmatprep.subr.mxu0 0.0
  %2892 = vmatpush2.msra.mxu0 0.0
  %2893 = vmatprep.subr.mxu0 0.0
  %2894 = vmatpush2.msra.mxu0 0.0
  %2895 = vmatprep.subr.mxu0 0.0
  %2896 = vmatpush2.msra.mxu0 0.0
  %2897 = vmatprep.subr.mxu0 0.0
  %2898 = vmatpush2.msra.mxu0 0.0
  %2899 = vmatprep.subr.mxu0 0.0
  %2900 = vmatpush2.msra.mxu0 0.0
  %2901 = vmatprep.subr.mxu0 0.0
  %2902 = vmatpush2.msra.mxu0 0.0
  %2903 = vmatprep.mubr.f32.mxu0 0.0
  %2904 = vmatmul.mubr.f32.gmra.mxu0 %v2837
  %v2905 = vpop.f32.mrf.mxu0
  %v2906 = vadd.f32 %v2832, %v2905
  %v2907 = vpop.f32.mrf.mxu0
  %2908 = vdwg.mxu0
  %v2909 = vsel %vm232, %v2381, %v2380
  %v2910 = vadd.f32 %v2906, %v2909
  %v2911 = vxor.u32 %v2910, 2147483648
  %v2912 = vmul.f32 %v2911, 1.442695
  %v2913 = vpow.pop %v2912
  %v2914 = vadd.f32 %v2913, 1.0
  %v2915 = vrcp.pop %v2914
  %v2916 = vmul.f32 1.0, %v2915
  %v2917 = vtanh.pop %v2910
  %v2918 = vmul.f32 %v2916, %v2753
  %2920 = vrot.lane.b32.xlu0 %v2917, 96
  %v2921 = vpop.permute.xlu0 %2920
  %v2923 = vmul.f32 %v2916, %v2921
  %2925 = vrot.lane.b32.xlu0 %v2923, 16
  %v2926 = vpop.permute.xlu0 %2925
  %v2928 = vadd.f32 %v2918, %v2926
  %v2929 = vtanh.pop %v2928
  %2931 = vrot.lane.b32.xlu0 %v2929, 32
  %v2932 = vpop.permute.xlu0 %2931
  %v2934 = vmul.f32 %v2916, %v2932
  %2936 = vrot.lane.b32.xlu0 %v2934, 16
  %v2937 = vpop.permute.xlu0 %2936
  %v2938 = vsel %vm233, %v2937, 0
  %2940 = vmatprep.subr.mxu0 0.0
  %2941 = vmatpush1.msra.mxu0 0.0
  %2942 = vmatprep.subr.mxu0 0.0
  %2943 = vmatpush1.msra.mxu0 0.0
  %2944 = vmatprep.subr.mxu0 0.0
  %2945 = vmatpush1.msra.mxu0 0.0
  %2946 = vmatprep.subr.mxu0 0.0
  %2947 = vmatpush1.msra.mxu0 0.0
  %2948 = vmatprep.subr.mxu0 0.0
  %2949 = vmatpush1.msra.mxu0 0.0
  %2950 = vmatprep.subr.mxu0 0.0
  %2951 = vmatpush1.msra.mxu0 0.0
  %2952 = vmatprep.subr.mxu0 0.0
  %2953 = vmatpush1.msra.mxu0 0.0
  %2954 = vmatprep.subr.mxu0 0.0
  %2955 = vmatpush1.msra.mxu0 0.0
  %2956 = vmatprep.subr.mxu0 0.0
  %2957 = vmatpush1.msra.mxu0 0.0
  %2958 = vmatprep.subr.mxu0 0.0
  %2959 = vmatpush1.msra.mxu0 0.0
  %2960 = vmatprep.subr.mxu0 0.0
  %2961 = vmatpush1.msra.mxu0 0.0
  %2962 = vmatprep.subr.mxu0 0.0
  %2963 = vmatpush1.msra.mxu0 0.0
  %2964 = vmatprep.subr.mxu0 0.0
  %2965 = vmatpush1.msra.mxu0 0.0
  %2966 = vmatprep.subr.mxu0 0.0
  %2967 = vmatpush1.msra.mxu0 0.0
  %2968 = vmatprep.subr.mxu0 0.0
  %2969 = vmatpush1.msra.mxu0 %v1885
  %2970 = vmatprep.subr.mxu0 0.0
  %2971 = vmatpush1.msra.mxu0 %v1884
  %2972 = vmatprep.subr.mxu0 0.0
  %2973 = vmatpush2.msra.mxu0 0.0
  %2974 = vmatprep.subr.mxu0 0.0
  %2975 = vmatpush2.msra.mxu0 0.0
  %2976 = vmatprep.subr.mxu0 0.0
  %2977 = vmatpush2.msra.mxu0 0.0
  %2978 = vmatprep.subr.mxu0 0.0
  %2979 = vmatpush2.msra.mxu0 0.0
  %2980 = vmatprep.subr.mxu0 0.0
  %2981 = vmatpush2.msra.mxu0 0.0
  %2982 = vmatprep.subr.mxu0 0.0
  %2983 = vmatpush2.msra.mxu0 0.0
  %2984 = vmatprep.subr.mxu0 0.0
  %2985 = vmatpush2.msra.mxu0 0.0
  %2986 = vmatprep.subr.mxu0 0.0
  %2987 = vmatpush2.msra.mxu0 0.0
  %2988 = vmatprep.subr.mxu0 0.0
  %2989 = vmatpush2.msra.mxu0 0.0
  %2990 = vmatprep.subr.mxu0 0.0
  %2991 = vmatpush2.msra.mxu0 0.0
  %2992 = vmatprep.subr.mxu0 0.0
  %2993 = vmatpush2.msra.mxu0 0.0
  %2994 = vmatprep.subr.mxu0 0.0
  %2995 = vmatpush2.msra.mxu0 0.0
  %2996 = vmatprep.subr.mxu0 0.0
  %2997 = vmatpush2.msra.mxu0 0.0
  %2998 = vmatprep.subr.mxu0 0.0
  %2999 = vmatpush2.msra.mxu0 0.0
  %3000 = vmatprep.subr.mxu0 0.0
  %3001 = vmatpush2.msra.mxu0 0.0
  %3002 = vmatprep.subr.mxu0 0.0
  %3003 = vmatpush2.msra.mxu0 0.0
  %3004 = vmatprep.mubr.f32.mxu0 0.0
  %3005 = vmatmul.mubr.f32.gmra.mxu0 %v2938
  %v3006 = vpop.f32.mrf.mxu0
  %v3007 = vadd.f32 0.0, %v3006
  %v3008 = vpop.f32.mrf.mxu0
  %3009 = vdwg.mxu0
  %3010 = vrot.lane.b32.xlu0 %v2934, 80
  %v3011 = vpop.permute.xlu0 %3010
  %v3012 = vsel %vm233, %v3011, 0
  %3014 = vmatprep.subr.mxu0 0.0
  %3015 = vmatpush1.msra.mxu0 0.0
  %3016 = vmatprep.subr.mxu0 0.0
  %3017 = vmatpush1.msra.mxu0 0.0
  %3018 = vmatprep.subr.mxu0 0.0
  %3019 = vmatpush1.msra.mxu0 0.0
  %3020 = vmatprep.subr.mxu0 0.0
  %3021 = vmatpush1.msra.mxu0 0.0
  %3022 = vmatprep.subr.mxu0 0.0
  %3023 = vmatpush1.msra.mxu0 0.0
  %3024 = vmatprep.subr.mxu0 0.0
  %3025 = vmatpush1.msra.mxu0 0.0
  %3026 = vmatprep.subr.mxu0 0.0
  %3027 = vmatpush1.msra.mxu0 0.0
  %3028 = vmatprep.subr.mxu0 0.0
  %3029 = vmatpush1.msra.mxu0 0.0
  %3030 = vmatprep.subr.mxu0 0.0
  %3031 = vmatpush1.msra.mxu0 0.0
  %3032 = vmatprep.subr.mxu0 0.0
  %3033 = vmatpush1.msra.mxu0 0.0
  %3034 = vmatprep.subr.mxu0 0.0
  %3035 = vmatpush1.msra.mxu0 0.0
  %3036 = vmatprep.subr.mxu0 0.0
  %3037 = vmatpush1.msra.mxu0 0.0
  %3038 = vmatprep.subr.mxu0 0.0
  %3039 = vmatpush1.msra.mxu0 0.0
  %3040 = vmatprep.subr.mxu0 0.0
  %3041 = vmatpush1.msra.mxu0 0.0
  %3042 = vmatprep.subr.mxu0 0.0
  %3043 = vmatpush1.msra.mxu0 %v1883
  %3044 = vmatprep.subr.mxu0 0.0
  %3045 = vmatpush1.msra.mxu0 %v1882
  %3046 = vmatprep.subr.mxu0 0.0
  %3047 = vmatpush2.msra.mxu0 0.0
  %3048 = vmatprep.subr.mxu0 0.0
  %3049 = vmatpush2.msra.mxu0 0.0
  %3050 = vmatprep.subr.mxu0 0.0
  %3051 = vmatpush2.msra.mxu0 0.0
  %3052 = vmatprep.subr.mxu0 0.0
  %3053 = vmatpush2.msra.mxu0 0.0
  %3054 = vmatprep.subr.mxu0 0.0
  %3055 = vmatpush2.msra.mxu0 0.0
  %3056 = vmatprep.subr.mxu0 0.0
  %3057 = vmatpush2.msra.mxu0 0.0
  %3058 = vmatprep.subr.mxu0 0.0
  %3059 = vmatpush2.msra.mxu0 0.0
  %3060 = vmatprep.subr.mxu0 0.0
  %3061 = vmatpush2.msra.mxu0 0.0
  %3062 = vmatprep.subr.mxu0 0.0
  %3063 = vmatpush2.msra.mxu0 0.0
  %3064 = vmatprep.subr.mxu0 0.0
  %3065 = vmatpush2.msra.mxu0 0.0
  %3066 = vmatprep.subr.mxu0 0.0
  %3067 = vmatpush2.msra.mxu0 0.0
  %3068 = vmatprep.subr.mxu0 0.0
  %3069 = vmatpush2.msra.mxu0 0.0
  %3070 = vmatprep.subr.mxu0 0.0
  %3071 = vmatpush2.msra.mxu0 0.0
  %3072 = vmatprep.subr.mxu0 0.0
  %3073 = vmatpush2.msra.mxu0 0.0
  %3074 = vmatprep.subr.mxu0 0.0
  %3075 = vmatpush2.msra.mxu0 0.0
  %3076 = vmatprep.subr.mxu0 0.0
  %3077 = vmatpush2.msra.mxu0 0.0
  %3078 = vmatprep.mubr.f32.mxu0 0.0
  %3079 = vmatmul.mubr.f32.gmra.mxu0 %v3012
  %v3080 = vpop.f32.mrf.mxu0
  %v3081 = vadd.f32 %v3007, %v3080
  %v3082 = vpop.f32.mrf.mxu0
  %3083 = vdwg.mxu0
  %v3084 = vsel %vm232, %v2204, %v2203
  %v3085 = vadd.f32 %v3081, %v3084
  %v3086 = vxor.u32 %v3085, 2147483648
  %v3087 = vmul.f32 %v3086, 1.442695
  %v3088 = vpow.pop %v3087
  %v3089 = vadd.f32 %v3088, 1.0
  %v3090 = vrcp.pop %v3089
  %v3091 = vmul.f32 1.0, %v3090
  %v3092 = vtanh.pop %v3085
  %v3093 = vmul.f32 %v3091, %v2928
  %3095 = vrot.lane.b32.xlu0 %v3092, 96
  %v3096 = vpop.permute.xlu0 %3095
  %v3098 = vmul.f32 %v3091, %v3096
  %3100 = vrot.lane.b32.xlu0 %v3098, 16
  %v3101 = vpop.permute.xlu0 %3100
  %v3103 = vadd.f32 %v3093, %v3101
  %v3104 = vtanh.pop %v3103
  %3106 = vrot.lane.b32.xlu0 %v3104, 32
  %v3107 = vpop.permute.xlu0 %3106
  %v3109 = vmul.f32 %v3091, %v3107
  %3111 = vrot.lane.b32.xlu0 %v3109, 16
  %v3112 = vpop.permute.xlu0 %3111
  %v3113 = vsel %vm233, %v3112, 0
  %3115 = vmatprep.subr.mxu0 0.0
  %3116 = vmatpush1.msra.mxu0 0.0
  %3117 = vmatprep.subr.mxu0 0.0
  %3118 = vmatpush1.msra.mxu0 0.0
  %3119 = vmatprep.subr.mxu0 0.0
  %3120 = vmatpush1.msra.mxu0 0.0
  %3121 = vmatprep.subr.mxu0 0.0
  %3122 = vmatpush1.msra.mxu0 0.0
  %3123 = vmatprep.subr.mxu0 0.0
  %3124 = vmatpush1.msra.mxu0 0.0
  %3125 = vmatprep.subr.mxu0 0.0
  %3126 = vmatpush1.msra.mxu0 0.0
  %3127 = vmatprep.subr.mxu0 0.0
  %3128 = vmatpush1.msra.mxu0 0.0
  %3129 = vmatprep.subr.mxu0 0.0
  %3130 = vmatpush1.msra.mxu0 0.0
  %3131 = vmatprep.subr.mxu0 0.0
  %3132 = vmatpush1.msra.mxu0 0.0
  %3133 = vmatprep.subr.mxu0 0.0
  %3134 = vmatpush1.msra.mxu0 0.0
  %3135 = vmatprep.subr.mxu0 0.0
  %3136 = vmatpush1.msra.mxu0 0.0
  %3137 = vmatprep.subr.mxu0 0.0
  %3138 = vmatpush1.msra.mxu0 0.0
  %3139 = vmatprep.subr.mxu0 0.0
  %3140 = vmatpush1.msra.mxu0 0.0
  %3141 = vmatprep.subr.mxu0 0.0
  %3142 = vmatpush1.msra.mxu0 0.0
  %3143 = vmatprep.subr.mxu0 0.0
  %3144 = vmatpush1.msra.mxu0 %v1885
  %3145 = vmatprep.subr.mxu0 0.0
  %3146 = vmatpush1.msra.mxu0 %v1884
  %3147 = vmatprep.subr.mxu0 0.0
  %3148 = vmatpush2.msra.mxu0 0.0
  %3149 = vmatprep.subr.mxu0 0.0
  %3150 = vmatpush2.msra.mxu0 0.0
  %3151 = vmatprep.subr.mxu0 0.0
  %3152 = vmatpush2.msra.mxu0 0.0
  %3153 = vmatprep.subr.mxu0 0.0
  %3154 = vmatpush2.msra.mxu0 0.0
  %3155 = vmatprep.subr.mxu0 0.0
  %3156 = vmatpush2.msra.mxu0 0.0
  %3157 = vmatprep.subr.mxu0 0.0
  %3158 = vmatpush2.msra.mxu0 0.0
  %3159 = vmatprep.subr.mxu0 0.0
  %3160 = vmatpush2.msra.mxu0 0.0
  %3161 = vmatprep.subr.mxu0 0.0
  %3162 = vmatpush2.msra.mxu0 0.0
  %3163 = vmatprep.subr.mxu0 0.0
  %3164 = vmatpush2.msra.mxu0 0.0
  %3165 = vmatprep.subr.mxu0 0.0
  %3166 = vmatpush2.msra.mxu0 0.0
  %3167 = vmatprep.subr.mxu0 0.0
  %3168 = vmatpush2.msra.mxu0 0.0
  %3169 = vmatprep.subr.mxu0 0.0
  %3170 = vmatpush2.msra.mxu0 0.0
  %3171 = vmatprep.subr.mxu0 0.0
  %3172 = vmatpush2.msra.mxu0 0.0
  %3173 = vmatprep.subr.mxu0 0.0
  %3174 = vmatpush2.msra.mxu0 0.0
  %3175 = vmatprep.subr.mxu0 0.0
  %3176 = vmatpush2.msra.mxu0 0.0
  %3177 = vmatprep.subr.mxu0 0.0
  %3178 = vmatpush2.msra.mxu0 0.0
  %3179 = vmatprep.mubr.f32.mxu0 0.0
  %3180 = vmatmul.mubr.f32.gmra.mxu0 %v3113
  %v3181 = vpop.f32.mrf.mxu0
  %v3182 = vadd.f32 0.0, %v3181
  %v3183 = vpop.f32.mrf.mxu0
  %3184 = vdwg.mxu0
  %3185 = vrot.lane.b32.xlu0 %v3109, 80
  %v3186 = vpop.permute.xlu0 %3185
  %v3187 = vsel %vm233, %v3186, 0
  %3189 = vmatprep.subr.mxu0 0.0
  %3190 = vmatpush1.msra.mxu0 0.0
  %3191 = vmatprep.subr.mxu0 0.0
  %3192 = vmatpush1.msra.mxu0 0.0
  %3193 = vmatprep.subr.mxu0 0.0
  %3194 = vmatpush1.msra.mxu0 0.0
  %3195 = vmatprep.subr.mxu0 0.0
  %3196 = vmatpush1.msra.mxu0 0.0
  %3197 = vmatprep.subr.mxu0 0.0
  %3198 = vmatpush1.msra.mxu0 0.0
  %3199 = vmatprep.subr.mxu0 0.0
  %3200 = vmatpush1.msra.mxu0 0.0
  %3201 = vmatprep.subr.mxu0 0.0
  %3202 = vmatpush1.msra.mxu0 0.0
  %3203 = vmatprep.subr.mxu0 0.0
  %3204 = vmatpush1.msra.mxu0 0.0
  %3205 = vmatprep.subr.mxu0 0.0
  %3206 = vmatpush1.msra.mxu0 0.0
  %3207 = vmatprep.subr.mxu0 0.0
  %3208 = vmatpush1.msra.mxu0 0.0
  %3209 = vmatprep.subr.mxu0 0.0
  %3210 = vmatpush1.msra.mxu0 0.0
  %3211 = vmatprep.subr.mxu0 0.0
  %3212 = vmatpush1.msra.mxu0 0.0
  %3213 = vmatprep.subr.mxu0 0.0
  %3214 = vmatpush1.msra.mxu0 0.0
  %3215 = vmatprep.subr.mxu0 0.0
  %3216 = vmatpush1.msra.mxu0 0.0
  %3217 = vmatprep.subr.mxu0 0.0
  %3218 = vmatpush1.msra.mxu0 %v1883
  %3219 = vmatprep.subr.mxu0 0.0
  %3220 = vmatpush1.msra.mxu0 %v1882
  %3221 = vmatprep.subr.mxu0 0.0
  %3222 = vmatpush2.msra.mxu0 0.0
  %3223 = vmatprep.subr.mxu0 0.0
  %3224 = vmatpush2.msra.mxu0 0.0
  %3225 = vmatprep.subr.mxu0 0.0
  %3226 = vmatpush2.msra.mxu0 0.0
  %3227 = vmatprep.subr.mxu0 0.0
  %3228 = vmatpush2.msra.mxu0 0.0
  %3229 = vmatprep.subr.mxu0 0.0
  %3230 = vmatpush2.msra.mxu0 0.0
  %3231 = vmatprep.subr.mxu0 0.0
  %3232 = vmatpush2.msra.mxu0 0.0
  %3233 = vmatprep.subr.mxu0 0.0
  %3234 = vmatpush2.msra.mxu0 0.0
  %3235 = vmatprep.subr.mxu0 0.0
  %3236 = vmatpush2.msra.mxu0 0.0
  %3237 = vmatprep.subr.mxu0 0.0
  %3238 = vmatpush2.msra.mxu0 0.0
  %3239 = vmatprep.subr.mxu0 0.0
  %3240 = vmatpush2.msra.mxu0 0.0
  %3241 = vmatprep.subr.mxu0 0.0
  %3242 = vmatpush2.msra.mxu0 0.0
  %3243 = vmatprep.subr.mxu0 0.0
  %3244 = vmatpush2.msra.mxu0 0.0
  %3245 = vmatprep.subr.mxu0 0.0
  %3246 = vmatpush2.msra.mxu0 0.0
  %3247 = vmatprep.subr.mxu0 0.0
  %3248 = vmatpush2.msra.mxu0 0.0
  %3249 = vmatprep.subr.mxu0 0.0
  %3250 = vmatpush2.msra.mxu0 0.0
  %3251 = vmatprep.subr.mxu0 0.0
  %3252 = vmatpush2.msra.mxu0 0.0
  %3253 = vmatprep.mubr.f32.mxu0 0.0
  %3254 = vmatmul.mubr.f32.gmra.mxu0 %v3187
  %v3255 = vpop.f32.mrf.mxu0
  %v3256 = vadd.f32 %v3182, %v3255
  %v3257 = vpop.f32.mrf.mxu0
  %3258 = vdwg.mxu0
  %v3259 = vsel %vm232, %v2027, %v2026
  %v3260 = vadd.f32 %v3256, %v3259
  %v3261 = vxor.u32 %v3260, 2147483648
  %v3262 = vmul.f32 %v3261, 1.442695
  %v3263 = vpow.pop %v3262
  %v3264 = vadd.f32 %v3263, 1.0
  %v3265 = vrcp.pop %v3264
  %v3266 = vmul.f32 1.0, %v3265
  %v3267 = vtanh.pop %v3260
  %v3268 = vmul.f32 %v3266, %v3103
  %3270 = vrot.lane.b32.xlu0 %v3267, 96
  %v3271 = vpop.permute.xlu0 %3270
  %v3273 = vmul.f32 %v3266, %v3271
  %3275 = vrot.lane.b32.xlu0 %v3273, 16
  %v3276 = vpop.permute.xlu0 %3275
  %v3278 = vadd.f32 %v3268, %v3276
  %v3279 = vtanh.pop %v3278
  %3281 = vrot.lane.b32.xlu0 %v3279, 32
  %v3282 = vpop.permute.xlu0 %3281
  %v3284 = vmul.f32 %v3266, %v3282
  %v3285 = vld [vmem:[%s7] sm:$0xff]
  %v3286 = vld [vmem:[%s7 + $0x8] sm:$0xff]
  %v3287 = vld [vmem:[%s7 + $0x10] sm:$0xff]
  %v3288 = vld [vmem:[%s7 + $0x18] sm:$0xff]
  %3290 = vrot.lane.b32.xlu0 %v3284, 16
  %v3291 = vpop.permute.xlu0 %3290
  %v3292 = vsel %vm233, %v3291, 0
  %3294 = vmatprep.subr.mxu0 0.0
  %3295 = vmatpush1.msra.mxu0 0.0
  %3296 = vmatprep.subr.mxu0 0.0
  %3297 = vmatpush1.msra.mxu0 0.0
  %3298 = vmatprep.subr.mxu0 0.0
  %3299 = vmatpush1.msra.mxu0 0.0
  %3300 = vmatprep.subr.mxu0 0.0
  %3301 = vmatpush1.msra.mxu0 0.0
  %3302 = vmatprep.subr.mxu0 0.0
  %3303 = vmatpush1.msra.mxu0 0.0
  %3304 = vmatprep.subr.mxu0 0.0
  %3305 = vmatpush1.msra.mxu0 0.0
  %3306 = vmatprep.subr.mxu0 0.0
  %3307 = vmatpush1.msra.mxu0 0.0
  %3308 = vmatprep.subr.mxu0 0.0
  %3309 = vmatpush1.msra.mxu0 0.0
  %3310 = vmatprep.subr.mxu0 0.0
  %3311 = vmatpush1.msra.mxu0 0.0
  %3312 = vmatprep.subr.mxu0 0.0
  %3313 = vmatpush1.msra.mxu0 0.0
  %3314 = vmatprep.subr.mxu0 0.0
  %3315 = vmatpush1.msra.mxu0 0.0
  %3316 = vmatprep.subr.mxu0 0.0
  %3317 = vmatpush1.msra.mxu0 0.0
  %3318 = vmatprep.subr.mxu0 0.0
  %3319 = vmatpush1.msra.mxu0 0.0
  %3320 = vmatprep.subr.mxu0 0.0
  %3321 = vmatpush1.msra.mxu0 0.0
  %3322 = vmatprep.subr.mxu0 0.0
  %3323 = vmatpush1.msra.mxu0 %v3288
  %3324 = vmatprep.subr.mxu0 0.0
  %3325 = vmatpush1.msra.mxu0 %v3287
  %3326 = vmatprep.subr.mxu0 0.0
  %3327 = vmatpush2.msra.mxu0 0.0
  %3328 = vmatprep.subr.mxu0 0.0
  %3329 = vmatpush2.msra.mxu0 0.0
  %3330 = vmatprep.subr.mxu0 0.0
  %3331 = vmatpush2.msra.mxu0 0.0
  %3332 = vmatprep.subr.mxu0 0.0
  %3333 = vmatpush2.msra.mxu0 0.0
  %3334 = vmatprep.subr.mxu0 0.0
  %3335 = vmatpush2.msra.mxu0 0.0
  %3336 = vmatprep.subr.mxu0 0.0
  %3337 = vmatpush2.msra.mxu0 0.0
  %3338 = vmatprep.subr.mxu0 0.0
  %3339 = vmatpush2.msra.mxu0 0.0
  %3340 = vmatprep.subr.mxu0 0.0
  %3341 = vmatpush2.msra.mxu0 0.0
  %3342 = vmatprep.subr.mxu0 0.0
  %3343 = vmatpush2.msra.mxu0 0.0
  %3344 = vmatprep.subr.mxu0 0.0
  %3345 = vmatpush2.msra.mxu0 0.0
  %3346 = vmatprep.subr.mxu0 0.0
  %3347 = vmatpush2.msra.mxu0 0.0
  %3348 = vmatprep.subr.mxu0 0.0
  %3349 = vmatpush2.msra.mxu0 0.0
  %3350 = vmatprep.subr.mxu0 0.0
  %3351 = vmatpush2.msra.mxu0 0.0
  %3352 = vmatprep.subr.mxu0 0.0
  %3353 = vmatpush2.msra.mxu0 0.0
  %3354 = vmatprep.subr.mxu0 0.0
  %3355 = vmatpush2.msra.mxu0 0.0
  %3356 = vmatprep.subr.mxu0 0.0
  %3357 = vmatpush2.msra.mxu0 0.0
  %3358 = vmatprep.mubr.f32.mxu0 0.0
  %3359 = vmatmul.mubr.f32.gmra.mxu0 %v3292
  %v3360 = vpop.f32.mrf.mxu0
  %v3361 = vadd.f32 0.0, %v3360
  %v3362 = vpop.f32.mrf.mxu0
  %3363 = vmatprep.mubr.f32.mxu0 0.0
  %3364 = vmatmul.mubr.f32.gmra.mxu0 %v3113
  %v3365 = vpop.f32.mrf.mxu0
  %v3366 = vadd.f32 0.0, %v3365
  %v3367 = vpop.f32.mrf.mxu0
  %3368 = vmatprep.mubr.f32.mxu0 0.0
  %3369 = vmatmul.mubr.f32.gmra.mxu0 %v2938
  %v3370 = vpop.f32.mrf.mxu0
  %v3371 = vadd.f32 0.0, %v3370
  %v3372 = vpop.f32.mrf.mxu0
  %3373 = vmatprep.mubr.f32.mxu0 0.0
  %3374 = vmatmul.mubr.f32.gmra.mxu0 %v2763
  %v3375 = vpop.f32.mrf.mxu0
  %v3376 = vadd.f32 0.0, %v3375
  %v3377 = vpop.f32.mrf.mxu0
  %3378 = vmatprep.mubr.f32.mxu0 0.0
  %3379 = vmatmul.mubr.f32.gmra.mxu0 %v2588
  %v3380 = vpop.f32.mrf.mxu0
  %v3381 = vadd.f32 0.0, %v3380
  %v3382 = vpop.f32.mrf.mxu0
  %3383 = vmatprep.mubr.f32.mxu0 0.0
  %3384 = vmatmul.mubr.f32.gmra.mxu0 %v2411
  %v3385 = vpop.f32.mrf.mxu0
  %v3386 = vadd.f32 0.0, %v3385
  %v3387 = vpop.f32.mrf.mxu0
  %3388 = vmatprep.mubr.f32.mxu0 0.0
  %3389 = vmatmul.mubr.f32.gmra.mxu0 %v2234
  %v3390 = vpop.f32.mrf.mxu0
  %v3391 = vadd.f32 0.0, %v3390
  %v3392 = vpop.f32.mrf.mxu0
  %3393 = vmatprep.mubr.f32.mxu0 0.0
  %3394 = vmatmul.mubr.f32.gmra.mxu0 %v2057
  %v3395 = vpop.f32.mrf.mxu0
  %v3396 = vadd.f32 0.0, %v3395
  %v3397 = vpop.f32.mrf.mxu0
  %3398 = vdwg.mxu0
  %3399 = vrot.lane.b32.xlu0 %v3284, 80
  %v3400 = vpop.permute.xlu0 %3399
  %v3401 = vsel %vm233, %v3400, 0
  %3403 = vmatprep.subr.mxu0 0.0
  %3404 = vmatpush1.msra.mxu0 0.0
  %3405 = vmatprep.subr.mxu0 0.0
  %3406 = vmatpush1.msra.mxu0 0.0
  %3407 = vmatprep.subr.mxu0 0.0
  %3408 = vmatpush1.msra.mxu0 0.0
  %3409 = vmatprep.subr.mxu0 0.0
  %3410 = vmatpush1.msra.mxu0 0.0
  %3411 = vmatprep.subr.mxu0 0.0
  %3412 = vmatpush1.msra.mxu0 0.0
  %3413 = vmatprep.subr.mxu0 0.0
  %3414 = vmatpush1.msra.mxu0 0.0
  %3415 = vmatprep.subr.mxu0 0.0
  %3416 = vmatpush1.msra.mxu0 0.0
  %3417 = vmatprep.subr.mxu0 0.0
  %3418 = vmatpush1.msra.mxu0 0.0
  %3419 = vmatprep.subr.mxu0 0.0
  %3420 = vmatpush1.msra.mxu0 0.0
  %3421 = vmatprep.subr.mxu0 0.0
  %3422 = vmatpush1.msra.mxu0 0.0
  %3423 = vmatprep.subr.mxu0 0.0
  %3424 = vmatpush1.msra.mxu0 0.0
  %3425 = vmatprep.subr.mxu0 0.0
  %3426 = vmatpush1.msra.mxu0 0.0
  %3427 = vmatprep.subr.mxu0 0.0
  %3428 = vmatpush1.msra.mxu0 0.0
  %3429 = vmatprep.subr.mxu0 0.0
  %3430 = vmatpush1.msra.mxu0 0.0
  %3431 = vmatprep.subr.mxu0 0.0
  %3432 = vmatpush1.msra.mxu0 %v3286
  %3433 = vmatprep.subr.mxu0 0.0
  %3434 = vmatpush1.msra.mxu0 %v3285
  %3435 = vmatprep.subr.mxu0 0.0
  %3436 = vmatpush2.msra.mxu0 0.0
  %3437 = vmatprep.subr.mxu0 0.0
  %3438 = vmatpush2.msra.mxu0 0.0
  %3439 = vmatprep.subr.mxu0 0.0
  %3440 = vmatpush2.msra.mxu0 0.0
  %3441 = vmatprep.subr.mxu0 0.0
  %3442 = vmatpush2.msra.mxu0 0.0
  %3443 = vmatprep.subr.mxu0 0.0
  %3444 = vmatpush2.msra.mxu0 0.0
  %3445 = vmatprep.subr.mxu0 0.0
  %3446 = vmatpush2.msra.mxu0 0.0
  %3447 = vmatprep.subr.mxu0 0.0
  %3448 = vmatpush2.msra.mxu0 0.0
  %3449 = vmatprep.subr.mxu0 0.0
  %3450 = vmatpush2.msra.mxu0 0.0
  %3451 = vmatprep.subr.mxu0 0.0
  %3452 = vmatpush2.msra.mxu0 0.0
  %3453 = vmatprep.subr.mxu0 0.0
  %3454 = vmatpush2.msra.mxu0 0.0
  %3455 = vmatprep.subr.mxu0 0.0
  %3456 = vmatpush2.msra.mxu0 0.0
  %3457 = vmatprep.subr.mxu0 0.0
  %3458 = vmatpush2.msra.mxu0 0.0
  %3459 = vmatprep.subr.mxu0 0.0
  %3460 = vmatpush2.msra.mxu0 0.0
  %3461 = vmatprep.subr.mxu0 0.0
  %3462 = vmatpush2.msra.mxu0 0.0
  %3463 = vmatprep.subr.mxu0 0.0
  %3464 = vmatpush2.msra.mxu0 0.0
  %3465 = vmatprep.subr.mxu0 0.0
  %3466 = vmatpush2.msra.mxu0 0.0
  %3467 = vmatprep.mubr.f32.mxu0 0.0
  %3468 = vmatmul.mubr.f32.gmra.mxu0 %v2131
  %v3469 = vpop.f32.mrf.mxu0
  %v3470 = vadd.f32 %v3361, %v3469
  %v3471 = vpop.f32.mrf.mxu0
  %3472 = vmatprep.mubr.f32.mxu0 0.0
  %3473 = vmatmul.mubr.f32.gmra.mxu0 %v2308
  %v3474 = vpop.f32.mrf.mxu0
  %v3475 = vadd.f32 %v3366, %v3474
  %v3476 = vpop.f32.mrf.mxu0
  %3477 = vmatprep.mubr.f32.mxu0 0.0
  %3478 = vmatmul.mubr.f32.gmra.mxu0 %v2485
  %v3479 = vpop.f32.mrf.mxu0
  %v3480 = vadd.f32 %v3371, %v3479
  %v3481 = vpop.f32.mrf.mxu0
  %3482 = vmatprep.mubr.f32.mxu0 0.0
  %3483 = vmatmul.mubr.f32.gmra.mxu0 %v2662
  %v3484 = vpop.f32.mrf.mxu0
  %v3485 = vadd.f32 %v3376, %v3484
  %v3486 = vpop.f32.mrf.mxu0
  %3487 = vmatprep.mubr.f32.mxu0 0.0
  %3488 = vmatmul.mubr.f32.gmra.mxu0 %v2837
  %v3489 = vpop.f32.mrf.mxu0
  %v3490 = vadd.f32 %v3381, %v3489
  %v3491 = vpop.f32.mrf.mxu0
  %3492 = vmatprep.mubr.f32.mxu0 0.0
  %3493 = vmatmul.mubr.f32.gmra.mxu0 %v3012
  %v3494 = vpop.f32.mrf.mxu0
  %v3495 = vadd.f32 %v3386, %v3494
  %v3496 = vpop.f32.mrf.mxu0
  %3497 = vmatprep.mubr.f32.mxu0 0.0
  %3498 = vmatmul.mubr.f32.gmra.mxu0 %v3187
  %v3499 = vpop.f32.mrf.mxu0
  %v3500 = vadd.f32 %v3391, %v3499
  %v3501 = vpop.f32.mrf.mxu0
  %3502 = vmatprep.mubr.f32.mxu0 0.0
  %3503 = vmatmul.mubr.f32.gmra.mxu0 %v3401
  %v3504 = vpop.f32.mrf.mxu0
  %v3505 = vadd.f32 %v3396, %v3504
  %v3506 = vpop.f32.mrf.mxu0
  %3507 = vdwg.mxu0
  %v3508 = vld [vmem:[%s8] sm:$0x1]
  %v3510 = vlaneseq
  %v3511 = vshrl.u32 %v3510, 7
  %v3512 = vsub.s32 0, %v3511
  %v3513 = vrot.slane %v3508, %v3512
  %v3515 = vadd.f32 %v3470, %v3513
  %v3516 = vadd.f32 %v3475, %v3513
  %v3517 = vadd.f32 %v3480, %v3513
  %v3518 = vadd.f32 %v3485, %v3513
  %v3519 = vadd.f32 %v3490, %v3513
  %v3520 = vadd.f32 %v3495, %v3513
  %v3521 = vadd.f32 %v3500, %v3513
  %v3522 = vadd.f32 %v3505, %v3513
  %3523 = vst [vmem:[#allocation4] sm:$0xff] %v3515
  %3524 = vst [vmem:[#allocation4 + $0x8] sm:$0xff] %v3516
  %3525 = vst [vmem:[#allocation4 + $0x10] sm:$0xff] %v3517
  %3526 = vst [vmem:[#allocation4 + $0x18] sm:$0xff] %v3518
  %3527 = vst [vmem:[#allocation4 + $0x20] sm:$0xff] %v3519
  %3528 = vst [vmem:[#allocation4 + $0x28] sm:$0xff] %v3520
  %3529 = vst [vmem:[#allocation4 + $0x30] sm:$0xff] %v3521
  %3530 = vst [vmem:[#allocation4 + $0x38] sm:$0xff] %v3522
  %v3531 = vld [vmem:[%s9] sm:$0xff]
  %v3532 = vld [vmem:[%s9 + $0x8] sm:$0xff]
  %v3533 = vld [vmem:[%s9 + $0x10] sm:$0xff]
  %v3534 = vld [vmem:[%s9 + $0x18] sm:$0xff]
  %3535 = vmatprep.subr.mxu0 0.0
  %3536 = vmatpush1.msra.mxu0 0.0
  %3537 = vmatprep.subr.mxu0 0.0
  %3538 = vmatpush1.msra.mxu0 0.0
  %3539 = vmatprep.subr.mxu0 0.0
  %3540 = vmatpush1.msra.mxu0 0.0
  %3541 = vmatprep.subr.mxu0 0.0
  %3542 = vmatpush1.msra.mxu0 0.0
  %3543 = vmatprep.subr.mxu0 0.0
  %3544 = vmatpush1.msra.mxu0 0.0
  %3545 = vmatprep.subr.mxu0 0.0
  %3546 = vmatpush1.msra.mxu0 0.0
  %3547 = vmatprep.subr.mxu0 0.0
  %3548 = vmatpush1.msra.mxu0 0.0
  %3549 = vmatprep.subr.mxu0 0.0
  %3550 = vmatpush1.msra.mxu0 0.0
  %3551 = vmatprep.subr.mxu0 0.0
  %3552 = vmatpush1.msra.mxu0 0.0
  %3553 = vmatprep.subr.mxu0 0.0
  %3554 = vmatpush1.msra.mxu0 0.0
  %3555 = vmatprep.subr.mxu0 0.0
  %3556 = vmatpush1.msra.mxu0 0.0
  %3557 = vmatprep.subr.mxu0 0.0
  %3558 = vmatpush1.msra.mxu0 0.0
  %3559 = vmatprep.subr.mxu0 0.0
  %3560 = vmatpush1.msra.mxu0 0.0
  %3561 = vmatprep.subr.mxu0 0.0
  %3562 = vmatpush1.msra.mxu0 0.0
  %3563 = vmatprep.subr.mxu0 0.0
  %3564 = vmatpush1.msra.mxu0 %v3534
  %3565 = vmatprep.subr.mxu0 0.0
  %3566 = vmatpush1.msra.mxu0 %v3533
  %3567 = vmatprep.subr.mxu0 0.0
  %3568 = vmatpush2.msra.mxu0 0.0
  %3569 = vmatprep.subr.mxu0 0.0
  %3570 = vmatpush2.msra.mxu0 0.0
  %3571 = vmatprep.subr.mxu0 0.0
  %3572 = vmatpush2.msra.mxu0 0.0
  %3573 = vmatprep.subr.mxu0 0.0
  %3574 = vmatpush2.msra.mxu0 0.0
  %3575 = vmatprep.subr.mxu0 0.0
  %3576 = vmatpush2.msra.mxu0 0.0
  %3577 = vmatprep.subr.mxu0 0.0
  %3578 = vmatpush2.msra.mxu0 0.0
  %3579 = vmatprep.subr.mxu0 0.0
  %3580 = vmatpush2.msra.mxu0 0.0
  %3581 = vmatprep.subr.mxu0 0.0
  %3582 = vmatpush2.msra.mxu0 0.0
  %3583 = vmatprep.subr.mxu0 0.0
  %3584 = vmatpush2.msra.mxu0 0.0
  %3585 = vmatprep.subr.mxu0 0.0
  %3586 = vmatpush2.msra.mxu0 0.0
  %3587 = vmatprep.subr.mxu0 0.0
  %3588 = vmatpush2.msra.mxu0 0.0
  %3589 = vmatprep.subr.mxu0 0.0
  %3590 = vmatpush2.msra.mxu0 0.0
  %3591 = vmatprep.subr.mxu0 0.0
  %3592 = vmatpush2.msra.mxu0 0.0
  %3593 = vmatprep.subr.mxu0 0.0
  %3594 = vmatpush2.msra.mxu0 0.0
  %3595 = vmatprep.subr.mxu0 0.0
  %3596 = vmatpush2.msra.mxu0 0.0
  %3597 = vmatprep.subr.mxu0 0.0
  %3598 = vmatpush2.msra.mxu0 0.0
  %3599 = vmatprep.mubr.f32.mxu0 0.0
  %3600 = vmatmul.mubr.f32.gmra.mxu0 %v235
  %v3601 = vpop.f32.mrf.mxu0
  %v3602 = vadd.f32 0.0, %v3601
  %v3603 = vpop.f32.mrf.mxu0
  %3604 = vdwg.mxu0
  %3605 = vmatprep.subr.mxu0 0.0
  %3606 = vmatpush1.msra.mxu0 0.0
  %3607 = vmatprep.subr.mxu0 0.0
  %3608 = vmatpush1.msra.mxu0 0.0
  %3609 = vmatprep.subr.mxu0 0.0
  %3610 = vmatpush1.msra.mxu0 0.0
  %3611 = vmatprep.subr.mxu0 0.0
  %3612 = vmatpush1.msra.mxu0 0.0
  %3613 = vmatprep.subr.mxu0 0.0
  %3614 = vmatpush1.msra.mxu0 0.0
  %3615 = vmatprep.subr.mxu0 0.0
  %3616 = vmatpush1.msra.mxu0 0.0
  %3617 = vmatprep.subr.mxu0 0.0
  %3618 = vmatpush1.msra.mxu0 0.0
  %3619 = vmatprep.subr.mxu0 0.0
  %3620 = vmatpush1.msra.mxu0 0.0
  %3621 = vmatprep.subr.mxu0 0.0
  %3622 = vmatpush1.msra.mxu0 0.0
  %3623 = vmatprep.subr.mxu0 0.0
  %3624 = vmatpush1.msra.mxu0 0.0
  %3625 = vmatprep.subr.mxu0 0.0
  %3626 = vmatpush1.msra.mxu0 0.0
  %3627 = vmatprep.subr.mxu0 0.0
  %3628 = vmatpush1.msra.mxu0 0.0
  %3629 = vmatprep.subr.mxu0 0.0
  %3630 = vmatpush1.msra.mxu0 0.0
  %3631 = vmatprep.subr.mxu0 0.0
  %3632 = vmatpush1.msra.mxu0 0.0
  %3633 = vmatprep.subr.mxu0 0.0
  %3634 = vmatpush1.msra.mxu0 %v3532
  %3635 = vmatprep.subr.mxu0 0.0
  %3636 = vmatpush1.msra.mxu0 %v3531
  %3637 = vmatprep.subr.mxu0 0.0
  %3638 = vmatpush2.msra.mxu0 0.0
  %3639 = vmatprep.subr.mxu0 0.0
  %3640 = vmatpush2.msra.mxu0 0.0
  %3641 = vmatprep.subr.mxu0 0.0
  %3642 = vmatpush2.msra.mxu0 0.0
  %3643 = vmatprep.subr.mxu0 0.0
  %3644 = vmatpush2.msra.mxu0 0.0
  %3645 = vmatprep.subr.mxu0 0.0
  %3646 = vmatpush2.msra.mxu0 0.0
  %3647 = vmatprep.subr.mxu0 0.0
  %3648 = vmatpush2.msra.mxu0 0.0
  %3649 = vmatprep.subr.mxu0 0.0
  %3650 = vmatpush2.msra.mxu0 0.0
  %3651 = vmatprep.subr.mxu0 0.0
  %3652 = vmatpush2.msra.mxu0 0.0
  %3653 = vmatprep.subr.mxu0 0.0
  %3654 = vmatpush2.msra.mxu0 0.0
  %3655 = vmatprep.subr.mxu0 0.0
  %3656 = vmatpush2.msra.mxu0 0.0
  %3657 = vmatprep.subr.mxu0 0.0
  %3658 = vmatpush2.msra.mxu0 0.0
  %3659 = vmatprep.subr.mxu0 0.0
  %3660 = vmatpush2.msra.mxu0 0.0
  %3661 = vmatprep.subr.mxu0 0.0
  %3662 = vmatpush2.msra.mxu0 0.0
  %3663 = vmatprep.subr.mxu0 0.0
  %3664 = vmatpush2.msra.mxu0 0.0
  %3665 = vmatprep.subr.mxu0 0.0
  %3666 = vmatpush2.msra.mxu0 0.0
  %3667 = vmatprep.subr.mxu0 0.0
  %3668 = vmatpush2.msra.mxu0 0.0
  %3669 = vmatprep.mubr.f32.mxu0 0.0
  %3670 = vmatmul.mubr.f32.gmra.mxu0 %v235
  %v3671 = vpop.f32.mrf.mxu0
  %v3672 = vadd.f32 %v3602, %v3671
  %v3673 = vpop.f32.mrf.mxu0
  %3674 = vdwg.mxu0
  %v3675 = vld [vmem:[#allocation4] sm:$0xff]
  %v3676 = vld [vmem:[#allocation4 + $0x38] sm:$0xff]
  %v3677 = vsel %vm232, %v3675, %v3676
  %v3678 = vadd.f32 %v3672, %v3677
  %v3679 = vxor.u32 %v3678, 2147483648
  %v3680 = vmul.f32 %v3679, 1.442695
  %v3681 = vpow.pop %v3680
  %v3682 = vadd.f32 %v3681, 1.0
  %v3683 = vrcp.pop %v3682
  %v3684 = vmul.f32 1.0, %v3683
  %v3685 = vtanh.pop %v3678
  %v3686 = vmul.f32 %v3684, 0.0
  %3688 = vrot.lane.b32.xlu0 %v3685, 96
  %v3689 = vpop.permute.xlu0 %3688
  %v3691 = vmul.f32 %v3684, %v3689
  %3693 = vrot.lane.b32.xlu0 %v3691, 16
  %v3694 = vpop.permute.xlu0 %3693
  %v3696 = vadd.f32 %v3686, %v3694
  %v3697 = vtanh.pop %v3696
  %3699 = vrot.lane.b32.xlu0 %v3697, 32
  %v3700 = vpop.permute.xlu0 %3699
  %v3702 = vmul.f32 %v3684, %v3700
  %3704 = vrot.lane.b32.xlu0 %v3702, 16
  %v3705 = vpop.permute.xlu0 %3704
  %v3706 = vsel %vm233, %v3705, 0
  %3708 = vmatprep.subr.mxu0 0.0
  %3709 = vmatpush1.msra.mxu0 0.0
  %3710 = vmatprep.subr.mxu0 0.0
  %3711 = vmatpush1.msra.mxu0 0.0
  %3712 = vmatprep.subr.mxu0 0.0
  %3713 = vmatpush1.msra.mxu0 0.0
  %3714 = vmatprep.subr.mxu0 0.0
  %3715 = vmatpush1.msra.mxu0 0.0
  %3716 = vmatprep.subr.mxu0 0.0
  %3717 = vmatpush1.msra.mxu0 0.0
  %3718 = vmatprep.subr.mxu0 0.0
  %3719 = vmatpush1.msra.mxu0 0.0
  %3720 = vmatprep.subr.mxu0 0.0
  %3721 = vmatpush1.msra.mxu0 0.0
  %3722 = vmatprep.subr.mxu0 0.0
  %3723 = vmatpush1.msra.mxu0 0.0
  %3724 = vmatprep.subr.mxu0 0.0
  %3725 = vmatpush1.msra.mxu0 0.0
  %3726 = vmatprep.subr.mxu0 0.0
  %3727 = vmatpush1.msra.mxu0 0.0
  %3728 = vmatprep.subr.mxu0 0.0
  %3729 = vmatpush1.msra.mxu0 0.0
  %3730 = vmatprep.subr.mxu0 0.0
  %3731 = vmatpush1.msra.mxu0 0.0
  %3732 = vmatprep.subr.mxu0 0.0
  %3733 = vmatpush1.msra.mxu0 0.0
  %3734 = vmatprep.subr.mxu0 0.0
  %3735 = vmatpush1.msra.mxu0 0.0
  %3736 = vmatprep.subr.mxu0 0.0
  %3737 = vmatpush1.msra.mxu0 %v3534
  %3738 = vmatprep.subr.mxu0 0.0
  %3739 = vmatpush1.msra.mxu0 %v3533
  %3740 = vmatprep.subr.mxu0 0.0
  %3741 = vmatpush2.msra.mxu0 0.0
  %3742 = vmatprep.subr.mxu0 0.0
  %3743 = vmatpush2.msra.mxu0 0.0
  %3744 = vmatprep.subr.mxu0 0.0
  %3745 = vmatpush2.msra.mxu0 0.0
  %3746 = vmatprep.subr.mxu0 0.0
  %3747 = vmatpush2.msra.mxu0 0.0
  %3748 = vmatprep.subr.mxu0 0.0
  %3749 = vmatpush2.msra.mxu0 0.0
  %3750 = vmatprep.subr.mxu0 0.0
  %3751 = vmatpush2.msra.mxu0 0.0
  %3752 = vmatprep.subr.mxu0 0.0
  %3753 = vmatpush2.msra.mxu0 0.0
  %3754 = vmatprep.subr.mxu0 0.0
  %3755 = vmatpush2.msra.mxu0 0.0
  %3756 = vmatprep.subr.mxu0 0.0
  %3757 = vmatpush2.msra.mxu0 0.0
  %3758 = vmatprep.subr.mxu0 0.0
  %3759 = vmatpush2.msra.mxu0 0.0
  %3760 = vmatprep.subr.mxu0 0.0
  %3761 = vmatpush2.msra.mxu0 0.0
  %3762 = vmatprep.subr.mxu0 0.0
  %3763 = vmatpush2.msra.mxu0 0.0
  %3764 = vmatprep.subr.mxu0 0.0
  %3765 = vmatpush2.msra.mxu0 0.0
  %3766 = vmatprep.subr.mxu0 0.0
  %3767 = vmatpush2.msra.mxu0 0.0
  %3768 = vmatprep.subr.mxu0 0.0
  %3769 = vmatpush2.msra.mxu0 0.0
  %3770 = vmatprep.subr.mxu0 0.0
  %3771 = vmatpush2.msra.mxu0 0.0
  %3772 = vmatprep.mubr.f32.mxu0 0.0
  %3773 = vmatmul.mubr.f32.gmra.mxu0 %v3706
  %v3774 = vpop.f32.mrf.mxu0
  %v3775 = vadd.f32 0.0, %v3774
  %v3776 = vpop.f32.mrf.mxu0
  %3777 = vdwg.mxu0
  %3778 = vrot.lane.b32.xlu0 %v3702, 80
  %v3779 = vpop.permute.xlu0 %3778
  %v3780 = vsel %vm233, %v3779, 0
  %3782 = vmatprep.subr.mxu0 0.0
  %3783 = vmatpush1.msra.mxu0 0.0
  %3784 = vmatprep.subr.mxu0 0.0
  %3785 = vmatpush1.msra.mxu0 0.0
  %3786 = vmatprep.subr.mxu0 0.0
  %3787 = vmatpush1.msra.mxu0 0.0
  %3788 = vmatprep.subr.mxu0 0.0
  %3789 = vmatpush1.msra.mxu0 0.0
  %3790 = vmatprep.subr.mxu0 0.0
  %3791 = vmatpush1.msra.mxu0 0.0
  %3792 = vmatprep.subr.mxu0 0.0
  %3793 = vmatpush1.msra.mxu0 0.0
  %3794 = vmatprep.subr.mxu0 0.0
  %3795 = vmatpush1.msra.mxu0 0.0
  %3796 = vmatprep.subr.mxu0 0.0
  %3797 = vmatpush1.msra.mxu0 0.0
  %3798 = vmatprep.subr.mxu0 0.0
  %3799 = vmatpush1.msra.mxu0 0.0
  %3800 = vmatprep.subr.mxu0 0.0
  %3801 = vmatpush1.msra.mxu0 0.0
  %3802 = vmatprep.subr.mxu0 0.0
  %3803 = vmatpush1.msra.mxu0 0.0
  %3804 = vmatprep.subr.mxu0 0.0
  %3805 = vmatpush1.msra.mxu0 0.0
  %3806 = vmatprep.subr.mxu0 0.0
  %3807 = vmatpush1.msra.mxu0 0.0
  %3808 = vmatprep.subr.mxu0 0.0
  %3809 = vmatpush1.msra.mxu0 0.0
  %3810 = vmatprep.subr.mxu0 0.0
  %3811 = vmatpush1.msra.mxu0 %v3532
  %3812 = vmatprep.subr.mxu0 0.0
  %3813 = vmatpush1.msra.mxu0 %v3531
  %3814 = vmatprep.subr.mxu0 0.0
  %3815 = vmatpush2.msra.mxu0 0.0
  %3816 = vmatprep.subr.mxu0 0.0
  %3817 = vmatpush2.msra.mxu0 0.0
  %3818 = vmatprep.subr.mxu0 0.0
  %3819 = vmatpush2.msra.mxu0 0.0
  %3820 = vmatprep.subr.mxu0 0.0
  %3821 = vmatpush2.msra.mxu0 0.0
  %3822 = vmatprep.subr.mxu0 0.0
  %3823 = vmatpush2.msra.mxu0 0.0
  %3824 = vmatprep.subr.mxu0 0.0
  %3825 = vmatpush2.msra.mxu0 0.0
  %3826 = vmatprep.subr.mxu0 0.0
  %3827 = vmatpush2.msra.mxu0 0.0
  %3828 = vmatprep.subr.mxu0 0.0
  %3829 = vmatpush2.msra.mxu0 0.0
  %3830 = vmatprep.subr.mxu0 0.0
  %3831 = vmatpush2.msra.mxu0 0.0
  %3832 = vmatprep.subr.mxu0 0.0
  %3833 = vmatpush2.msra.mxu0 0.0
  %3834 = vmatprep.subr.mxu0 0.0
  %3835 = vmatpush2.msra.mxu0 0.0
  %3836 = vmatprep.subr.mxu0 0.0
  %3837 = vmatpush2.msra.mxu0 0.0
  %3838 = vmatprep.subr.mxu0 0.0
  %3839 = vmatpush2.msra.mxu0 0.0
  %3840 = vmatprep.subr.mxu0 0.0
  %3841 = vmatpush2.msra.mxu0 0.0
  %3842 = vmatprep.subr.mxu0 0.0
  %3843 = vmatpush2.msra.mxu0 0.0
  %3844 = vmatprep.subr.mxu0 0.0
  %3845 = vmatpush2.msra.mxu0 0.0
  %3846 = vmatprep.mubr.f32.mxu0 0.0
  %3847 = vmatmul.mubr.f32.gmra.mxu0 %v3780
  %v3848 = vpop.f32.mrf.mxu0
  %v3849 = vadd.f32 %v3775, %v3848
  %v3850 = vpop.f32.mrf.mxu0
  %3851 = vdwg.mxu0
  %v3852 = vld [vmem:[#allocation4 + $0x8] sm:$0xff]
  %v3853 = vld [vmem:[#allocation4 + $0x30] sm:$0xff]
  %v3854 = vsel %vm232, %v3852, %v3853
  %v3855 = vadd.f32 %v3849, %v3854
  %v3856 = vxor.u32 %v3855, 2147483648
  %v3857 = vmul.f32 %v3856, 1.442695
  %v3858 = vpow.pop %v3857
  %v3859 = vadd.f32 %v3858, 1.0
  %v3860 = vrcp.pop %v3859
  %v3861 = vmul.f32 1.0, %v3860
  %v3862 = vtanh.pop %v3855
  %v3863 = vmul.f32 %v3861, %v3696
  %3865 = vrot.lane.b32.xlu0 %v3862, 96
  %v3866 = vpop.permute.xlu0 %3865
  %v3868 = vmul.f32 %v3861, %v3866
  %3870 = vrot.lane.b32.xlu0 %v3868, 16
  %v3871 = vpop.permute.xlu0 %3870
  %v3873 = vadd.f32 %v3863, %v3871
  %v3874 = vtanh.pop %v3873
  %3876 = vrot.lane.b32.xlu0 %v3874, 32
  %v3877 = vpop.permute.xlu0 %3876
  %v3879 = vmul.f32 %v3861, %v3877
  %3881 = vrot.lane.b32.xlu0 %v3879, 16
  %v3882 = vpop.permute.xlu0 %3881
  %v3883 = vsel %vm233, %v3882, 0
  %3885 = vmatprep.subr.mxu0 0.0
  %3886 = vmatpush1.msra.mxu0 0.0
  %3887 = vmatprep.subr.mxu0 0.0
  %3888 = vmatpush1.msra.mxu0 0.0
  %3889 = vmatprep.subr.mxu0 0.0
  %3890 = vmatpush1.msra.mxu0 0.0
  %3891 = vmatprep.subr.mxu0 0.0
  %3892 = vmatpush1.msra.mxu0 0.0
  %3893 = vmatprep.subr.mxu0 0.0
  %3894 = vmatpush1.msra.mxu0 0.0
  %3895 = vmatprep.subr.mxu0 0.0
  %3896 = vmatpush1.msra.mxu0 0.0
  %3897 = vmatprep.subr.mxu0 0.0
  %3898 = vmatpush1.msra.mxu0 0.0
  %3899 = vmatprep.subr.mxu0 0.0
  %3900 = vmatpush1.msra.mxu0 0.0
  %3901 = vmatprep.subr.mxu0 0.0
  %3902 = vmatpush1.msra.mxu0 0.0
  %3903 = vmatprep.subr.mxu0 0.0
  %3904 = vmatpush1.msra.mxu0 0.0
  %3905 = vmatprep.subr.mxu0 0.0
  %3906 = vmatpush1.msra.mxu0 0.0
  %3907 = vmatprep.subr.mxu0 0.0
  %3908 = vmatpush1.msra.mxu0 0.0
  %3909 = vmatprep.subr.mxu0 0.0
  %3910 = vmatpush1.msra.mxu0 0.0
  %3911 = vmatprep.subr.mxu0 0.0
  %3912 = vmatpush1.msra.mxu0 0.0
  %3913 = vmatprep.subr.mxu0 0.0
  %3914 = vmatpush1.msra.mxu0 %v3534
  %3915 = vmatprep.subr.mxu0 0.0
  %3916 = vmatpush1.msra.mxu0 %v3533
  %3917 = vmatprep.subr.mxu0 0.0
  %3918 = vmatpush2.msra.mxu0 0.0
  %3919 = vmatprep.subr.mxu0 0.0
  %3920 = vmatpush2.msra.mxu0 0.0
  %3921 = vmatprep.subr.mxu0 0.0
  %3922 = vmatpush2.msra.mxu0 0.0
  %3923 = vmatprep.subr.mxu0 0.0
  %3924 = vmatpush2.msra.mxu0 0.0
  %3925 = vmatprep.subr.mxu0 0.0
  %3926 = vmatpush2.msra.mxu0 0.0
  %3927 = vmatprep.subr.mxu0 0.0
  %3928 = vmatpush2.msra.mxu0 0.0
  %3929 = vmatprep.subr.mxu0 0.0
  %3930 = vmatpush2.msra.mxu0 0.0
  %3931 = vmatprep.subr.mxu0 0.0
  %3932 = vmatpush2.msra.mxu0 0.0
  %3933 = vmatprep.subr.mxu0 0.0
  %3934 = vmatpush2.msra.mxu0 0.0
  %3935 = vmatprep.subr.mxu0 0.0
  %3936 = vmatpush2.msra.mxu0 0.0
  %3937 = vmatprep.subr.mxu0 0.0
  %3938 = vmatpush2.msra.mxu0 0.0
  %3939 = vmatprep.subr.mxu0 0.0
  %3940 = vmatpush2.msra.mxu0 0.0
  %3941 = vmatprep.subr.mxu0 0.0
  %3942 = vmatpush2.msra.mxu0 0.0
  %3943 = vmatprep.subr.mxu0 0.0
  %3944 = vmatpush2.msra.mxu0 0.0
  %3945 = vmatprep.subr.mxu0 0.0
  %3946 = vmatpush2.msra.mxu0 0.0
  %3947 = vmatprep.subr.mxu0 0.0
  %3948 = vmatpush2.msra.mxu0 0.0
  %3949 = vmatprep.mubr.f32.mxu0 0.0
  %3950 = vmatmul.mubr.f32.gmra.mxu0 %v3883
  %v3951 = vpop.f32.mrf.mxu0
  %v3952 = vadd.f32 0.0, %v3951
  %v3953 = vpop.f32.mrf.mxu0
  %3954 = vdwg.mxu0
  %3955 = vrot.lane.b32.xlu0 %v3879, 80
  %v3956 = vpop.permute.xlu0 %3955
  %v3957 = vsel %vm233, %v3956, 0
  %3959 = vmatprep.subr.mxu0 0.0
  %3960 = vmatpush1.msra.mxu0 0.0
  %3961 = vmatprep.subr.mxu0 0.0
  %3962 = vmatpush1.msra.mxu0 0.0
  %3963 = vmatprep.subr.mxu0 0.0
  %3964 = vmatpush1.msra.mxu0 0.0
  %3965 = vmatprep.subr.mxu0 0.0
  %3966 = vmatpush1.msra.mxu0 0.0
  %3967 = vmatprep.subr.mxu0 0.0
  %3968 = vmatpush1.msra.mxu0 0.0
  %3969 = vmatprep.subr.mxu0 0.0
  %3970 = vmatpush1.msra.mxu0 0.0
  %3971 = vmatprep.subr.mxu0 0.0
  %3972 = vmatpush1.msra.mxu0 0.0
  %3973 = vmatprep.subr.mxu0 0.0
  %3974 = vmatpush1.msra.mxu0 0.0
  %3975 = vmatprep.subr.mxu0 0.0
  %3976 = vmatpush1.msra.mxu0 0.0
  %3977 = vmatprep.subr.mxu0 0.0
  %3978 = vmatpush1.msra.mxu0 0.0
  %3979 = vmatprep.subr.mxu0 0.0
  %3980 = vmatpush1.msra.mxu0 0.0
  %3981 = vmatprep.subr.mxu0 0.0
  %3982 = vmatpush1.msra.mxu0 0.0
  %3983 = vmatprep.subr.mxu0 0.0
  %3984 = vmatpush1.msra.mxu0 0.0
  %3985 = vmatprep.subr.mxu0 0.0
  %3986 = vmatpush1.msra.mxu0 0.0
  %3987 = vmatprep.subr.mxu0 0.0
  %3988 = vmatpush1.msra.mxu0 %v3532
  %3989 = vmatprep.subr.mxu0 0.0
  %3990 = vmatpush1.msra.mxu0 %v3531
  %3991 = vmatprep.subr.mxu0 0.0
  %3992 = vmatpush2.msra.mxu0 0.0
  %3993 = vmatprep.subr.mxu0 0.0
  %3994 = vmatpush2.msra.mxu0 0.0
  %3995 = vmatprep.subr.mxu0 0.0
  %3996 = vmatpush2.msra.mxu0 0.0
  %3997 = vmatprep.subr.mxu0 0.0
  %3998 = vmatpush2.msra.mxu0 0.0
  %3999 = vmatprep.subr.mxu0 0.0
  %4000 = vmatpush2.msra.mxu0 0.0
  %4001 = vmatprep.subr.mxu0 0.0
  %4002 = vmatpush2.msra.mxu0 0.0
  %4003 = vmatprep.subr.mxu0 0.0
  %4004 = vmatpush2.msra.mxu0 0.0
  %4005 = vmatprep.subr.mxu0 0.0
  %4006 = vmatpush2.msra.mxu0 0.0
  %4007 = vmatprep.subr.mxu0 0.0
  %4008 = vmatpush2.msra.mxu0 0.0
  %4009 = vmatprep.subr.mxu0 0.0
  %4010 = vmatpush2.msra.mxu0 0.0
  %4011 = vmatprep.subr.mxu0 0.0
  %4012 = vmatpush2.msra.mxu0 0.0
  %4013 = vmatprep.subr.mxu0 0.0
  %4014 = vmatpush2.msra.mxu0 0.0
  %4015 = vmatprep.subr.mxu0 0.0
  %4016 = vmatpush2.msra.mxu0 0.0
  %4017 = vmatprep.subr.mxu0 0.0
  %4018 = vmatpush2.msra.mxu0 0.0
  %4019 = vmatprep.subr.mxu0 0.0
  %4020 = vmatpush2.msra.mxu0 0.0
  %4021 = vmatprep.subr.mxu0 0.0
  %4022 = vmatpush2.msra.mxu0 0.0
  %4023 = vmatprep.mubr.f32.mxu0 0.0
  %4024 = vmatmul.mubr.f32.gmra.mxu0 %v3957
  %v4025 = vpop.f32.mrf.mxu0
  %v4026 = vadd.f32 %v3952, %v4025
  %v4027 = vpop.f32.mrf.mxu0
  %4028 = vdwg.mxu0
  %v4029 = vld [vmem:[#allocation4 + $0x10] sm:$0xff]
  %v4030 = vld [vmem:[#allocation4 + $0x28] sm:$0xff]
  %v4031 = vsel %vm232, %v4029, %v4030
  %v4032 = vadd.f32 %v4026, %v4031
  %v4033 = vxor.u32 %v4032, 2147483648
  %v4034 = vmul.f32 %v4033, 1.442695
  %v4035 = vpow.pop %v4034
  %v4036 = vadd.f32 %v4035, 1.0
  %v4037 = vrcp.pop %v4036
  %v4038 = vmul.f32 1.0, %v4037
  %v4039 = vtanh.pop %v4032
  %v4040 = vmul.f32 %v4038, %v3873
  %4042 = vrot.lane.b32.xlu0 %v4039, 96
  %v4043 = vpop.permute.xlu0 %4042
  %v4045 = vmul.f32 %v4038, %v4043
  %4047 = vrot.lane.b32.xlu0 %v4045, 16
  %v4048 = vpop.permute.xlu0 %4047
  %v4050 = vadd.f32 %v4040, %v4048
  %v4051 = vtanh.pop %v4050
  %4053 = vrot.lane.b32.xlu0 %v4051, 32
  %v4054 = vpop.permute.xlu0 %4053
  %v4056 = vmul.f32 %v4038, %v4054
  %4058 = vrot.lane.b32.xlu0 %v4056, 16
  %v4059 = vpop.permute.xlu0 %4058
  %v4060 = vsel %vm233, %v4059, 0
  %4062 = vmatprep.subr.mxu0 0.0
  %4063 = vmatpush1.msra.mxu0 0.0
  %4064 = vmatprep.subr.mxu0 0.0
  %4065 = vmatpush1.msra.mxu0 0.0
  %4066 = vmatprep.subr.mxu0 0.0
  %4067 = vmatpush1.msra.mxu0 0.0
  %4068 = vmatprep.subr.mxu0 0.0
  %4069 = vmatpush1.msra.mxu0 0.0
  %4070 = vmatprep.subr.mxu0 0.0
  %4071 = vmatpush1.msra.mxu0 0.0
  %4072 = vmatprep.subr.mxu0 0.0
  %4073 = vmatpush1.msra.mxu0 0.0
  %4074 = vmatprep.subr.mxu0 0.0
  %4075 = vmatpush1.msra.mxu0 0.0
  %4076 = vmatprep.subr.mxu0 0.0
  %4077 = vmatpush1.msra.mxu0 0.0
  %4078 = vmatprep.subr.mxu0 0.0
  %4079 = vmatpush1.msra.mxu0 0.0
  %4080 = vmatprep.subr.mxu0 0.0
  %4081 = vmatpush1.msra.mxu0 0.0
  %4082 = vmatprep.subr.mxu0 0.0
  %4083 = vmatpush1.msra.mxu0 0.0
  %4084 = vmatprep.subr.mxu0 0.0
  %4085 = vmatpush1.msra.mxu0 0.0
  %4086 = vmatprep.subr.mxu0 0.0
  %4087 = vmatpush1.msra.mxu0 0.0
  %4088 = vmatprep.subr.mxu0 0.0
  %4089 = vmatpush1.msra.mxu0 0.0
  %4090 = vmatprep.subr.mxu0 0.0
  %4091 = vmatpush1.msra.mxu0 %v3534
  %4092 = vmatprep.subr.mxu0 0.0
  %4093 = vmatpush1.msra.mxu0 %v3533
  %4094 = vmatprep.subr.mxu0 0.0
  %4095 = vmatpush2.msra.mxu0 0.0
  %4096 = vmatprep.subr.mxu0 0.0
  %4097 = vmatpush2.msra.mxu0 0.0
  %4098 = vmatprep.subr.mxu0 0.0
  %4099 = vmatpush2.msra.mxu0 0.0
  %4100 = vmatprep.subr.mxu0 0.0
  %4101 = vmatpush2.msra.mxu0 0.0
  %4102 = vmatprep.subr.mxu0 0.0
  %4103 = vmatpush2.msra.mxu0 0.0
  %4104 = vmatprep.subr.mxu0 0.0
  %4105 = vmatpush2.msra.mxu0 0.0
  %4106 = vmatprep.subr.mxu0 0.0
  %4107 = vmatpush2.msra.mxu0 0.0
  %4108 = vmatprep.subr.mxu0 0.0
  %4109 = vmatpush2.msra.mxu0 0.0
  %4110 = vmatprep.subr.mxu0 0.0
  %4111 = vmatpush2.msra.mxu0 0.0
  %4112 = vmatprep.subr.mxu0 0.0
  %4113 = vmatpush2.msra.mxu0 0.0
  %4114 = vmatprep.subr.mxu0 0.0
  %4115 = vmatpush2.msra.mxu0 0.0
  %4116 = vmatprep.subr.mxu0 0.0
  %4117 = vmatpush2.msra.mxu0 0.0
  %4118 = vmatprep.subr.mxu0 0.0
  %4119 = vmatpush2.msra.mxu0 0.0
  %4120 = vmatprep.subr.mxu0 0.0
  %4121 = vmatpush2.msra.mxu0 0.0
  %4122 = vmatprep.subr.mxu0 0.0
  %4123 = vmatpush2.msra.mxu0 0.0
  %4124 = vmatprep.subr.mxu0 0.0
  %4125 = vmatpush2.msra.mxu0 0.0
  %4126 = vmatprep.mubr.f32.mxu0 0.0
  %4127 = vmatmul.mubr.f32.gmra.mxu0 %v4060
  %v4128 = vpop.f32.mrf.mxu0
  %v4129 = vadd.f32 0.0, %v4128
  %v4130 = vpop.f32.mrf.mxu0
  %4131 = vdwg.mxu0
  %4132 = vrot.lane.b32.xlu0 %v4056, 80
  %v4133 = vpop.permute.xlu0 %4132
  %v4134 = vsel %vm233, %v4133, 0
  %4136 = vmatprep.subr.mxu0 0.0
  %4137 = vmatpush1.msra.mxu0 0.0
  %4138 = vmatprep.subr.mxu0 0.0
  %4139 = vmatpush1.msra.mxu0 0.0
  %4140 = vmatprep.subr.mxu0 0.0
  %4141 = vmatpush1.msra.mxu0 0.0
  %4142 = vmatprep.subr.mxu0 0.0
  %4143 = vmatpush1.msra.mxu0 0.0
  %4144 = vmatprep.subr.mxu0 0.0
  %4145 = vmatpush1.msra.mxu0 0.0
  %4146 = vmatprep.subr.mxu0 0.0
  %4147 = vmatpush1.msra.mxu0 0.0
  %4148 = vmatprep.subr.mxu0 0.0
  %4149 = vmatpush1.msra.mxu0 0.0
  %4150 = vmatprep.subr.mxu0 0.0
  %4151 = vmatpush1.msra.mxu0 0.0
  %4152 = vmatprep.subr.mxu0 0.0
  %4153 = vmatpush1.msra.mxu0 0.0
  %4154 = vmatprep.subr.mxu0 0.0
  %4155 = vmatpush1.msra.mxu0 0.0
  %4156 = vmatprep.subr.mxu0 0.0
  %4157 = vmatpush1.msra.mxu0 0.0
  %4158 = vmatprep.subr.mxu0 0.0
  %4159 = vmatpush1.msra.mxu0 0.0
  %4160 = vmatprep.subr.mxu0 0.0
  %4161 = vmatpush1.msra.mxu0 0.0
  %4162 = vmatprep.subr.mxu0 0.0
  %4163 = vmatpush1.msra.mxu0 0.0
  %4164 = vmatprep.subr.mxu0 0.0
  %4165 = vmatpush1.msra.mxu0 %v3532
  %4166 = vmatprep.subr.mxu0 0.0
  %4167 = vmatpush1.msra.mxu0 %v3531
  %4168 = vmatprep.subr.mxu0 0.0
  %4169 = vmatpush2.msra.mxu0 0.0
  %4170 = vmatprep.subr.mxu0 0.0
  %4171 = vmatpush2.msra.mxu0 0.0
  %4172 = vmatprep.subr.mxu0 0.0
  %4173 = vmatpush2.msra.mxu0 0.0
  %4174 = vmatprep.subr.mxu0 0.0
  %4175 = vmatpush2.msra.mxu0 0.0
  %4176 = vmatprep.subr.mxu0 0.0
  %4177 = vmatpush2.msra.mxu0 0.0
  %4178 = vmatprep.subr.mxu0 0.0
  %4179 = vmatpush2.msra.mxu0 0.0
  %4180 = vmatprep.subr.mxu0 0.0
  %4181 = vmatpush2.msra.mxu0 0.0
  %4182 = vmatprep.subr.mxu0 0.0
  %4183 = vmatpush2.msra.mxu0 0.0
  %4184 = vmatprep.subr.mxu0 0.0
  %4185 = vmatpush2.msra.mxu0 0.0
  %4186 = vmatprep.subr.mxu0 0.0
  %4187 = vmatpush2.msra.mxu0 0.0
  %4188 = vmatprep.subr.mxu0 0.0
  %4189 = vmatpush2.msra.mxu0 0.0
  %4190 = vmatprep.subr.mxu0 0.0
  %4191 = vmatpush2.msra.mxu0 0.0
  %4192 = vmatprep.subr.mxu0 0.0
  %4193 = vmatpush2.msra.mxu0 0.0
  %4194 = vmatprep.subr.mxu0 0.0
  %4195 = vmatpush2.msra.mxu0 0.0
  %4196 = vmatprep.subr.mxu0 0.0
  %4197 = vmatpush2.msra.mxu0 0.0
  %4198 = vmatprep.subr.mxu0 0.0
  %4199 = vmatpush2.msra.mxu0 0.0
  %4200 = vmatprep.mubr.f32.mxu0 0.0
  %4201 = vmatmul.mubr.f32.gmra.mxu0 %v4134
  %v4202 = vpop.f32.mrf.mxu0
  %v4203 = vadd.f32 %v4129, %v4202
  %v4204 = vpop.f32.mrf.mxu0
  %4205 = vdwg.mxu0
  %v4206 = vld [vmem:[#allocation4 + $0x18] sm:$0xff]
  %v4207 = vld [vmem:[#allocation4 + $0x20] sm:$0xff]
  %v4208 = vsel %vm232, %v4206, %v4207
  %v4209 = vadd.f32 %v4203, %v4208
  %v4210 = vxor.u32 %v4209, 2147483648
  %v4211 = vmul.f32 %v4210, 1.442695
  %v4212 = vpow.pop %v4211
  %v4213 = vadd.f32 %v4212, 1.0
  %v4214 = vrcp.pop %v4213
  %v4215 = vmul.f32 1.0, %v4214
  %v4216 = vtanh.pop %v4209
  %v4217 = vmul.f32 %v4215, %v4050
  %4219 = vrot.lane.b32.xlu0 %v4216, 96
  %v4220 = vpop.permute.xlu0 %4219
  %v4222 = vmul.f32 %v4215, %v4220
  %4224 = vrot.lane.b32.xlu0 %v4222, 16
  %v4225 = vpop.permute.xlu0 %4224
  %v4227 = vadd.f32 %v4217, %v4225
  %v4228 = vtanh.pop %v4227
  %4230 = vrot.lane.b32.xlu0 %v4228, 32
  %v4231 = vpop.permute.xlu0 %4230
  %v4233 = vmul.f32 %v4215, %v4231
  %4235 = vrot.lane.b32.xlu0 %v4233, 16
  %v4236 = vpop.permute.xlu0 %4235
  %v4237 = vsel %vm233, %v4236, 0
  %4239 = vmatprep.subr.mxu0 0.0
  %4240 = vmatpush1.msra.mxu0 0.0
  %4241 = vmatprep.subr.mxu0 0.0
  %4242 = vmatpush1.msra.mxu0 0.0
  %4243 = vmatprep.subr.mxu0 0.0
  %4244 = vmatpush1.msra.mxu0 0.0
  %4245 = vmatprep.subr.mxu0 0.0
  %4246 = vmatpush1.msra.mxu0 0.0
  %4247 = vmatprep.subr.mxu0 0.0
  %4248 = vmatpush1.msra.mxu0 0.0
  %4249 = vmatprep.subr.mxu0 0.0
  %4250 = vmatpush1.msra.mxu0 0.0
  %4251 = vmatprep.subr.mxu0 0.0
  %4252 = vmatpush1.msra.mxu0 0.0
  %4253 = vmatprep.subr.mxu0 0.0
  %4254 = vmatpush1.msra.mxu0 0.0
  %4255 = vmatprep.subr.mxu0 0.0
  %4256 = vmatpush1.msra.mxu0 0.0
  %4257 = vmatprep.subr.mxu0 0.0
  %4258 = vmatpush1.msra.mxu0 0.0
  %4259 = vmatprep.subr.mxu0 0.0
  %4260 = vmatpush1.msra.mxu0 0.0
  %4261 = vmatprep.subr.mxu0 0.0
  %4262 = vmatpush1.msra.mxu0 0.0
  %4263 = vmatprep.subr.mxu0 0.0
  %4264 = vmatpush1.msra.mxu0 0.0
  %4265 = vmatprep.subr.mxu0 0.0
  %4266 = vmatpush1.msra.mxu0 0.0
  %4267 = vmatprep.subr.mxu0 0.0
  %4268 = vmatpush1.msra.mxu0 %v3534
  %4269 = vmatprep.subr.mxu0 0.0
  %4270 = vmatpush1.msra.mxu0 %v3533
  %4271 = vmatprep.subr.mxu0 0.0
  %4272 = vmatpush2.msra.mxu0 0.0
  %4273 = vmatprep.subr.mxu0 0.0
  %4274 = vmatpush2.msra.mxu0 0.0
  %4275 = vmatprep.subr.mxu0 0.0
  %4276 = vmatpush2.msra.mxu0 0.0
  %4277 = vmatprep.subr.mxu0 0.0
  %4278 = vmatpush2.msra.mxu0 0.0
  %4279 = vmatprep.subr.mxu0 0.0
  %4280 = vmatpush2.msra.mxu0 0.0
  %4281 = vmatprep.subr.mxu0 0.0
  %4282 = vmatpush2.msra.mxu0 0.0
  %4283 = vmatprep.subr.mxu0 0.0
  %4284 = vmatpush2.msra.mxu0 0.0
  %4285 = vmatprep.subr.mxu0 0.0
  %4286 = vmatpush2.msra.mxu0 0.0
  %4287 = vmatprep.subr.mxu0 0.0
  %4288 = vmatpush2.msra.mxu0 0.0
  %4289 = vmatprep.subr.mxu0 0.0
  %4290 = vmatpush2.msra.mxu0 0.0
  %4291 = vmatprep.subr.mxu0 0.0
  %4292 = vmatpush2.msra.mxu0 0.0
  %4293 = vmatprep.subr.mxu0 0.0
  %4294 = vmatpush2.msra.mxu0 0.0
  %4295 = vmatprep.subr.mxu0 0.0
  %4296 = vmatpush2.msra.mxu0 0.0
  %4297 = vmatprep.subr.mxu0 0.0
  %4298 = vmatpush2.msra.mxu0 0.0
  %4299 = vmatprep.subr.mxu0 0.0
  %4300 = vmatpush2.msra.mxu0 0.0
  %4301 = vmatprep.subr.mxu0 0.0
  %4302 = vmatpush2.msra.mxu0 0.0
  %4303 = vmatprep.mubr.f32.mxu0 0.0
  %4304 = vmatmul.mubr.f32.gmra.mxu0 %v4237
  %v4305 = vpop.f32.mrf.mxu0
  %v4306 = vadd.f32 0.0, %v4305
  %v4307 = vpop.f32.mrf.mxu0
  %4308 = vdwg.mxu0
  %4309 = vrot.lane.b32.xlu0 %v4233, 80
  %v4310 = vpop.permute.xlu0 %4309
  %v4311 = vsel %vm233, %v4310, 0
  %4313 = vmatprep.subr.mxu0 0.0
  %4314 = vmatpush1.msra.mxu0 0.0
  %4315 = vmatprep.subr.mxu0 0.0
  %4316 = vmatpush1.msra.mxu0 0.0
  %4317 = vmatprep.subr.mxu0 0.0
  %4318 = vmatpush1.msra.mxu0 0.0
  %4319 = vmatprep.subr.mxu0 0.0
  %4320 = vmatpush1.msra.mxu0 0.0
  %4321 = vmatprep.subr.mxu0 0.0
  %4322 = vmatpush1.msra.mxu0 0.0
  %4323 = vmatprep.subr.mxu0 0.0
  %4324 = vmatpush1.msra.mxu0 0.0
  %4325 = vmatprep.subr.mxu0 0.0
  %4326 = vmatpush1.msra.mxu0 0.0
  %4327 = vmatprep.subr.mxu0 0.0
  %4328 = vmatpush1.msra.mxu0 0.0
  %4329 = vmatprep.subr.mxu0 0.0
  %4330 = vmatpush1.msra.mxu0 0.0
  %4331 = vmatprep.subr.mxu0 0.0
  %4332 = vmatpush1.msra.mxu0 0.0
  %4333 = vmatprep.subr.mxu0 0.0
  %4334 = vmatpush1.msra.mxu0 0.0
  %4335 = vmatprep.subr.mxu0 0.0
  %4336 = vmatpush1.msra.mxu0 0.0
  %4337 = vmatprep.subr.mxu0 0.0
  %4338 = vmatpush1.msra.mxu0 0.0
  %4339 = vmatprep.subr.mxu0 0.0
  %4340 = vmatpush1.msra.mxu0 0.0
  %4341 = vmatprep.subr.mxu0 0.0
  %4342 = vmatpush1.msra.mxu0 %v3532
  %4343 = vmatprep.subr.mxu0 0.0
  %4344 = vmatpush1.msra.mxu0 %v3531
  %4345 = vmatprep.subr.mxu0 0.0
  %4346 = vmatpush2.msra.mxu0 0.0
  %4347 = vmatprep.subr.mxu0 0.0
  %4348 = vmatpush2.msra.mxu0 0.0
  %4349 = vmatprep.subr.mxu0 0.0
  %4350 = vmatpush2.msra.mxu0 0.0
  %4351 = vmatprep.subr.mxu0 0.0
  %4352 = vmatpush2.msra.mxu0 0.0
  %4353 = vmatprep.subr.mxu0 0.0
  %4354 = vmatpush2.msra.mxu0 0.0
  %4355 = vmatprep.subr.mxu0 0.0
  %4356 = vmatpush2.msra.mxu0 0.0
  %4357 = vmatprep.subr.mxu0 0.0
  %4358 = vmatpush2.msra.mxu0 0.0
  %4359 = vmatprep.subr.mxu0 0.0
  %4360 = vmatpush2.msra.mxu0 0.0
  %4361 = vmatprep.subr.mxu0 0.0
  %4362 = vmatpush2.msra.mxu0 0.0
  %4363 = vmatprep.subr.mxu0 0.0
  %4364 = vmatpush2.msra.mxu0 0.0
  %4365 = vmatprep.subr.mxu0 0.0
  %4366 = vmatpush2.msra.mxu0 0.0
  %4367 = vmatprep.subr.mxu0 0.0
  %4368 = vmatpush2.msra.mxu0 0.0
  %4369 = vmatprep.subr.mxu0 0.0
  %4370 = vmatpush2.msra.mxu0 0.0
  %4371 = vmatprep.subr.mxu0 0.0
  %4372 = vmatpush2.msra.mxu0 0.0
  %4373 = vmatprep.subr.mxu0 0.0
  %4374 = vmatpush2.msra.mxu0 0.0
  %4375 = vmatprep.subr.mxu0 0.0
  %4376 = vmatpush2.msra.mxu0 0.0
  %4377 = vmatprep.mubr.f32.mxu0 0.0
  %4378 = vmatmul.mubr.f32.gmra.mxu0 %v4311
  %v4379 = vpop.f32.mrf.mxu0
  %v4380 = vadd.f32 %v4306, %v4379
  %v4381 = vpop.f32.mrf.mxu0
  %4382 = vdwg.mxu0
  %v4383 = vsel %vm232, %v4207, %v4206
  %v4384 = vadd.f32 %v4380, %v4383
  %v4385 = vxor.u32 %v4384, 2147483648
  %v4386 = vmul.f32 %v4385, 1.442695
  %v4387 = vpow.pop %v4386
  %v4388 = vadd.f32 %v4387, 1.0
  %v4389 = vrcp.pop %v4388
  %v4390 = vmul.f32 1.0, %v4389
  %v4391 = vtanh.pop %v4384
  %v4392 = vmul.f32 %v4390, %v4227
  %4394 = vrot.lane.b32.xlu0 %v4391, 96
  %v4395 = vpop.permute.xlu0 %4394
  %v4397 = vmul.f32 %v4390, %v4395
  %4399 = vrot.lane.b32.xlu0 %v4397, 16
  %v4400 = vpop.permute.xlu0 %4399
  %v4402 = vadd.f32 %v4392, %v4400
  %v4403 = vtanh.pop %v4402
  %4405 = vrot.lane.b32.xlu0 %v4403, 32
  %v4406 = vpop.permute.xlu0 %4405
  %v4408 = vmul.f32 %v4390, %v4406
  %4410 = vrot.lane.b32.xlu0 %v4408, 16
  %v4411 = vpop.permute.xlu0 %4410
  %v4412 = vsel %vm233, %v4411, 0
  %4414 = vmatprep.subr.mxu0 0.0
  %4415 = vmatpush1.msra.mxu0 0.0
  %4416 = vmatprep.subr.mxu0 0.0
  %4417 = vmatpush1.msra.mxu0 0.0
  %4418 = vmatprep.subr.mxu0 0.0
  %4419 = vmatpush1.msra.mxu0 0.0
  %4420 = vmatprep.subr.mxu0 0.0
  %4421 = vmatpush1.msra.mxu0 0.0
  %4422 = vmatprep.subr.mxu0 0.0
  %4423 = vmatpush1.msra.mxu0 0.0
  %4424 = vmatprep.subr.mxu0 0.0
  %4425 = vmatpush1.msra.mxu0 0.0
  %4426 = vmatprep.subr.mxu0 0.0
  %4427 = vmatpush1.msra.mxu0 0.0
  %4428 = vmatprep.subr.mxu0 0.0
  %4429 = vmatpush1.msra.mxu0 0.0
  %4430 = vmatprep.subr.mxu0 0.0
  %4431 = vmatpush1.msra.mxu0 0.0
  %4432 = vmatprep.subr.mxu0 0.0
  %4433 = vmatpush1.msra.mxu0 0.0
  %4434 = vmatprep.subr.mxu0 0.0
  %4435 = vmatpush1.msra.mxu0 0.0
  %4436 = vmatprep.subr.mxu0 0.0
  %4437 = vmatpush1.msra.mxu0 0.0
  %4438 = vmatprep.subr.mxu0 0.0
  %4439 = vmatpush1.msra.mxu0 0.0
  %4440 = vmatprep.subr.mxu0 0.0
  %4441 = vmatpush1.msra.mxu0 0.0
  %4442 = vmatprep.subr.mxu0 0.0
  %4443 = vmatpush1.msra.mxu0 %v3534
  %4444 = vmatprep.subr.mxu0 0.0
  %4445 = vmatpush1.msra.mxu0 %v3533
  %4446 = vmatprep.subr.mxu0 0.0
  %4447 = vmatpush2.msra.mxu0 0.0
  %4448 = vmatprep.subr.mxu0 0.0
  %4449 = vmatpush2.msra.mxu0 0.0
  %4450 = vmatprep.subr.mxu0 0.0
  %4451 = vmatpush2.msra.mxu0 0.0
  %4452 = vmatprep.subr.mxu0 0.0
  %4453 = vmatpush2.msra.mxu0 0.0
  %4454 = vmatprep.subr.mxu0 0.0
  %4455 = vmatpush2.msra.mxu0 0.0
  %4456 = vmatprep.subr.mxu0 0.0
  %4457 = vmatpush2.msra.mxu0 0.0
  %4458 = vmatprep.subr.mxu0 0.0
  %4459 = vmatpush2.msra.mxu0 0.0
  %4460 = vmatprep.subr.mxu0 0.0
  %4461 = vmatpush2.msra.mxu0 0.0
  %4462 = vmatprep.subr.mxu0 0.0
  %4463 = vmatpush2.msra.mxu0 0.0
  %4464 = vmatprep.subr.mxu0 0.0
  %4465 = vmatpush2.msra.mxu0 0.0
  %4466 = vmatprep.subr.mxu0 0.0
  %4467 = vmatpush2.msra.mxu0 0.0
  %4468 = vmatprep.subr.mxu0 0.0
  %4469 = vmatpush2.msra.mxu0 0.0
  %4470 = vmatprep.subr.mxu0 0.0
  %4471 = vmatpush2.msra.mxu0 0.0
  %4472 = vmatprep.subr.mxu0 0.0
  %4473 = vmatpush2.msra.mxu0 0.0
  %4474 = vmatprep.subr.mxu0 0.0
  %4475 = vmatpush2.msra.mxu0 0.0
  %4476 = vmatprep.subr.mxu0 0.0
  %4477 = vmatpush2.msra.mxu0 0.0
  %4478 = vmatprep.mubr.f32.mxu0 0.0
  %4479 = vmatmul.mubr.f32.gmra.mxu0 %v4412
  %v4480 = vpop.f32.mrf.mxu0
  %v4481 = vadd.f32 0.0, %v4480
  %v4482 = vpop.f32.mrf.mxu0
  %4483 = vdwg.mxu0
  %4484 = vrot.lane.b32.xlu0 %v4408, 80
  %v4485 = vpop.permute.xlu0 %4484
  %v4486 = vsel %vm233, %v4485, 0
  %4488 = vmatprep.subr.mxu0 0.0
  %4489 = vmatpush1.msra.mxu0 0.0
  %4490 = vmatprep.subr.mxu0 0.0
  %4491 = vmatpush1.msra.mxu0 0.0
  %4492 = vmatprep.subr.mxu0 0.0
  %4493 = vmatpush1.msra.mxu0 0.0
  %4494 = vmatprep.subr.mxu0 0.0
  %4495 = vmatpush1.msra.mxu0 0.0
  %4496 = vmatprep.subr.mxu0 0.0
  %4497 = vmatpush1.msra.mxu0 0.0
  %4498 = vmatprep.subr.mxu0 0.0
  %4499 = vmatpush1.msra.mxu0 0.0
  %4500 = vmatprep.subr.mxu0 0.0
  %4501 = vmatpush1.msra.mxu0 0.0
  %4502 = vmatprep.subr.mxu0 0.0
  %4503 = vmatpush1.msra.mxu0 0.0
  %4504 = vmatprep.subr.mxu0 0.0
  %4505 = vmatpush1.msra.mxu0 0.0
  %4506 = vmatprep.subr.mxu0 0.0
  %4507 = vmatpush1.msra.mxu0 0.0
  %4508 = vmatprep.subr.mxu0 0.0
  %4509 = vmatpush1.msra.mxu0 0.0
  %4510 = vmatprep.subr.mxu0 0.0
  %4511 = vmatpush1.msra.mxu0 0.0
  %4512 = vmatprep.subr.mxu0 0.0
  %4513 = vmatpush1.msra.mxu0 0.0
  %4514 = vmatprep.subr.mxu0 0.0
  %4515 = vmatpush1.msra.mxu0 0.0
  %4516 = vmatprep.subr.mxu0 0.0
  %4517 = vmatpush1.msra.mxu0 %v3532
  %4518 = vmatprep.subr.mxu0 0.0
  %4519 = vmatpush1.msra.mxu0 %v3531
  %4520 = vmatprep.subr.mxu0 0.0
  %4521 = vmatpush2.msra.mxu0 0.0
  %4522 = vmatprep.subr.mxu0 0.0
  %4523 = vmatpush2.msra.mxu0 0.0
  %4524 = vmatprep.subr.mxu0 0.0
  %4525 = vmatpush2.msra.mxu0 0.0
  %4526 = vmatprep.subr.mxu0 0.0
  %4527 = vmatpush2.msra.mxu0 0.0
  %4528 = vmatprep.subr.mxu0 0.0
  %4529 = vmatpush2.msra.mxu0 0.0
  %4530 = vmatprep.subr.mxu0 0.0
  %4531 = vmatpush2.msra.mxu0 0.0
  %4532 = vmatprep.subr.mxu0 0.0
  %4533 = vmatpush2.msra.mxu0 0.0
  %4534 = vmatprep.subr.mxu0 0.0
  %4535 = vmatpush2.msra.mxu0 0.0
  %4536 = vmatprep.subr.mxu0 0.0
  %4537 = vmatpush2.msra.mxu0 0.0
  %4538 = vmatprep.subr.mxu0 0.0
  %4539 = vmatpush2.msra.mxu0 0.0
  %4540 = vmatprep.subr.mxu0 0.0
  %4541 = vmatpush2.msra.mxu0 0.0
  %4542 = vmatprep.subr.mxu0 0.0
  %4543 = vmatpush2.msra.mxu0 0.0
  %4544 = vmatprep.subr.mxu0 0.0
  %4545 = vmatpush2.msra.mxu0 0.0
  %4546 = vmatprep.subr.mxu0 0.0
  %4547 = vmatpush2.msra.mxu0 0.0
  %4548 = vmatprep.subr.mxu0 0.0
  %4549 = vmatpush2.msra.mxu0 0.0
  %4550 = vmatprep.subr.mxu0 0.0
  %4551 = vmatpush2.msra.mxu0 0.0
  %4552 = vmatprep.mubr.f32.mxu0 0.0
  %4553 = vmatmul.mubr.f32.gmra.mxu0 %v4486
  %v4554 = vpop.f32.mrf.mxu0
  %v4555 = vadd.f32 %v4481, %v4554
  %v4556 = vpop.f32.mrf.mxu0
  %4557 = vdwg.mxu0
  %v4558 = vsel %vm232, %v4030, %v4029
  %v4559 = vadd.f32 %v4555, %v4558
  %v4560 = vxor.u32 %v4559, 2147483648
  %v4561 = vmul.f32 %v4560, 1.442695
  %v4562 = vpow.pop %v4561
  %v4563 = vadd.f32 %v4562, 1.0
  %v4564 = vrcp.pop %v4563
  %v4565 = vmul.f32 1.0, %v4564
  %v4566 = vtanh.pop %v4559
  %v4567 = vmul.f32 %v4565, %v4402
  %4569 = vrot.lane.b32.xlu0 %v4566, 96
  %v4570 = vpop.permute.xlu0 %4569
  %v4572 = vmul.f32 %v4565, %v4570
  %4574 = vrot.lane.b32.xlu0 %v4572, 16
  %v4575 = vpop.permute.xlu0 %4574
  %v4577 = vadd.f32 %v4567, %v4575
  %v4578 = vtanh.pop %v4577
  %4580 = vrot.lane.b32.xlu0 %v4578, 32
  %v4581 = vpop.permute.xlu0 %4580
  %v4583 = vmul.f32 %v4565, %v4581
  %4585 = vrot.lane.b32.xlu0 %v4583, 16
  %v4586 = vpop.permute.xlu0 %4585
  %v4587 = vsel %vm233, %v4586, 0
  %4589 = vmatprep.subr.mxu0 0.0
  %4590 = vmatpush1.msra.mxu0 0.0
  %4591 = vmatprep.subr.mxu0 0.0
  %4592 = vmatpush1.msra.mxu0 0.0
  %4593 = vmatprep.subr.mxu0 0.0
  %4594 = vmatpush1.msra.mxu0 0.0
  %4595 = vmatprep.subr.mxu0 0.0
  %4596 = vmatpush1.msra.mxu0 0.0
  %4597 = vmatprep.subr.mxu0 0.0
  %4598 = vmatpush1.msra.mxu0 0.0
  %4599 = vmatprep.subr.mxu0 0.0
  %4600 = vmatpush1.msra.mxu0 0.0
  %4601 = vmatprep.subr.mxu0 0.0
  %4602 = vmatpush1.msra.mxu0 0.0
  %4603 = vmatprep.subr.mxu0 0.0
  %4604 = vmatpush1.msra.mxu0 0.0
  %4605 = vmatprep.subr.mxu0 0.0
  %4606 = vmatpush1.msra.mxu0 0.0
  %4607 = vmatprep.subr.mxu0 0.0
  %4608 = vmatpush1.msra.mxu0 0.0
  %4609 = vmatprep.subr.mxu0 0.0
  %4610 = vmatpush1.msra.mxu0 0.0
  %4611 = vmatprep.subr.mxu0 0.0
  %4612 = vmatpush1.msra.mxu0 0.0
  %4613 = vmatprep.subr.mxu0 0.0
  %4614 = vmatpush1.msra.mxu0 0.0
  %4615 = vmatprep.subr.mxu0 0.0
  %4616 = vmatpush1.msra.mxu0 0.0
  %4617 = vmatprep.subr.mxu0 0.0
  %4618 = vmatpush1.msra.mxu0 %v3534
  %4619 = vmatprep.subr.mxu0 0.0
  %4620 = vmatpush1.msra.mxu0 %v3533
  %4621 = vmatprep.subr.mxu0 0.0
  %4622 = vmatpush2.msra.mxu0 0.0
  %4623 = vmatprep.subr.mxu0 0.0
  %4624 = vmatpush2.msra.mxu0 0.0
  %4625 = vmatprep.subr.mxu0 0.0
  %4626 = vmatpush2.msra.mxu0 0.0
  %4627 = vmatprep.subr.mxu0 0.0
  %4628 = vmatpush2.msra.mxu0 0.0
  %4629 = vmatprep.subr.mxu0 0.0
  %4630 = vmatpush2.msra.mxu0 0.0
  %4631 = vmatprep.subr.mxu0 0.0
  %4632 = vmatpush2.msra.mxu0 0.0
  %4633 = vmatprep.subr.mxu0 0.0
  %4634 = vmatpush2.msra.mxu0 0.0
  %4635 = vmatprep.subr.mxu0 0.0
  %4636 = vmatpush2.msra.mxu0 0.0
  %4637 = vmatprep.subr.mxu0 0.0
  %4638 = vmatpush2.msra.mxu0 0.0
  %4639 = vmatprep.subr.mxu0 0.0
  %4640 = vmatpush2.msra.mxu0 0.0
  %4641 = vmatprep.subr.mxu0 0.0
  %4642 = vmatpush2.msra.mxu0 0.0
  %4643 = vmatprep.subr.mxu0 0.0
  %4644 = vmatpush2.msra.mxu0 0.0
  %4645 = vmatprep.subr.mxu0 0.0
  %4646 = vmatpush2.msra.mxu0 0.0
  %4647 = vmatprep.subr.mxu0 0.0
  %4648 = vmatpush2.msra.mxu0 0.0
  %4649 = vmatprep.subr.mxu0 0.0
  %4650 = vmatpush2.msra.mxu0 0.0
  %4651 = vmatprep.subr.mxu0 0.0
  %4652 = vmatpush2.msra.mxu0 0.0
  %4653 = vmatprep.mubr.f32.mxu0 0.0
  %4654 = vmatmul.mubr.f32.gmra.mxu0 %v4587
  %v4655 = vpop.f32.mrf.mxu0
  %v4656 = vadd.f32 0.0, %v4655
  %v4657 = vpop.f32.mrf.mxu0
  %4658 = vdwg.mxu0
  %4659 = vrot.lane.b32.xlu0 %v4583, 80
  %v4660 = vpop.permute.xlu0 %4659
  %v4661 = vsel %vm233, %v4660, 0
  %4663 = vmatprep.subr.mxu0 0.0
  %4664 = vmatpush1.msra.mxu0 0.0
  %4665 = vmatprep.subr.mxu0 0.0
  %4666 = vmatpush1.msra.mxu0 0.0
  %4667 = vmatprep.subr.mxu0 0.0
  %4668 = vmatpush1.msra.mxu0 0.0
  %4669 = vmatprep.subr.mxu0 0.0
  %4670 = vmatpush1.msra.mxu0 0.0
  %4671 = vmatprep.subr.mxu0 0.0
  %4672 = vmatpush1.msra.mxu0 0.0
  %4673 = vmatprep.subr.mxu0 0.0
  %4674 = vmatpush1.msra.mxu0 0.0
  %4675 = vmatprep.subr.mxu0 0.0
  %4676 = vmatpush1.msra.mxu0 0.0
  %4677 = vmatprep.subr.mxu0 0.0
  %4678 = vmatpush1.msra.mxu0 0.0
  %4679 = vmatprep.subr.mxu0 0.0
  %4680 = vmatpush1.msra.mxu0 0.0
  %4681 = vmatprep.subr.mxu0 0.0
  %4682 = vmatpush1.msra.mxu0 0.0
  %4683 = vmatprep.subr.mxu0 0.0
  %4684 = vmatpush1.msra.mxu0 0.0
  %4685 = vmatprep.subr.mxu0 0.0
  %4686 = vmatpush1.msra.mxu0 0.0
  %4687 = vmatprep.subr.mxu0 0.0
  %4688 = vmatpush1.msra.mxu0 0.0
  %4689 = vmatprep.subr.mxu0 0.0
  %4690 = vmatpush1.msra.mxu0 0.0
  %4691 = vmatprep.subr.mxu0 0.0
  %4692 = vmatpush1.msra.mxu0 %v3532
  %4693 = vmatprep.subr.mxu0 0.0
  %4694 = vmatpush1.msra.mxu0 %v3531
  %4695 = vmatprep.subr.mxu0 0.0
  %4696 = vmatpush2.msra.mxu0 0.0
  %4697 = vmatprep.subr.mxu0 0.0
  %4698 = vmatpush2.msra.mxu0 0.0
  %4699 = vmatprep.subr.mxu0 0.0
  %4700 = vmatpush2.msra.mxu0 0.0
  %4701 = vmatprep.subr.mxu0 0.0
  %4702 = vmatpush2.msra.mxu0 0.0
  %4703 = vmatprep.subr.mxu0 0.0
  %4704 = vmatpush2.msra.mxu0 0.0
  %4705 = vmatprep.subr.mxu0 0.0
  %4706 = vmatpush2.msra.mxu0 0.0
  %4707 = vmatprep.subr.mxu0 0.0
  %4708 = vmatpush2.msra.mxu0 0.0
  %4709 = vmatprep.subr.mxu0 0.0
  %4710 = vmatpush2.msra.mxu0 0.0
  %4711 = vmatprep.subr.mxu0 0.0
  %4712 = vmatpush2.msra.mxu0 0.0
  %4713 = vmatprep.subr.mxu0 0.0
  %4714 = vmatpush2.msra.mxu0 0.0
  %4715 = vmatprep.subr.mxu0 0.0
  %4716 = vmatpush2.msra.mxu0 0.0
  %4717 = vmatprep.subr.mxu0 0.0
  %4718 = vmatpush2.msra.mxu0 0.0
  %4719 = vmatprep.subr.mxu0 0.0
  %4720 = vmatpush2.msra.mxu0 0.0
  %4721 = vmatprep.subr.mxu0 0.0
  %4722 = vmatpush2.msra.mxu0 0.0
  %4723 = vmatprep.subr.mxu0 0.0
  %4724 = vmatpush2.msra.mxu0 0.0
  %4725 = vmatprep.subr.mxu0 0.0
  %4726 = vmatpush2.msra.mxu0 0.0
  %4727 = vmatprep.mubr.f32.mxu0 0.0
  %4728 = vmatmul.mubr.f32.gmra.mxu0 %v4661
  %v4729 = vpop.f32.mrf.mxu0
  %v4730 = vadd.f32 %v4656, %v4729
  %v4731 = vpop.f32.mrf.mxu0
  %4732 = vdwg.mxu0
  %v4733 = vsel %vm232, %v3853, %v3852
  %v4734 = vadd.f32 %v4730, %v4733
  %v4735 = vxor.u32 %v4734, 2147483648
  %v4736 = vmul.f32 %v4735, 1.442695
  %v4737 = vpow.pop %v4736
  %v4738 = vadd.f32 %v4737, 1.0
  %v4739 = vrcp.pop %v4738
  %v4740 = vmul.f32 1.0, %v4739
  %v4741 = vtanh.pop %v4734
  %v4742 = vmul.f32 %v4740, %v4577
  %4744 = vrot.lane.b32.xlu0 %v4741, 96
  %v4745 = vpop.permute.xlu0 %4744
  %v4747 = vmul.f32 %v4740, %v4745
  %4749 = vrot.lane.b32.xlu0 %v4747, 16
  %v4750 = vpop.permute.xlu0 %4749
  %v4752 = vadd.f32 %v4742, %v4750
  %v4753 = vtanh.pop %v4752
  %4755 = vrot.lane.b32.xlu0 %v4753, 32
  %v4756 = vpop.permute.xlu0 %4755
  %v4758 = vmul.f32 %v4740, %v4756
  %4760 = vrot.lane.b32.xlu0 %v4758, 16
  %v4761 = vpop.permute.xlu0 %4760
  %v4762 = vsel %vm233, %v4761, 0
  %4764 = vmatprep.subr.mxu0 0.0
  %4765 = vmatpush1.msra.mxu0 0.0
  %4766 = vmatprep.subr.mxu0 0.0
  %4767 = vmatpush1.msra.mxu0 0.0
  %4768 = vmatprep.subr.mxu0 0.0
  %4769 = vmatpush1.msra.mxu0 0.0
  %4770 = vmatprep.subr.mxu0 0.0
  %4771 = vmatpush1.msra.mxu0 0.0
  %4772 = vmatprep.subr.mxu0 0.0
  %4773 = vmatpush1.msra.mxu0 0.0
  %4774 = vmatprep.subr.mxu0 0.0
  %4775 = vmatpush1.msra.mxu0 0.0
  %4776 = vmatprep.subr.mxu0 0.0
  %4777 = vmatpush1.msra.mxu0 0.0
  %4778 = vmatprep.subr.mxu0 0.0
  %4779 = vmatpush1.msra.mxu0 0.0
  %4780 = vmatprep.subr.mxu0 0.0
  %4781 = vmatpush1.msra.mxu0 0.0
  %4782 = vmatprep.subr.mxu0 0.0
  %4783 = vmatpush1.msra.mxu0 0.0
  %4784 = vmatprep.subr.mxu0 0.0
  %4785 = vmatpush1.msra.mxu0 0.0
  %4786 = vmatprep.subr.mxu0 0.0
  %4787 = vmatpush1.msra.mxu0 0.0
  %4788 = vmatprep.subr.mxu0 0.0
  %4789 = vmatpush1.msra.mxu0 0.0
  %4790 = vmatprep.subr.mxu0 0.0
  %4791 = vmatpush1.msra.mxu0 0.0
  %4792 = vmatprep.subr.mxu0 0.0
  %4793 = vmatpush1.msra.mxu0 %v3534
  %4794 = vmatprep.subr.mxu0 0.0
  %4795 = vmatpush1.msra.mxu0 %v3533
  %4796 = vmatprep.subr.mxu0 0.0
  %4797 = vmatpush2.msra.mxu0 0.0
  %4798 = vmatprep.subr.mxu0 0.0
  %4799 = vmatpush2.msra.mxu0 0.0
  %4800 = vmatprep.subr.mxu0 0.0
  %4801 = vmatpush2.msra.mxu0 0.0
  %4802 = vmatprep.subr.mxu0 0.0
  %4803 = vmatpush2.msra.mxu0 0.0
  %4804 = vmatprep.subr.mxu0 0.0
  %4805 = vmatpush2.msra.mxu0 0.0
  %4806 = vmatprep.subr.mxu0 0.0
  %4807 = vmatpush2.msra.mxu0 0.0
  %4808 = vmatprep.subr.mxu0 0.0
  %4809 = vmatpush2.msra.mxu0 0.0
  %4810 = vmatprep.subr.mxu0 0.0
  %4811 = vmatpush2.msra.mxu0 0.0
  %4812 = vmatprep.subr.mxu0 0.0
  %4813 = vmatpush2.msra.mxu0 0.0
  %4814 = vmatprep.subr.mxu0 0.0
  %4815 = vmatpush2.msra.mxu0 0.0
  %4816 = vmatprep.subr.mxu0 0.0
  %4817 = vmatpush2.msra.mxu0 0.0
  %4818 = vmatprep.subr.mxu0 0.0
  %4819 = vmatpush2.msra.mxu0 0.0
  %4820 = vmatprep.subr.mxu0 0.0
  %4821 = vmatpush2.msra.mxu0 0.0
  %4822 = vmatprep.subr.mxu0 0.0
  %4823 = vmatpush2.msra.mxu0 0.0
  %4824 = vmatprep.subr.mxu0 0.0
  %4825 = vmatpush2.msra.mxu0 0.0
  %4826 = vmatprep.subr.mxu0 0.0
  %4827 = vmatpush2.msra.mxu0 0.0
  %4828 = vmatprep.mubr.f32.mxu0 0.0
  %4829 = vmatmul.mubr.f32.gmra.mxu0 %v4762
  %v4830 = vpop.f32.mrf.mxu0
  %v4831 = vadd.f32 0.0, %v4830
  %v4832 = vpop.f32.mrf.mxu0
  %4833 = vdwg.mxu0
  %4834 = vrot.lane.b32.xlu0 %v4758, 80
  %v4835 = vpop.permute.xlu0 %4834
  %v4836 = vsel %vm233, %v4835, 0
  %4838 = vmatprep.subr.mxu0 0.0
  %4839 = vmatpush1.msra.mxu0 0.0
  %4840 = vmatprep.subr.mxu0 0.0
  %4841 = vmatpush1.msra.mxu0 0.0
  %4842 = vmatprep.subr.mxu0 0.0
  %4843 = vmatpush1.msra.mxu0 0.0
  %4844 = vmatprep.subr.mxu0 0.0
  %4845 = vmatpush1.msra.mxu0 0.0
  %4846 = vmatprep.subr.mxu0 0.0
  %4847 = vmatpush1.msra.mxu0 0.0
  %4848 = vmatprep.subr.mxu0 0.0
  %4849 = vmatpush1.msra.mxu0 0.0
  %4850 = vmatprep.subr.mxu0 0.0
  %4851 = vmatpush1.msra.mxu0 0.0
  %4852 = vmatprep.subr.mxu0 0.0
  %4853 = vmatpush1.msra.mxu0 0.0
  %4854 = vmatprep.subr.mxu0 0.0
  %4855 = vmatpush1.msra.mxu0 0.0
  %4856 = vmatprep.subr.mxu0 0.0
  %4857 = vmatpush1.msra.mxu0 0.0
  %4858 = vmatprep.subr.mxu0 0.0
  %4859 = vmatpush1.msra.mxu0 0.0
  %4860 = vmatprep.subr.mxu0 0.0
  %4861 = vmatpush1.msra.mxu0 0.0
  %4862 = vmatprep.subr.mxu0 0.0
  %4863 = vmatpush1.msra.mxu0 0.0
  %4864 = vmatprep.subr.mxu0 0.0
  %4865 = vmatpush1.msra.mxu0 0.0
  %4866 = vmatprep.subr.mxu0 0.0
  %4867 = vmatpush1.msra.mxu0 %v3532
  %4868 = vmatprep.subr.mxu0 0.0
  %4869 = vmatpush1.msra.mxu0 %v3531
  %4870 = vmatprep.subr.mxu0 0.0
  %4871 = vmatpush2.msra.mxu0 0.0
  %4872 = vmatprep.subr.mxu0 0.0
  %4873 = vmatpush2.msra.mxu0 0.0
  %4874 = vmatprep.subr.mxu0 0.0
  %4875 = vmatpush2.msra.mxu0 0.0
  %4876 = vmatprep.subr.mxu0 0.0
  %4877 = vmatpush2.msra.mxu0 0.0
  %4878 = vmatprep.subr.mxu0 0.0
  %4879 = vmatpush2.msra.mxu0 0.0
  %4880 = vmatprep.subr.mxu0 0.0
  %4881 = vmatpush2.msra.mxu0 0.0
  %4882 = vmatprep.subr.mxu0 0.0
  %4883 = vmatpush2.msra.mxu0 0.0
  %4884 = vmatprep.subr.mxu0 0.0
  %4885 = vmatpush2.msra.mxu0 0.0
  %4886 = vmatprep.subr.mxu0 0.0
  %4887 = vmatpush2.msra.mxu0 0.0
  %4888 = vmatprep.subr.mxu0 0.0
  %4889 = vmatpush2.msra.mxu0 0.0
  %4890 = vmatprep.subr.mxu0 0.0
  %4891 = vmatpush2.msra.mxu0 0.0
  %4892 = vmatprep.subr.mxu0 0.0
  %4893 = vmatpush2.msra.mxu0 0.0
  %4894 = vmatprep.subr.mxu0 0.0
  %4895 = vmatpush2.msra.mxu0 0.0
  %4896 = vmatprep.subr.mxu0 0.0
  %4897 = vmatpush2.msra.mxu0 0.0
  %4898 = vmatprep.subr.mxu0 0.0
  %4899 = vmatpush2.msra.mxu0 0.0
  %4900 = vmatprep.subr.mxu0 0.0
  %4901 = vmatpush2.msra.mxu0 0.0
  %4902 = vmatprep.mubr.f32.mxu0 0.0
  %4903 = vmatmul.mubr.f32.gmra.mxu0 %v4836
  %v4904 = vpop.f32.mrf.mxu0
  %v4905 = vadd.f32 %v4831, %v4904
  %v4906 = vpop.f32.mrf.mxu0
  %4907 = vdwg.mxu0
  %v4908 = vsel %vm232, %v3676, %v3675
  %v4909 = vadd.f32 %v4905, %v4908
  %v4910 = vxor.u32 %v4909, 2147483648
  %v4911 = vmul.f32 %v4910, 1.442695
  %v4912 = vpow.pop %v4911
  %v4913 = vadd.f32 %v4912, 1.0
  %v4914 = vrcp.pop %v4913
  %v4915 = vmul.f32 1.0, %v4914
  %v4916 = vtanh.pop %v4909
  %v4917 = vmul.f32 %v4915, %v4752
  %4919 = vrot.lane.b32.xlu0 %v4916, 96
  %v4920 = vpop.permute.xlu0 %4919
  %v4922 = vmul.f32 %v4915, %v4920
  %4924 = vrot.lane.b32.xlu0 %v4922, 16
  %v4925 = vpop.permute.xlu0 %4924
  %v4927 = vadd.f32 %v4917, %v4925
  %v4928 = vtanh.pop %v4927
  %4930 = vrot.lane.b32.xlu0 %v4928, 32
  %v4931 = vpop.permute.xlu0 %4930
  %v4933 = vmul.f32 %v4915, %v4931
  %v4934 = vld [vmem:[%s10] sm:$0xff]
  %v4935 = vld [vmem:[%s10 + $0x8] sm:$0xff]
  %v4936 = vld [vmem:[%s10 + $0x10] sm:$0xff]
  %v4937 = vld [vmem:[%s10 + $0x18] sm:$0xff]
  %4939 = vrot.lane.b32.xlu0 %v4933, 16
  %v4940 = vpop.permute.xlu0 %4939
  %v4941 = vsel %vm233, %v4940, 0
  %4943 = vmatprep.subr.mxu0 0.0
  %4944 = vmatpush1.msra.mxu0 0.0
  %4945 = vmatprep.subr.mxu0 0.0
  %4946 = vmatpush1.msra.mxu0 0.0
  %4947 = vmatprep.subr.mxu0 0.0
  %4948 = vmatpush1.msra.mxu0 0.0
  %4949 = vmatprep.subr.mxu0 0.0
  %4950 = vmatpush1.msra.mxu0 0.0
  %4951 = vmatprep.subr.mxu0 0.0
  %4952 = vmatpush1.msra.mxu0 0.0
  %4953 = vmatprep.subr.mxu0 0.0
  %4954 = vmatpush1.msra.mxu0 0.0
  %4955 = vmatprep.subr.mxu0 0.0
  %4956 = vmatpush1.msra.mxu0 0.0
  %4957 = vmatprep.subr.mxu0 0.0
  %4958 = vmatpush1.msra.mxu0 0.0
  %4959 = vmatprep.subr.mxu0 0.0
  %4960 = vmatpush1.msra.mxu0 0.0
  %4961 = vmatprep.subr.mxu0 0.0
  %4962 = vmatpush1.msra.mxu0 0.0
  %4963 = vmatprep.subr.mxu0 0.0
  %4964 = vmatpush1.msra.mxu0 0.0
  %4965 = vmatprep.subr.mxu0 0.0
  %4966 = vmatpush1.msra.mxu0 0.0
  %4967 = vmatprep.subr.mxu0 0.0
  %4968 = vmatpush1.msra.mxu0 0.0
  %4969 = vmatprep.subr.mxu0 0.0
  %4970 = vmatpush1.msra.mxu0 0.0
  %4971 = vmatprep.subr.mxu0 0.0
  %4972 = vmatpush1.msra.mxu0 %v4937
  %4973 = vmatprep.subr.mxu0 0.0
  %4974 = vmatpush1.msra.mxu0 %v4936
  %4975 = vmatprep.subr.mxu0 0.0
  %4976 = vmatpush2.msra.mxu0 0.0
  %4977 = vmatprep.subr.mxu0 0.0
  %4978 = vmatpush2.msra.mxu0 0.0
  %4979 = vmatprep.subr.mxu0 0.0
  %4980 = vmatpush2.msra.mxu0 0.0
  %4981 = vmatprep.subr.mxu0 0.0
  %4982 = vmatpush2.msra.mxu0 0.0
  %4983 = vmatprep.subr.mxu0 0.0
  %4984 = vmatpush2.msra.mxu0 0.0
  %4985 = vmatprep.subr.mxu0 0.0
  %4986 = vmatpush2.msra.mxu0 0.0
  %4987 = vmatprep.subr.mxu0 0.0
  %4988 = vmatpush2.msra.mxu0 0.0
  %4989 = vmatprep.subr.mxu0 0.0
  %4990 = vmatpush2.msra.mxu0 0.0
  %4991 = vmatprep.subr.mxu0 0.0
  %4992 = vmatpush2.msra.mxu0 0.0
  %4993 = vmatprep.subr.mxu0 0.0
  %4994 = vmatpush2.msra.mxu0 0.0
  %4995 = vmatprep.subr.mxu0 0.0
  %4996 = vmatpush2.msra.mxu0 0.0
  %4997 = vmatprep.subr.mxu0 0.0
  %4998 = vmatpush2.msra.mxu0 0.0
  %4999 = vmatprep.subr.mxu0 0.0
  %5000 = vmatpush2.msra.mxu0 0.0
  %5001 = vmatprep.subr.mxu0 0.0
  %5002 = vmatpush2.msra.mxu0 0.0
  %5003 = vmatprep.subr.mxu0 0.0
  %5004 = vmatpush2.msra.mxu0 0.0
  %5005 = vmatprep.subr.mxu0 0.0
  %5006 = vmatpush2.msra.mxu0 0.0
  %5007 = vmatprep.mubr.f32.mxu0 0.0
  %5008 = vmatmul.mubr.f32.gmra.mxu0 %v4941
  %v5009 = vpop.f32.mrf.mxu0
  %v5010 = vadd.f32 0.0, %v5009
  %v5011 = vpop.f32.mrf.mxu0
  %5012 = vmatprep.mubr.f32.mxu0 0.0
  %5013 = vmatmul.mubr.f32.gmra.mxu0 %v4762
  %v5014 = vpop.f32.mrf.mxu0
  %v5015 = vadd.f32 0.0, %v5014
  %v5016 = vpop.f32.mrf.mxu0
  %5017 = vmatprep.mubr.f32.mxu0 0.0
  %5018 = vmatmul.mubr.f32.gmra.mxu0 %v4587
  %v5019 = vpop.f32.mrf.mxu0
  %v5020 = vadd.f32 0.0, %v5019
  %v5021 = vpop.f32.mrf.mxu0
  %5022 = vmatprep.mubr.f32.mxu0 0.0
  %5023 = vmatmul.mubr.f32.gmra.mxu0 %v4412
  %v5024 = vpop.f32.mrf.mxu0
  %v5025 = vadd.f32 0.0, %v5024
  %v5026 = vpop.f32.mrf.mxu0
  %5027 = vmatprep.mubr.f32.mxu0 0.0
  %5028 = vmatmul.mubr.f32.gmra.mxu0 %v4237
  %v5029 = vpop.f32.mrf.mxu0
  %v5030 = vadd.f32 0.0, %v5029
  %v5031 = vpop.f32.mrf.mxu0
  %5032 = vmatprep.mubr.f32.mxu0 0.0
  %5033 = vmatmul.mubr.f32.gmra.mxu0 %v4060
  %v5034 = vpop.f32.mrf.mxu0
  %v5035 = vadd.f32 0.0, %v5034
  %v5036 = vpop.f32.mrf.mxu0
  %5037 = vmatprep.mubr.f32.mxu0 0.0
  %5038 = vmatmul.mubr.f32.gmra.mxu0 %v3883
  %v5039 = vpop.f32.mrf.mxu0
  %v5040 = vadd.f32 0.0, %v5039
  %v5041 = vpop.f32.mrf.mxu0
  %5042 = vmatprep.mubr.f32.mxu0 0.0
  %5043 = vmatmul.mubr.f32.gmra.mxu0 %v3706
  %v5044 = vpop.f32.mrf.mxu0
  %v5045 = vadd.f32 0.0, %v5044
  %v5046 = vpop.f32.mrf.mxu0
  %5047 = vdwg.mxu0
  %5048 = vrot.lane.b32.xlu0 %v4933, 80
  %v5049 = vpop.permute.xlu0 %5048
  %v5050 = vsel %vm233, %v5049, 0
  %5052 = vmatprep.subr.mxu0 0.0
  %5053 = vmatpush1.msra.mxu0 0.0
  %5054 = vmatprep.subr.mxu0 0.0
  %5055 = vmatpush1.msra.mxu0 0.0
  %5056 = vmatprep.subr.mxu0 0.0
  %5057 = vmatpush1.msra.mxu0 0.0
  %5058 = vmatprep.subr.mxu0 0.0
  %5059 = vmatpush1.msra.mxu0 0.0
  %5060 = vmatprep.subr.mxu0 0.0
  %5061 = vmatpush1.msra.mxu0 0.0
  %5062 = vmatprep.subr.mxu0 0.0
  %5063 = vmatpush1.msra.mxu0 0.0
  %5064 = vmatprep.subr.mxu0 0.0
  %5065 = vmatpush1.msra.mxu0 0.0
  %5066 = vmatprep.subr.mxu0 0.0
  %5067 = vmatpush1.msra.mxu0 0.0
  %5068 = vmatprep.subr.mxu0 0.0
  %5069 = vmatpush1.msra.mxu0 0.0
  %5070 = vmatprep.subr.mxu0 0.0
  %5071 = vmatpush1.msra.mxu0 0.0
  %5072 = vmatprep.subr.mxu0 0.0
  %5073 = vmatpush1.msra.mxu0 0.0
  %5074 = vmatprep.subr.mxu0 0.0
  %5075 = vmatpush1.msra.mxu0 0.0
  %5076 = vmatprep.subr.mxu0 0.0
  %5077 = vmatpush1.msra.mxu0 0.0
  %5078 = vmatprep.subr.mxu0 0.0
  %5079 = vmatpush1.msra.mxu0 0.0
  %5080 = vmatprep.subr.mxu0 0.0
  %5081 = vmatpush1.msra.mxu0 %v4935
  %5082 = vmatprep.subr.mxu0 0.0
  %5083 = vmatpush1.msra.mxu0 %v4934
  %5084 = vmatprep.subr.mxu0 0.0
  %5085 = vmatpush2.msra.mxu0 0.0
  %5086 = vmatprep.subr.mxu0 0.0
  %5087 = vmatpush2.msra.mxu0 0.0
  %5088 = vmatprep.subr.mxu0 0.0
  %5089 = vmatpush2.msra.mxu0 0.0
  %5090 = vmatprep.subr.mxu0 0.0
  %5091 = vmatpush2.msra.mxu0 0.0
  %5092 = vmatprep.subr.mxu0 0.0
  %5093 = vmatpush2.msra.mxu0 0.0
  %5094 = vmatprep.subr.mxu0 0.0
  %5095 = vmatpush2.msra.mxu0 0.0
  %5096 = vmatprep.subr.mxu0 0.0
  %5097 = vmatpush2.msra.mxu0 0.0
  %5098 = vmatprep.subr.mxu0 0.0
  %5099 = vmatpush2.msra.mxu0 0.0
  %5100 = vmatprep.subr.mxu0 0.0
  %5101 = vmatpush2.msra.mxu0 0.0
  %5102 = vmatprep.subr.mxu0 0.0
  %5103 = vmatpush2.msra.mxu0 0.0
  %5104 = vmatprep.subr.mxu0 0.0
  %5105 = vmatpush2.msra.mxu0 0.0
  %5106 = vmatprep.subr.mxu0 0.0
  %5107 = vmatpush2.msra.mxu0 0.0
  %5108 = vmatprep.subr.mxu0 0.0
  %5109 = vmatpush2.msra.mxu0 0.0
  %5110 = vmatprep.subr.mxu0 0.0
  %5111 = vmatpush2.msra.mxu0 0.0
  %5112 = vmatprep.subr.mxu0 0.0
  %5113 = vmatpush2.msra.mxu0 0.0
  %5114 = vmatprep.subr.mxu0 0.0
  %5115 = vmatpush2.msra.mxu0 0.0
  %5116 = vmatprep.mubr.f32.mxu0 0.0
  %5117 = vmatmul.mubr.f32.gmra.mxu0 %v3780
  %v5118 = vpop.f32.mrf.mxu0
  %v5119 = vadd.f32 %v5010, %v5118
  %v5120 = vpop.f32.mrf.mxu0
  %5121 = vmatprep.mubr.f32.mxu0 0.0
  %5122 = vmatmul.mubr.f32.gmra.mxu0 %v3957
  %v5123 = vpop.f32.mrf.mxu0
  %v5124 = vadd.f32 %v5015, %v5123
  %v5125 = vpop.f32.mrf.mxu0
  %5126 = vmatprep.mubr.f32.mxu0 0.0
  %5127 = vmatmul.mubr.f32.gmra.mxu0 %v4134
  %v5128 = vpop.f32.mrf.mxu0
  %v5129 = vadd.f32 %v5020, %v5128
  %v5130 = vpop.f32.mrf.mxu0
  %5131 = vmatprep.mubr.f32.mxu0 0.0
  %5132 = vmatmul.mubr.f32.gmra.mxu0 %v4311
  %v5133 = vpop.f32.mrf.mxu0
  %v5134 = vadd.f32 %v5025, %v5133
  %v5135 = vpop.f32.mrf.mxu0
  %5136 = vmatprep.mubr.f32.mxu0 0.0
  %5137 = vmatmul.mubr.f32.gmra.mxu0 %v4486
  %v5138 = vpop.f32.mrf.mxu0
  %v5139 = vadd.f32 %v5030, %v5138
  %v5140 = vpop.f32.mrf.mxu0
  %5141 = vmatprep.mubr.f32.mxu0 0.0
  %5142 = vmatmul.mubr.f32.gmra.mxu0 %v4661
  %v5143 = vpop.f32.mrf.mxu0
  %v5144 = vadd.f32 %v5035, %v5143
  %v5145 = vpop.f32.mrf.mxu0
  %5146 = vmatprep.mubr.f32.mxu0 0.0
  %5147 = vmatmul.mubr.f32.gmra.mxu0 %v4836
  %v5148 = vpop.f32.mrf.mxu0
  %v5149 = vadd.f32 %v5040, %v5148
  %v5150 = vpop.f32.mrf.mxu0
  %5151 = vmatprep.mubr.f32.mxu0 0.0
  %5152 = vmatmul.mubr.f32.gmra.mxu0 %v5050
  %v5153 = vpop.f32.mrf.mxu0
  %v5154 = vadd.f32 %v5045, %v5153
  %v5155 = vpop.f32.mrf.mxu0
  %5156 = vdwg.mxu0
  %v5157 = vld [vmem:[%s11] sm:$0x1]
  %v5159 = vlaneseq
  %v5160 = vshrl.u32 %v5159, 7
  %v5161 = vsub.s32 0, %v5160
  %v5162 = vrot.slane %v5157, %v5161
  %v5164 = vadd.f32 %v5119, %v5162
  %v5165 = vadd.f32 %v5124, %v5162
  %v5166 = vadd.f32 %v5129, %v5162
  %v5167 = vadd.f32 %v5134, %v5162
  %v5168 = vadd.f32 %v5139, %v5162
  %v5169 = vadd.f32 %v5144, %v5162
  %v5170 = vadd.f32 %v5149, %v5162
  %v5171 = vadd.f32 %v5154, %v5162
  %5172 = vst [vmem:[#allocation5] sm:$0xff] %v5164
  %5173 = vst [vmem:[#allocation5 + $0x8] sm:$0xff] %v5165
  %5174 = vst [vmem:[#allocation5 + $0x10] sm:$0xff] %v5166
  %5175 = vst [vmem:[#allocation5 + $0x18] sm:$0xff] %v5167
  %5176 = vst [vmem:[#allocation5 + $0x20] sm:$0xff] %v5168
  %5177 = vst [vmem:[#allocation5 + $0x28] sm:$0xff] %v5169
  %5178 = vst [vmem:[#allocation5 + $0x30] sm:$0xff] %v5170
  %5179 = vst [vmem:[#allocation5 + $0x38] sm:$0xff] %v5171
  %v5180 = vld [vmem:[%s12] sm:$0xff]
  %v5181 = vld [vmem:[%s12 + $0x8] sm:$0xff]
  %v5182 = vld [vmem:[%s12 + $0x10] sm:$0xff]
  %v5183 = vld [vmem:[%s12 + $0x18] sm:$0xff]
  %5184 = vmatprep.subr.mxu0 0.0
  %5185 = vmatpush1.msra.mxu0 0.0
  %5186 = vmatprep.subr.mxu0 0.0
  %5187 = vmatpush1.msra.mxu0 0.0
  %5188 = vmatprep.subr.mxu0 0.0
  %5189 = vmatpush1.msra.mxu0 0.0
  %5190 = vmatprep.subr.mxu0 0.0
  %5191 = vmatpush1.msra.mxu0 0.0
  %5192 = vmatprep.subr.mxu0 0.0
  %5193 = vmatpush1.msra.mxu0 0.0
  %5194 = vmatprep.subr.mxu0 0.0
  %5195 = vmatpush1.msra.mxu0 0.0
  %5196 = vmatprep.subr.mxu0 0.0
  %5197 = vmatpush1.msra.mxu0 0.0
  %5198 = vmatprep.subr.mxu0 0.0
  %5199 = vmatpush1.msra.mxu0 0.0
  %5200 = vmatprep.subr.mxu0 0.0
  %5201 = vmatpush1.msra.mxu0 0.0
  %5202 = vmatprep.subr.mxu0 0.0
  %5203 = vmatpush1.msra.mxu0 0.0
  %5204 = vmatprep.subr.mxu0 0.0
  %5205 = vmatpush1.msra.mxu0 0.0
  %5206 = vmatprep.subr.mxu0 0.0
  %5207 = vmatpush1.msra.mxu0 0.0
  %5208 = vmatprep.subr.mxu0 0.0
  %5209 = vmatpush1.msra.mxu0 0.0
  %5210 = vmatprep.subr.mxu0 0.0
  %5211 = vmatpush1.msra.mxu0 0.0
  %5212 = vmatprep.subr.mxu0 0.0
  %5213 = vmatpush1.msra.mxu0 %v5183
  %5214 = vmatprep.subr.mxu0 0.0
  %5215 = vmatpush1.msra.mxu0 %v5182
  %5216 = vmatprep.subr.mxu0 0.0
  %5217 = vmatpush2.msra.mxu0 0.0
  %5218 = vmatprep.subr.mxu0 0.0
  %5219 = vmatpush2.msra.mxu0 0.0
  %5220 = vmatprep.subr.mxu0 0.0
  %5221 = vmatpush2.msra.mxu0 0.0
  %5222 = vmatprep.subr.mxu0 0.0
  %5223 = vmatpush2.msra.mxu0 0.0
  %5224 = vmatprep.subr.mxu0 0.0
  %5225 = vmatpush2.msra.mxu0 0.0
  %5226 = vmatprep.subr.mxu0 0.0
  %5227 = vmatpush2.msra.mxu0 0.0
  %5228 = vmatprep.subr.mxu0 0.0
  %5229 = vmatpush2.msra.mxu0 0.0
  %5230 = vmatprep.subr.mxu0 0.0
  %5231 = vmatpush2.msra.mxu0 0.0
  %5232 = vmatprep.subr.mxu0 0.0
  %5233 = vmatpush2.msra.mxu0 0.0
  %5234 = vmatprep.subr.mxu0 0.0
  %5235 = vmatpush2.msra.mxu0 0.0
  %5236 = vmatprep.subr.mxu0 0.0
  %5237 = vmatpush2.msra.mxu0 0.0
  %5238 = vmatprep.subr.mxu0 0.0
  %5239 = vmatpush2.msra.mxu0 0.0
  %5240 = vmatprep.subr.mxu0 0.0
  %5241 = vmatpush2.msra.mxu0 0.0
  %5242 = vmatprep.subr.mxu0 0.0
  %5243 = vmatpush2.msra.mxu0 0.0
  %5244 = vmatprep.subr.mxu0 0.0
  %5245 = vmatpush2.msra.mxu0 0.0
  %5246 = vmatprep.subr.mxu0 0.0
  %5247 = vmatpush2.msra.mxu0 0.0
  %5248 = vmatprep.mubr.f32.mxu0 0.0
  %5249 = vmatmul.mubr.f32.gmra.mxu0 %v235
  %v5250 = vpop.f32.mrf.mxu0
  %v5251 = vadd.f32 0.0, %v5250
  %v5252 = vpop.f32.mrf.mxu0
  %5253 = vdwg.mxu0
  %5254 = vmatprep.subr.mxu0 0.0
  %5255 = vmatpush1.msra.mxu0 0.0
  %5256 = vmatprep.subr.mxu0 0.0
  %5257 = vmatpush1.msra.mxu0 0.0
  %5258 = vmatprep.subr.mxu0 0.0
  %5259 = vmatpush1.msra.mxu0 0.0
  %5260 = vmatprep.subr.mxu0 0.0
  %5261 = vmatpush1.msra.mxu0 0.0
  %5262 = vmatprep.subr.mxu0 0.0
  %5263 = vmatpush1.msra.mxu0 0.0
  %5264 = vmatprep.subr.mxu0 0.0
  %5265 = vmatpush1.msra.mxu0 0.0
  %5266 = vmatprep.subr.mxu0 0.0
  %5267 = vmatpush1.msra.mxu0 0.0
  %5268 = vmatprep.subr.mxu0 0.0
  %5269 = vmatpush1.msra.mxu0 0.0
  %5270 = vmatprep.subr.mxu0 0.0
  %5271 = vmatpush1.msra.mxu0 0.0
  %5272 = vmatprep.subr.mxu0 0.0
  %5273 = vmatpush1.msra.mxu0 0.0
  %5274 = vmatprep.subr.mxu0 0.0
  %5275 = vmatpush1.msra.mxu0 0.0
  %5276 = vmatprep.subr.mxu0 0.0
  %5277 = vmatpush1.msra.mxu0 0.0
  %5278 = vmatprep.subr.mxu0 0.0
  %5279 = vmatpush1.msra.mxu0 0.0
  %5280 = vmatprep.subr.mxu0 0.0
  %5281 = vmatpush1.msra.mxu0 0.0
  %5282 = vmatprep.subr.mxu0 0.0
  %5283 = vmatpush1.msra.mxu0 %v5181
  %5284 = vmatprep.subr.mxu0 0.0
  %5285 = vmatpush1.msra.mxu0 %v5180
  %5286 = vmatprep.subr.mxu0 0.0
  %5287 = vmatpush2.msra.mxu0 0.0
  %5288 = vmatprep.subr.mxu0 0.0
  %5289 = vmatpush2.msra.mxu0 0.0
  %5290 = vmatprep.subr.mxu0 0.0
  %5291 = vmatpush2.msra.mxu0 0.0
  %5292 = vmatprep.subr.mxu0 0.0
  %5293 = vmatpush2.msra.mxu0 0.0
  %5294 = vmatprep.subr.mxu0 0.0
  %5295 = vmatpush2.msra.mxu0 0.0
  %5296 = vmatprep.subr.mxu0 0.0
  %5297 = vmatpush2.msra.mxu0 0.0
  %5298 = vmatprep.subr.mxu0 0.0
  %5299 = vmatpush2.msra.mxu0 0.0
  %5300 = vmatprep.subr.mxu0 0.0
  %5301 = vmatpush2.msra.mxu0 0.0
  %5302 = vmatprep.subr.mxu0 0.0
  %5303 = vmatpush2.msra.mxu0 0.0
  %5304 = vmatprep.subr.mxu0 0.0
  %5305 = vmatpush2.msra.mxu0 0.0
  %5306 = vmatprep.subr.mxu0 0.0
  %5307 = vmatpush2.msra.mxu0 0.0
  %5308 = vmatprep.subr.mxu0 0.0
  %5309 = vmatpush2.msra.mxu0 0.0
  %5310 = vmatprep.subr.mxu0 0.0
  %5311 = vmatpush2.msra.mxu0 0.0
  %5312 = vmatprep.subr.mxu0 0.0
  %5313 = vmatpush2.msra.mxu0 0.0
  %5314 = vmatprep.subr.mxu0 0.0
  %5315 = vmatpush2.msra.mxu0 0.0
  %5316 = vmatprep.subr.mxu0 0.0
  %5317 = vmatpush2.msra.mxu0 0.0
  %5318 = vmatprep.mubr.f32.mxu0 0.0
  %5319 = vmatmul.mubr.f32.gmra.mxu0 %v235
  %v5320 = vpop.f32.mrf.mxu0
  %v5321 = vadd.f32 %v5251, %v5320
  %v5322 = vpop.f32.mrf.mxu0
  %5323 = vdwg.mxu0
  %v5324 = vld [vmem:[#allocation5] sm:$0xff]
  %v5325 = vld [vmem:[#allocation5 + $0x38] sm:$0xff]
  %v5326 = vsel %vm232, %v5324, %v5325
  %v5327 = vadd.f32 %v5321, %v5326
  %v5328 = vxor.u32 %v5327, 2147483648
  %v5329 = vmul.f32 %v5328, 1.442695
  %v5330 = vpow.pop %v5329
  %v5331 = vadd.f32 %v5330, 1.0
  %v5332 = vrcp.pop %v5331
  %v5333 = vmul.f32 1.0, %v5332
  %v5334 = vtanh.pop %v5327
  %v5335 = vmul.f32 %v5333, 0.0
  %5337 = vrot.lane.b32.xlu0 %v5334, 96
  %v5338 = vpop.permute.xlu0 %5337
  %v5340 = vmul.f32 %v5333, %v5338
  %5342 = vrot.lane.b32.xlu0 %v5340, 16
  %v5343 = vpop.permute.xlu0 %5342
  %v5345 = vadd.f32 %v5335, %v5343
  %v5346 = vtanh.pop %v5345
  %5348 = vrot.lane.b32.xlu0 %v5346, 32
  %v5349 = vpop.permute.xlu0 %5348
  %v5351 = vmul.f32 %v5333, %v5349
  %5353 = vrot.lane.b32.xlu0 %v5351, 16
  %v5354 = vpop.permute.xlu0 %5353
  %v5355 = vsel %vm233, %v5354, 0
  %5357 = vmatprep.subr.mxu0 0.0
  %5358 = vmatpush1.msra.mxu0 0.0
  %5359 = vmatprep.subr.mxu0 0.0
  %5360 = vmatpush1.msra.mxu0 0.0
  %5361 = vmatprep.subr.mxu0 0.0
  %5362 = vmatpush1.msra.mxu0 0.0
  %5363 = vmatprep.subr.mxu0 0.0
  %5364 = vmatpush1.msra.mxu0 0.0
  %5365 = vmatprep.subr.mxu0 0.0
  %5366 = vmatpush1.msra.mxu0 0.0
  %5367 = vmatprep.subr.mxu0 0.0
  %5368 = vmatpush1.msra.mxu0 0.0
  %5369 = vmatprep.subr.mxu0 0.0
  %5370 = vmatpush1.msra.mxu0 0.0
  %5371 = vmatprep.subr.mxu0 0.0
  %5372 = vmatpush1.msra.mxu0 0.0
  %5373 = vmatprep.subr.mxu0 0.0
  %5374 = vmatpush1.msra.mxu0 0.0
  %5375 = vmatprep.subr.mxu0 0.0
  %5376 = vmatpush1.msra.mxu0 0.0
  %5377 = vmatprep.subr.mxu0 0.0
  %5378 = vmatpush1.msra.mxu0 0.0
  %5379 = vmatprep.subr.mxu0 0.0
  %5380 = vmatpush1.msra.mxu0 0.0
  %5381 = vmatprep.subr.mxu0 0.0
  %5382 = vmatpush1.msra.mxu0 0.0
  %5383 = vmatprep.subr.mxu0 0.0
  %5384 = vmatpush1.msra.mxu0 0.0
  %5385 = vmatprep.subr.mxu0 0.0
  %5386 = vmatpush1.msra.mxu0 %v5183
  %5387 = vmatprep.subr.mxu0 0.0
  %5388 = vmatpush1.msra.mxu0 %v5182
  %5389 = vmatprep.subr.mxu0 0.0
  %5390 = vmatpush2.msra.mxu0 0.0
  %5391 = vmatprep.subr.mxu0 0.0
  %5392 = vmatpush2.msra.mxu0 0.0
  %5393 = vmatprep.subr.mxu0 0.0
  %5394 = vmatpush2.msra.mxu0 0.0
  %5395 = vmatprep.subr.mxu0 0.0
  %5396 = vmatpush2.msra.mxu0 0.0
  %5397 = vmatprep.subr.mxu0 0.0
  %5398 = vmatpush2.msra.mxu0 0.0
  %5399 = vmatprep.subr.mxu0 0.0
  %5400 = vmatpush2.msra.mxu0 0.0
  %5401 = vmatprep.subr.mxu0 0.0
  %5402 = vmatpush2.msra.mxu0 0.0
  %5403 = vmatprep.subr.mxu0 0.0
  %5404 = vmatpush2.msra.mxu0 0.0
  %5405 = vmatprep.subr.mxu0 0.0
  %5406 = vmatpush2.msra.mxu0 0.0
  %5407 = vmatprep.subr.mxu0 0.0
  %5408 = vmatpush2.msra.mxu0 0.0
  %5409 = vmatprep.subr.mxu0 0.0
  %5410 = vmatpush2.msra.mxu0 0.0
  %5411 = vmatprep.subr.mxu0 0.0
  %5412 = vmatpush2.msra.mxu0 0.0
  %5413 = vmatprep.subr.mxu0 0.0
  %5414 = vmatpush2.msra.mxu0 0.0
  %5415 = vmatprep.subr.mxu0 0.0
  %5416 = vmatpush2.msra.mxu0 0.0
  %5417 = vmatprep.subr.mxu0 0.0
  %5418 = vmatpush2.msra.mxu0 0.0
  %5419 = vmatprep.subr.mxu0 0.0
  %5420 = vmatpush2.msra.mxu0 0.0
  %5421 = vmatprep.mubr.f32.mxu0 0.0
  %5422 = vmatmul.mubr.f32.gmra.mxu0 %v5355
  %v5423 = vpop.f32.mrf.mxu0
  %v5424 = vadd.f32 0.0, %v5423
  %v5425 = vpop.f32.mrf.mxu0
  %5426 = vdwg.mxu0
  %5427 = vrot.lane.b32.xlu0 %v5351, 80
  %v5428 = vpop.permute.xlu0 %5427
  %v5429 = vsel %vm233, %v5428, 0
  %5431 = vmatprep.subr.mxu0 0.0
  %5432 = vmatpush1.msra.mxu0 0.0
  %5433 = vmatprep.subr.mxu0 0.0
  %5434 = vmatpush1.msra.mxu0 0.0
  %5435 = vmatprep.subr.mxu0 0.0
  %5436 = vmatpush1.msra.mxu0 0.0
  %5437 = vmatprep.subr.mxu0 0.0
  %5438 = vmatpush1.msra.mxu0 0.0
  %5439 = vmatprep.subr.mxu0 0.0
  %5440 = vmatpush1.msra.mxu0 0.0
  %5441 = vmatprep.subr.mxu0 0.0
  %5442 = vmatpush1.msra.mxu0 0.0
  %5443 = vmatprep.subr.mxu0 0.0
  %5444 = vmatpush1.msra.mxu0 0.0
  %5445 = vmatprep.subr.mxu0 0.0
  %5446 = vmatpush1.msra.mxu0 0.0
  %5447 = vmatprep.subr.mxu0 0.0
  %5448 = vmatpush1.msra.mxu0 0.0
  %5449 = vmatprep.subr.mxu0 0.0
  %5450 = vmatpush1.msra.mxu0 0.0
  %5451 = vmatprep.subr.mxu0 0.0
  %5452 = vmatpush1.msra.mxu0 0.0
  %5453 = vmatprep.subr.mxu0 0.0
  %5454 = vmatpush1.msra.mxu0 0.0
  %5455 = vmatprep.subr.mxu0 0.0
  %5456 = vmatpush1.msra.mxu0 0.0
  %5457 = vmatprep.subr.mxu0 0.0
  %5458 = vmatpush1.msra.mxu0 0.0
  %5459 = vmatprep.subr.mxu0 0.0
  %5460 = vmatpush1.msra.mxu0 %v5181
  %5461 = vmatprep.subr.mxu0 0.0
  %5462 = vmatpush1.msra.mxu0 %v5180
  %5463 = vmatprep.subr.mxu0 0.0
  %5464 = vmatpush2.msra.mxu0 0.0
  %5465 = vmatprep.subr.mxu0 0.0
  %5466 = vmatpush2.msra.mxu0 0.0
  %5467 = vmatprep.subr.mxu0 0.0
  %5468 = vmatpush2.msra.mxu0 0.0
  %5469 = vmatprep.subr.mxu0 0.0
  %5470 = vmatpush2.msra.mxu0 0.0
  %5471 = vmatprep.subr.mxu0 0.0
  %5472 = vmatpush2.msra.mxu0 0.0
  %5473 = vmatprep.subr.mxu0 0.0
  %5474 = vmatpush2.msra.mxu0 0.0
  %5475 = vmatprep.subr.mxu0 0.0
  %5476 = vmatpush2.msra.mxu0 0.0
  %5477 = vmatprep.subr.mxu0 0.0
  %5478 = vmatpush2.msra.mxu0 0.0
  %5479 = vmatprep.subr.mxu0 0.0
  %5480 = vmatpush2.msra.mxu0 0.0
  %5481 = vmatprep.subr.mxu0 0.0
  %5482 = vmatpush2.msra.mxu0 0.0
  %5483 = vmatprep.subr.mxu0 0.0
  %5484 = vmatpush2.msra.mxu0 0.0
  %5485 = vmatprep.subr.mxu0 0.0
  %5486 = vmatpush2.msra.mxu0 0.0
  %5487 = vmatprep.subr.mxu0 0.0
  %5488 = vmatpush2.msra.mxu0 0.0
  %5489 = vmatprep.subr.mxu0 0.0
  %5490 = vmatpush2.msra.mxu0 0.0
  %5491 = vmatprep.subr.mxu0 0.0
  %5492 = vmatpush2.msra.mxu0 0.0
  %5493 = vmatprep.subr.mxu0 0.0
  %5494 = vmatpush2.msra.mxu0 0.0
  %5495 = vmatprep.mubr.f32.mxu0 0.0
  %5496 = vmatmul.mubr.f32.gmra.mxu0 %v5429
  %v5497 = vpop.f32.mrf.mxu0
  %v5498 = vadd.f32 %v5424, %v5497
  %v5499 = vpop.f32.mrf.mxu0
  %5500 = vdwg.mxu0
  %v5501 = vld [vmem:[#allocation5 + $0x8] sm:$0xff]
  %v5502 = vld [vmem:[#allocation5 + $0x30] sm:$0xff]
  %v5503 = vsel %vm232, %v5501, %v5502
  %v5504 = vadd.f32 %v5498, %v5503
  %v5505 = vxor.u32 %v5504, 2147483648
  %v5506 = vmul.f32 %v5505, 1.442695
  %v5507 = vpow.pop %v5506
  %v5508 = vadd.f32 %v5507, 1.0
  %v5509 = vrcp.pop %v5508
  %v5510 = vmul.f32 1.0, %v5509
  %v5511 = vtanh.pop %v5504
  %v5512 = vmul.f32 %v5510, %v5345
  %5514 = vrot.lane.b32.xlu0 %v5511, 96
  %v5515 = vpop.permute.xlu0 %5514
  %v5517 = vmul.f32 %v5510, %v5515
  %5519 = vrot.lane.b32.xlu0 %v5517, 16
  %v5520 = vpop.permute.xlu0 %5519
  %v5522 = vadd.f32 %v5512, %v5520
  %v5523 = vtanh.pop %v5522
  %5525 = vrot.lane.b32.xlu0 %v5523, 32
  %v5526 = vpop.permute.xlu0 %5525
  %v5528 = vmul.f32 %v5510, %v5526
  %5530 = vrot.lane.b32.xlu0 %v5528, 16
  %v5531 = vpop.permute.xlu0 %5530
  %v5532 = vsel %vm233, %v5531, 0
  %5534 = vmatprep.subr.mxu0 0.0
  %5535 = vmatpush1.msra.mxu0 0.0
  %5536 = vmatprep.subr.mxu0 0.0
  %5537 = vmatpush1.msra.mxu0 0.0
  %5538 = vmatprep.subr.mxu0 0.0
  %5539 = vmatpush1.msra.mxu0 0.0
  %5540 = vmatprep.subr.mxu0 0.0
  %5541 = vmatpush1.msra.mxu0 0.0
  %5542 = vmatprep.subr.mxu0 0.0
  %5543 = vmatpush1.msra.mxu0 0.0
  %5544 = vmatprep.subr.mxu0 0.0
  %5545 = vmatpush1.msra.mxu0 0.0
  %5546 = vmatprep.subr.mxu0 0.0
  %5547 = vmatpush1.msra.mxu0 0.0
  %5548 = vmatprep.subr.mxu0 0.0
  %5549 = vmatpush1.msra.mxu0 0.0
  %5550 = vmatprep.subr.mxu0 0.0
  %5551 = vmatpush1.msra.mxu0 0.0
  %5552 = vmatprep.subr.mxu0 0.0
  %5553 = vmatpush1.msra.mxu0 0.0
  %5554 = vmatprep.subr.mxu0 0.0
  %5555 = vmatpush1.msra.mxu0 0.0
  %5556 = vmatprep.subr.mxu0 0.0
  %5557 = vmatpush1.msra.mxu0 0.0
  %5558 = vmatprep.subr.mxu0 0.0
  %5559 = vmatpush1.msra.mxu0 0.0
  %5560 = vmatprep.subr.mxu0 0.0
  %5561 = vmatpush1.msra.mxu0 0.0
  %5562 = vmatprep.subr.mxu0 0.0
  %5563 = vmatpush1.msra.mxu0 %v5183
  %5564 = vmatprep.subr.mxu0 0.0
  %5565 = vmatpush1.msra.mxu0 %v5182
  %5566 = vmatprep.subr.mxu0 0.0
  %5567 = vmatpush2.msra.mxu0 0.0
  %5568 = vmatprep.subr.mxu0 0.0
  %5569 = vmatpush2.msra.mxu0 0.0
  %5570 = vmatprep.subr.mxu0 0.0
  %5571 = vmatpush2.msra.mxu0 0.0
  %5572 = vmatprep.subr.mxu0 0.0
  %5573 = vmatpush2.msra.mxu0 0.0
  %5574 = vmatprep.subr.mxu0 0.0
  %5575 = vmatpush2.msra.mxu0 0.0
  %5576 = vmatprep.subr.mxu0 0.0
  %5577 = vmatpush2.msra.mxu0 0.0
  %5578 = vmatprep.subr.mxu0 0.0
  %5579 = vmatpush2.msra.mxu0 0.0
  %5580 = vmatprep.subr.mxu0 0.0
  %5581 = vmatpush2.msra.mxu0 0.0
  %5582 = vmatprep.subr.mxu0 0.0
  %5583 = vmatpush2.msra.mxu0 0.0
  %5584 = vmatprep.subr.mxu0 0.0
  %5585 = vmatpush2.msra.mxu0 0.0
  %5586 = vmatprep.subr.mxu0 0.0
  %5587 = vmatpush2.msra.mxu0 0.0
  %5588 = vmatprep.subr.mxu0 0.0
  %5589 = vmatpush2.msra.mxu0 0.0
  %5590 = vmatprep.subr.mxu0 0.0
  %5591 = vmatpush2.msra.mxu0 0.0
  %5592 = vmatprep.subr.mxu0 0.0
  %5593 = vmatpush2.msra.mxu0 0.0
  %5594 = vmatprep.subr.mxu0 0.0
  %5595 = vmatpush2.msra.mxu0 0.0
  %5596 = vmatprep.subr.mxu0 0.0
  %5597 = vmatpush2.msra.mxu0 0.0
  %5598 = vmatprep.mubr.f32.mxu0 0.0
  %5599 = vmatmul.mubr.f32.gmra.mxu0 %v5532
  %v5600 = vpop.f32.mrf.mxu0
  %v5601 = vadd.f32 0.0, %v5600
  %v5602 = vpop.f32.mrf.mxu0
  %5603 = vdwg.mxu0
  %5604 = vrot.lane.b32.xlu0 %v5528, 80
  %v5605 = vpop.permute.xlu0 %5604
  %v5606 = vsel %vm233, %v5605, 0
  %5608 = vmatprep.subr.mxu0 0.0
  %5609 = vmatpush1.msra.mxu0 0.0
  %5610 = vmatprep.subr.mxu0 0.0
  %5611 = vmatpush1.msra.mxu0 0.0
  %5612 = vmatprep.subr.mxu0 0.0
  %5613 = vmatpush1.msra.mxu0 0.0
  %5614 = vmatprep.subr.mxu0 0.0
  %5615 = vmatpush1.msra.mxu0 0.0
  %5616 = vmatprep.subr.mxu0 0.0
  %5617 = vmatpush1.msra.mxu0 0.0
  %5618 = vmatprep.subr.mxu0 0.0
  %5619 = vmatpush1.msra.mxu0 0.0
  %5620 = vmatprep.subr.mxu0 0.0
  %5621 = vmatpush1.msra.mxu0 0.0
  %5622 = vmatprep.subr.mxu0 0.0
  %5623 = vmatpush1.msra.mxu0 0.0
  %5624 = vmatprep.subr.mxu0 0.0
  %5625 = vmatpush1.msra.mxu0 0.0
  %5626 = vmatprep.subr.mxu0 0.0
  %5627 = vmatpush1.msra.mxu0 0.0
  %5628 = vmatprep.subr.mxu0 0.0
  %5629 = vmatpush1.msra.mxu0 0.0
  %5630 = vmatprep.subr.mxu0 0.0
  %5631 = vmatpush1.msra.mxu0 0.0
  %5632 = vmatprep.subr.mxu0 0.0
  %5633 = vmatpush1.msra.mxu0 0.0
  %5634 = vmatprep.subr.mxu0 0.0
  %5635 = vmatpush1.msra.mxu0 0.0
  %5636 = vmatprep.subr.mxu0 0.0
  %5637 = vmatpush1.msra.mxu0 %v5181
  %5638 = vmatprep.subr.mxu0 0.0
  %5639 = vmatpush1.msra.mxu0 %v5180
  %5640 = vmatprep.subr.mxu0 0.0
  %5641 = vmatpush2.msra.mxu0 0.0
  %5642 = vmatprep.subr.mxu0 0.0
  %5643 = vmatpush2.msra.mxu0 0.0
  %5644 = vmatprep.subr.mxu0 0.0
  %5645 = vmatpush2.msra.mxu0 0.0
  %5646 = vmatprep.subr.mxu0 0.0
  %5647 = vmatpush2.msra.mxu0 0.0
  %5648 = vmatprep.subr.mxu0 0.0
  %5649 = vmatpush2.msra.mxu0 0.0
  %5650 = vmatprep.subr.mxu0 0.0
  %5651 = vmatpush2.msra.mxu0 0.0
  %5652 = vmatprep.subr.mxu0 0.0
  %5653 = vmatpush2.msra.mxu0 0.0
  %5654 = vmatprep.subr.mxu0 0.0
  %5655 = vmatpush2.msra.mxu0 0.0
  %5656 = vmatprep.subr.mxu0 0.0
  %5657 = vmatpush2.msra.mxu0 0.0
  %5658 = vmatprep.subr.mxu0 0.0
  %5659 = vmatpush2.msra.mxu0 0.0
  %5660 = vmatprep.subr.mxu0 0.0
  %5661 = vmatpush2.msra.mxu0 0.0
  %5662 = vmatprep.subr.mxu0 0.0
  %5663 = vmatpush2.msra.mxu0 0.0
  %5664 = vmatprep.subr.mxu0 0.0
  %5665 = vmatpush2.msra.mxu0 0.0
  %5666 = vmatprep.subr.mxu0 0.0
  %5667 = vmatpush2.msra.mxu0 0.0
  %5668 = vmatprep.subr.mxu0 0.0
  %5669 = vmatpush2.msra.mxu0 0.0
  %5670 = vmatprep.subr.mxu0 0.0
  %5671 = vmatpush2.msra.mxu0 0.0
  %5672 = vmatprep.mubr.f32.mxu0 0.0
  %5673 = vmatmul.mubr.f32.gmra.mxu0 %v5606
  %v5674 = vpop.f32.mrf.mxu0
  %v5675 = vadd.f32 %v5601, %v5674
  %v5676 = vpop.f32.mrf.mxu0
  %5677 = vdwg.mxu0
  %v5678 = vld [vmem:[#allocation5 + $0x10] sm:$0xff]
  %v5679 = vld [vmem:[#allocation5 + $0x28] sm:$0xff]
  %v5680 = vsel %vm232, %v5678, %v5679
  %v5681 = vadd.f32 %v5675, %v5680
  %v5682 = vxor.u32 %v5681, 2147483648
  %v5683 = vmul.f32 %v5682, 1.442695
  %v5684 = vpow.pop %v5683
  %v5685 = vadd.f32 %v5684, 1.0
  %v5686 = vrcp.pop %v5685
  %v5687 = vmul.f32 1.0, %v5686
  %v5688 = vtanh.pop %v5681
  %v5689 = vmul.f32 %v5687, %v5522
  %5691 = vrot.lane.b32.xlu0 %v5688, 96
  %v5692 = vpop.permute.xlu0 %5691
  %v5694 = vmul.f32 %v5687, %v5692
  %5696 = vrot.lane.b32.xlu0 %v5694, 16
  %v5697 = vpop.permute.xlu0 %5696
  %v5699 = vadd.f32 %v5689, %v5697
  %v5700 = vtanh.pop %v5699
  %5702 = vrot.lane.b32.xlu0 %v5700, 32
  %v5703 = vpop.permute.xlu0 %5702
  %v5705 = vmul.f32 %v5687, %v5703
  %5707 = vrot.lane.b32.xlu0 %v5705, 16
  %v5708 = vpop.permute.xlu0 %5707
  %v5709 = vsel %vm233, %v5708, 0
  %5711 = vmatprep.subr.mxu0 0.0
  %5712 = vmatpush1.msra.mxu0 0.0
  %5713 = vmatprep.subr.mxu0 0.0
  %5714 = vmatpush1.msra.mxu0 0.0
  %5715 = vmatprep.subr.mxu0 0.0
  %5716 = vmatpush1.msra.mxu0 0.0
  %5717 = vmatprep.subr.mxu0 0.0
  %5718 = vmatpush1.msra.mxu0 0.0
  %5719 = vmatprep.subr.mxu0 0.0
  %5720 = vmatpush1.msra.mxu0 0.0
  %5721 = vmatprep.subr.mxu0 0.0
  %5722 = vmatpush1.msra.mxu0 0.0
  %5723 = vmatprep.subr.mxu0 0.0
  %5724 = vmatpush1.msra.mxu0 0.0
  %5725 = vmatprep.subr.mxu0 0.0
  %5726 = vmatpush1.msra.mxu0 0.0
  %5727 = vmatprep.subr.mxu0 0.0
  %5728 = vmatpush1.msra.mxu0 0.0
  %5729 = vmatprep.subr.mxu0 0.0
  %5730 = vmatpush1.msra.mxu0 0.0
  %5731 = vmatprep.subr.mxu0 0.0
  %5732 = vmatpush1.msra.mxu0 0.0
  %5733 = vmatprep.subr.mxu0 0.0
  %5734 = vmatpush1.msra.mxu0 0.0
  %5735 = vmatprep.subr.mxu0 0.0
  %5736 = vmatpush1.msra.mxu0 0.0
  %5737 = vmatprep.subr.mxu0 0.0
  %5738 = vmatpush1.msra.mxu0 0.0
  %5739 = vmatprep.subr.mxu0 0.0
  %5740 = vmatpush1.msra.mxu0 %v5183
  %5741 = vmatprep.subr.mxu0 0.0
  %5742 = vmatpush1.msra.mxu0 %v5182
  %5743 = vmatprep.subr.mxu0 0.0
  %5744 = vmatpush2.msra.mxu0 0.0
  %5745 = vmatprep.subr.mxu0 0.0
  %5746 = vmatpush2.msra.mxu0 0.0
  %5747 = vmatprep.subr.mxu0 0.0
  %5748 = vmatpush2.msra.mxu0 0.0
  %5749 = vmatprep.subr.mxu0 0.0
  %5750 = vmatpush2.msra.mxu0 0.0
  %5751 = vmatprep.subr.mxu0 0.0
  %5752 = vmatpush2.msra.mxu0 0.0
  %5753 = vmatprep.subr.mxu0 0.0
  %5754 = vmatpush2.msra.mxu0 0.0
  %5755 = vmatprep.subr.mxu0 0.0
  %5756 = vmatpush2.msra.mxu0 0.0
  %5757 = vmatprep.subr.mxu0 0.0
  %5758 = vmatpush2.msra.mxu0 0.0
  %5759 = vmatprep.subr.mxu0 0.0
  %5760 = vmatpush2.msra.mxu0 0.0
  %5761 = vmatprep.subr.mxu0 0.0
  %5762 = vmatpush2.msra.mxu0 0.0
  %5763 = vmatprep.subr.mxu0 0.0
  %5764 = vmatpush2.msra.mxu0 0.0
  %5765 = vmatprep.subr.mxu0 0.0
  %5766 = vmatpush2.msra.mxu0 0.0
  %5767 = vmatprep.subr.mxu0 0.0
  %5768 = vmatpush2.msra.mxu0 0.0
  %5769 = vmatprep.subr.mxu0 0.0
  %5770 = vmatpush2.msra.mxu0 0.0
  %5771 = vmatprep.subr.mxu0 0.0
  %5772 = vmatpush2.msra.mxu0 0.0
  %5773 = vmatprep.subr.mxu0 0.0
  %5774 = vmatpush2.msra.mxu0 0.0
  %5775 = vmatprep.mubr.f32.mxu0 0.0
  %5776 = vmatmul.mubr.f32.gmra.mxu0 %v5709
  %v5777 = vpop.f32.mrf.mxu0
  %v5778 = vadd.f32 0.0, %v5777
  %v5779 = vpop.f32.mrf.mxu0
  %5780 = vdwg.mxu0
  %5781 = vrot.lane.b32.xlu0 %v5705, 80
  %v5782 = vpop.permute.xlu0 %5781
  %v5783 = vsel %vm233, %v5782, 0
  %5785 = vmatprep.subr.mxu0 0.0
  %5786 = vmatpush1.msra.mxu0 0.0
  %5787 = vmatprep.subr.mxu0 0.0
  %5788 = vmatpush1.msra.mxu0 0.0
  %5789 = vmatprep.subr.mxu0 0.0
  %5790 = vmatpush1.msra.mxu0 0.0
  %5791 = vmatprep.subr.mxu0 0.0
  %5792 = vmatpush1.msra.mxu0 0.0
  %5793 = vmatprep.subr.mxu0 0.0
  %5794 = vmatpush1.msra.mxu0 0.0
  %5795 = vmatprep.subr.mxu0 0.0
  %5796 = vmatpush1.msra.mxu0 0.0
  %5797 = vmatprep.subr.mxu0 0.0
  %5798 = vmatpush1.msra.mxu0 0.0
  %5799 = vmatprep.subr.mxu0 0.0
  %5800 = vmatpush1.msra.mxu0 0.0
  %5801 = vmatprep.subr.mxu0 0.0
  %5802 = vmatpush1.msra.mxu0 0.0
  %5803 = vmatprep.subr.mxu0 0.0
  %5804 = vmatpush1.msra.mxu0 0.0
  %5805 = vmatprep.subr.mxu0 0.0
  %5806 = vmatpush1.msra.mxu0 0.0
  %5807 = vmatprep.subr.mxu0 0.0
  %5808 = vmatpush1.msra.mxu0 0.0
  %5809 = vmatprep.subr.mxu0 0.0
  %5810 = vmatpush1.msra.mxu0 0.0
  %5811 = vmatprep.subr.mxu0 0.0
  %5812 = vmatpush1.msra.mxu0 0.0
  %5813 = vmatprep.subr.mxu0 0.0
  %5814 = vmatpush1.msra.mxu0 %v5181
  %5815 = vmatprep.subr.mxu0 0.0
  %5816 = vmatpush1.msra.mxu0 %v5180
  %5817 = vmatprep.subr.mxu0 0.0
  %5818 = vmatpush2.msra.mxu0 0.0
  %5819 = vmatprep.subr.mxu0 0.0
  %5820 = vmatpush2.msra.mxu0 0.0
  %5821 = vmatprep.subr.mxu0 0.0
  %5822 = vmatpush2.msra.mxu0 0.0
  %5823 = vmatprep.subr.mxu0 0.0
  %5824 = vmatpush2.msra.mxu0 0.0
  %5825 = vmatprep.subr.mxu0 0.0
  %5826 = vmatpush2.msra.mxu0 0.0
  %5827 = vmatprep.subr.mxu0 0.0
  %5828 = vmatpush2.msra.mxu0 0.0
  %5829 = vmatprep.subr.mxu0 0.0
  %5830 = vmatpush2.msra.mxu0 0.0
  %5831 = vmatprep.subr.mxu0 0.0
  %5832 = vmatpush2.msra.mxu0 0.0
  %5833 = vmatprep.subr.mxu0 0.0
  %5834 = vmatpush2.msra.mxu0 0.0
  %5835 = vmatprep.subr.mxu0 0.0
  %5836 = vmatpush2.msra.mxu0 0.0
  %5837 = vmatprep.subr.mxu0 0.0
  %5838 = vmatpush2.msra.mxu0 0.0
  %5839 = vmatprep.subr.mxu0 0.0
  %5840 = vmatpush2.msra.mxu0 0.0
  %5841 = vmatprep.subr.mxu0 0.0
  %5842 = vmatpush2.msra.mxu0 0.0
  %5843 = vmatprep.subr.mxu0 0.0
  %5844 = vmatpush2.msra.mxu0 0.0
  %5845 = vmatprep.subr.mxu0 0.0
  %5846 = vmatpush2.msra.mxu0 0.0
  %5847 = vmatprep.subr.mxu0 0.0
  %5848 = vmatpush2.msra.mxu0 0.0
  %5849 = vmatprep.mubr.f32.mxu0 0.0
  %5850 = vmatmul.mubr.f32.gmra.mxu0 %v5783
  %v5851 = vpop.f32.mrf.mxu0
  %v5852 = vadd.f32 %v5778, %v5851
  %v5853 = vpop.f32.mrf.mxu0
  %5854 = vdwg.mxu0
  %v5855 = vld [vmem:[#allocation5 + $0x18] sm:$0xff]
  %v5856 = vld [vmem:[#allocation5 + $0x20] sm:$0xff]
  %v5857 = vsel %vm232, %v5855, %v5856
  %v5858 = vadd.f32 %v5852, %v5857
  %v5859 = vxor.u32 %v5858, 2147483648
  %v5860 = vmul.f32 %v5859, 1.442695
  %v5861 = vpow.pop %v5860
  %v5862 = vadd.f32 %v5861, 1.0
  %v5863 = vrcp.pop %v5862
  %v5864 = vmul.f32 1.0, %v5863
  %v5865 = vtanh.pop %v5858
  %v5866 = vmul.f32 %v5864, %v5699
  %5868 = vrot.lane.b32.xlu0 %v5865, 96
  %v5869 = vpop.permute.xlu0 %5868
  %v5871 = vmul.f32 %v5864, %v5869
  %5873 = vrot.lane.b32.xlu0 %v5871, 16
  %v5874 = vpop.permute.xlu0 %5873
  %v5876 = vadd.f32 %v5866, %v5874
  %v5877 = vtanh.pop %v5876
  %5879 = vrot.lane.b32.xlu0 %v5877, 32
  %v5880 = vpop.permute.xlu0 %5879
  %v5882 = vmul.f32 %v5864, %v5880
  %5884 = vrot.lane.b32.xlu0 %v5882, 16
  %v5885 = vpop.permute.xlu0 %5884
  %v5886 = vsel %vm233, %v5885, 0
  %5888 = vmatprep.subr.mxu0 0.0
  %5889 = vmatpush1.msra.mxu0 0.0
  %5890 = vmatprep.subr.mxu0 0.0
  %5891 = vmatpush1.msra.mxu0 0.0
  %5892 = vmatprep.subr.mxu0 0.0
  %5893 = vmatpush1.msra.mxu0 0.0
  %5894 = vmatprep.subr.mxu0 0.0
  %5895 = vmatpush1.msra.mxu0 0.0
  %5896 = vmatprep.subr.mxu0 0.0
  %5897 = vmatpush1.msra.mxu0 0.0
  %5898 = vmatprep.subr.mxu0 0.0
  %5899 = vmatpush1.msra.mxu0 0.0
  %5900 = vmatprep.subr.mxu0 0.0
  %5901 = vmatpush1.msra.mxu0 0.0
  %5902 = vmatprep.subr.mxu0 0.0
  %5903 = vmatpush1.msra.mxu0 0.0
  %5904 = vmatprep.subr.mxu0 0.0
  %5905 = vmatpush1.msra.mxu0 0.0
  %5906 = vmatprep.subr.mxu0 0.0
  %5907 = vmatpush1.msra.mxu0 0.0
  %5908 = vmatprep.subr.mxu0 0.0
  %5909 = vmatpush1.msra.mxu0 0.0
  %5910 = vmatprep.subr.mxu0 0.0
  %5911 = vmatpush1.msra.mxu0 0.0
  %5912 = vmatprep.subr.mxu0 0.0
  %5913 = vmatpush1.msra.mxu0 0.0
  %5914 = vmatprep.subr.mxu0 0.0
  %5915 = vmatpush1.msra.mxu0 0.0
  %5916 = vmatprep.subr.mxu0 0.0
  %5917 = vmatpush1.msra.mxu0 %v5183
  %5918 = vmatprep.subr.mxu0 0.0
  %5919 = vmatpush1.msra.mxu0 %v5182
  %5920 = vmatprep.subr.mxu0 0.0
  %5921 = vmatpush2.msra.mxu0 0.0
  %5922 = vmatprep.subr.mxu0 0.0
  %5923 = vmatpush2.msra.mxu0 0.0
  %5924 = vmatprep.subr.mxu0 0.0
  %5925 = vmatpush2.msra.mxu0 0.0
  %5926 = vmatprep.subr.mxu0 0.0
  %5927 = vmatpush2.msra.mxu0 0.0
  %5928 = vmatprep.subr.mxu0 0.0
  %5929 = vmatpush2.msra.mxu0 0.0
  %5930 = vmatprep.subr.mxu0 0.0
  %5931 = vmatpush2.msra.mxu0 0.0
  %5932 = vmatprep.subr.mxu0 0.0
  %5933 = vmatpush2.msra.mxu0 0.0
  %5934 = vmatprep.subr.mxu0 0.0
  %5935 = vmatpush2.msra.mxu0 0.0
  %5936 = vmatprep.subr.mxu0 0.0
  %5937 = vmatpush2.msra.mxu0 0.0
  %5938 = vmatprep.subr.mxu0 0.0
  %5939 = vmatpush2.msra.mxu0 0.0
  %5940 = vmatprep.subr.mxu0 0.0
  %5941 = vmatpush2.msra.mxu0 0.0
  %5942 = vmatprep.subr.mxu0 0.0
  %5943 = vmatpush2.msra.mxu0 0.0
  %5944 = vmatprep.subr.mxu0 0.0
  %5945 = vmatpush2.msra.mxu0 0.0
  %5946 = vmatprep.subr.mxu0 0.0
  %5947 = vmatpush2.msra.mxu0 0.0
  %5948 = vmatprep.subr.mxu0 0.0
  %5949 = vmatpush2.msra.mxu0 0.0
  %5950 = vmatprep.subr.mxu0 0.0
  %5951 = vmatpush2.msra.mxu0 0.0
  %5952 = vmatprep.mubr.f32.mxu0 0.0
  %5953 = vmatmul.mubr.f32.gmra.mxu0 %v5886
  %v5954 = vpop.f32.mrf.mxu0
  %v5955 = vadd.f32 0.0, %v5954
  %v5956 = vpop.f32.mrf.mxu0
  %5957 = vdwg.mxu0
  %5958 = vrot.lane.b32.xlu0 %v5882, 80
  %v5959 = vpop.permute.xlu0 %5958
  %v5960 = vsel %vm233, %v5959, 0
  %5962 = vmatprep.subr.mxu0 0.0
  %5963 = vmatpush1.msra.mxu0 0.0
  %5964 = vmatprep.subr.mxu0 0.0
  %5965 = vmatpush1.msra.mxu0 0.0
  %5966 = vmatprep.subr.mxu0 0.0
  %5967 = vmatpush1.msra.mxu0 0.0
  %5968 = vmatprep.subr.mxu0 0.0
  %5969 = vmatpush1.msra.mxu0 0.0
  %5970 = vmatprep.subr.mxu0 0.0
  %5971 = vmatpush1.msra.mxu0 0.0
  %5972 = vmatprep.subr.mxu0 0.0
  %5973 = vmatpush1.msra.mxu0 0.0
  %5974 = vmatprep.subr.mxu0 0.0
  %5975 = vmatpush1.msra.mxu0 0.0
  %5976 = vmatprep.subr.mxu0 0.0
  %5977 = vmatpush1.msra.mxu0 0.0
  %5978 = vmatprep.subr.mxu0 0.0
  %5979 = vmatpush1.msra.mxu0 0.0
  %5980 = vmatprep.subr.mxu0 0.0
  %5981 = vmatpush1.msra.mxu0 0.0
  %5982 = vmatprep.subr.mxu0 0.0
  %5983 = vmatpush1.msra.mxu0 0.0
  %5984 = vmatprep.subr.mxu0 0.0
  %5985 = vmatpush1.msra.mxu0 0.0
  %5986 = vmatprep.subr.mxu0 0.0
  %5987 = vmatpush1.msra.mxu0 0.0
  %5988 = vmatprep.subr.mxu0 0.0
  %5989 = vmatpush1.msra.mxu0 0.0
  %5990 = vmatprep.subr.mxu0 0.0
  %5991 = vmatpush1.msra.mxu0 %v5181
  %5992 = vmatprep.subr.mxu0 0.0
  %5993 = vmatpush1.msra.mxu0 %v5180
  %5994 = vmatprep.subr.mxu0 0.0
  %5995 = vmatpush2.msra.mxu0 0.0
  %5996 = vmatprep.subr.mxu0 0.0
  %5997 = vmatpush2.msra.mxu0 0.0
  %5998 = vmatprep.subr.mxu0 0.0
  %5999 = vmatpush2.msra.mxu0 0.0
  %6000 = vmatprep.subr.mxu0 0.0
  %6001 = vmatpush2.msra.mxu0 0.0
  %6002 = vmatprep.subr.mxu0 0.0
  %6003 = vmatpush2.msra.mxu0 0.0
  %6004 = vmatprep.subr.mxu0 0.0
  %6005 = vmatpush2.msra.mxu0 0.0
  %6006 = vmatprep.subr.mxu0 0.0
  %6007 = vmatpush2.msra.mxu0 0.0
  %6008 = vmatprep.subr.mxu0 0.0
  %6009 = vmatpush2.msra.mxu0 0.0
  %6010 = vmatprep.subr.mxu0 0.0
  %6011 = vmatpush2.msra.mxu0 0.0
  %6012 = vmatprep.subr.mxu0 0.0
  %6013 = vmatpush2.msra.mxu0 0.0
  %6014 = vmatprep.subr.mxu0 0.0
  %6015 = vmatpush2.msra.mxu0 0.0
  %6016 = vmatprep.subr.mxu0 0.0
  %6017 = vmatpush2.msra.mxu0 0.0
  %6018 = vmatprep.subr.mxu0 0.0
  %6019 = vmatpush2.msra.mxu0 0.0
  %6020 = vmatprep.subr.mxu0 0.0
  %6021 = vmatpush2.msra.mxu0 0.0
  %6022 = vmatprep.subr.mxu0 0.0
  %6023 = vmatpush2.msra.mxu0 0.0
  %6024 = vmatprep.subr.mxu0 0.0
  %6025 = vmatpush2.msra.mxu0 0.0
  %6026 = vmatprep.mubr.f32.mxu0 0.0
  %6027 = vmatmul.mubr.f32.gmra.mxu0 %v5960
  %v6028 = vpop.f32.mrf.mxu0
  %v6029 = vadd.f32 %v5955, %v6028
  %v6030 = vpop.f32.mrf.mxu0
  %6031 = vdwg.mxu0
  %v6032 = vsel %vm232, %v5856, %v5855
  %v6033 = vadd.f32 %v6029, %v6032
  %v6034 = vxor.u32 %v6033, 2147483648
  %v6035 = vmul.f32 %v6034, 1.442695
  %v6036 = vpow.pop %v6035
  %v6037 = vadd.f32 %v6036, 1.0
  %v6038 = vrcp.pop %v6037
  %v6039 = vmul.f32 1.0, %v6038
  %v6040 = vtanh.pop %v6033
  %v6041 = vmul.f32 %v6039, %v5876
  %6043 = vrot.lane.b32.xlu0 %v6040, 96
  %v6044 = vpop.permute.xlu0 %6043
  %v6046 = vmul.f32 %v6039, %v6044
  %6048 = vrot.lane.b32.xlu0 %v6046, 16
  %v6049 = vpop.permute.xlu0 %6048
  %v6051 = vadd.f32 %v6041, %v6049
  %v6052 = vtanh.pop %v6051
  %6054 = vrot.lane.b32.xlu0 %v6052, 32
  %v6055 = vpop.permute.xlu0 %6054
  %v6057 = vmul.f32 %v6039, %v6055
  %6059 = vrot.lane.b32.xlu0 %v6057, 16
  %v6060 = vpop.permute.xlu0 %6059
  %v6061 = vsel %vm233, %v6060, 0
  %6063 = vmatprep.subr.mxu0 0.0
  %6064 = vmatpush1.msra.mxu0 0.0
  %6065 = vmatprep.subr.mxu0 0.0
  %6066 = vmatpush1.msra.mxu0 0.0
  %6067 = vmatprep.subr.mxu0 0.0
  %6068 = vmatpush1.msra.mxu0 0.0
  %6069 = vmatprep.subr.mxu0 0.0
  %6070 = vmatpush1.msra.mxu0 0.0
  %6071 = vmatprep.subr.mxu0 0.0
  %6072 = vmatpush1.msra.mxu0 0.0
  %6073 = vmatprep.subr.mxu0 0.0
  %6074 = vmatpush1.msra.mxu0 0.0
  %6075 = vmatprep.subr.mxu0 0.0
  %6076 = vmatpush1.msra.mxu0 0.0
  %6077 = vmatprep.subr.mxu0 0.0
  %6078 = vmatpush1.msra.mxu0 0.0
  %6079 = vmatprep.subr.mxu0 0.0
  %6080 = vmatpush1.msra.mxu0 0.0
  %6081 = vmatprep.subr.mxu0 0.0
  %6082 = vmatpush1.msra.mxu0 0.0
  %6083 = vmatprep.subr.mxu0 0.0
  %6084 = vmatpush1.msra.mxu0 0.0
  %6085 = vmatprep.subr.mxu0 0.0
  %6086 = vmatpush1.msra.mxu0 0.0
  %6087 = vmatprep.subr.mxu0 0.0
  %6088 = vmatpush1.msra.mxu0 0.0
  %6089 = vmatprep.subr.mxu0 0.0
  %6090 = vmatpush1.msra.mxu0 0.0
  %6091 = vmatprep.subr.mxu0 0.0
  %6092 = vmatpush1.msra.mxu0 %v5183
  %6093 = vmatprep.subr.mxu0 0.0
  %6094 = vmatpush1.msra.mxu0 %v5182
  %6095 = vmatprep.subr.mxu0 0.0
  %6096 = vmatpush2.msra.mxu0 0.0
  %6097 = vmatprep.subr.mxu0 0.0
  %6098 = vmatpush2.msra.mxu0 0.0
  %6099 = vmatprep.subr.mxu0 0.0
  %6100 = vmatpush2.msra.mxu0 0.0
  %6101 = vmatprep.subr.mxu0 0.0
  %6102 = vmatpush2.msra.mxu0 0.0
  %6103 = vmatprep.subr.mxu0 0.0
  %6104 = vmatpush2.msra.mxu0 0.0
  %6105 = vmatprep.subr.mxu0 0.0
  %6106 = vmatpush2.msra.mxu0 0.0
  %6107 = vmatprep.subr.mxu0 0.0
  %6108 = vmatpush2.msra.mxu0 0.0
  %6109 = vmatprep.subr.mxu0 0.0
  %6110 = vmatpush2.msra.mxu0 0.0
  %6111 = vmatprep.subr.mxu0 0.0
  %6112 = vmatpush2.msra.mxu0 0.0
  %6113 = vmatprep.subr.mxu0 0.0
  %6114 = vmatpush2.msra.mxu0 0.0
  %6115 = vmatprep.subr.mxu0 0.0
  %6116 = vmatpush2.msra.mxu0 0.0
  %6117 = vmatprep.subr.mxu0 0.0
  %6118 = vmatpush2.msra.mxu0 0.0
  %6119 = vmatprep.subr.mxu0 0.0
  %6120 = vmatpush2.msra.mxu0 0.0
  %6121 = vmatprep.subr.mxu0 0.0
  %6122 = vmatpush2.msra.mxu0 0.0
  %6123 = vmatprep.subr.mxu0 0.0
  %6124 = vmatpush2.msra.mxu0 0.0
  %6125 = vmatprep.subr.mxu0 0.0
  %6126 = vmatpush2.msra.mxu0 0.0
  %6127 = vmatprep.mubr.f32.mxu0 0.0
  %6128 = vmatmul.mubr.f32.gmra.mxu0 %v6061
  %v6129 = vpop.f32.mrf.mxu0
  %v6130 = vadd.f32 0.0, %v6129
  %v6131 = vpop.f32.mrf.mxu0
  %6132 = vdwg.mxu0
  %6133 = vrot.lane.b32.xlu0 %v6057, 80
  %v6134 = vpop.permute.xlu0 %6133
  %v6135 = vsel %vm233, %v6134, 0
  %6137 = vmatprep.subr.mxu0 0.0
  %6138 = vmatpush1.msra.mxu0 0.0
  %6139 = vmatprep.subr.mxu0 0.0
  %6140 = vmatpush1.msra.mxu0 0.0
  %6141 = vmatprep.subr.mxu0 0.0
  %6142 = vmatpush1.msra.mxu0 0.0
  %6143 = vmatprep.subr.mxu0 0.0
  %6144 = vmatpush1.msra.mxu0 0.0
  %6145 = vmatprep.subr.mxu0 0.0
  %6146 = vmatpush1.msra.mxu0 0.0
  %6147 = vmatprep.subr.mxu0 0.0
  %6148 = vmatpush1.msra.mxu0 0.0
  %6149 = vmatprep.subr.mxu0 0.0
  %6150 = vmatpush1.msra.mxu0 0.0
  %6151 = vmatprep.subr.mxu0 0.0
  %6152 = vmatpush1.msra.mxu0 0.0
  %6153 = vmatprep.subr.mxu0 0.0
  %6154 = vmatpush1.msra.mxu0 0.0
  %6155 = vmatprep.subr.mxu0 0.0
  %6156 = vmatpush1.msra.mxu0 0.0
  %6157 = vmatprep.subr.mxu0 0.0
  %6158 = vmatpush1.msra.mxu0 0.0
  %6159 = vmatprep.subr.mxu0 0.0
  %6160 = vmatpush1.msra.mxu0 0.0
  %6161 = vmatprep.subr.mxu0 0.0
  %6162 = vmatpush1.msra.mxu0 0.0
  %6163 = vmatprep.subr.mxu0 0.0
  %6164 = vmatpush1.msra.mxu0 0.0
  %6165 = vmatprep.subr.mxu0 0.0
  %6166 = vmatpush1.msra.mxu0 %v5181
  %6167 = vmatprep.subr.mxu0 0.0
  %6168 = vmatpush1.msra.mxu0 %v5180
  %6169 = vmatprep.subr.mxu0 0.0
  %6170 = vmatpush2.msra.mxu0 0.0
  %6171 = vmatprep.subr.mxu0 0.0
  %6172 = vmatpush2.msra.mxu0 0.0
  %6173 = vmatprep.subr.mxu0 0.0
  %6174 = vmatpush2.msra.mxu0 0.0
  %6175 = vmatprep.subr.mxu0 0.0
  %6176 = vmatpush2.msra.mxu0 0.0
  %6177 = vmatprep.subr.mxu0 0.0
  %6178 = vmatpush2.msra.mxu0 0.0
  %6179 = vmatprep.subr.mxu0 0.0
  %6180 = vmatpush2.msra.mxu0 0.0
  %6181 = vmatprep.subr.mxu0 0.0
  %6182 = vmatpush2.msra.mxu0 0.0
  %6183 = vmatprep.subr.mxu0 0.0
  %6184 = vmatpush2.msra.mxu0 0.0
  %6185 = vmatprep.subr.mxu0 0.0
  %6186 = vmatpush2.msra.mxu0 0.0
  %6187 = vmatprep.subr.mxu0 0.0
  %6188 = vmatpush2.msra.mxu0 0.0
  %6189 = vmatprep.subr.mxu0 0.0
  %6190 = vmatpush2.msra.mxu0 0.0
  %6191 = vmatprep.subr.mxu0 0.0
  %6192 = vmatpush2.msra.mxu0 0.0
  %6193 = vmatprep.subr.mxu0 0.0
  %6194 = vmatpush2.msra.mxu0 0.0
  %6195 = vmatprep.subr.mxu0 0.0
  %6196 = vmatpush2.msra.mxu0 0.0
  %6197 = vmatprep.subr.mxu0 0.0
  %6198 = vmatpush2.msra.mxu0 0.0
  %6199 = vmatprep.subr.mxu0 0.0
  %6200 = vmatpush2.msra.mxu0 0.0
  %6201 = vmatprep.mubr.f32.mxu0 0.0
  %6202 = vmatmul.mubr.f32.gmra.mxu0 %v6135
  %v6203 = vpop.f32.mrf.mxu0
  %v6204 = vadd.f32 %v6130, %v6203
  %v6205 = vpop.f32.mrf.mxu0
  %6206 = vdwg.mxu0
  %v6207 = vsel %vm232, %v5679, %v5678
  %v6208 = vadd.f32 %v6204, %v6207
  %v6209 = vxor.u32 %v6208, 2147483648
  %v6210 = vmul.f32 %v6209, 1.442695
  %v6211 = vpow.pop %v6210
  %v6212 = vadd.f32 %v6211, 1.0
  %v6213 = vrcp.pop %v6212
  %v6214 = vmul.f32 1.0, %v6213
  %v6215 = vtanh.pop %v6208
  %v6216 = vmul.f32 %v6214, %v6051
  %6218 = vrot.lane.b32.xlu0 %v6215, 96
  %v6219 = vpop.permute.xlu0 %6218
  %v6221 = vmul.f32 %v6214, %v6219
  %6223 = vrot.lane.b32.xlu0 %v6221, 16
  %v6224 = vpop.permute.xlu0 %6223
  %v6226 = vadd.f32 %v6216, %v6224
  %v6227 = vtanh.pop %v6226
  %6229 = vrot.lane.b32.xlu0 %v6227, 32
  %v6230 = vpop.permute.xlu0 %6229
  %v6232 = vmul.f32 %v6214, %v6230
  %6234 = vrot.lane.b32.xlu0 %v6232, 16
  %v6235 = vpop.permute.xlu0 %6234
  %v6236 = vsel %vm233, %v6235, 0
  %6238 = vmatprep.subr.mxu0 0.0
  %6239 = vmatpush1.msra.mxu0 0.0
  %6240 = vmatprep.subr.mxu0 0.0
  %6241 = vmatpush1.msra.mxu0 0.0
  %6242 = vmatprep.subr.mxu0 0.0
  %6243 = vmatpush1.msra.mxu0 0.0
  %6244 = vmatprep.subr.mxu0 0.0
  %6245 = vmatpush1.msra.mxu0 0.0
  %6246 = vmatprep.subr.mxu0 0.0
  %6247 = vmatpush1.msra.mxu0 0.0
  %6248 = vmatprep.subr.mxu0 0.0
  %6249 = vmatpush1.msra.mxu0 0.0
  %6250 = vmatprep.subr.mxu0 0.0
  %6251 = vmatpush1.msra.mxu0 0.0
  %6252 = vmatprep.subr.mxu0 0.0
  %6253 = vmatpush1.msra.mxu0 0.0
  %6254 = vmatprep.subr.mxu0 0.0
  %6255 = vmatpush1.msra.mxu0 0.0
  %6256 = vmatprep.subr.mxu0 0.0
  %6257 = vmatpush1.msra.mxu0 0.0
  %6258 = vmatprep.subr.mxu0 0.0
  %6259 = vmatpush1.msra.mxu0 0.0
  %6260 = vmatprep.subr.mxu0 0.0
  %6261 = vmatpush1.msra.mxu0 0.0
  %6262 = vmatprep.subr.mxu0 0.0
  %6263 = vmatpush1.msra.mxu0 0.0
  %6264 = vmatprep.subr.mxu0 0.0
  %6265 = vmatpush1.msra.mxu0 0.0
  %6266 = vmatprep.subr.mxu0 0.0
  %6267 = vmatpush1.msra.mxu0 %v5183
  %6268 = vmatprep.subr.mxu0 0.0
  %6269 = vmatpush1.msra.mxu0 %v5182
  %6270 = vmatprep.subr.mxu0 0.0
  %6271 = vmatpush2.msra.mxu0 0.0
  %6272 = vmatprep.subr.mxu0 0.0
  %6273 = vmatpush2.msra.mxu0 0.0
  %6274 = vmatprep.subr.mxu0 0.0
  %6275 = vmatpush2.msra.mxu0 0.0
  %6276 = vmatprep.subr.mxu0 0.0
  %6277 = vmatpush2.msra.mxu0 0.0
  %6278 = vmatprep.subr.mxu0 0.0
  %6279 = vmatpush2.msra.mxu0 0.0
  %6280 = vmatprep.subr.mxu0 0.0
  %6281 = vmatpush2.msra.mxu0 0.0
  %6282 = vmatprep.subr.mxu0 0.0
  %6283 = vmatpush2.msra.mxu0 0.0
  %6284 = vmatprep.subr.mxu0 0.0
  %6285 = vmatpush2.msra.mxu0 0.0
  %6286 = vmatprep.subr.mxu0 0.0
  %6287 = vmatpush2.msra.mxu0 0.0
  %6288 = vmatprep.subr.mxu0 0.0
  %6289 = vmatpush2.msra.mxu0 0.0
  %6290 = vmatprep.subr.mxu0 0.0
  %6291 = vmatpush2.msra.mxu0 0.0
  %6292 = vmatprep.subr.mxu0 0.0
  %6293 = vmatpush2.msra.mxu0 0.0
  %6294 = vmatprep.subr.mxu0 0.0
  %6295 = vmatpush2.msra.mxu0 0.0
  %6296 = vmatprep.subr.mxu0 0.0
  %6297 = vmatpush2.msra.mxu0 0.0
  %6298 = vmatprep.subr.mxu0 0.0
  %6299 = vmatpush2.msra.mxu0 0.0
  %6300 = vmatprep.subr.mxu0 0.0
  %6301 = vmatpush2.msra.mxu0 0.0
  %6302 = vmatprep.mubr.f32.mxu0 0.0
  %6303 = vmatmul.mubr.f32.gmra.mxu0 %v6236
  %v6304 = vpop.f32.mrf.mxu0
  %v6305 = vadd.f32 0.0, %v6304
  %v6306 = vpop.f32.mrf.mxu0
  %6307 = vdwg.mxu0
  %6308 = vrot.lane.b32.xlu0 %v6232, 80
  %v6309 = vpop.permute.xlu0 %6308
  %v6310 = vsel %vm233, %v6309, 0
  %6312 = vmatprep.subr.mxu0 0.0
  %6313 = vmatpush1.msra.mxu0 0.0
  %6314 = vmatprep.subr.mxu0 0.0
  %6315 = vmatpush1.msra.mxu0 0.0
  %6316 = vmatprep.subr.mxu0 0.0
  %6317 = vmatpush1.msra.mxu0 0.0
  %6318 = vmatprep.subr.mxu0 0.0
  %6319 = vmatpush1.msra.mxu0 0.0
  %6320 = vmatprep.subr.mxu0 0.0
  %6321 = vmatpush1.msra.mxu0 0.0
  %6322 = vmatprep.subr.mxu0 0.0
  %6323 = vmatpush1.msra.mxu0 0.0
  %6324 = vmatprep.subr.mxu0 0.0
  %6325 = vmatpush1.msra.mxu0 0.0
  %6326 = vmatprep.subr.mxu0 0.0
  %6327 = vmatpush1.msra.mxu0 0.0
  %6328 = vmatprep.subr.mxu0 0.0
  %6329 = vmatpush1.msra.mxu0 0.0
  %6330 = vmatprep.subr.mxu0 0.0
  %6331 = vmatpush1.msra.mxu0 0.0
  %6332 = vmatprep.subr.mxu0 0.0
  %6333 = vmatpush1.msra.mxu0 0.0
  %6334 = vmatprep.subr.mxu0 0.0
  %6335 = vmatpush1.msra.mxu0 0.0
  %6336 = vmatprep.subr.mxu0 0.0
  %6337 = vmatpush1.msra.mxu0 0.0
  %6338 = vmatprep.subr.mxu0 0.0
  %6339 = vmatpush1.msra.mxu0 0.0
  %6340 = vmatprep.subr.mxu0 0.0
  %6341 = vmatpush1.msra.mxu0 %v5181
  %6342 = vmatprep.subr.mxu0 0.0
  %6343 = vmatpush1.msra.mxu0 %v5180
  %6344 = vmatprep.subr.mxu0 0.0
  %6345 = vmatpush2.msra.mxu0 0.0
  %6346 = vmatprep.subr.mxu0 0.0
  %6347 = vmatpush2.msra.mxu0 0.0
  %6348 = vmatprep.subr.mxu0 0.0
  %6349 = vmatpush2.msra.mxu0 0.0
  %6350 = vmatprep.subr.mxu0 0.0
  %6351 = vmatpush2.msra.mxu0 0.0
  %6352 = vmatprep.subr.mxu0 0.0
  %6353 = vmatpush2.msra.mxu0 0.0
  %6354 = vmatprep.subr.mxu0 0.0
  %6355 = vmatpush2.msra.mxu0 0.0
  %6356 = vmatprep.subr.mxu0 0.0
  %6357 = vmatpush2.msra.mxu0 0.0
  %6358 = vmatprep.subr.mxu0 0.0
  %6359 = vmatpush2.msra.mxu0 0.0
  %6360 = vmatprep.subr.mxu0 0.0
  %6361 = vmatpush2.msra.mxu0 0.0
  %6362 = vmatprep.subr.mxu0 0.0
  %6363 = vmatpush2.msra.mxu0 0.0
  %6364 = vmatprep.subr.mxu0 0.0
  %6365 = vmatpush2.msra.mxu0 0.0
  %6366 = vmatprep.subr.mxu0 0.0
  %6367 = vmatpush2.msra.mxu0 0.0
  %6368 = vmatprep.subr.mxu0 0.0
  %6369 = vmatpush2.msra.mxu0 0.0
  %6370 = vmatprep.subr.mxu0 0.0
  %6371 = vmatpush2.msra.mxu0 0.0
  %6372 = vmatprep.subr.mxu0 0.0
  %6373 = vmatpush2.msra.mxu0 0.0
  %6374 = vmatprep.subr.mxu0 0.0
  %6375 = vmatpush2.msra.mxu0 0.0
  %6376 = vmatprep.mubr.f32.mxu0 0.0
  %6377 = vmatmul.mubr.f32.gmra.mxu0 %v6310
  %v6378 = vpop.f32.mrf.mxu0
  %v6379 = vadd.f32 %v6305, %v6378
  %v6380 = vpop.f32.mrf.mxu0
  %6381 = vdwg.mxu0
  %v6382 = vsel %vm232, %v5502, %v5501
  %v6383 = vadd.f32 %v6379, %v6382
  %v6384 = vxor.u32 %v6383, 2147483648
  %v6385 = vmul.f32 %v6384, 1.442695
  %v6386 = vpow.pop %v6385
  %v6387 = vadd.f32 %v6386, 1.0
  %v6388 = vrcp.pop %v6387
  %v6389 = vmul.f32 1.0, %v6388
  %v6390 = vtanh.pop %v6383
  %v6391 = vmul.f32 %v6389, %v6226
  %6393 = vrot.lane.b32.xlu0 %v6390, 96
  %v6394 = vpop.permute.xlu0 %6393
  %v6396 = vmul.f32 %v6389, %v6394
  %6398 = vrot.lane.b32.xlu0 %v6396, 16
  %v6399 = vpop.permute.xlu0 %6398
  %v6401 = vadd.f32 %v6391, %v6399
  %v6402 = vtanh.pop %v6401
  %6404 = vrot.lane.b32.xlu0 %v6402, 32
  %v6405 = vpop.permute.xlu0 %6404
  %v6407 = vmul.f32 %v6389, %v6405
  %6409 = vrot.lane.b32.xlu0 %v6407, 16
  %v6410 = vpop.permute.xlu0 %6409
  %v6411 = vsel %vm233, %v6410, 0
  %6413 = vmatprep.subr.mxu0 0.0
  %6414 = vmatpush1.msra.mxu0 0.0
  %6415 = vmatprep.subr.mxu0 0.0
  %6416 = vmatpush1.msra.mxu0 0.0
  %6417 = vmatprep.subr.mxu0 0.0
  %6418 = vmatpush1.msra.mxu0 0.0
  %6419 = vmatprep.subr.mxu0 0.0
  %6420 = vmatpush1.msra.mxu0 0.0
  %6421 = vmatprep.subr.mxu0 0.0
  %6422 = vmatpush1.msra.mxu0 0.0
  %6423 = vmatprep.subr.mxu0 0.0
  %6424 = vmatpush1.msra.mxu0 0.0
  %6425 = vmatprep.subr.mxu0 0.0
  %6426 = vmatpush1.msra.mxu0 0.0
  %6427 = vmatprep.subr.mxu0 0.0
  %6428 = vmatpush1.msra.mxu0 0.0
  %6429 = vmatprep.subr.mxu0 0.0
  %6430 = vmatpush1.msra.mxu0 0.0
  %6431 = vmatprep.subr.mxu0 0.0
  %6432 = vmatpush1.msra.mxu0 0.0
  %6433 = vmatprep.subr.mxu0 0.0
  %6434 = vmatpush1.msra.mxu0 0.0
  %6435 = vmatprep.subr.mxu0 0.0
  %6436 = vmatpush1.msra.mxu0 0.0
  %6437 = vmatprep.subr.mxu0 0.0
  %6438 = vmatpush1.msra.mxu0 0.0
  %6439 = vmatprep.subr.mxu0 0.0
  %6440 = vmatpush1.msra.mxu0 0.0
  %6441 = vmatprep.subr.mxu0 0.0
  %6442 = vmatpush1.msra.mxu0 %v5183
  %6443 = vmatprep.subr.mxu0 0.0
  %6444 = vmatpush1.msra.mxu0 %v5182
  %6445 = vmatprep.subr.mxu0 0.0
  %6446 = vmatpush2.msra.mxu0 0.0
  %6447 = vmatprep.subr.mxu0 0.0
  %6448 = vmatpush2.msra.mxu0 0.0
  %6449 = vmatprep.subr.mxu0 0.0
  %6450 = vmatpush2.msra.mxu0 0.0
  %6451 = vmatprep.subr.mxu0 0.0
  %6452 = vmatpush2.msra.mxu0 0.0
  %6453 = vmatprep.subr.mxu0 0.0
  %6454 = vmatpush2.msra.mxu0 0.0
  %6455 = vmatprep.subr.mxu0 0.0
  %6456 = vmatpush2.msra.mxu0 0.0
  %6457 = vmatprep.subr.mxu0 0.0
  %6458 = vmatpush2.msra.mxu0 0.0
  %6459 = vmatprep.subr.mxu0 0.0
  %6460 = vmatpush2.msra.mxu0 0.0
  %6461 = vmatprep.subr.mxu0 0.0
  %6462 = vmatpush2.msra.mxu0 0.0
  %6463 = vmatprep.subr.mxu0 0.0
  %6464 = vmatpush2.msra.mxu0 0.0
  %6465 = vmatprep.subr.mxu0 0.0
  %6466 = vmatpush2.msra.mxu0 0.0
  %6467 = vmatprep.subr.mxu0 0.0
  %6468 = vmatpush2.msra.mxu0 0.0
  %6469 = vmatprep.subr.mxu0 0.0
  %6470 = vmatpush2.msra.mxu0 0.0
  %6471 = vmatprep.subr.mxu0 0.0
  %6472 = vmatpush2.msra.mxu0 0.0
  %6473 = vmatprep.subr.mxu0 0.0
  %6474 = vmatpush2.msra.mxu0 0.0
  %6475 = vmatprep.subr.mxu0 0.0
  %6476 = vmatpush2.msra.mxu0 0.0
  %6477 = vmatprep.mubr.f32.mxu0 0.0
  %6478 = vmatmul.mubr.f32.gmra.mxu0 %v6411
  %v6479 = vpop.f32.mrf.mxu0
  %v6480 = vadd.f32 0.0, %v6479
  %v6481 = vpop.f32.mrf.mxu0
  %6482 = vdwg.mxu0
  %6483 = vrot.lane.b32.xlu0 %v6407, 80
  %v6484 = vpop.permute.xlu0 %6483
  %v6485 = vsel %vm233, %v6484, 0
  %6487 = vmatprep.subr.mxu0 0.0
  %6488 = vmatpush1.msra.mxu0 0.0
  %6489 = vmatprep.subr.mxu0 0.0
  %6490 = vmatpush1.msra.mxu0 0.0
  %6491 = vmatprep.subr.mxu0 0.0
  %6492 = vmatpush1.msra.mxu0 0.0
  %6493 = vmatprep.subr.mxu0 0.0
  %6494 = vmatpush1.msra.mxu0 0.0
  %6495 = vmatprep.subr.mxu0 0.0
  %6496 = vmatpush1.msra.mxu0 0.0
  %6497 = vmatprep.subr.mxu0 0.0
  %6498 = vmatpush1.msra.mxu0 0.0
  %6499 = vmatprep.subr.mxu0 0.0
  %6500 = vmatpush1.msra.mxu0 0.0
  %6501 = vmatprep.subr.mxu0 0.0
  %6502 = vmatpush1.msra.mxu0 0.0
  %6503 = vmatprep.subr.mxu0 0.0
  %6504 = vmatpush1.msra.mxu0 0.0
  %6505 = vmatprep.subr.mxu0 0.0
  %6506 = vmatpush1.msra.mxu0 0.0
  %6507 = vmatprep.subr.mxu0 0.0
  %6508 = vmatpush1.msra.mxu0 0.0
  %6509 = vmatprep.subr.mxu0 0.0
  %6510 = vmatpush1.msra.mxu0 0.0
  %6511 = vmatprep.subr.mxu0 0.0
  %6512 = vmatpush1.msra.mxu0 0.0
  %6513 = vmatprep.subr.mxu0 0.0
  %6514 = vmatpush1.msra.mxu0 0.0
  %6515 = vmatprep.subr.mxu0 0.0
  %6516 = vmatpush1.msra.mxu0 %v5181
  %6517 = vmatprep.subr.mxu0 0.0
  %6518 = vmatpush1.msra.mxu0 %v5180
  %6519 = vmatprep.subr.mxu0 0.0
  %6520 = vmatpush2.msra.mxu0 0.0
  %6521 = vmatprep.subr.mxu0 0.0
  %6522 = vmatpush2.msra.mxu0 0.0
  %6523 = vmatprep.subr.mxu0 0.0
  %6524 = vmatpush2.msra.mxu0 0.0
  %6525 = vmatprep.subr.mxu0 0.0
  %6526 = vmatpush2.msra.mxu0 0.0
  %6527 = vmatprep.subr.mxu0 0.0
  %6528 = vmatpush2.msra.mxu0 0.0
  %6529 = vmatprep.subr.mxu0 0.0
  %6530 = vmatpush2.msra.mxu0 0.0
  %6531 = vmatprep.subr.mxu0 0.0
  %6532 = vmatpush2.msra.mxu0 0.0
  %6533 = vmatprep.subr.mxu0 0.0
  %6534 = vmatpush2.msra.mxu0 0.0
  %6535 = vmatprep.subr.mxu0 0.0
  %6536 = vmatpush2.msra.mxu0 0.0
  %6537 = vmatprep.subr.mxu0 0.0
  %6538 = vmatpush2.msra.mxu0 0.0
  %6539 = vmatprep.subr.mxu0 0.0
  %6540 = vmatpush2.msra.mxu0 0.0
  %6541 = vmatprep.subr.mxu0 0.0
  %6542 = vmatpush2.msra.mxu0 0.0
  %6543 = vmatprep.subr.mxu0 0.0
  %6544 = vmatpush2.msra.mxu0 0.0
  %6545 = vmatprep.subr.mxu0 0.0
  %6546 = vmatpush2.msra.mxu0 0.0
  %6547 = vmatprep.subr.mxu0 0.0
  %6548 = vmatpush2.msra.mxu0 0.0
  %6549 = vmatprep.subr.mxu0 0.0
  %6550 = vmatpush2.msra.mxu0 0.0
  %6551 = vmatprep.mubr.f32.mxu0 0.0
  %6552 = vmatmul.mubr.f32.gmra.mxu0 %v6485
  %v6553 = vpop.f32.mrf.mxu0
  %v6554 = vadd.f32 %v6480, %v6553
  %v6555 = vpop.f32.mrf.mxu0
  %6556 = vdwg.mxu0
  %v6557 = vsel %vm232, %v5325, %v5324
  %v6558 = vadd.f32 %v6554, %v6557
  %v6559 = vxor.u32 %v6558, 2147483648
  %v6560 = vmul.f32 %v6559, 1.442695
  %v6561 = vpow.pop %v6560
  %v6562 = vadd.f32 %v6561, 1.0
  %v6563 = vrcp.pop %v6562
  %v6564 = vmul.f32 1.0, %v6563
  %v6565 = vtanh.pop %v6558
  %v6566 = vmul.f32 %v6564, %v6401
  %6568 = vrot.lane.b32.xlu0 %v6565, 96
  %v6569 = vpop.permute.xlu0 %6568
  %v6571 = vmul.f32 %v6564, %v6569
  %6573 = vrot.lane.b32.xlu0 %v6571, 16
  %v6574 = vpop.permute.xlu0 %6573
  %v6576 = vadd.f32 %v6566, %v6574
  %v6577 = vtanh.pop %v6576
  %6579 = vrot.lane.b32.xlu0 %v6577, 32
  %v6580 = vpop.permute.xlu0 %6579
  %v6582 = vmul.f32 %v6564, %v6580
  %v6583 = vld [vmem:[%s13] sm:$0xff]
  %v6584 = vld [vmem:[%s13 + $0x8] sm:$0xff]
  %v6585 = vld [vmem:[%s13 + $0x10] sm:$0xff]
  %v6586 = vld [vmem:[%s13 + $0x18] sm:$0xff]
  %6588 = vrot.lane.b32.xlu0 %v6582, 16
  %v6589 = vpop.permute.xlu0 %6588
  %v6590 = vsel %vm233, %v6589, 0
  %6592 = vmatprep.subr.mxu0 0.0
  %6593 = vmatpush1.msra.mxu0 0.0
  %6594 = vmatprep.subr.mxu0 0.0
  %6595 = vmatpush1.msra.mxu0 0.0
  %6596 = vmatprep.subr.mxu0 0.0
  %6597 = vmatpush1.msra.mxu0 0.0
  %6598 = vmatprep.subr.mxu0 0.0
  %6599 = vmatpush1.msra.mxu0 0.0
  %6600 = vmatprep.subr.mxu0 0.0
  %6601 = vmatpush1.msra.mxu0 0.0
  %6602 = vmatprep.subr.mxu0 0.0
  %6603 = vmatpush1.msra.mxu0 0.0
  %6604 = vmatprep.subr.mxu0 0.0
  %6605 = vmatpush1.msra.mxu0 0.0
  %6606 = vmatprep.subr.mxu0 0.0
  %6607 = vmatpush1.msra.mxu0 0.0
  %6608 = vmatprep.subr.mxu0 0.0
  %6609 = vmatpush1.msra.mxu0 0.0
  %6610 = vmatprep.subr.mxu0 0.0
  %6611 = vmatpush1.msra.mxu0 0.0
  %6612 = vmatprep.subr.mxu0 0.0
  %6613 = vmatpush1.msra.mxu0 0.0
  %6614 = vmatprep.subr.mxu0 0.0
  %6615 = vmatpush1.msra.mxu0 0.0
  %6616 = vmatprep.subr.mxu0 0.0
  %6617 = vmatpush1.msra.mxu0 0.0
  %6618 = vmatprep.subr.mxu0 0.0
  %6619 = vmatpush1.msra.mxu0 0.0
  %6620 = vmatprep.subr.mxu0 0.0
  %6621 = vmatpush1.msra.mxu0 %v6586
  %6622 = vmatprep.subr.mxu0 0.0
  %6623 = vmatpush1.msra.mxu0 %v6585
  %6624 = vmatprep.subr.mxu0 0.0
  %6625 = vmatpush2.msra.mxu0 0.0
  %6626 = vmatprep.subr.mxu0 0.0
  %6627 = vmatpush2.msra.mxu0 0.0
  %6628 = vmatprep.subr.mxu0 0.0
  %6629 = vmatpush2.msra.mxu0 0.0
  %6630 = vmatprep.subr.mxu0 0.0
  %6631 = vmatpush2.msra.mxu0 0.0
  %6632 = vmatprep.subr.mxu0 0.0
  %6633 = vmatpush2.msra.mxu0 0.0
  %6634 = vmatprep.subr.mxu0 0.0
  %6635 = vmatpush2.msra.mxu0 0.0
  %6636 = vmatprep.subr.mxu0 0.0
  %6637 = vmatpush2.msra.mxu0 0.0
  %6638 = vmatprep.subr.mxu0 0.0
  %6639 = vmatpush2.msra.mxu0 0.0
  %6640 = vmatprep.subr.mxu0 0.0
  %6641 = vmatpush2.msra.mxu0 0.0
  %6642 = vmatprep.subr.mxu0 0.0
  %6643 = vmatpush2.msra.mxu0 0.0
  %6644 = vmatprep.subr.mxu0 0.0
  %6645 = vmatpush2.msra.mxu0 0.0
  %6646 = vmatprep.subr.mxu0 0.0
  %6647 = vmatpush2.msra.mxu0 0.0
  %6648 = vmatprep.subr.mxu0 0.0
  %6649 = vmatpush2.msra.mxu0 0.0
  %6650 = vmatprep.subr.mxu0 0.0
  %6651 = vmatpush2.msra.mxu0 0.0
  %6652 = vmatprep.subr.mxu0 0.0
  %6653 = vmatpush2.msra.mxu0 0.0
  %6654 = vmatprep.subr.mxu0 0.0
  %6655 = vmatpush2.msra.mxu0 0.0
  %6656 = vmatprep.mubr.f32.mxu0 0.0
  %6657 = vmatmul.mubr.f32.gmra.mxu0 %v6590
  %v6658 = vpop.f32.mrf.mxu0
  %v6659 = vadd.f32 0.0, %v6658
  %v6660 = vpop.f32.mrf.mxu0
  %6661 = vmatprep.mubr.f32.mxu0 0.0
  %6662 = vmatmul.mubr.f32.gmra.mxu0 %v6411
  %v6663 = vpop.f32.mrf.mxu0
  %v6664 = vadd.f32 0.0, %v6663
  %v6665 = vpop.f32.mrf.mxu0
  %6666 = vmatprep.mubr.f32.mxu0 0.0
  %6667 = vmatmul.mubr.f32.gmra.mxu0 %v6236
  %v6668 = vpop.f32.mrf.mxu0
  %v6669 = vadd.f32 0.0, %v6668
  %v6670 = vpop.f32.mrf.mxu0
  %6671 = vmatprep.mubr.f32.mxu0 0.0
  %6672 = vmatmul.mubr.f32.gmra.mxu0 %v6061
  %v6673 = vpop.f32.mrf.mxu0
  %v6674 = vadd.f32 0.0, %v6673
  %v6675 = vpop.f32.mrf.mxu0
  %6676 = vmatprep.mubr.f32.mxu0 0.0
  %6677 = vmatmul.mubr.f32.gmra.mxu0 %v5886
  %v6678 = vpop.f32.mrf.mxu0
  %v6679 = vadd.f32 0.0, %v6678
  %v6680 = vpop.f32.mrf.mxu0
  %6681 = vmatprep.mubr.f32.mxu0 0.0
  %6682 = vmatmul.mubr.f32.gmra.mxu0 %v5709
  %v6683 = vpop.f32.mrf.mxu0
  %v6684 = vadd.f32 0.0, %v6683
  %v6685 = vpop.f32.mrf.mxu0
  %6686 = vmatprep.mubr.f32.mxu0 0.0
  %6687 = vmatmul.mubr.f32.gmra.mxu0 %v5532
  %v6688 = vpop.f32.mrf.mxu0
  %v6689 = vadd.f32 0.0, %v6688
  %v6690 = vpop.f32.mrf.mxu0
  %6691 = vmatprep.mubr.f32.mxu0 0.0
  %6692 = vmatmul.mubr.f32.gmra.mxu0 %v5355
  %v6693 = vpop.f32.mrf.mxu0
  %v6694 = vadd.f32 0.0, %v6693
  %v6695 = vpop.f32.mrf.mxu0
  %6696 = vdwg.mxu0
  %6697 = vrot.lane.b32.xlu0 %v6582, 80
  %v6698 = vpop.permute.xlu0 %6697
  %v6699 = vsel %vm233, %v6698, 0
  %6701 = vmatprep.subr.mxu0 0.0
  %6702 = vmatpush1.msra.mxu0 0.0
  %6703 = vmatprep.subr.mxu0 0.0
  %6704 = vmatpush1.msra.mxu0 0.0
  %6705 = vmatprep.subr.mxu0 0.0
  %6706 = vmatpush1.msra.mxu0 0.0
  %6707 = vmatprep.subr.mxu0 0.0
  %6708 = vmatpush1.msra.mxu0 0.0
  %6709 = vmatprep.subr.mxu0 0.0
  %6710 = vmatpush1.msra.mxu0 0.0
  %6711 = vmatprep.subr.mxu0 0.0
  %6712 = vmatpush1.msra.mxu0 0.0
  %6713 = vmatprep.subr.mxu0 0.0
  %6714 = vmatpush1.msra.mxu0 0.0
  %6715 = vmatprep.subr.mxu0 0.0
  %6716 = vmatpush1.msra.mxu0 0.0
  %6717 = vmatprep.subr.mxu0 0.0
  %6718 = vmatpush1.msra.mxu0 0.0
  %6719 = vmatprep.subr.mxu0 0.0
  %6720 = vmatpush1.msra.mxu0 0.0
  %6721 = vmatprep.subr.mxu0 0.0
  %6722 = vmatpush1.msra.mxu0 0.0
  %6723 = vmatprep.subr.mxu0 0.0
  %6724 = vmatpush1.msra.mxu0 0.0
  %6725 = vmatprep.subr.mxu0 0.0
  %6726 = vmatpush1.msra.mxu0 0.0
  %6727 = vmatprep.subr.mxu0 0.0
  %6728 = vmatpush1.msra.mxu0 0.0
  %6729 = vmatprep.subr.mxu0 0.0
  %6730 = vmatpush1.msra.mxu0 %v6584
  %6731 = vmatprep.subr.mxu0 0.0
  %6732 = vmatpush1.msra.mxu0 %v6583
  %6733 = vmatprep.subr.mxu0 0.0
  %6734 = vmatpush2.msra.mxu0 0.0
  %6735 = vmatprep.subr.mxu0 0.0
  %6736 = vmatpush2.msra.mxu0 0.0
  %6737 = vmatprep.subr.mxu0 0.0
  %6738 = vmatpush2.msra.mxu0 0.0
  %6739 = vmatprep.subr.mxu0 0.0
  %6740 = vmatpush2.msra.mxu0 0.0
  %6741 = vmatprep.subr.mxu0 0.0
  %6742 = vmatpush2.msra.mxu0 0.0
  %6743 = vmatprep.subr.mxu0 0.0
  %6744 = vmatpush2.msra.mxu0 0.0
  %6745 = vmatprep.subr.mxu0 0.0
  %6746 = vmatpush2.msra.mxu0 0.0
  %6747 = vmatprep.subr.mxu0 0.0
  %6748 = vmatpush2.msra.mxu0 0.0
  %6749 = vmatprep.subr.mxu0 0.0
  %6750 = vmatpush2.msra.mxu0 0.0
  %6751 = vmatprep.subr.mxu0 0.0
  %6752 = vmatpush2.msra.mxu0 0.0
  %6753 = vmatprep.subr.mxu0 0.0
  %6754 = vmatpush2.msra.mxu0 0.0
  %6755 = vmatprep.subr.mxu0 0.0
  %6756 = vmatpush2.msra.mxu0 0.0
  %6757 = vmatprep.subr.mxu0 0.0
  %6758 = vmatpush2.msra.mxu0 0.0
  %6759 = vmatprep.subr.mxu0 0.0
  %6760 = vmatpush2.msra.mxu0 0.0
  %6761 = vmatprep.subr.mxu0 0.0
  %6762 = vmatpush2.msra.mxu0 0.0
  %6763 = vmatprep.subr.mxu0 0.0
  %6764 = vmatpush2.msra.mxu0 0.0
  %6765 = vmatprep.mubr.f32.mxu0 0.0
  %6766 = vmatmul.mubr.f32.gmra.mxu0 %v5429
  %v6767 = vpop.f32.mrf.mxu0
  %v6768 = vadd.f32 %v6659, %v6767
  %v6769 = vpop.f32.mrf.mxu0
  %6770 = vmatprep.mubr.f32.mxu0 0.0
  %6771 = vmatmul.mubr.f32.gmra.mxu0 %v5606
  %v6772 = vpop.f32.mrf.mxu0
  %v6773 = vadd.f32 %v6664, %v6772
  %v6774 = vpop.f32.mrf.mxu0
  %6775 = vmatprep.mubr.f32.mxu0 0.0
  %6776 = vmatmul.mubr.f32.gmra.mxu0 %v5783
  %v6777 = vpop.f32.mrf.mxu0
  %v6778 = vadd.f32 %v6669, %v6777
  %v6779 = vpop.f32.mrf.mxu0
  %6780 = vmatprep.mubr.f32.mxu0 0.0
  %6781 = vmatmul.mubr.f32.gmra.mxu0 %v5960
  %v6782 = vpop.f32.mrf.mxu0
  %v6783 = vadd.f32 %v6674, %v6782
  %v6784 = vpop.f32.mrf.mxu0
  %6785 = vmatprep.mubr.f32.mxu0 0.0
  %6786 = vmatmul.mubr.f32.gmra.mxu0 %v6135
  %v6787 = vpop.f32.mrf.mxu0
  %v6788 = vadd.f32 %v6679, %v6787
  %v6789 = vpop.f32.mrf.mxu0
  %6790 = vmatprep.mubr.f32.mxu0 0.0
  %6791 = vmatmul.mubr.f32.gmra.mxu0 %v6310
  %v6792 = vpop.f32.mrf.mxu0
  %v6793 = vadd.f32 %v6684, %v6792
  %v6794 = vpop.f32.mrf.mxu0
  %6795 = vmatprep.mubr.f32.mxu0 0.0
  %6796 = vmatmul.mubr.f32.gmra.mxu0 %v6485
  %v6797 = vpop.f32.mrf.mxu0
  %v6798 = vadd.f32 %v6689, %v6797
  %v6799 = vpop.f32.mrf.mxu0
  %6800 = vmatprep.mubr.f32.mxu0 0.0
  %6801 = vmatmul.mubr.f32.gmra.mxu0 %v6699
  %v6802 = vpop.f32.mrf.mxu0
  %v6803 = vadd.f32 %v6694, %v6802
  %v6804 = vpop.f32.mrf.mxu0
  %6805 = vdwg.mxu0
  %v6806 = vld [vmem:[%s14] sm:$0x1]
  %v6808 = vlaneseq
  %v6809 = vshrl.u32 %v6808, 7
  %v6810 = vsub.s32 0, %v6809
  %v6811 = vrot.slane %v6806, %v6810
  %v6813 = vadd.f32 %v6768, %v6811
  %v6814 = vadd.f32 %v6773, %v6811
  %v6815 = vadd.f32 %v6778, %v6811
  %v6816 = vadd.f32 %v6783, %v6811
  %v6817 = vadd.f32 %v6788, %v6811
  %v6818 = vadd.f32 %v6793, %v6811
  %v6819 = vadd.f32 %v6798, %v6811
  %v6820 = vadd.f32 %v6803, %v6811
  %v6821 = vld [vmem:[%s15] sm:$0xff]
  %v6822 = vld [vmem:[%s15 + $0x8] sm:$0xff]
  %v6823 = vld [vmem:[%s15 + $0x10] sm:$0xff]
  %v6824 = vld [vmem:[%s15 + $0x18] sm:$0xff]
  %6825 = vmatprep.subr.mxu0 0.0
  %6826 = vmatpush1.msra.mxu0 0.0
  %6827 = vmatprep.subr.mxu0 0.0
  %6828 = vmatpush1.msra.mxu0 0.0
  %6829 = vmatprep.subr.mxu0 0.0
  %6830 = vmatpush1.msra.mxu0 0.0
  %6831 = vmatprep.subr.mxu0 0.0
  %6832 = vmatpush1.msra.mxu0 0.0
  %6833 = vmatprep.subr.mxu0 0.0
  %6834 = vmatpush1.msra.mxu0 0.0
  %6835 = vmatprep.subr.mxu0 0.0
  %6836 = vmatpush1.msra.mxu0 0.0
  %6837 = vmatprep.subr.mxu0 0.0
  %6838 = vmatpush1.msra.mxu0 0.0
  %6839 = vmatprep.subr.mxu0 0.0
  %6840 = vmatpush1.msra.mxu0 0.0
  %6841 = vmatprep.subr.mxu0 0.0
  %6842 = vmatpush1.msra.mxu0 0.0
  %6843 = vmatprep.subr.mxu0 0.0
  %6844 = vmatpush1.msra.mxu0 0.0
  %6845 = vmatprep.subr.mxu0 0.0
  %6846 = vmatpush1.msra.mxu0 0.0
  %6847 = vmatprep.subr.mxu0 0.0
  %6848 = vmatpush1.msra.mxu0 0.0
  %6849 = vmatprep.subr.mxu0 0.0
  %6850 = vmatpush1.msra.mxu0 0.0
  %6851 = vmatprep.subr.mxu0 0.0
  %6852 = vmatpush1.msra.mxu0 0.0
  %6853 = vmatprep.subr.mxu0 0.0
  %6854 = vmatpush1.msra.mxu0 %v6824
  %6855 = vmatprep.subr.mxu0 0.0
  %6856 = vmatpush1.msra.mxu0 %v6823
  %6857 = vmatprep.subr.mxu0 0.0
  %6858 = vmatpush2.msra.mxu0 0.0
  %6859 = vmatprep.subr.mxu0 0.0
  %6860 = vmatpush2.msra.mxu0 0.0
  %6861 = vmatprep.subr.mxu0 0.0
  %6862 = vmatpush2.msra.mxu0 0.0
  %6863 = vmatprep.subr.mxu0 0.0
  %6864 = vmatpush2.msra.mxu0 0.0
  %6865 = vmatprep.subr.mxu0 0.0
  %6866 = vmatpush2.msra.mxu0 0.0
  %6867 = vmatprep.subr.mxu0 0.0
  %6868 = vmatpush2.msra.mxu0 0.0
  %6869 = vmatprep.subr.mxu0 0.0
  %6870 = vmatpush2.msra.mxu0 0.0
  %6871 = vmatprep.subr.mxu0 0.0
  %6872 = vmatpush2.msra.mxu0 0.0
  %6873 = vmatprep.subr.mxu0 0.0
  %6874 = vmatpush2.msra.mxu0 0.0
  %6875 = vmatprep.subr.mxu0 0.0
  %6876 = vmatpush2.msra.mxu0 0.0
  %6877 = vmatprep.subr.mxu0 0.0
  %6878 = vmatpush2.msra.mxu0 0.0
  %6879 = vmatprep.subr.mxu0 0.0
  %6880 = vmatpush2.msra.mxu0 0.0
  %6881 = vmatprep.subr.mxu0 0.0
  %6882 = vmatpush2.msra.mxu0 0.0
  %6883 = vmatprep.subr.mxu0 0.0
  %6884 = vmatpush2.msra.mxu0 0.0
  %6885 = vmatprep.subr.mxu0 0.0
  %6886 = vmatpush2.msra.mxu0 0.0
  %6887 = vmatprep.subr.mxu0 0.0
  %6888 = vmatpush2.msra.mxu0 0.0
  %6889 = vmatprep.mubr.f32.mxu0 0.0
  %6890 = vmatmul.mubr.f32.gmra.mxu0 %v6590
  %v6891 = vpop.f32.mrf.mxu0
  %v6892 = vadd.f32 0.0, %v6891
  %v6893 = vpop.f32.mrf.mxu0
  %6894 = vmatprep.mubr.f32.mxu0 0.0
  %6895 = vmatmul.mubr.f32.gmra.mxu0 %v6411
  %v6896 = vpop.f32.mrf.mxu0
  %v6897 = vadd.f32 0.0, %v6896
  %v6898 = vpop.f32.mrf.mxu0
  %6899 = vmatprep.mubr.f32.mxu0 0.0
  %6900 = vmatmul.mubr.f32.gmra.mxu0 %v6236
  %v6901 = vpop.f32.mrf.mxu0
  %v6902 = vadd.f32 0.0, %v6901
  %v6903 = vpop.f32.mrf.mxu0
  %6904 = vmatprep.mubr.f32.mxu0 0.0
  %6905 = vmatmul.mubr.f32.gmra.mxu0 %v6061
  %v6906 = vpop.f32.mrf.mxu0
  %v6907 = vadd.f32 0.0, %v6906
  %v6908 = vpop.f32.mrf.mxu0
  %6909 = vmatprep.mubr.f32.mxu0 0.0
  %6910 = vmatmul.mubr.f32.gmra.mxu0 %v5886
  %v6911 = vpop.f32.mrf.mxu0
  %v6912 = vadd.f32 0.0, %v6911
  %v6913 = vpop.f32.mrf.mxu0
  %6914 = vmatprep.mubr.f32.mxu0 0.0
  %6915 = vmatmul.mubr.f32.gmra.mxu0 %v5709
  %v6916 = vpop.f32.mrf.mxu0
  %v6917 = vadd.f32 0.0, %v6916
  %v6918 = vpop.f32.mrf.mxu0
  %6919 = vmatprep.mubr.f32.mxu0 0.0
  %6920 = vmatmul.mubr.f32.gmra.mxu0 %v5532
  %v6921 = vpop.f32.mrf.mxu0
  %v6922 = vadd.f32 0.0, %v6921
  %v6923 = vpop.f32.mrf.mxu0
  %6924 = vmatprep.mubr.f32.mxu0 0.0
  %6925 = vmatmul.mubr.f32.gmra.mxu0 %v5355
  %v6926 = vpop.f32.mrf.mxu0
  %v6927 = vadd.f32 0.0, %v6926
  %v6928 = vpop.f32.mrf.mxu0
  %6929 = vdwg.mxu0
  %6930 = vmatprep.subr.mxu0 0.0
  %6931 = vmatpush1.msra.mxu0 0.0
  %6932 = vmatprep.subr.mxu0 0.0
  %6933 = vmatpush1.msra.mxu0 0.0
  %6934 = vmatprep.subr.mxu0 0.0
  %6935 = vmatpush1.msra.mxu0 0.0
  %6936 = vmatprep.subr.mxu0 0.0
  %6937 = vmatpush1.msra.mxu0 0.0
  %6938 = vmatprep.subr.mxu0 0.0
  %6939 = vmatpush1.msra.mxu0 0.0
  %6940 = vmatprep.subr.mxu0 0.0
  %6941 = vmatpush1.msra.mxu0 0.0
  %6942 = vmatprep.subr.mxu0 0.0
  %6943 = vmatpush1.msra.mxu0 0.0
  %6944 = vmatprep.subr.mxu0 0.0
  %6945 = vmatpush1.msra.mxu0 0.0
  %6946 = vmatprep.subr.mxu0 0.0
  %6947 = vmatpush1.msra.mxu0 0.0
  %6948 = vmatprep.subr.mxu0 0.0
  %6949 = vmatpush1.msra.mxu0 0.0
  %6950 = vmatprep.subr.mxu0 0.0
  %6951 = vmatpush1.msra.mxu0 0.0
  %6952 = vmatprep.subr.mxu0 0.0
  %6953 = vmatpush1.msra.mxu0 0.0
  %6954 = vmatprep.subr.mxu0 0.0
  %6955 = vmatpush1.msra.mxu0 0.0
  %6956 = vmatprep.subr.mxu0 0.0
  %6957 = vmatpush1.msra.mxu0 0.0
  %6958 = vmatprep.subr.mxu0 0.0
  %6959 = vmatpush1.msra.mxu0 %v6822
  %6960 = vmatprep.subr.mxu0 0.0
  %6961 = vmatpush1.msra.mxu0 %v6821
  %6962 = vmatprep.subr.mxu0 0.0
  %6963 = vmatpush2.msra.mxu0 0.0
  %6964 = vmatprep.subr.mxu0 0.0
  %6965 = vmatpush2.msra.mxu0 0.0
  %6966 = vmatprep.subr.mxu0 0.0
  %6967 = vmatpush2.msra.mxu0 0.0
  %6968 = vmatprep.subr.mxu0 0.0
  %6969 = vmatpush2.msra.mxu0 0.0
  %6970 = vmatprep.subr.mxu0 0.0
  %6971 = vmatpush2.msra.mxu0 0.0
  %6972 = vmatprep.subr.mxu0 0.0
  %6973 = vmatpush2.msra.mxu0 0.0
  %6974 = vmatprep.subr.mxu0 0.0
  %6975 = vmatpush2.msra.mxu0 0.0
  %6976 = vmatprep.subr.mxu0 0.0
  %6977 = vmatpush2.msra.mxu0 0.0
  %6978 = vmatprep.subr.mxu0 0.0
  %6979 = vmatpush2.msra.mxu0 0.0
  %6980 = vmatprep.subr.mxu0 0.0
  %6981 = vmatpush2.msra.mxu0 0.0
  %6982 = vmatprep.subr.mxu0 0.0
  %6983 = vmatpush2.msra.mxu0 0.0
  %6984 = vmatprep.subr.mxu0 0.0
  %6985 = vmatpush2.msra.mxu0 0.0
  %6986 = vmatprep.subr.mxu0 0.0
  %6987 = vmatpush2.msra.mxu0 0.0
  %6988 = vmatprep.subr.mxu0 0.0
  %6989 = vmatpush2.msra.mxu0 0.0
  %6990 = vmatprep.subr.mxu0 0.0
  %6991 = vmatpush2.msra.mxu0 0.0
  %6992 = vmatprep.subr.mxu0 0.0
  %6993 = vmatpush2.msra.mxu0 0.0
  %6994 = vmatprep.mubr.f32.mxu0 0.0
  %6995 = vmatmul.mubr.f32.gmra.mxu0 %v5429
  %v6996 = vpop.f32.mrf.mxu0
  %v6997 = vadd.f32 %v6892, %v6996
  %v6998 = vpop.f32.mrf.mxu0
  %6999 = vmatprep.mubr.f32.mxu0 0.0
  %7000 = vmatmul.mubr.f32.gmra.mxu0 %v5606
  %v7001 = vpop.f32.mrf.mxu0
  %v7002 = vadd.f32 %v6897, %v7001
  %v7003 = vpop.f32.mrf.mxu0
  %7004 = vmatprep.mubr.f32.mxu0 0.0
  %7005 = vmatmul.mubr.f32.gmra.mxu0 %v5783
  %v7006 = vpop.f32.mrf.mxu0
  %v7007 = vadd.f32 %v6902, %v7006
  %v7008 = vpop.f32.mrf.mxu0
  %7009 = vmatprep.mubr.f32.mxu0 0.0
  %7010 = vmatmul.mubr.f32.gmra.mxu0 %v5960
  %v7011 = vpop.f32.mrf.mxu0
  %v7012 = vadd.f32 %v6907, %v7011
  %v7013 = vpop.f32.mrf.mxu0
  %7014 = vmatprep.mubr.f32.mxu0 0.0
  %7015 = vmatmul.mubr.f32.gmra.mxu0 %v6135
  %v7016 = vpop.f32.mrf.mxu0
  %v7017 = vadd.f32 %v6912, %v7016
  %v7018 = vpop.f32.mrf.mxu0
  %7019 = vmatprep.mubr.f32.mxu0 0.0
  %7020 = vmatmul.mubr.f32.gmra.mxu0 %v6310
  %v7021 = vpop.f32.mrf.mxu0
  %v7022 = vadd.f32 %v6917, %v7021
  %v7023 = vpop.f32.mrf.mxu0
  %7024 = vmatprep.mubr.f32.mxu0 0.0
  %7025 = vmatmul.mubr.f32.gmra.mxu0 %v6485
  %v7026 = vpop.f32.mrf.mxu0
  %v7027 = vadd.f32 %v6922, %v7026
  %v7028 = vpop.f32.mrf.mxu0
  %7029 = vmatprep.mubr.f32.mxu0 0.0
  %7030 = vmatmul.mubr.f32.gmra.mxu0 %v6699
  %v7031 = vpop.f32.mrf.mxu0
  %v7032 = vadd.f32 %v6927, %v7031
  %v7033 = vpop.f32.mrf.mxu0
  %7034 = vdwg.mxu0
  %v7035 = vld [vmem:[%s16] sm:$0x1]
  %v7037 = vlaneseq
  %v7038 = vshrl.u32 %v7037, 7
  %v7039 = vsub.s32 0, %v7038
  %v7040 = vrot.slane %v7035, %v7039
  %v7042 = vadd.f32 %v6997, %v7040
  %v7043 = vadd.f32 %v7002, %v7040
  %v7044 = vadd.f32 %v7007, %v7040
  %v7045 = vadd.f32 %v7012, %v7040
  %v7046 = vadd.f32 %v7017, %v7040
  %v7047 = vadd.f32 %v7022, %v7040
  %v7048 = vadd.f32 %v7027, %v7040
  %v7049 = vadd.f32 %v7032, %v7040
  %v7050 = vld [vmem:[%s17] sm:$0xff]
  %v7051 = vld [vmem:[%s17 + $0x8] sm:$0xff]
  %v7052 = vld [vmem:[%s17 + $0x10] sm:$0xff]
  %v7053 = vld [vmem:[%s17 + $0x18] sm:$0xff]
  %7054 = vmatprep.subr.mxu0 0.0
  %7055 = vmatpush1.msra.mxu0 0.0
  %7056 = vmatprep.subr.mxu0 0.0
  %7057 = vmatpush1.msra.mxu0 0.0
  %7058 = vmatprep.subr.mxu0 0.0
  %7059 = vmatpush1.msra.mxu0 0.0
  %7060 = vmatprep.subr.mxu0 0.0
  %7061 = vmatpush1.msra.mxu0 0.0
  %7062 = vmatprep.subr.mxu0 0.0
  %7063 = vmatpush1.msra.mxu0 0.0
  %7064 = vmatprep.subr.mxu0 0.0
  %7065 = vmatpush1.msra.mxu0 0.0
  %7066 = vmatprep.subr.mxu0 0.0
  %7067 = vmatpush1.msra.mxu0 0.0
  %7068 = vmatprep.subr.mxu0 0.0
  %7069 = vmatpush1.msra.mxu0 0.0
  %7070 = vmatprep.subr.mxu0 0.0
  %7071 = vmatpush1.msra.mxu0 0.0
  %7072 = vmatprep.subr.mxu0 0.0
  %7073 = vmatpush1.msra.mxu0 0.0
  %7074 = vmatprep.subr.mxu0 0.0
  %7075 = vmatpush1.msra.mxu0 0.0
  %7076 = vmatprep.subr.mxu0 0.0
  %7077 = vmatpush1.msra.mxu0 0.0
  %7078 = vmatprep.subr.mxu0 0.0
  %7079 = vmatpush1.msra.mxu0 0.0
  %7080 = vmatprep.subr.mxu0 0.0
  %7081 = vmatpush1.msra.mxu0 0.0
  %7082 = vmatprep.subr.mxu0 0.0
  %7083 = vmatpush1.msra.mxu0 %v7053
  %7084 = vmatprep.subr.mxu0 0.0
  %7085 = vmatpush1.msra.mxu0 %v7052
  %7086 = vmatprep.subr.mxu0 0.0
  %7087 = vmatpush2.msra.mxu0 0.0
  %7088 = vmatprep.subr.mxu0 0.0
  %7089 = vmatpush2.msra.mxu0 0.0
  %7090 = vmatprep.subr.mxu0 0.0
  %7091 = vmatpush2.msra.mxu0 0.0
  %7092 = vmatprep.subr.mxu0 0.0
  %7093 = vmatpush2.msra.mxu0 0.0
  %7094 = vmatprep.subr.mxu0 0.0
  %7095 = vmatpush2.msra.mxu0 0.0
  %7096 = vmatprep.subr.mxu0 0.0
  %7097 = vmatpush2.msra.mxu0 0.0
  %7098 = vmatprep.subr.mxu0 0.0
  %7099 = vmatpush2.msra.mxu0 0.0
  %7100 = vmatprep.subr.mxu0 0.0
  %7101 = vmatpush2.msra.mxu0 0.0
  %7102 = vmatprep.subr.mxu0 0.0
  %7103 = vmatpush2.msra.mxu0 0.0
  %7104 = vmatprep.subr.mxu0 0.0
  %7105 = vmatpush2.msra.mxu0 0.0
  %7106 = vmatprep.subr.mxu0 0.0
  %7107 = vmatpush2.msra.mxu0 0.0
  %7108 = vmatprep.subr.mxu0 0.0
  %7109 = vmatpush2.msra.mxu0 0.0
  %7110 = vmatprep.subr.mxu0 0.0
  %7111 = vmatpush2.msra.mxu0 0.0
  %7112 = vmatprep.subr.mxu0 0.0
  %7113 = vmatpush2.msra.mxu0 0.0
  %7114 = vmatprep.subr.mxu0 0.0
  %7115 = vmatpush2.msra.mxu0 0.0
  %7116 = vmatprep.subr.mxu0 0.0
  %7117 = vmatpush2.msra.mxu0 0.0
  %7118 = vmatprep.mubr.f32.mxu0 0.0
  %7119 = vmatmul.mubr.f32.gmra.mxu0 %v6590
  %v7120 = vpop.f32.mrf.mxu0
  %v7121 = vadd.f32 0.0, %v7120
  %v7122 = vpop.f32.mrf.mxu0
  %7123 = vmatprep.mubr.f32.mxu0 0.0
  %7124 = vmatmul.mubr.f32.gmra.mxu0 %v6411
  %v7125 = vpop.f32.mrf.mxu0
  %v7126 = vadd.f32 0.0, %v7125
  %v7127 = vpop.f32.mrf.mxu0
  %7128 = vmatprep.mubr.f32.mxu0 0.0
  %7129 = vmatmul.mubr.f32.gmra.mxu0 %v6236
  %v7130 = vpop.f32.mrf.mxu0
  %v7131 = vadd.f32 0.0, %v7130
  %v7132 = vpop.f32.mrf.mxu0
  %7133 = vmatprep.mubr.f32.mxu0 0.0
  %7134 = vmatmul.mubr.f32.gmra.mxu0 %v6061
  %v7135 = vpop.f32.mrf.mxu0
  %v7136 = vadd.f32 0.0, %v7135
  %v7137 = vpop.f32.mrf.mxu0
  %7138 = vmatprep.mubr.f32.mxu0 0.0
  %7139 = vmatmul.mubr.f32.gmra.mxu0 %v5886
  %v7140 = vpop.f32.mrf.mxu0
  %v7141 = vadd.f32 0.0, %v7140
  %v7142 = vpop.f32.mrf.mxu0
  %7143 = vmatprep.mubr.f32.mxu0 0.0
  %7144 = vmatmul.mubr.f32.gmra.mxu0 %v5709
  %v7145 = vpop.f32.mrf.mxu0
  %v7146 = vadd.f32 0.0, %v7145
  %v7147 = vpop.f32.mrf.mxu0
  %7148 = vmatprep.mubr.f32.mxu0 0.0
  %7149 = vmatmul.mubr.f32.gmra.mxu0 %v5532
  %v7150 = vpop.f32.mrf.mxu0
  %v7151 = vadd.f32 0.0, %v7150
  %v7152 = vpop.f32.mrf.mxu0
  %7153 = vmatprep.mubr.f32.mxu0 0.0
  %7154 = vmatmul.mubr.f32.gmra.mxu0 %v5355
  %v7155 = vpop.f32.mrf.mxu0
  %v7156 = vadd.f32 0.0, %v7155
  %v7157 = vpop.f32.mrf.mxu0
  %7158 = vdwg.mxu0
  %7159 = vmatprep.subr.mxu0 0.0
  %7160 = vmatpush1.msra.mxu0 0.0
  %7161 = vmatprep.subr.mxu0 0.0
  %7162 = vmatpush1.msra.mxu0 0.0
  %7163 = vmatprep.subr.mxu0 0.0
  %7164 = vmatpush1.msra.mxu0 0.0
  %7165 = vmatprep.subr.mxu0 0.0
  %7166 = vmatpush1.msra.mxu0 0.0
  %7167 = vmatprep.subr.mxu0 0.0
  %7168 = vmatpush1.msra.mxu0 0.0
  %7169 = vmatprep.subr.mxu0 0.0
  %7170 = vmatpush1.msra.mxu0 0.0
  %7171 = vmatprep.subr.mxu0 0.0
  %7172 = vmatpush1.msra.mxu0 0.0
  %7173 = vmatprep.subr.mxu0 0.0
  %7174 = vmatpush1.msra.mxu0 0.0
  %7175 = vmatprep.subr.mxu0 0.0
  %7176 = vmatpush1.msra.mxu0 0.0
  %7177 = vmatprep.subr.mxu0 0.0
  %7178 = vmatpush1.msra.mxu0 0.0
  %7179 = vmatprep.subr.mxu0 0.0
  %7180 = vmatpush1.msra.mxu0 0.0
  %7181 = vmatprep.subr.mxu0 0.0
  %7182 = vmatpush1.msra.mxu0 0.0
  %7183 = vmatprep.subr.mxu0 0.0
  %7184 = vmatpush1.msra.mxu0 0.0
  %7185 = vmatprep.subr.mxu0 0.0
  %7186 = vmatpush1.msra.mxu0 0.0
  %7187 = vmatprep.subr.mxu0 0.0
  %7188 = vmatpush1.msra.mxu0 %v7051
  %7189 = vmatprep.subr.mxu0 0.0
  %7190 = vmatpush1.msra.mxu0 %v7050
  %7191 = vmatprep.subr.mxu0 0.0
  %7192 = vmatpush2.msra.mxu0 0.0
  %7193 = vmatprep.subr.mxu0 0.0
  %7194 = vmatpush2.msra.mxu0 0.0
  %7195 = vmatprep.subr.mxu0 0.0
  %7196 = vmatpush2.msra.mxu0 0.0
  %7197 = vmatprep.subr.mxu0 0.0
  %7198 = vmatpush2.msra.mxu0 0.0
  %7199 = vmatprep.subr.mxu0 0.0
  %7200 = vmatpush2.msra.mxu0 0.0
  %7201 = vmatprep.subr.mxu0 0.0
  %7202 = vmatpush2.msra.mxu0 0.0
  %7203 = vmatprep.subr.mxu0 0.0
  %7204 = vmatpush2.msra.mxu0 0.0
  %7205 = vmatprep.subr.mxu0 0.0
  %7206 = vmatpush2.msra.mxu0 0.0
  %7207 = vmatprep.subr.mxu0 0.0
  %7208 = vmatpush2.msra.mxu0 0.0
  %7209 = vmatprep.subr.mxu0 0.0
  %7210 = vmatpush2.msra.mxu0 0.0
  %7211 = vmatprep.subr.mxu0 0.0
  %7212 = vmatpush2.msra.mxu0 0.0
  %7213 = vmatprep.subr.mxu0 0.0
  %7214 = vmatpush2.msra.mxu0 0.0
  %7215 = vmatprep.subr.mxu0 0.0
  %7216 = vmatpush2.msra.mxu0 0.0
  %7217 = vmatprep.subr.mxu0 0.0
  %7218 = vmatpush2.msra.mxu0 0.0
  %7219 = vmatprep.subr.mxu0 0.0
  %7220 = vmatpush2.msra.mxu0 0.0
  %7221 = vmatprep.subr.mxu0 0.0
  %7222 = vmatpush2.msra.mxu0 0.0
  %7223 = vmatprep.mubr.f32.mxu0 0.0
  %7224 = vmatmul.mubr.f32.gmra.mxu0 %v5429
  %v7225 = vpop.f32.mrf.mxu0
  %v7226 = vadd.f32 %v7121, %v7225
  %v7227 = vpop.f32.mrf.mxu0
  %7228 = vmatprep.mubr.f32.mxu0 0.0
  %7229 = vmatmul.mubr.f32.gmra.mxu0 %v5606
  %v7230 = vpop.f32.mrf.mxu0
  %v7231 = vadd.f32 %v7126, %v7230
  %v7232 = vpop.f32.mrf.mxu0
  %7233 = vmatprep.mubr.f32.mxu0 0.0
  %7234 = vmatmul.mubr.f32.gmra.mxu0 %v5783
  %v7235 = vpop.f32.mrf.mxu0
  %v7236 = vadd.f32 %v7131, %v7235
  %v7237 = vpop.f32.mrf.mxu0
  %7238 = vmatprep.mubr.f32.mxu0 0.0
  %7239 = vmatmul.mubr.f32.gmra.mxu0 %v5960
  %v7240 = vpop.f32.mrf.mxu0
  %v7241 = vadd.f32 %v7136, %v7240
  %v7242 = vpop.f32.mrf.mxu0
  %7243 = vmatprep.mubr.f32.mxu0 0.0
  %7244 = vmatmul.mubr.f32.gmra.mxu0 %v6135
  %v7245 = vpop.f32.mrf.mxu0
  %v7246 = vadd.f32 %v7141, %v7245
  %v7247 = vpop.f32.mrf.mxu0
  %7248 = vmatprep.mubr.f32.mxu0 0.0
  %7249 = vmatmul.mubr.f32.gmra.mxu0 %v6310
  %v7250 = vpop.f32.mrf.mxu0
  %v7251 = vadd.f32 %v7146, %v7250
  %v7252 = vpop.f32.mrf.mxu0
  %7253 = vmatprep.mubr.f32.mxu0 0.0
  %7254 = vmatmul.mubr.f32.gmra.mxu0 %v6485
  %v7255 = vpop.f32.mrf.mxu0
  %v7256 = vadd.f32 %v7151, %v7255
  %v7257 = vpop.f32.mrf.mxu0
  %7258 = vmatprep.mubr.f32.mxu0 0.0
  %7259 = vmatmul.mubr.f32.gmra.mxu0 %v6699
  %v7260 = vpop.f32.mrf.mxu0
  %v7261 = vadd.f32 %v7156, %v7260
  %v7262 = vpop.f32.mrf.mxu0
  %7263 = vdwg.mxu0
  %v7264 = vld [vmem:[%s18] sm:$0x1]
  %v7266 = vlaneseq
  %v7267 = vshrl.u32 %v7266, 7
  %v7268 = vsub.s32 0, %v7267
  %v7269 = vrot.slane %v7264, %v7268
  %v7271 = vadd.f32 %v7226, %v7269
  %v7272 = vadd.f32 %v7231, %v7269
  %v7273 = vadd.f32 %v7236, %v7269
  %v7274 = vadd.f32 %v7241, %v7269
  %v7275 = vadd.f32 %v7246, %v7269
  %v7276 = vadd.f32 %v7251, %v7269
  %v7277 = vadd.f32 %v7256, %v7269
  %v7278 = vadd.f32 %v7261, %v7269
  %vm7279 = vcmask 261120
  %v7281 = vsel %vm7279, %v6813, 0
  %v7284 = vsel %vm7279, %v6814, 0
  %v7287 = vsel %vm7279, %v6815, 0
  %v7290 = vsel %vm7279, %v6816, 0
  %v7293 = vsel %vm7279, %v6817, 0
  %v7296 = vsel %vm7279, %v6818, 0
  %v7299 = vsel %vm7279, %v6819, 0
  %v7302 = vsel %vm7279, %v6820, 0
  %v7305 = vsel %vm7279, %v7042, 0
  %v7308 = vsel %vm7279, %v7043, 0
  %v7311 = vsel %vm7279, %v7044, 0
  %v7314 = vsel %vm7279, %v7045, 0
  %v7317 = vsel %vm7279, %v7046, 0
  %v7320 = vsel %vm7279, %v7047, 0
  %v7323 = vsel %vm7279, %v7048, 0
  %v7326 = vsel %vm7279, %v7049, 0
  %7328 = vmatprep.subr.mxu0 0.0
  %7329 = vmatpush1.xpose.msra.mxu0 0.0
  %7330 = vmatprep.subr.mxu0 0.0
  %7331 = vmatpush1.xpose.msra.mxu0 0.0
  %7332 = vmatprep.subr.mxu0 0.0
  %7333 = vmatpush1.xpose.msra.mxu0 0.0
  %7334 = vmatprep.subr.mxu0 0.0
  %7335 = vmatpush1.xpose.msra.mxu0 0.0
  %7336 = vmatprep.subr.mxu0 0.0
  %7337 = vmatpush1.xpose.msra.mxu0 0.0
  %7338 = vmatprep.subr.mxu0 0.0
  %7339 = vmatpush1.xpose.msra.mxu0 0.0
  %7340 = vmatprep.subr.mxu0 0.0
  %7341 = vmatpush1.xpose.msra.mxu0 0.0
  %7342 = vmatprep.subr.mxu0 0.0
  %7343 = vmatpush1.xpose.msra.mxu0 0.0
  %7344 = vmatprep.subr.mxu0 0.0
  %7345 = vmatpush1.xpose.msra.mxu0 %v7326
  %7346 = vmatprep.subr.mxu0 0.0
  %7347 = vmatpush1.xpose.msra.mxu0 %v7323
  %7348 = vmatprep.subr.mxu0 0.0
  %7349 = vmatpush1.xpose.msra.mxu0 %v7320
  %7350 = vmatprep.subr.mxu0 0.0
  %7351 = vmatpush1.xpose.msra.mxu0 %v7317
  %7352 = vmatprep.subr.mxu0 0.0
  %7353 = vmatpush1.xpose.msra.mxu0 %v7314
  %7354 = vmatprep.subr.mxu0 0.0
  %7355 = vmatpush1.xpose.msra.mxu0 %v7311
  %7356 = vmatprep.subr.mxu0 0.0
  %7357 = vmatpush1.xpose.msra.mxu0 %v7308
  %7358 = vmatprep.subr.mxu0 0.0
  %7359 = vmatpush1.xpose.msra.mxu0 %v7305
  %7360 = vmatprep.subr.mxu0 0.0
  %7361 = vmatpush2.xpose.msra.mxu0 0.0
  %7362 = vmatprep.subr.mxu0 0.0
  %7363 = vmatpush2.xpose.msra.mxu0 0.0
  %7364 = vmatprep.subr.mxu0 0.0
  %7365 = vmatpush2.xpose.msra.mxu0 0.0
  %7366 = vmatprep.subr.mxu0 0.0
  %7367 = vmatpush2.xpose.msra.mxu0 0.0
  %7368 = vmatprep.subr.mxu0 0.0
  %7369 = vmatpush2.xpose.msra.mxu0 0.0
  %7370 = vmatprep.subr.mxu0 0.0
  %7371 = vmatpush2.xpose.msra.mxu0 0.0
  %7372 = vmatprep.subr.mxu0 0.0
  %7373 = vmatpush2.xpose.msra.mxu0 0.0
  %7374 = vmatprep.subr.mxu0 0.0
  %7375 = vmatpush2.xpose.msra.mxu0 0.0
  %7376 = vmatprep.subr.mxu0 0.0
  %7377 = vmatpush2.xpose.msra.mxu0 0.0
  %7378 = vmatprep.subr.mxu0 0.0
  %7379 = vmatpush2.xpose.msra.mxu0 0.0
  %7380 = vmatprep.subr.mxu0 0.0
  %7381 = vmatpush2.xpose.msra.mxu0 0.0
  %7382 = vmatprep.subr.mxu0 0.0
  %7383 = vmatpush2.xpose.msra.mxu0 0.0
  %7384 = vmatprep.subr.mxu0 0.0
  %7385 = vmatpush2.xpose.msra.mxu0 0.0
  %7386 = vmatprep.subr.mxu0 0.0
  %7387 = vmatpush2.xpose.msra.mxu0 0.0
  %7388 = vmatprep.subr.mxu0 0.0
  %7389 = vmatpush2.xpose.msra.mxu0 0.0
  %7390 = vmatprep.subr.mxu0 0.0
  %7391 = vmatpush2.xpose.msra.mxu0 0.0
  %7392 = vmatprep.mubr.f32.mxu0 0.0
  %7393 = vmatmul.mubr.f32.gmra.mxu0 %v7281
  %v7394 = vpop.f32.mrf.mxu0
  %v7395 = vadd.f32 0.0, %v7394
  %v7396 = vpop.f32.mrf.mxu0
  %7397 = vmatprep.mubr.f32.mxu0 0.0
  %7398 = vmatmul.mubr.f32.gmra.mxu0 %v7284
  %v7399 = vpop.f32.mrf.mxu0
  %v7400 = vadd.f32 0.0, %v7399
  %v7401 = vpop.f32.mrf.mxu0
  %7402 = vmatprep.mubr.f32.mxu0 0.0
  %7403 = vmatmul.mubr.f32.gmra.mxu0 %v7287
  %v7404 = vpop.f32.mrf.mxu0
  %v7405 = vadd.f32 0.0, %v7404
  %v7406 = vpop.f32.mrf.mxu0
  %7407 = vmatprep.mubr.f32.mxu0 0.0
  %7408 = vmatmul.mubr.f32.gmra.mxu0 %v7290
  %v7409 = vpop.f32.mrf.mxu0
  %v7410 = vadd.f32 0.0, %v7409
  %v7411 = vpop.f32.mrf.mxu0
  %7412 = vmatprep.mubr.f32.mxu0 0.0
  %7413 = vmatmul.mubr.f32.gmra.mxu0 %v7293
  %v7414 = vpop.f32.mrf.mxu0
  %v7415 = vadd.f32 0.0, %v7414
  %v7416 = vpop.f32.mrf.mxu0
  %7417 = vmatprep.mubr.f32.mxu0 0.0
  %7418 = vmatmul.mubr.f32.gmra.mxu0 %v7296
  %v7419 = vpop.f32.mrf.mxu0
  %v7420 = vadd.f32 0.0, %v7419
  %v7421 = vpop.f32.mrf.mxu0
  %7422 = vmatprep.mubr.f32.mxu0 0.0
  %7423 = vmatmul.mubr.f32.gmra.mxu0 %v7299
  %v7424 = vpop.f32.mrf.mxu0
  %v7425 = vadd.f32 0.0, %v7424
  %v7426 = vpop.f32.mrf.mxu0
  %7427 = vmatprep.mubr.f32.mxu0 0.0
  %7428 = vmatmul.mubr.f32.gmra.mxu0 %v7302
  %v7429 = vpop.f32.mrf.mxu0
  %v7430 = vadd.f32 0.0, %v7429
  %v7431 = vpop.f32.mrf.mxu0
  %7432 = vdwg.mxu0
  %v7433 = vlaneseq
  %v7434 = vshrl.u32 %v7433, 7
  %v7435 = vadd.s32 %v7434, 8
  %v7436 = vadd.s32 %v7434, 16
  %v7437 = vadd.s32 %v7434, 24
  %v7438 = vadd.s32 %v7434, 32
  %v7439 = vadd.s32 %v7434, 40
  %v7440 = vadd.s32 %v7434, 48
  %v7441 = vadd.s32 %v7434, 56
  %vm7442 = vcmp.lt.s32.totalorder %v7434, 0
  %v7443 = vsub.s32 0, %v7434
  %v7444 = vsel %vm7442, %v7443, %v7434
  %v7445 = vshrl.u32 %v7444, 3
  %v7446 = vand.u32 %v7444, 7
  %v7447 = vsub.s32 0, %v7446
  %v7448 = vsel %vm7442, %v7447, %v7446
  %vm7449 = vcmp.lt.s32.totalorder %v7435, 0
  %v7450 = vsub.s32 0, %v7435
  %v7451 = vsel %vm7449, %v7450, %v7435
  %v7452 = vshrl.u32 %v7451, 3
  %v7453 = vand.u32 %v7451, 7
  %v7454 = vsub.s32 0, %v7453
  %v7455 = vsel %vm7449, %v7454, %v7453
  %vm7456 = vcmp.lt.s32.totalorder %v7436, 0
  %v7457 = vsub.s32 0, %v7436
  %v7458 = vsel %vm7456, %v7457, %v7436
  %v7459 = vshrl.u32 %v7458, 3
  %v7460 = vand.u32 %v7458, 7
  %v7461 = vsub.s32 0, %v7460
  %v7462 = vsel %vm7456, %v7461, %v7460
  %vm7463 = vcmp.lt.s32.totalorder %v7437, 0
  %v7464 = vsub.s32 0, %v7437
  %v7465 = vsel %vm7463, %v7464, %v7437
  %v7466 = vshrl.u32 %v7465, 3
  %v7467 = vand.u32 %v7465, 7
  %v7468 = vsub.s32 0, %v7467
  %v7469 = vsel %vm7463, %v7468, %v7467
  %vm7470 = vcmp.lt.s32.totalorder %v7438, 0
  %v7471 = vsub.s32 0, %v7438
  %v7472 = vsel %vm7470, %v7471, %v7438
  %v7473 = vshrl.u32 %v7472, 3
  %v7474 = vand.u32 %v7472, 7
  %v7475 = vsub.s32 0, %v7474
  %v7476 = vsel %vm7470, %v7475, %v7474
  %vm7477 = vcmp.lt.s32.totalorder %v7439, 0
  %v7478 = vsub.s32 0, %v7439
  %v7479 = vsel %vm7477, %v7478, %v7439
  %v7480 = vshrl.u32 %v7479, 3
  %v7481 = vand.u32 %v7479, 7
  %v7482 = vsub.s32 0, %v7481
  %v7483 = vsel %vm7477, %v7482, %v7481
  %vm7484 = vcmp.lt.s32.totalorder %v7440, 0
  %v7485 = vsub.s32 0, %v7440
  %v7486 = vsel %vm7484, %v7485, %v7440
  %v7487 = vshrl.u32 %v7486, 3
  %v7488 = vand.u32 %v7486, 7
  %v7489 = vsub.s32 0, %v7488
  %v7490 = vsel %vm7484, %v7489, %v7488
  %vm7491 = vcmp.lt.s32.totalorder %v7441, 0
  %v7492 = vsub.s32 0, %v7441
  %v7493 = vsel %vm7491, %v7492, %v7441
  %v7494 = vshrl.u32 %v7493, 3
  %v7495 = vand.u32 %v7493, 7
  %v7496 = vsub.s32 0, %v7495
  %v7497 = vsel %vm7491, %v7496, %v7495
  %vm7498 = vcmp.ne.s32.totalorder %v7448, 0
  %vm7499 = vcmp.ne.s32.totalorder %v7455, 0
  %vm7500 = vcmp.ne.s32.totalorder %v7462, 0
  %vm7501 = vcmp.ne.s32.totalorder %v7469, 0
  %vm7502 = vcmp.ne.s32.totalorder %v7476, 0
  %vm7503 = vcmp.ne.s32.totalorder %v7483, 0
  %vm7504 = vcmp.ne.s32.totalorder %v7490, 0
  %vm7505 = vcmp.ne.s32.totalorder %v7497, 0
  %vm7506 = vcmp.lt.s32.totalorder %v7448, 0
  %vm7507 = vcmp.lt.s32.totalorder %v7455, 0
  %vm7508 = vcmp.lt.s32.totalorder %v7462, 0
  %vm7509 = vcmp.lt.s32.totalorder %v7469, 0
  %vm7510 = vcmp.lt.s32.totalorder %v7476, 0
  %vm7511 = vcmp.lt.s32.totalorder %v7483, 0
  %vm7512 = vcmp.lt.s32.totalorder %v7490, 0
  %vm7513 = vcmp.lt.s32.totalorder %v7497, 0
  %vm7514 = vmand %vm7506, %vm7498
  %vm7515 = vmand %vm7507, %vm7499
  %vm7516 = vmand %vm7508, %vm7500
  %vm7517 = vmand %vm7509, %vm7501
  %vm7518 = vmand %vm7510, %vm7502
  %vm7519 = vmand %vm7511, %vm7503
  %vm7520 = vmand %vm7512, %vm7504
  %vm7521 = vmand %vm7513, %vm7505
  %v7522 = vadd.s32 %v7448, 8
  %v7523 = vadd.s32 %v7455, 8
  %v7524 = vadd.s32 %v7462, 8
  %v7525 = vadd.s32 %v7469, 8
  %v7526 = vadd.s32 %v7476, 8
  %v7527 = vadd.s32 %v7483, 8
  %v7528 = vadd.s32 %v7490, 8
  %v7529 = vadd.s32 %v7497, 8
  %v7530 = vsel %vm7514, %v7522, %v7448
  %v7531 = vsel %vm7515, %v7523, %v7455
  %v7532 = vsel %vm7516, %v7524, %v7462
  %v7533 = vsel %vm7517, %v7525, %v7469
  %v7534 = vsel %vm7518, %v7526, %v7476
  %v7535 = vsel %vm7519, %v7527, %v7483
  %v7536 = vsel %vm7520, %v7528, %v7490
  %v7537 = vsel %vm7521, %v7529, %v7497
  %vm7538 = vcmp.lt.s32.totalorder %v231, 0
  %v7539 = vsub.s32 0, %v231
  %v7540 = vsel %vm7538, %v7539, %v231
  %v7541 = vshrl.u32 %v7540, 3
  %v7542 = vand.u32 %v7540, 7
  %v7543 = vsub.s32 0, %v7542
  %v7544 = vsel %vm7538, %v7543, %v7542
  %vm7545 = vcmp.ne.s32.totalorder %v7544, 0
  %vm7546 = vcmp.lt.s32.totalorder %v7544, 0
  %vm7547 = vmand %vm7546, %vm7545
  %v7548 = vadd.s32 %v7544, 8
  %v7549 = vsel %vm7547, %v7548, %v7544
  %vm7550 = vcmp.eq.s32.totalorder %v7530, %v7549
  %vm7551 = vcmp.eq.s32.totalorder %v7531, %v7549
  %vm7552 = vcmp.eq.s32.totalorder %v7532, %v7549
  %vm7553 = vcmp.eq.s32.totalorder %v7533, %v7549
  %vm7554 = vcmp.eq.s32.totalorder %v7534, %v7549
  %vm7555 = vcmp.eq.s32.totalorder %v7535, %v7549
  %vm7556 = vcmp.eq.s32.totalorder %v7536, %v7549
  %vm7557 = vcmp.eq.s32.totalorder %v7537, %v7549
  %v7558 = vsel %vm7550, %v7395, -1e+30
  %v7559 = vsel %vm7551, %v7400, -1e+30
  %v7560 = vsel %vm7552, %v7405, -1e+30
  %v7561 = vsel %vm7553, %v7410, -1e+30
  %v7562 = vsel %vm7554, %v7415, -1e+30
  %v7563 = vsel %vm7555, %v7420, -1e+30
  %v7564 = vsel %vm7556, %v7425, -1e+30
  %v7565 = vsel %vm7557, %v7430, -1e+30
  %vm7566 = vcmask 523264
  %v7567 = vsel %vm7566, %v7558, -inf
  %7568 = vmax.xlane.f32.xlu0 %v7567
  %v7569 = vpop.xlane.xlu0 %7568
  %v7570 = vsel %vm7566, %v7559, -inf
  %7571 = vmax.xlane.f32.xlu0 %v7570
  %v7572 = vpop.xlane.xlu0 %7571
  %v7573 = vsel %vm7566, %v7560, -inf
  %7574 = vmax.xlane.f32.xlu0 %v7573
  %v7575 = vpop.xlane.xlu0 %7574
  %v7576 = vsel %vm7566, %v7561, -inf
  %7577 = vmax.xlane.f32.xlu0 %v7576
  %v7578 = vpop.xlane.xlu0 %7577
  %v7579 = vsel %vm7566, %v7562, -inf
  %7580 = vmax.xlane.f32.xlu0 %v7579
  %v7581 = vpop.xlane.xlu0 %7580
  %v7582 = vsel %vm7566, %v7563, -inf
  %7583 = vmax.xlane.f32.xlu0 %v7582
  %v7584 = vpop.xlane.xlu0 %7583
  %v7585 = vsel %vm7566, %v7564, -inf
  %7586 = vmax.xlane.f32.xlu0 %v7585
  %v7587 = vpop.xlane.xlu0 %7586
  %v7588 = vsel %vm7566, %v7565, -inf
  %7589 = vmax.xlane.f32.xlu0 %v7588
  %v7590 = vpop.xlane.xlu0 %7589
  %v7591 = vsub.f32 %v7558, %v7569
  %v7592 = vsub.f32 %v7559, %v7572
  %v7593 = vsub.f32 %v7560, %v7575
  %v7594 = vsub.f32 %v7561, %v7578
  %v7595 = vsub.f32 %v7562, %v7581
  %v7596 = vsub.f32 %v7563, %v7584
  %v7597 = vsub.f32 %v7564, %v7587
  %v7598 = vsub.f32 %v7565, %v7590
  %v7599 = vmul.f32 %v7591, 1.442695
  %v7600 = vpow.pop %v7599
  %v7601 = vmul.f32 %v7592, 1.442695
  %v7602 = vpow.pop %v7601
  %v7603 = vmul.f32 %v7593, 1.442695
  %v7604 = vpow.pop %v7603
  %v7605 = vmul.f32 %v7594, 1.442695
  %v7606 = vpow.pop %v7605
  %v7607 = vmul.f32 %v7595, 1.442695
  %v7608 = vpow.pop %v7607
  %v7609 = vmul.f32 %v7596, 1.442695
  %v7610 = vpow.pop %v7609
  %v7611 = vmul.f32 %v7597, 1.442695
  %v7612 = vpow.pop %v7611
  %v7613 = vmul.f32 %v7598, 1.442695
  %v7614 = vpow.pop %v7613
  %v7615 = vsel %vm7566, %v7600, 0.0
  %7616 = vadd.xlane.f32.xlu0 %v7615
  %v7617 = vpop.xlane.xlu0 %7616
  %v7618 = vsel %vm7566, %v7602, 0.0
  %7619 = vadd.xlane.f32.xlu0 %v7618
  %v7620 = vpop.xlane.xlu0 %7619
  %v7621 = vsel %vm7566, %v7604, 0.0
  %7622 = vadd.xlane.f32.xlu0 %v7621
  %v7623 = vpop.xlane.xlu0 %7622
  %v7624 = vsel %vm7566, %v7606, 0.0
  %7625 = vadd.xlane.f32.xlu0 %v7624
  %v7626 = vpop.xlane.xlu0 %7625
  %v7627 = vsel %vm7566, %v7608, 0.0
  %7628 = vadd.xlane.f32.xlu0 %v7627
  %v7629 = vpop.xlane.xlu0 %7628
  %v7630 = vsel %vm7566, %v7610, 0.0
  %7631 = vadd.xlane.f32.xlu0 %v7630
  %v7632 = vpop.xlane.xlu0 %7631
  %v7633 = vsel %vm7566, %v7612, 0.0
  %7634 = vadd.xlane.f32.xlu0 %v7633
  %v7635 = vpop.xlane.xlu0 %7634
  %v7636 = vsel %vm7566, %v7614, 0.0
  %7637 = vadd.xlane.f32.xlu0 %v7636
  %v7638 = vpop.xlane.xlu0 %7637
  %v7639 = vrcp.pop %v7617
  %v7640 = vrcp.pop %v7620
  %v7641 = vrcp.pop %v7623
  %v7642 = vrcp.pop %v7626
  %v7643 = vrcp.pop %v7629
  %v7644 = vrcp.pop %v7632
  %v7645 = vrcp.pop %v7635
  %v7646 = vrcp.pop %v7638
  %v7647 = vmul.f32 %v7600, %v7639
  %v7648 = vmul.f32 %v7602, %v7640
  %v7649 = vmul.f32 %v7604, %v7641
  %v7650 = vmul.f32 %v7606, %v7642
  %v7651 = vmul.f32 %v7608, %v7643
  %v7652 = vmul.f32 %v7610, %v7644
  %v7653 = vmul.f32 %v7612, %v7645
  %v7654 = vmul.f32 %v7614, %v7646
  %v7656 = vsel %vm7566, %v7647, 0
  %v7659 = vsel %vm7566, %v7648, 0
  %v7662 = vsel %vm7566, %v7649, 0
  %v7665 = vsel %vm7566, %v7650, 0
  %v7668 = vsel %vm7566, %v7651, 0
  %v7671 = vsel %vm7566, %v7652, 0
  %v7674 = vsel %vm7566, %v7653, 0
  %v7677 = vsel %vm7566, %v7654, 0
  %7679 = vmatprep.subr.mxu0 0.0
  %7680 = vmatpush1.msra.mxu0 0.0
  %7681 = vmatprep.subr.mxu0 0.0
  %7682 = vmatpush1.msra.mxu0 0.0
  %7683 = vmatprep.subr.mxu0 0.0
  %7684 = vmatpush1.msra.mxu0 0.0
  %7685 = vmatprep.subr.mxu0 0.0
  %7686 = vmatpush1.msra.mxu0 0.0
  %7687 = vmatprep.subr.mxu0 0.0
  %7688 = vmatpush1.msra.mxu0 0.0
  %7689 = vmatprep.subr.mxu0 0.0
  %7690 = vmatpush1.msra.mxu0 0.0
  %7691 = vmatprep.subr.mxu0 0.0
  %7692 = vmatpush1.msra.mxu0 0.0
  %7693 = vmatprep.subr.mxu0 0.0
  %7694 = vmatpush1.msra.mxu0 0.0
  %7695 = vmatprep.subr.mxu0 0.0
  %7696 = vmatpush1.msra.mxu0 %v7278
  %7697 = vmatprep.subr.mxu0 0.0
  %7698 = vmatpush1.msra.mxu0 %v7277
  %7699 = vmatprep.subr.mxu0 0.0
  %7700 = vmatpush1.msra.mxu0 %v7276
  %7701 = vmatprep.subr.mxu0 0.0
  %7702 = vmatpush1.msra.mxu0 %v7275
  %7703 = vmatprep.subr.mxu0 0.0
  %7704 = vmatpush1.msra.mxu0 %v7274
  %7705 = vmatprep.subr.mxu0 0.0
  %7706 = vmatpush1.msra.mxu0 %v7273
  %7707 = vmatprep.subr.mxu0 0.0
  %7708 = vmatpush1.msra.mxu0 %v7272
  %7709 = vmatprep.subr.mxu0 0.0
  %7710 = vmatpush1.msra.mxu0 %v7271
  %7711 = vmatprep.subr.mxu0 0.0
  %7712 = vmatpush2.msra.mxu0 0.0
  %7713 = vmatprep.subr.mxu0 0.0
  %7714 = vmatpush2.msra.mxu0 0.0
  %7715 = vmatprep.subr.mxu0 0.0
  %7716 = vmatpush2.msra.mxu0 0.0
  %7717 = vmatprep.subr.mxu0 0.0
  %7718 = vmatpush2.msra.mxu0 0.0
  %7719 = vmatprep.subr.mxu0 0.0
  %7720 = vmatpush2.msra.mxu0 0.0
  %7721 = vmatprep.subr.mxu0 0.0
  %7722 = vmatpush2.msra.mxu0 0.0
  %7723 = vmatprep.subr.mxu0 0.0
  %7724 = vmatpush2.msra.mxu0 0.0
  %7725 = vmatprep.subr.mxu0 0.0
  %7726 = vmatpush2.msra.mxu0 0.0
  %7727 = vmatprep.subr.mxu0 0.0
  %7728 = vmatpush2.msra.mxu0 0.0
  %7729 = vmatprep.subr.mxu0 0.0
  %7730 = vmatpush2.msra.mxu0 0.0
  %7731 = vmatprep.subr.mxu0 0.0
  %7732 = vmatpush2.msra.mxu0 0.0
  %7733 = vmatprep.subr.mxu0 0.0
  %7734 = vmatpush2.msra.mxu0 0.0
  %7735 = vmatprep.subr.mxu0 0.0
  %7736 = vmatpush2.msra.mxu0 0.0
  %7737 = vmatprep.subr.mxu0 0.0
  %7738 = vmatpush2.msra.mxu0 0.0
  %7739 = vmatprep.subr.mxu0 0.0
  %7740 = vmatpush2.msra.mxu0 0.0
  %7741 = vmatprep.subr.mxu0 0.0
  %7742 = vmatpush2.msra.mxu0 0.0
  %7743 = vmatprep.mubr.f32.mxu0 0.0
  %7744 = vmatmul.mubr.f32.gmra.mxu0 %v7656
  %v7745 = vpop.f32.mrf.mxu0
  %v7746 = vadd.f32 0.0, %v7745
  %v7747 = vpop.f32.mrf.mxu0
  %7748 = vmatprep.mubr.f32.mxu0 0.0
  %7749 = vmatmul.mubr.f32.gmra.mxu0 %v7659
  %v7750 = vpop.f32.mrf.mxu0
  %v7751 = vadd.f32 0.0, %v7750
  %v7752 = vpop.f32.mrf.mxu0
  %7753 = vmatprep.mubr.f32.mxu0 0.0
  %7754 = vmatmul.mubr.f32.gmra.mxu0 %v7662
  %v7755 = vpop.f32.mrf.mxu0
  %v7756 = vadd.f32 0.0, %v7755
  %v7757 = vpop.f32.mrf.mxu0
  %7758 = vmatprep.mubr.f32.mxu0 0.0
  %7759 = vmatmul.mubr.f32.gmra.mxu0 %v7665
  %v7760 = vpop.f32.mrf.mxu0
  %v7761 = vadd.f32 0.0, %v7760
  %v7762 = vpop.f32.mrf.mxu0
  %7763 = vmatprep.mubr.f32.mxu0 0.0
  %7764 = vmatmul.mubr.f32.gmra.mxu0 %v7668
  %v7765 = vpop.f32.mrf.mxu0
  %v7766 = vadd.f32 0.0, %v7765
  %v7767 = vpop.f32.mrf.mxu0
  %7768 = vmatprep.mubr.f32.mxu0 0.0
  %7769 = vmatmul.mubr.f32.gmra.mxu0 %v7671
  %v7770 = vpop.f32.mrf.mxu0
  %v7771 = vadd.f32 0.0, %v7770
  %v7772 = vpop.f32.mrf.mxu0
  %7773 = vmatprep.mubr.f32.mxu0 0.0
  %7774 = vmatmul.mubr.f32.gmra.mxu0 %v7674
  %v7775 = vpop.f32.mrf.mxu0
  %v7776 = vadd.f32 0.0, %v7775
  %v7777 = vpop.f32.mrf.mxu0
  %7778 = vmatprep.mubr.f32.mxu0 0.0
  %7779 = vmatmul.mubr.f32.gmra.mxu0 %v7677
  %v7780 = vpop.f32.mrf.mxu0
  %v7781 = vadd.f32 0.0, %v7780
  %v7782 = vpop.f32.mrf.mxu0
  %7783 = vdwg.mxu0
  %v7784 = vld [vmem:[%s19] sm:$0x1]
  %v7785 = vld [vmem:[#allocation6] sm:$0x1]
  %7787 = vset.pattern.permute.xlu0 0
  %7788 = vperm.xlu0 %7787, %v7785
  %v7789 = vpop.permute.xlu0 %7788
  %v7791 = vlaneseq
  %v7792 = vshrl.u32 %v7791, 7
  %v7793 = vsub.s32 0, %v7792
  %v7794 = vrot.slane %v7789, %v7793
  %v7796 = vsel %vm7279, %v7784, 0
  %v7799 = vsel %vm7279, %v7746, 0
  %v7802 = vsel %vm7279, %v7751, 0
  %v7805 = vsel %vm7279, %v7756, 0
  %v7808 = vsel %vm7279, %v7761, 0
  %v7811 = vsel %vm7279, %v7766, 0
  %v7814 = vsel %vm7279, %v7771, 0
  %v7817 = vsel %vm7279, %v7776, 0
  %v7820 = vsel %vm7279, %v7781, 0
  %7822 = vmatprep.subr.mxu0 0.0
  %7823 = vmatpush1.xpose.msra.mxu0 0.0
  %7824 = vmatprep.subr.mxu0 0.0
  %7825 = vmatpush1.xpose.msra.mxu0 0.0
  %7826 = vmatprep.subr.mxu0 0.0
  %7827 = vmatpush1.xpose.msra.mxu0 0.0
  %7828 = vmatprep.subr.mxu0 0.0
  %7829 = vmatpush1.xpose.msra.mxu0 0.0
  %7830 = vmatprep.subr.mxu0 0.0
  %7831 = vmatpush1.xpose.msra.mxu0 0.0
  %7832 = vmatprep.subr.mxu0 0.0
  %7833 = vmatpush1.xpose.msra.mxu0 0.0
  %7834 = vmatprep.subr.mxu0 0.0
  %7835 = vmatpush1.xpose.msra.mxu0 0.0
  %7836 = vmatprep.subr.mxu0 0.0
  %7837 = vmatpush1.xpose.msra.mxu0 0.0
  %7838 = vmatprep.subr.mxu0 0.0
  %7839 = vmatpush1.xpose.msra.mxu0 %v7820
  %7840 = vmatprep.subr.mxu0 0.0
  %7841 = vmatpush1.xpose.msra.mxu0 %v7817
  %7842 = vmatprep.subr.mxu0 0.0
  %7843 = vmatpush1.xpose.msra.mxu0 %v7814
  %7844 = vmatprep.subr.mxu0 0.0
  %7845 = vmatpush1.xpose.msra.mxu0 %v7811
  %7846 = vmatprep.subr.mxu0 0.0
  %7847 = vmatpush1.xpose.msra.mxu0 %v7808
  %7848 = vmatprep.subr.mxu0 0.0
  %7849 = vmatpush1.xpose.msra.mxu0 %v7805
  %7850 = vmatprep.subr.mxu0 0.0
  %7851 = vmatpush1.xpose.msra.mxu0 %v7802
  %7852 = vmatprep.subr.mxu0 0.0
  %7853 = vmatpush1.xpose.msra.mxu0 %v7799
  %7854 = vmatprep.subr.mxu0 0.0
  %7855 = vmatpush2.xpose.msra.mxu0 0.0
  %7856 = vmatprep.subr.mxu0 0.0
  %7857 = vmatpush2.xpose.msra.mxu0 0.0
  %7858 = vmatprep.subr.mxu0 0.0
  %7859 = vmatpush2.xpose.msra.mxu0 0.0
  %7860 = vmatprep.subr.mxu0 0.0
  %7861 = vmatpush2.xpose.msra.mxu0 0.0
  %7862 = vmatprep.subr.mxu0 0.0
  %7863 = vmatpush2.xpose.msra.mxu0 0.0
  %7864 = vmatprep.subr.mxu0 0.0
  %7865 = vmatpush2.xpose.msra.mxu0 0.0
  %7866 = vmatprep.subr.mxu0 0.0
  %7867 = vmatpush2.xpose.msra.mxu0 0.0
  %7868 = vmatprep.subr.mxu0 0.0
  %7869 = vmatpush2.xpose.msra.mxu0 0.0
  %7870 = vmatprep.subr.mxu0 0.0
  %7871 = vmatpush2.xpose.msra.mxu0 0.0
  %7872 = vmatprep.subr.mxu0 0.0
  %7873 = vmatpush2.xpose.msra.mxu0 0.0
  %7874 = vmatprep.subr.mxu0 0.0
  %7875 = vmatpush2.xpose.msra.mxu0 0.0
  %7876 = vmatprep.subr.mxu0 0.0
  %7877 = vmatpush2.xpose.msra.mxu0 0.0
  %7878 = vmatprep.subr.mxu0 0.0
  %7879 = vmatpush2.xpose.msra.mxu0 0.0
  %7880 = vmatprep.subr.mxu0 0.0
  %7881 = vmatpush2.xpose.msra.mxu0 0.0
  %7882 = vmatprep.subr.mxu0 0.0
  %7883 = vmatpush2.xpose.msra.mxu0 0.0
  %7884 = vmatprep.subr.mxu0 0.0
  %7885 = vmatpush2.xpose.msra.mxu0 0.0
  %7886 = vmatprep.mubr.f32.mxu0 0.0
  %7887 = vmatmul.mubr.f32.gmra.mxu0 %v7796
  %v7888 = vpop.f32.mrf.mxu0
  %v7889 = vadd.f32 %v7794, %v7888
  %v7890 = vpop.f32.mrf.mxu0
  %7891 = vdwg.mxu0
  %vm7892 = vcmask 516096
  %7893 = vst.msk [vmem:[%s21] sm:$0x1] %vm7892, %v7889
  // Predicated region
  $region86: #{forward.1} parent=0 // pred_check
    _
  $region87: #{forward.1} parent=0 // pred_check_branch
    %7895 = sbr.rel (0) target = $region89
  $region88: #{forward.1} parent=0 // pred_region
    _
  $region89: #{forward.1} parent=0 // pred_fallthru
    _
  // Predicated region
  $region90: #{forward.1} parent=0 // pred_check
    _
  $region91: #{forward.1} parent=0 // pred_check_branch
    %7897 = sbr.rel (0) target = $region93
  $region92: #{forward.1} parent=0 // pred_region
    _
  $region93: #{forward.1} parent=0 // pred_fallthru
    _

</llo_original>
